<compile_context>
chip_gen: v7x
topology: tpu7x:2x2x1
jax: 0.10.0
libtpu: 0.0.40
codegen_flags: <defaults>
</compile_context>

<pallas_src>
import functools

import jax
import jax.numpy as jnp
from jax.experimental import pallas as pl
from jax.experimental.pallas import tpu as pltpu

EPS = 1e-5
VMEM_LIMIT = 32 * 1024 * 1024   # explicit: v5e scoped-VMEM default is only 16 MiB


# ----------------------------- Pallas kernels ------------------------------

def _conv_bn_kernel(p_ref, w_ref, b_ref, *rest, relu, has_residual):
    """out = [relu]( p @ w + b [+ residual] ).

    p_ref: (TM, K) bf16 im2col patches, w_ref: (K, N) bf16 (BN scale folded in),
    b_ref: (1, N) f32 folded BN bias, optional r_ref: (TM, N) bf16 residual,
    o_ref: (TM, N) bf16.
    """
    if has_residual:
        r_ref, o_ref = rest
    else:
        (o_ref,) = rest
    acc = jnp.dot(p_ref[...], w_ref[...], preferred_element_type=jnp.float32)
    acc = acc + b_ref[...]
    if has_residual:
        acc = acc + r_ref[...].astype(jnp.float32)
    if relu:
        acc = jnp.maximum(acc, 0.0)
    o_ref[...] = acc.astype(o_ref.dtype)


def _head_kernel(x_ref, w_ref, b_ref, o_ref):
    """AvgPool2d(8) on the 8x8 final map (== global mean) + Linear, fused."""
    pooled = jnp.mean(x_ref[...].astype(jnp.float32), axis=1)           # (B, C)
    o_ref[...] = jnp.dot(pooled.astype(w_ref.dtype), w_ref[...],
                         preferred_element_type=jnp.float32) + b_ref[...]


# ----------------------------- Pallas wrappers ------------------------------

def _choose_tm(M):
    """~M/2 rows per tile (>= 2 grid steps for v7x megacore), capped at 1024."""
    tm = max(8, -(-M // 2))
    tm = min(1024, ((tm + 7) // 8) * 8)
    return tm


def fused_conv_bn(patches, w_mat, bias, residual, relu):
    """patches: (M, K) bf16, w_mat: (K, N) bf16, bias: (N,) f32,
    residual: (M, N) bf16 or None.  Returns (M, N) bf16."""
    M, K = patches.shape
    N = w_mat.shape[1]
    tm = _choose_tm(M)
    n_tiles = (M + tm - 1) // tm
    Mp = n_tiles * tm
    if Mp != M:
        patches = jnp.pad(patches, ((0, Mp - M), (0, 0)))
        if residual is not None:
            residual = jnp.pad(residual, ((0, Mp - M), (0, 0)))

    has_residual = residual is not None
    in_specs = [
        pl.BlockSpec((tm, K), lambda i: (i, 0)),    # patches tile
        pl.BlockSpec((K, N), lambda i: (0, 0)),     # weights (resident)
        pl.BlockSpec((1, N), lambda i: (0, 0)),     # folded BN bias
    ]
    args = [patches, w_mat, bias.reshape(1, N)]
    if has_residual:
        in_specs.append(pl.BlockSpec((tm, N), lambda i: (i, 0)))
        args.append(residual)

    out = pl.pallas_call(
        functools.partial(_conv_bn_kernel, relu=relu, has_residual=has_residual),
        out_shape=jax.ShapeDtypeStruct((Mp, N), jnp.bfloat16),
        grid=(n_tiles,),
        in_specs=in_specs,
        out_specs=pl.BlockSpec((tm, N), lambda i: (i, 0)),
        compiler_params=pltpu.CompilerParams(
            dimension_semantics=("parallel",),
            vmem_limit_bytes=VMEM_LIMIT),
    )(*args)
    return out if Mp == M else out[:M]


def head(x_feat, w_pad, b_pad, num_classes):
    """x_feat: (B, H*W, C) bf16, w_pad: (C, NP) bf16, b_pad: (NP,) f32."""
    B, HW, C = x_feat.shape
    NP = w_pad.shape[1]
    out = pl.pallas_call(
        _head_kernel,
        out_shape=jax.ShapeDtypeStruct((B, NP), jnp.float32),
        grid=(1,),
        in_specs=[
            pl.BlockSpec((B, HW, C), lambda i: (0, 0, 0)),
            pl.BlockSpec((C, NP), lambda i: (0, 0)),
            pl.BlockSpec((1, NP), lambda i: (0, 0)),
        ],
        out_specs=pl.BlockSpec((B, NP), lambda i: (0, 0)),
        compiler_params=pltpu.CompilerParams(
            dimension_semantics=("arbitrary",),
            vmem_limit_bytes=VMEM_LIMIT),
    )(x_feat, w_pad, b_pad.reshape(1, NP))
    return out[:, :num_classes]


# ------------------------------- glue (JAX) ---------------------------------

def im2col(x, ksize, stride, padding):
    """x: (B, H, W, C) -> patches (B*Ho*Wo, ksize*ksize*C), feature order (kh, kw, cin)."""
    B, H, W, C = x.shape
    xp = jnp.pad(x, ((0, 0), (padding, padding), (padding, padding), (0, 0)))
    Ho = (H + 2 * padding - ksize) // stride + 1
    Wo = (W + 2 * padding - ksize) // stride + 1
    cols = []
    for kh in range(ksize):
        for kw in range(ksize):
            cols.append(xp[:, kh:kh + Ho * stride:stride,
                           kw:kw + Wo * stride:stride, :])
    patches = jnp.concatenate(cols, axis=-1)
    return patches.reshape(B * Ho * Wo, ksize * ksize * C), Ho, Wo


def conv_bn(x, layer, stride, relu, residual=None):
    """x: (B, H, W, Cin) bf16 -> (B, Ho, Wo, Cout) bf16; conv(no bias)+BN(+res)(+relu)."""
    ksize = layer['ksize']
    padding = 1 if ksize == 3 else 0
    B = x.shape[0]
    cout = layer['w_mat'].shape[1]
    patches, Ho, Wo = im2col(x, ksize, stride, padding)
    res = None if residual is None else residual.reshape(B * Ho * Wo, cout)
    out = fused_conv_bn(patches, layer['w_mat'], layer['bias'], res, relu)
    return out.reshape(B, Ho, Wo, cout)


# ------------------------- parameter initialization -------------------------

def init_conv_bn(key, ksize, cin, cout):
    # kaiming_normal_(mode='fan_out', nonlinearity='relu'): std = sqrt(2 / (cout*k*k))
    fan_out = cout * ksize * ksize
    std = (2.0 / fan_out) ** 0.5
    w = jax.random.normal(key, (ksize, ksize, cin, cout), jnp.float32) * std
    # BatchNorm (eval mode): gamma=1, beta=0, running_mean=0, running_var=1
    gamma = jnp.ones((cout,), jnp.float32)
    beta = jnp.zeros((cout,), jnp.float32)
    mean = jnp.zeros((cout,), jnp.float32)
    var = jnp.ones((cout,), jnp.float32)
    scale = gamma / jnp.sqrt(var + EPS)
    bias = beta - mean * scale
    # Fold BN scale into the weight matrix (conv is linear), cast operands to bf16.
    w_mat = (w.reshape(ksize * ksize * cin, cout) * scale[None, :]).astype(jnp.bfloat16)
    return {'w_mat': w_mat, 'bias': bias, 'ksize': ksize}


class ResNetPallas:
    """Mirrors EarlyExitNetwork ResNet(params) forward (inference-mode BN)."""

    def __init__(self, params, key):
        self.num_blocks = params['num_blocks']
        self.num_classes = int(params['num_classes'])
        self.input_size = int(params['input_size'])
        assert params['block_type'] == 'basic'
        self.in_channels = 16
        keys = iter(jax.random.split(key, 128))

        self.init_stride = 1 if self.input_size == 32 else 2
        self.init_conv = init_conv_bn(next(keys), 3, 3, self.in_channels)

        self.blocks = []
        for block_id, (channels, stride) in enumerate(zip((16, 32, 64), (1, 2, 2))):
            nb = int(self.num_blocks[block_id])
            strides = [stride] + [1] * (nb - 1)
            for s in strides:
                blk = {
                    'conv1': init_conv_bn(next(keys), 3, self.in_channels, channels),
                    'conv2': init_conv_bn(next(keys), 3, channels, channels),
                    'stride': s,
                    'shortcut': None,
                }
                if s != 1 or self.in_channels != channels:
                    blk['shortcut'] = init_conv_bn(next(keys), 1, self.in_channels, channels)
                self.blocks.append(blk)
                self.in_channels = channels

        # Linear: weight ~ N(0, 0.01) (PyTorch stores (num_classes, 64)), bias = 0.
        # Pre-transpose + pad classes to a 128-lane multiple at init (lane-dense store).
        nclass_pad = ((self.num_classes + 127) // 128) * 128
        w_lin = jax.random.normal(next(keys), (self.num_classes, 64),
                                  jnp.float32) * 0.01
        w_pad = jnp.zeros((64, nclass_pad), jnp.float32).at[:, :self.num_classes].set(w_lin.T)
        self.w_head = w_pad.astype(jnp.bfloat16)
        self.b_head = jnp.zeros((nclass_pad,), jnp.float32)

    def forward(self, x_nchw):
        # NCHW -> NHWC, bf16 activations throughout the conv stack.
        x = jnp.transpose(x_nchw, (0, 2, 3, 1)).astype(jnp.bfloat16)
        out = conv_bn(x, self.init_conv, self.init_stride, relu=True)
        for blk in self.blocks:
            fwd = conv_bn(out, blk['conv1'], blk['stride'], relu=True)
            if blk['shortcut'] is None:
                res = out                                            # identity shortcut
            else:
                res = conv_bn(out, blk['shortcut'], blk['stride'], relu=False)
            out = conv_bn(fwd, blk['conv2'], 1, relu=True, residual=res)
        B, H, W, C = out.shape
        # AvgPool2d(8) == global mean only because the final map is exactly 8x8.
        assert H == 8 and W == 8, "head assumes an 8x8 final feature map"
        feat = out.reshape(B, H * W, C)
        return head(feat, self.w_head, self.b_head, self.num_classes)


# ----------------------------------- main ------------------------------------

if __name__ == "__main__":
    params = dict(num_blocks=[1, 1, 1], num_classes=10,
                  augment_training=False, input_size=32, block_type='basic')
    key = jax.random.PRNGKey(0)
    k_params, k_x = jax.random.split(key)

    model = ResNetPallas(params, k_params)
    # PyTorch-style NCHW input: (batch=2, 3 channels, 32x32)
    x = jax.random.normal(k_x, (2, 3, 32, 32), jnp.float32)

    fwd = jax.jit(model.forward)        # single XLA program: removes per-call dispatch
    logits = fwd(x)
    jax.block_until_ready(logits)
    assert logits.shape == (2, params['num_classes'])
    assert bool(jnp.all(jnp.isfinite(logits)))
    print("KERNEL_OK")
</pallas_src>

<mosaic_0001>
module attributes {stable_mosaic.version = 11 : i64} {
  func.func @_conv_bn_kernel(%arg0: i32, %arg1: memref<1024x27xbf16, #tpu.memory_space<vmem>>, %arg2: memref<27x16xbf16, #tpu.memory_space<vmem>>, %arg3: memref<1x16xf32, #tpu.memory_space<vmem>>, %arg4: memref<1024x16xbf16, #tpu.memory_space<vmem>>) attributes {dimension_semantics = [#tpu.dimension_semantics<parallel>], iteration_bounds = array<i64: 2>, scalar_prefetch = 0 : i64, scratch_operands = 0 : i64, tpu.core_type = #tpu.core_type<tc>, window_params = [{transform_indices = @transform_0, window_bounds = array<i64: 1024, 27>}, {pipeline_mode = #tpu.pipeline_mode<synchronous>, transform_indices = @transform_1, window_bounds = array<i64: 27, 16>}, {pipeline_mode = #tpu.pipeline_mode<synchronous>, transform_indices = @transform_2, window_bounds = array<i64: 1, 16>}, {transform_indices = @transform_3, window_bounds = array<i64: 1024, 16>}]} {
    %c0 = arith.constant 0 : index
    %c0_0 = arith.constant 0 : index
    %0 = vector.load %arg1[%c0, %c0_0] : memref<1024x27xbf16, #tpu.memory_space<vmem>>, vector<1024x27xbf16>
    %c0_1 = arith.constant 0 : index
    %c0_2 = arith.constant 0 : index
    %1 = vector.load %arg2[%c0_1, %c0_2] : memref<27x16xbf16, #tpu.memory_space<vmem>>, vector<27x16xbf16>
    %cst = arith.constant dense<0.000000e+00> : vector<1024x16xf32>
    %2 = tpu.matmul %0, %1, %cst {dimension_numbers = #tpu.dot_dimension_numbers<[1], [0], [0], [1], [0, 0, 1, 1], [], []>} : vector<1024x27xbf16>, vector<27x16xbf16>, vector<1024x16xf32> -> vector<1024x16xf32>
    %c0_3 = arith.constant 0 : index
    %c0_4 = arith.constant 0 : index
    %3 = vector.load %arg3[%c0_3, %c0_4] : memref<1x16xf32, #tpu.memory_space<vmem>>, vector<1x16xf32>
    %4 = vector.broadcast %3 : vector<1x16xf32> to vector<1024x16xf32>
    %5 = arith.addf %2, %4 : vector<1024x16xf32>
    %cst_5 = arith.constant 0.000000e+00 : f32
    %6 = vector.broadcast %cst_5 : f32 to vector<1024x16xf32>
    %7 = arith.maximumf %5, %6 : vector<1024x16xf32>
    %8 = arith.truncf %7 : vector<1024x16xf32> to vector<1024x16xbf16>
    %c0_6 = arith.constant 0 : index
    %c0_7 = arith.constant 0 : index
    %9 = vector.load %arg4[%c0_6, %c0_7] : memref<1024x16xbf16, #tpu.memory_space<vmem>>, vector<1024x16xbf16>
    tpu.vector_store %arg4[%c0_6, %c0_7], %8 {strides = array<i32>} : memref<1024x16xbf16, #tpu.memory_space<vmem>>, vector<1024x16xbf16>,
    return
  }
  func.func @transform_0(%arg0: i32) -> (i32, i32) {
    %c0_i32 = arith.constant 0 : i32
    %c0_i32_0 = arith.constant 0 : i32
    return %arg0, %c0_i32 : i32, i32
  }
  func.func @transform_1(%arg0: i32) -> (i32, i32) {
    %c0_i32 = arith.constant 0 : i32
    %c0_i32_0 = arith.constant 0 : i32
    %c0_i32_1 = arith.constant 0 : i32
    return %c0_i32, %c0_i32_0 : i32, i32
  }
  func.func @transform_2(%arg0: i32) -> (i32, i32) {
    %c0_i32 = arith.constant 0 : i32
    %c0_i32_0 = arith.constant 0 : i32
    %c0_i32_1 = arith.constant 0 : i32
    return %c0_i32, %c0_i32_0 : i32, i32
  }
  func.func @transform_3(%arg0: i32) -> (i32, i32) {
    %c0_i32 = arith.constant 0 : i32
    %c0_i32_0 = arith.constant 0 : i32
    return %arg0, %c0_i32 : i32, i32
  }
}

module attributes {stable_mosaic.version = 11 : i64} {
  func.func @_conv_bn_kernel(%arg0: i32, %arg1: memref<1024x144xbf16, #tpu.memory_space<vmem>>, %arg2: memref<144x16xbf16, #tpu.memory_space<vmem>>, %arg3: memref<1x16xf32, #tpu.memory_space<vmem>>, %arg4: memref<1024x16xbf16, #tpu.memory_space<vmem>>) attributes {dimension_semantics = [#tpu.dimension_semantics<parallel>], iteration_bounds = array<i64: 2>, scalar_prefetch = 0 : i64, scratch_operands = 0 : i64, tpu.core_type = #tpu.core_type<tc>, window_params = [{transform_indices = @transform_0, window_bounds = array<i64: 1024, 144>}, {pipeline_mode = #tpu.pipeline_mode<synchronous>, transform_indices = @transform_1, window_bounds = array<i64: 144, 16>}, {pipeline_mode = #tpu.pipeline_mode<synchronous>, transform_indices = @transform_2, window_bounds = array<i64: 1, 16>}, {transform_indices = @transform_3, window_bounds = array<i64: 1024, 16>}]} {
    %c0 = arith.constant 0 : index
    %c0_0 = arith.constant 0 : index
    %0 = vector.load %arg1[%c0, %c0_0] : memref<1024x144xbf16, #tpu.memory_space<vmem>>, vector<1024x144xbf16>
    %c0_1 = arith.constant 0 : index
    %c0_2 = arith.constant 0 : index
    %1 = vector.load %arg2[%c0_1, %c0_2] : memref<144x16xbf16, #tpu.memory_space<vmem>>, vector<144x16xbf16>
    %cst = arith.constant dense<0.000000e+00> : vector<1024x16xf32>
    %2 = tpu.matmul %0, %1, %cst {dimension_numbers = #tpu.dot_dimension_numbers<[1], [0], [0], [1], [0, 0, 1, 1], [], []>} : vector<1024x144xbf16>, vector<144x16xbf16>, vector<1024x16xf32> -> vector<1024x16xf32>
    %c0_3 = arith.constant 0 : index
    %c0_4 = arith.constant 0 : index
    %3 = vector.load %arg3[%c0_3, %c0_4] : memref<1x16xf32, #tpu.memory_space<vmem>>, vector<1x16xf32>
    %4 = vector.broadcast %3 : vector<1x16xf32> to vector<1024x16xf32>
    %5 = arith.addf %2, %4 : vector<1024x16xf32>
    %cst_5 = arith.constant 0.000000e+00 : f32
    %6 = vector.broadcast %cst_5 : f32 to vector<1024x16xf32>
    %7 = arith.maximumf %5, %6 : vector<1024x16xf32>
    %8 = arith.truncf %7 : vector<1024x16xf32> to vector<1024x16xbf16>
    %c0_6 = arith.constant 0 : index
    %c0_7 = arith.constant 0 : index
    %9 = vector.load %arg4[%c0_6, %c0_7] : memref<1024x16xbf16, #tpu.memory_space<vmem>>, vector<1024x16xbf16>
    tpu.vector_store %arg4[%c0_6, %c0_7], %8 {strides = array<i32>} : memref<1024x16xbf16, #tpu.memory_space<vmem>>, vector<1024x16xbf16>,
    return
  }
  func.func @transform_0(%arg0: i32) -> (i32, i32) {
    %c0_i32 = arith.constant 0 : i32
    %c0_i32_0 = arith.constant 0 : i32
    return %arg0, %c0_i32 : i32, i32
  }
  func.func @transform_1(%arg0: i32) -> (i32, i32) {
    %c0_i32 = arith.constant 0 : i32
    %c0_i32_0 = arith.constant 0 : i32
    %c0_i32_1 = arith.constant 0 : i32
    return %c0_i32, %c0_i32_0 : i32, i32
  }
  func.func @transform_2(%arg0: i32) -> (i32, i32) {
    %c0_i32 = arith.constant 0 : i32
    %c0_i32_0 = arith.constant 0 : i32
    %c0_i32_1 = arith.constant 0 : i32
    return %c0_i32, %c0_i32_0 : i32, i32
  }
  func.func @transform_3(%arg0: i32) -> (i32, i32) {
    %c0_i32 = arith.constant 0 : i32
    %c0_i32_0 = arith.constant 0 : i32
    return %arg0, %c0_i32 : i32, i32
  }
}

module attributes {stable_mosaic.version = 11 : i64} {
  func.func @_conv_bn_kernel(%arg0: i32, %arg1: memref<1024x144xbf16, #tpu.memory_space<vmem>>, %arg2: memref<144x16xbf16, #tpu.memory_space<vmem>>, %arg3: memref<1x16xf32, #tpu.memory_space<vmem>>, %arg4: memref<1024x16xbf16, #tpu.memory_space<vmem>>, %arg5: memref<1024x16xbf16, #tpu.memory_space<vmem>>) attributes {dimension_semantics = [#tpu.dimension_semantics<parallel>], iteration_bounds = array<i64: 2>, scalar_prefetch = 0 : i64, scratch_operands = 0 : i64, tpu.core_type = #tpu.core_type<tc>, window_params = [{transform_indices = @transform_0, window_bounds = array<i64: 1024, 144>}, {pipeline_mode = #tpu.pipeline_mode<synchronous>, transform_indices = @transform_1, window_bounds = array<i64: 144, 16>}, {pipeline_mode = #tpu.pipeline_mode<synchronous>, transform_indices = @transform_2, window_bounds = array<i64: 1, 16>}, {transform_indices = @transform_3, window_bounds = array<i64: 1024, 16>}, {transform_indices = @transform_4, window_bounds = array<i64: 1024, 16>}]} {
    %c0 = arith.constant 0 : index
    %c0_0 = arith.constant 0 : index
    %0 = vector.load %arg1[%c0, %c0_0] : memref<1024x144xbf16, #tpu.memory_space<vmem>>, vector<1024x144xbf16>
    %c0_1 = arith.constant 0 : index
    %c0_2 = arith.constant 0 : index
    %1 = vector.load %arg2[%c0_1, %c0_2] : memref<144x16xbf16, #tpu.memory_space<vmem>>, vector<144x16xbf16>
    %cst = arith.constant dense<0.000000e+00> : vector<1024x16xf32>
    %2 = tpu.matmul %0, %1, %cst {dimension_numbers = #tpu.dot_dimension_numbers<[1], [0], [0], [1], [0, 0, 1, 1], [], []>} : vector<1024x144xbf16>, vector<144x16xbf16>, vector<1024x16xf32> -> vector<1024x16xf32>
    %c0_3 = arith.constant 0 : index
    %c0_4 = arith.constant 0 : index
    %3 = vector.load %arg3[%c0_3, %c0_4] : memref<1x16xf32, #tpu.memory_space<vmem>>, vector<1x16xf32>
    %4 = vector.broadcast %3 : vector<1x16xf32> to vector<1024x16xf32>
    %5 = arith.addf %2, %4 : vector<1024x16xf32>
    %c0_5 = arith.constant 0 : index
    %c0_6 = arith.constant 0 : index
    %6 = vector.load %arg4[%c0_5, %c0_6] : memref<1024x16xbf16, #tpu.memory_space<vmem>>, vector<1024x16xbf16>
    %7 = arith.extf %6 : vector<1024x16xbf16> to vector<1024x16xf32>
    %8 = arith.addf %5, %7 : vector<1024x16xf32>
    %cst_7 = arith.constant 0.000000e+00 : f32
    %9 = vector.broadcast %cst_7 : f32 to vector<1024x16xf32>
    %10 = arith.maximumf %8, %9 : vector<1024x16xf32>
    %11 = arith.truncf %10 : vector<1024x16xf32> to vector<1024x16xbf16>
    %c0_8 = arith.constant 0 : index
    %c0_9 = arith.constant 0 : index
    %12 = vector.load %arg5[%c0_8, %c0_9] : memref<1024x16xbf16, #tpu.memory_space<vmem>>, vector<1024x16xbf16>
    tpu.vector_store %arg5[%c0_8, %c0_9], %11 {strides = array<i32>} : memref<1024x16xbf16, #tpu.memory_space<vmem>>, vector<1024x16xbf16>,
    return
  }
  func.func @transform_0(%arg0: i32) -> (i32, i32) {
    %c0_i32 = arith.constant 0 : i32
    %c0_i32_0 = arith.constant 0 : i32
    return %arg0, %c0_i32 : i32, i32
  }
  func.func @transform_1(%arg0: i32) -> (i32, i32) {
    %c0_i32 = arith.constant 0 : i32
    %c0_i32_0 = arith.constant 0 : i32
    %c0_i32_1 = arith.constant 0 : i32
    return %c0_i32, %c0_i32_0 : i32, i32
  }
  func.func @transform_2(%arg0: i32) -> (i32, i32) {
    %c0_i32 = arith.constant 0 : i32
    %c0_i32_0 = arith.constant 0 : i32
    %c0_i32_1 = arith.constant 0 : i32
    return %c0_i32, %c0_i32_0 : i32, i32
  }
  func.func @transform_3(%arg0: i32) -> (i32, i32) {
    %c0_i32 = arith.constant 0 : i32
    %c0_i32_0 = arith.constant 0 : i32
    return %arg0, %c0_i32 : i32, i32
  }
  func.func @transform_4(%arg0: i32) -> (i32, i32) {
    %c0_i32 = arith.constant 0 : i32
    %c0_i32_0 = arith.constant 0 : i32
    return %arg0, %c0_i32 : i32, i32
  }
}

module attributes {stable_mosaic.version = 11 : i64} {
  func.func @_conv_bn_kernel(%arg0: i32, %arg1: memref<256x144xbf16, #tpu.memory_space<vmem>>, %arg2: memref<144x32xbf16, #tpu.memory_space<vmem>>, %arg3: memref<1x32xf32, #tpu.memory_space<vmem>>, %arg4: memref<256x32xbf16, #tpu.memory_space<vmem>>) attributes {dimension_semantics = [#tpu.dimension_semantics<parallel>], iteration_bounds = array<i64: 2>, scalar_prefetch = 0 : i64, scratch_operands = 0 : i64, tpu.core_type = #tpu.core_type<tc>, window_params = [{transform_indices = @transform_0, window_bounds = array<i64: 256, 144>}, {pipeline_mode = #tpu.pipeline_mode<synchronous>, transform_indices = @transform_1, window_bounds = array<i64: 144, 32>}, {pipeline_mode = #tpu.pipeline_mode<synchronous>, transform_indices = @transform_2, window_bounds = array<i64: 1, 32>}, {transform_indices = @transform_3, window_bounds = array<i64: 256, 32>}]} {
    %c0 = arith.constant 0 : index
    %c0_0 = arith.constant 0 : index
    %0 = vector.load %arg1[%c0, %c0_0] : memref<256x144xbf16, #tpu.memory_space<vmem>>, vector<256x144xbf16>
    %c0_1 = arith.constant 0 : index
    %c0_2 = arith.constant 0 : index
    %1 = vector.load %arg2[%c0_1, %c0_2] : memref<144x32xbf16, #tpu.memory_space<vmem>>, vector<144x32xbf16>
    %cst = arith.constant dense<0.000000e+00> : vector<256x32xf32>
    %2 = tpu.matmul %0, %1, %cst {dimension_numbers = #tpu.dot_dimension_numbers<[1], [0], [0], [1], [0, 0, 1, 1], [], []>} : vector<256x144xbf16>, vector<144x32xbf16>, vector<256x32xf32> -> vector<256x32xf32>
    %c0_3 = arith.constant 0 : index
    %c0_4 = arith.constant 0 : index
    %3 = vector.load %arg3[%c0_3, %c0_4] : memref<1x32xf32, #tpu.memory_space<vmem>>, vector<1x32xf32>
    %4 = vector.broadcast %3 : vector<1x32xf32> to vector<256x32xf32>
    %5 = arith.addf %2, %4 : vector<256x32xf32>
    %cst_5 = arith.constant 0.000000e+00 : f32
    %6 = vector.broadcast %cst_5 : f32 to vector<256x32xf32>
    %7 = arith.maximumf %5, %6 : vector<256x32xf32>
    %8 = arith.truncf %7 : vector<256x32xf32> to vector<256x32xbf16>
    %c0_6 = arith.constant 0 : index
    %c0_7 = arith.constant 0 : index
    %9 = vector.load %arg4[%c0_6, %c0_7] : memref<256x32xbf16, #tpu.memory_space<vmem>>, vector<256x32xbf16>
    tpu.vector_store %arg4[%c0_6, %c0_7], %8 {strides = array<i32>} : memref<256x32xbf16, #tpu.memory_space<vmem>>, vector<256x32xbf16>,
    return
  }
  func.func @transform_0(%arg0: i32) -> (i32, i32) {
    %c0_i32 = arith.constant 0 : i32
    %c0_i32_0 = arith.constant 0 : i32
    return %arg0, %c0_i32 : i32, i32
  }
  func.func @transform_1(%arg0: i32) -> (i32, i32) {
    %c0_i32 = arith.constant 0 : i32
    %c0_i32_0 = arith.constant 0 : i32
    %c0_i32_1 = arith.constant 0 : i32
    return %c0_i32, %c0_i32_0 : i32, i32
  }
  func.func @transform_2(%arg0: i32) -> (i32, i32) {
    %c0_i32 = arith.constant 0 : i32
    %c0_i32_0 = arith.constant 0 : i32
    %c0_i32_1 = arith.constant 0 : i32
    return %c0_i32, %c0_i32_0 : i32, i32
  }
  func.func @transform_3(%arg0: i32) -> (i32, i32) {
    %c0_i32 = arith.constant 0 : i32
    %c0_i32_0 = arith.constant 0 : i32
    return %arg0, %c0_i32 : i32, i32
  }
}

module attributes {stable_mosaic.version = 11 : i64} {
  func.func @_conv_bn_kernel(%arg0: i32, %arg1: memref<256x16xbf16, #tpu.memory_space<vmem>>, %arg2: memref<16x32xbf16, #tpu.memory_space<vmem>>, %arg3: memref<1x32xf32, #tpu.memory_space<vmem>>, %arg4: memref<256x32xbf16, #tpu.memory_space<vmem>>) attributes {dimension_semantics = [#tpu.dimension_semantics<parallel>], iteration_bounds = array<i64: 2>, scalar_prefetch = 0 : i64, scratch_operands = 0 : i64, tpu.core_type = #tpu.core_type<tc>, window_params = [{transform_indices = @transform_0, window_bounds = array<i64: 256, 16>}, {pipeline_mode = #tpu.pipeline_mode<synchronous>, transform_indices = @transform_1, window_bounds = array<i64: 16, 32>}, {pipeline_mode = #tpu.pipeline_mode<synchronous>, transform_indices = @transform_2, window_bounds = array<i64: 1, 32>}, {transform_indices = @transform_3, window_bounds = array<i64: 256, 32>}]} {
    %c0 = arith.constant 0 : index
    %c0_0 = arith.constant 0 : index
    %0 = vector.load %arg1[%c0, %c0_0] : memref<256x16xbf16, #tpu.memory_space<vmem>>, vector<256x16xbf16>
    %c0_1 = arith.constant 0 : index
    %c0_2 = arith.constant 0 : index
    %1 = vector.load %arg2[%c0_1, %c0_2] : memref<16x32xbf16, #tpu.memory_space<vmem>>, vector<16x32xbf16>
    %cst = arith.constant dense<0.000000e+00> : vector<256x32xf32>
    %2 = tpu.matmul %0, %1, %cst {dimension_numbers = #tpu.dot_dimension_numbers<[1], [0], [0], [1], [0, 0, 1, 1], [], []>} : vector<256x16xbf16>, vector<16x32xbf16>, vector<256x32xf32> -> vector<256x32xf32>
    %c0_3 = arith.constant 0 : index
    %c0_4 = arith.constant 0 : index
    %3 = vector.load %arg3[%c0_3, %c0_4] : memref<1x32xf32, #tpu.memory_space<vmem>>, vector<1x32xf32>
    %4 = vector.broadcast %3 : vector<1x32xf32> to vector<256x32xf32>
    %5 = arith.addf %2, %4 : vector<256x32xf32>
    %6 = arith.truncf %5 : vector<256x32xf32> to vector<256x32xbf16>
    %c0_5 = arith.constant 0 : index
    %c0_6 = arith.constant 0 : index
    %7 = vector.load %arg4[%c0_5, %c0_6] : memref<256x32xbf16, #tpu.memory_space<vmem>>, vector<256x32xbf16>
    tpu.vector_store %arg4[%c0_5, %c0_6], %6 {strides = array<i32>} : memref<256x32xbf16, #tpu.memory_space<vmem>>, vector<256x32xbf16>,
    return
  }
  func.func @transform_0(%arg0: i32) -> (i32, i32) {
    %c0_i32 = arith.constant 0 : i32
    %c0_i32_0 = arith.constant 0 : i32
    return %arg0, %c0_i32 : i32, i32
  }
  func.func @transform_1(%arg0: i32) -> (i32, i32) {
    %c0_i32 = arith.constant 0 : i32
    %c0_i32_0 = arith.constant 0 : i32
    %c0_i32_1 = arith.constant 0 : i32
    return %c0_i32, %c0_i32_0 : i32, i32
  }
  func.func @transform_2(%arg0: i32) -> (i32, i32) {
    %c0_i32 = arith.constant 0 : i32
    %c0_i32_0 = arith.constant 0 : i32
    %c0_i32_1 = arith.constant 0 : i32
    return %c0_i32, %c0_i32_0 : i32, i32
  }
  func.func @transform_3(%arg0: i32) -> (i32, i32) {
    %c0_i32 = arith.constant 0 : i32
    %c0_i32_0 = arith.constant 0 : i32
    return %arg0, %c0_i32 : i32, i32
  }
}

module attributes {stable_mosaic.version = 11 : i64} {
  func.func @_conv_bn_kernel(%arg0: i32, %arg1: memref<256x288xbf16, #tpu.memory_space<vmem>>, %arg2: memref<288x32xbf16, #tpu.memory_space<vmem>>, %arg3: memref<1x32xf32, #tpu.memory_space<vmem>>, %arg4: memref<256x32xbf16, #tpu.memory_space<vmem>>, %arg5: memref<256x32xbf16, #tpu.memory_space<vmem>>) attributes {dimension_semantics = [#tpu.dimension_semantics<parallel>], iteration_bounds = array<i64: 2>, scalar_prefetch = 0 : i64, scratch_operands = 0 : i64, tpu.core_type = #tpu.core_type<tc>, window_params = [{transform_indices = @transform_0, window_bounds = array<i64: 256, 288>}, {pipeline_mode = #tpu.pipeline_mode<synchronous>, transform_indices = @transform_1, window_bounds = array<i64: 288, 32>}, {pipeline_mode = #tpu.pipeline_mode<synchronous>, transform_indices = @transform_2, window_bounds = array<i64: 1, 32>}, {transform_indices = @transform_3, window_bounds = array<i64: 256, 32>}, {transform_indices = @transform_4, window_bounds = array<i64: 256, 32>}]} {
    %c0 = arith.constant 0 : index
    %c0_0 = arith.constant 0 : index
    %0 = vector.load %arg1[%c0, %c0_0] : memref<256x288xbf16, #tpu.memory_space<vmem>>, vector<256x288xbf16>
    %c0_1 = arith.constant 0 : index
    %c0_2 = arith.constant 0 : index
    %1 = vector.load %arg2[%c0_1, %c0_2] : memref<288x32xbf16, #tpu.memory_space<vmem>>, vector<288x32xbf16>
    %cst = arith.constant dense<0.000000e+00> : vector<256x32xf32>
    %2 = tpu.matmul %0, %1, %cst {dimension_numbers = #tpu.dot_dimension_numbers<[1], [0], [0], [1], [0, 0, 1, 1], [], []>} : vector<256x288xbf16>, vector<288x32xbf16>, vector<256x32xf32> -> vector<256x32xf32>
    %c0_3 = arith.constant 0 : index
    %c0_4 = arith.constant 0 : index
    %3 = vector.load %arg3[%c0_3, %c0_4] : memref<1x32xf32, #tpu.memory_space<vmem>>, vector<1x32xf32>
    %4 = vector.broadcast %3 : vector<1x32xf32> to vector<256x32xf32>
    %5 = arith.addf %2, %4 : vector<256x32xf32>
    %c0_5 = arith.constant 0 : index
    %c0_6 = arith.constant 0 : index
    %6 = vector.load %arg4[%c0_5, %c0_6] : memref<256x32xbf16, #tpu.memory_space<vmem>>, vector<256x32xbf16>
    %7 = arith.extf %6 : vector<256x32xbf16> to vector<256x32xf32>
    %8 = arith.addf %5, %7 : vector<256x32xf32>
    %cst_7 = arith.constant 0.000000e+00 : f32
    %9 = vector.broadcast %cst_7 : f32 to vector<256x32xf32>
    %10 = arith.maximumf %8, %9 : vector<256x32xf32>
    %11 = arith.truncf %10 : vector<256x32xf32> to vector<256x32xbf16>
    %c0_8 = arith.constant 0 : index
    %c0_9 = arith.constant 0 : index
    %12 = vector.load %arg5[%c0_8, %c0_9] : memref<256x32xbf16, #tpu.memory_space<vmem>>, vector<256x32xbf16>
    tpu.vector_store %arg5[%c0_8, %c0_9], %11 {strides = array<i32>} : memref<256x32xbf16, #tpu.memory_space<vmem>>, vector<256x32xbf16>,
    return
  }
  func.func @transform_0(%arg0: i32) -> (i32, i32) {
    %c0_i32 = arith.constant 0 : i32
    %c0_i32_0 = arith.constant 0 : i32
    return %arg0, %c0_i32 : i32, i32
  }
  func.func @transform_1(%arg0: i32) -> (i32, i32) {
    %c0_i32 = arith.constant 0 : i32
    %c0_i32_0 = arith.constant 0 : i32
    %c0_i32_1 = arith.constant 0 : i32
    return %c0_i32, %c0_i32_0 : i32, i32
  }
  func.func @transform_2(%arg0: i32) -> (i32, i32) {
    %c0_i32 = arith.constant 0 : i32
    %c0_i32_0 = arith.constant 0 : i32
    %c0_i32_1 = arith.constant 0 : i32
    return %c0_i32, %c0_i32_0 : i32, i32
  }
  func.func @transform_3(%arg0: i32) -> (i32, i32) {
    %c0_i32 = arith.constant 0 : i32
    %c0_i32_0 = arith.constant 0 : i32
    return %arg0, %c0_i32 : i32, i32
  }
  func.func @transform_4(%arg0: i32) -> (i32, i32) {
    %c0_i32 = arith.constant 0 : i32
    %c0_i32_0 = arith.constant 0 : i32
    return %arg0, %c0_i32 : i32, i32
  }
}

module attributes {stable_mosaic.version = 11 : i64} {
  func.func @_conv_bn_kernel(%arg0: i32, %arg1: memref<64x288xbf16, #tpu.memory_space<vmem>>, %arg2: memref<288x64xbf16, #tpu.memory_space<vmem>>, %arg3: memref<1x64xf32, #tpu.memory_space<vmem>>, %arg4: memref<64x64xbf16, #tpu.memory_space<vmem>>) attributes {dimension_semantics = [#tpu.dimension_semantics<parallel>], iteration_bounds = array<i64: 2>, scalar_prefetch = 0 : i64, scratch_operands = 0 : i64, tpu.core_type = #tpu.core_type<tc>, window_params = [{transform_indices = @transform_0, window_bounds = array<i64: 64, 288>}, {pipeline_mode = #tpu.pipeline_mode<synchronous>, transform_indices = @transform_1, window_bounds = array<i64: 288, 64>}, {pipeline_mode = #tpu.pipeline_mode<synchronous>, transform_indices = @transform_2, window_bounds = array<i64: 1, 64>}, {transform_indices = @transform_3, window_bounds = array<i64: 64, 64>}]} {
    %c0 = arith.constant 0 : index
    %c0_0 = arith.constant 0 : index
    %0 = vector.load %arg1[%c0, %c0_0] : memref<64x288xbf16, #tpu.memory_space<vmem>>, vector<64x288xbf16>
    %c0_1 = arith.constant 0 : index
    %c0_2 = arith.constant 0 : index
    %1 = vector.load %arg2[%c0_1, %c0_2] : memref<288x64xbf16, #tpu.memory_space<vmem>>, vector<288x64xbf16>
    %cst = arith.constant dense<0.000000e+00> : vector<64x64xf32>
    %2 = tpu.matmul %0, %1, %cst {dimension_numbers = #tpu.dot_dimension_numbers<[1], [0], [0], [1], [0, 0, 1, 1], [], []>} : vector<64x288xbf16>, vector<288x64xbf16>, vector<64x64xf32> -> vector<64x64xf32>
    %c0_3 = arith.constant 0 : index
    %c0_4 = arith.constant 0 : index
    %3 = vector.load %arg3[%c0_3, %c0_4] : memref<1x64xf32, #tpu.memory_space<vmem>>, vector<1x64xf32>
    %4 = vector.broadcast %3 : vector<1x64xf32> to vector<64x64xf32>
    %5 = arith.addf %2, %4 : vector<64x64xf32>
    %cst_5 = arith.constant 0.000000e+00 : f32
    %6 = vector.broadcast %cst_5 : f32 to vector<64x64xf32>
    %7 = arith.maximumf %5, %6 : vector<64x64xf32>
    %8 = arith.truncf %7 : vector<64x64xf32> to vector<64x64xbf16>
    %c0_6 = arith.constant 0 : index
    %c0_7 = arith.constant 0 : index
    %9 = vector.load %arg4[%c0_6, %c0_7] : memref<64x64xbf16, #tpu.memory_space<vmem>>, vector<64x64xbf16>
    tpu.vector_store %arg4[%c0_6, %c0_7], %8 {strides = array<i32>} : memref<64x64xbf16, #tpu.memory_space<vmem>>, vector<64x64xbf16>,
    return
  }
  func.func @transform_0(%arg0: i32) -> (i32, i32) {
    %c0_i32 = arith.constant 0 : i32
    %c0_i32_0 = arith.constant 0 : i32
    return %arg0, %c0_i32 : i32, i32
  }
  func.func @transform_1(%arg0: i32) -> (i32, i32) {
    %c0_i32 = arith.constant 0 : i32
    %c0_i32_0 = arith.constant 0 : i32
    %c0_i32_1 = arith.constant 0 : i32
    return %c0_i32, %c0_i32_0 : i32, i32
  }
  func.func @transform_2(%arg0: i32) -> (i32, i32) {
    %c0_i32 = arith.constant 0 : i32
    %c0_i32_0 = arith.constant 0 : i32
    %c0_i32_1 = arith.constant 0 : i32
    return %c0_i32, %c0_i32_0 : i32, i32
  }
  func.func @transform_3(%arg0: i32) -> (i32, i32) {
    %c0_i32 = arith.constant 0 : i32
    %c0_i32_0 = arith.constant 0 : i32
    return %arg0, %c0_i32 : i32, i32
  }
}

module attributes {stable_mosaic.version = 11 : i64} {
  func.func @_conv_bn_kernel(%arg0: i32, %arg1: memref<64x576xbf16, #tpu.memory_space<vmem>>, %arg2: memref<576x64xbf16, #tpu.memory_space<vmem>>, %arg3: memref<1x64xf32, #tpu.memory_space<vmem>>, %arg4: memref<64x64xbf16, #tpu.memory_space<vmem>>, %arg5: memref<64x64xbf16, #tpu.memory_space<vmem>>) attributes {dimension_semantics = [#tpu.dimension_semantics<parallel>], iteration_bounds = array<i64: 2>, scalar_prefetch = 0 : i64, scratch_operands = 0 : i64, tpu.core_type = #tpu.core_type<tc>, window_params = [{transform_indices = @transform_0, window_bounds = array<i64: 64, 576>}, {pipeline_mode = #tpu.pipeline_mode<synchronous>, transform_indices = @transform_1, window_bounds = array<i64: 576, 64>}, {pipeline_mode = #tpu.pipeline_mode<synchronous>, transform_indices = @transform_2, window_bounds = array<i64: 1, 64>}, {transform_indices = @transform_3, window_bounds = array<i64: 64, 64>}, {transform_indices = @transform_4, window_bounds = array<i64: 64, 64>}]} {
    %c0 = arith.constant 0 : index
    %c0_0 = arith.constant 0 : index
    %0 = vector.load %arg1[%c0, %c0_0] : memref<64x576xbf16, #tpu.memory_space<vmem>>, vector<64x576xbf16>
    %c0_1 = arith.constant 0 : index
    %c0_2 = arith.constant 0 : index
    %1 = vector.load %arg2[%c0_1, %c0_2] : memref<576x64xbf16, #tpu.memory_space<vmem>>, vector<576x64xbf16>
    %cst = arith.constant dense<0.000000e+00> : vector<64x64xf32>
    %2 = tpu.matmul %0, %1, %cst {dimension_numbers = #tpu.dot_dimension_numbers<[1], [0], [0], [1], [0, 0, 1, 1], [], []>} : vector<64x576xbf16>, vector<576x64xbf16>, vector<64x64xf32> -> vector<64x64xf32>
    %c0_3 = arith.constant 0 : index
    %c0_4 = arith.constant 0 : index
    %3 = vector.load %arg3[%c0_3, %c0_4] : memref<1x64xf32, #tpu.memory_space<vmem>>, vector<1x64xf32>
    %4 = vector.broadcast %3 : vector<1x64xf32> to vector<64x64xf32>
    %5 = arith.addf %2, %4 : vector<64x64xf32>
    %c0_5 = arith.constant 0 : index
    %c0_6 = arith.constant 0 : index
    %6 = vector.load %arg4[%c0_5, %c0_6] : memref<64x64xbf16, #tpu.memory_space<vmem>>, vector<64x64xbf16>
    %7 = arith.extf %6 : vector<64x64xbf16> to vector<64x64xf32>
    %8 = arith.addf %5, %7 : vector<64x64xf32>
    %cst_7 = arith.constant 0.000000e+00 : f32
    %9 = vector.broadcast %cst_7 : f32 to vector<64x64xf32>
    %10 = arith.maximumf %8, %9 : vector<64x64xf32>
    %11 = arith.truncf %10 : vector<64x64xf32> to vector<64x64xbf16>
    %c0_8 = arith.constant 0 : index
    %c0_9 = arith.constant 0 : index
    %12 = vector.load %arg5[%c0_8, %c0_9] : memref<64x64xbf16, #tpu.memory_space<vmem>>, vector<64x64xbf16>
    tpu.vector_store %arg5[%c0_8, %c0_9], %11 {strides = array<i32>} : memref<64x64xbf16, #tpu.memory_space<vmem>>, vector<64x64xbf16>,
    return
  }
  func.func @transform_0(%arg0: i32) -> (i32, i32) {
    %c0_i32 = arith.constant 0 : i32
    %c0_i32_0 = arith.constant 0 : i32
    return %arg0, %c0_i32 : i32, i32
  }
  func.func @transform_1(%arg0: i32) -> (i32, i32) {
    %c0_i32 = arith.constant 0 : i32
    %c0_i32_0 = arith.constant 0 : i32
    %c0_i32_1 = arith.constant 0 : i32
    return %c0_i32, %c0_i32_0 : i32, i32
  }
  func.func @transform_2(%arg0: i32) -> (i32, i32) {
    %c0_i32 = arith.constant 0 : i32
    %c0_i32_0 = arith.constant 0 : i32
    %c0_i32_1 = arith.constant 0 : i32
    return %c0_i32, %c0_i32_0 : i32, i32
  }
  func.func @transform_3(%arg0: i32) -> (i32, i32) {
    %c0_i32 = arith.constant 0 : i32
    %c0_i32_0 = arith.constant 0 : i32
    return %arg0, %c0_i32 : i32, i32
  }
  func.func @transform_4(%arg0: i32) -> (i32, i32) {
    %c0_i32 = arith.constant 0 : i32
    %c0_i32_0 = arith.constant 0 : i32
    return %arg0, %c0_i32 : i32, i32
  }
}

module attributes {stable_mosaic.version = 11 : i64} {
  func.func @_conv_bn_kernel(%arg0: i32, %arg1: memref<64x32xbf16, #tpu.memory_space<vmem>>, %arg2: memref<32x64xbf16, #tpu.memory_space<vmem>>, %arg3: memref<1x64xf32, #tpu.memory_space<vmem>>, %arg4: memref<64x64xbf16, #tpu.memory_space<vmem>>) attributes {dimension_semantics = [#tpu.dimension_semantics<parallel>], iteration_bounds = array<i64: 2>, scalar_prefetch = 0 : i64, scratch_operands = 0 : i64, tpu.core_type = #tpu.core_type<tc>, window_params = [{transform_indices = @transform_0, window_bounds = array<i64: 64, 32>}, {pipeline_mode = #tpu.pipeline_mode<synchronous>, transform_indices = @transform_1, window_bounds = array<i64: 32, 64>}, {pipeline_mode = #tpu.pipeline_mode<synchronous>, transform_indices = @transform_2, window_bounds = array<i64: 1, 64>}, {transform_indices = @transform_3, window_bounds = array<i64: 64, 64>}]} {
    %c0 = arith.constant 0 : index
    %c0_0 = arith.constant 0 : index
    %0 = vector.load %arg1[%c0, %c0_0] : memref<64x32xbf16, #tpu.memory_space<vmem>>, vector<64x32xbf16>
    %c0_1 = arith.constant 0 : index
    %c0_2 = arith.constant 0 : index
    %1 = vector.load %arg2[%c0_1, %c0_2] : memref<32x64xbf16, #tpu.memory_space<vmem>>, vector<32x64xbf16>
    %cst = arith.constant dense<0.000000e+00> : vector<64x64xf32>
    %2 = tpu.matmul %0, %1, %cst {dimension_numbers = #tpu.dot_dimension_numbers<[1], [0], [0], [1], [0, 0, 1, 1], [], []>} : vector<64x32xbf16>, vector<32x64xbf16>, vector<64x64xf32> -> vector<64x64xf32>
    %c0_3 = arith.constant 0 : index
    %c0_4 = arith.constant 0 : index
    %3 = vector.load %arg3[%c0_3, %c0_4] : memref<1x64xf32, #tpu.memory_space<vmem>>, vector<1x64xf32>
    %4 = vector.broadcast %3 : vector<1x64xf32> to vector<64x64xf32>
    %5 = arith.addf %2, %4 : vector<64x64xf32>
    %6 = arith.truncf %5 : vector<64x64xf32> to vector<64x64xbf16>
    %c0_5 = arith.constant 0 : index
    %c0_6 = arith.constant 0 : index
    %7 = vector.load %arg4[%c0_5, %c0_6] : memref<64x64xbf16, #tpu.memory_space<vmem>>, vector<64x64xbf16>
    tpu.vector_store %arg4[%c0_5, %c0_6], %6 {strides = array<i32>} : memref<64x64xbf16, #tpu.memory_space<vmem>>, vector<64x64xbf16>,
    return
  }
  func.func @transform_0(%arg0: i32) -> (i32, i32) {
    %c0_i32 = arith.constant 0 : i32
    %c0_i32_0 = arith.constant 0 : i32
    return %arg0, %c0_i32 : i32, i32
  }
  func.func @transform_1(%arg0: i32) -> (i32, i32) {
    %c0_i32 = arith.constant 0 : i32
    %c0_i32_0 = arith.constant 0 : i32
    %c0_i32_1 = arith.constant 0 : i32
    return %c0_i32, %c0_i32_0 : i32, i32
  }
  func.func @transform_2(%arg0: i32) -> (i32, i32) {
    %c0_i32 = arith.constant 0 : i32
    %c0_i32_0 = arith.constant 0 : i32
    %c0_i32_1 = arith.constant 0 : i32
    return %c0_i32, %c0_i32_0 : i32, i32
  }
  func.func @transform_3(%arg0: i32) -> (i32, i32) {
    %c0_i32 = arith.constant 0 : i32
    %c0_i32_0 = arith.constant 0 : i32
    return %arg0, %c0_i32 : i32, i32
  }
}

module attributes {stable_mosaic.version = 11 : i64} {
  func.func @_head_kernel(%arg0: i32, %arg1: memref<2x64x64xbf16, #tpu.memory_space<vmem>>, %arg2: memref<64x128xbf16, #tpu.memory_space<vmem>>, %arg3: memref<1x128xf32, #tpu.memory_space<vmem>>, %arg4: memref<2x128xf32, #tpu.memory_space<vmem>>) attributes {dimension_semantics = [#tpu.dimension_semantics<arbitrary>], iteration_bounds = array<i64: 1>, scalar_prefetch = 0 : i64, scratch_operands = 0 : i64, tpu.core_type = #tpu.core_type<tc>, window_params = [{pipeline_mode = #tpu.pipeline_mode<synchronous>, transform_indices = @transform_0, window_bounds = array<i64: 2, 64, 64>}, {pipeline_mode = #tpu.pipeline_mode<synchronous>, transform_indices = @transform_1, window_bounds = array<i64: 64, 128>}, {pipeline_mode = #tpu.pipeline_mode<synchronous>, transform_indices = @transform_2, window_bounds = array<i64: 1, 128>}, {pipeline_mode = #tpu.pipeline_mode<synchronous>, transform_indices = @transform_3, window_bounds = array<i64: 2, 128>}]} {
    %c0 = arith.constant 0 : index
    %c0_0 = arith.constant 0 : index
    %c0_1 = arith.constant 0 : index
    %0 = vector.load %arg1[%c0, %c0_0, %c0_1] : memref<2x64x64xbf16, #tpu.memory_space<vmem>>, vector<2x64x64xbf16>
    %1 = arith.extf %0 : vector<2x64x64xbf16> to vector<2x64x64xf32>
    %cst = arith.constant dense<0.000000e+00> : vector<2x64xf32>
    %2 = vector.multi_reduction <add>, %1, %cst [1] : vector<2x64x64xf32> to vector<2x64xf32>
    %cst_2 = arith.constant 6.400000e+01 : f32
    %3 = vector.broadcast %cst_2 : f32 to vector<2x64xf32>
    %4 = arith.divf %2, %3 : vector<2x64xf32>
    %5 = arith.truncf %4 : vector<2x64xf32> to vector<2x64xbf16>
    %c0_3 = arith.constant 0 : index
    %c0_4 = arith.constant 0 : index
    %6 = vector.load %arg2[%c0_3, %c0_4] : memref<64x128xbf16, #tpu.memory_space<vmem>>, vector<64x128xbf16>
    %cst_5 = arith.constant dense<0.000000e+00> : vector<2x128xf32>
    %7 = tpu.matmul %5, %6, %cst_5 {dimension_numbers = #tpu.dot_dimension_numbers<[1], [0], [0], [1], [0, 0, 1, 1], [], []>} : vector<2x64xbf16>, vector<64x128xbf16>, vector<2x128xf32> -> vector<2x128xf32>
    %c0_6 = arith.constant 0 : index
    %c0_7 = arith.constant 0 : index
    %8 = vector.load %arg3[%c0_6, %c0_7] : memref<1x128xf32, #tpu.memory_space<vmem>>, vector<1x128xf32>
    %9 = vector.broadcast %8 : vector<1x128xf32> to vector<2x128xf32>
    %10 = arith.addf %7, %9 : vector<2x128xf32>
    %c0_8 = arith.constant 0 : index
    %c0_9 = arith.constant 0 : index
    %11 = vector.load %arg4[%c0_8, %c0_9] : memref<2x128xf32, #tpu.memory_space<vmem>>, vector<2x128xf32>
    tpu.vector_store %arg4[%c0_8, %c0_9], %10 {strides = array<i32>} : memref<2x128xf32, #tpu.memory_space<vmem>>, vector<2x128xf32>,
    return
  }
  func.func @transform_0(%arg0: i32) -> (i32, i32, i32) {
    %c0_i32 = arith.constant 0 : i32
    %c0_i32_0 = arith.constant 0 : i32
    %c0_i32_1 = arith.constant 0 : i32
    %c0_i32_2 = arith.constant 0 : i32
    return %c0_i32, %c0_i32_0, %c0_i32_1 : i32, i32, i32
  }
  func.func @transform_1(%arg0: i32) -> (i32, i32) {
    %c0_i32 = arith.constant 0 : i32
    %c0_i32_0 = arith.constant 0 : i32
    %c0_i32_1 = arith.constant 0 : i32
    return %c0_i32, %c0_i32_0 : i32, i32
  }
  func.func @transform_2(%arg0: i32) -> (i32, i32) {
    %c0_i32 = arith.constant 0 : i32
    %c0_i32_0 = arith.constant 0 : i32
    %c0_i32_1 = arith.constant 0 : i32
    return %c0_i32, %c0_i32_0 : i32, i32
  }
  func.func @transform_3(%arg0: i32) -> (i32, i32) {
    %c0_i32 = arith.constant 0 : i32
    %c0_i32_0 = arith.constant 0 : i32
    %c0_i32_1 = arith.constant 0 : i32
    return %c0_i32, %c0_i32_0 : i32, i32
  }
}

</mosaic_0001>

<llo_original>
// kernel: forward.10
$region0: #{forward.10}
  #allocation0 [shape = 'u32[]', space=smem, size = 0x4, offset = 0x4, fixed_abs, tag = 'smem constant byte address 0x4 - core index']
  #allocation1 [shape = 'u32[144,128]{1,0:T(1,128)}', space=vmem, size = 0x12000, scoped, tag = 'internal scratch']
  %s0 = inlined_call_operand.vmem [shape: bf16[2048,27], index: 0, kind: input, shape index: {}]
  %s1 = inlined_call_operand.vmem [shape: bf16[27,16], index: 1, kind: input, shape index: {}]
  %s2 = inlined_call_operand.vmem [shape: f32[1,16], index: 2, kind: input, shape index: {}]
  %s3 = inlined_call_operand.vmem [shape: bf16[2048,16], index: 3, kind: output, shape index: {}]
  %s4 = sld [smem:[#allocation0]]
  $region45: #{forward.10} parent=0
    _
  %s6 = ssub.s32 1, %s4
  %s7 = scalar_select 0, %s6, %s4
  loop: start=0, step=1, limit=4
  $region2: #{forward.10} parent=0 // loop_pre_header
    _
  $region3: #{forward.10} parent=0 // loop_header
    %s9 = sphi 0, %s13
    %p10 = scmp.ge.s32.totalorder %s9, 4
    %s19 = sphi 0, %s21
    %s22 = sphi 0, %s19
    %s23 = sphi 0, %s22
    %s39 = sphi 0, %s23
    %s43 = sphi 0, %s43
    %s45 = sphi 0, %s43
    %s46 = sphi 0, %s45
    %s60 = sphi 0, %s46
    %s64 = sphi 0, %s64
    %s66 = sphi 0, %s64
    %s67 = sphi 0, %s66
    %s81 = sphi 0, %s67
    %s87 = sphi 0, %s89
    %s90 = sphi 0, %s87
    %s91 = sphi 0, %s90
    %s107 = sphi 0, %s91
  $region4: #{forward.10} parent=0 // loop_header_branch
    %12 = sbr.rel (%p10) target = $region8
  $region5: #{forward.10} parent=0 // loop_body
    %s14 = ssub.s32 %s9, 1
    %s15 = ssub.s32 %s9, 2
    %s16 = sadd.s32 %s9, 1
    %s17 = ssub.s32 %s9, %s16
    %p18 = scmp.eq.s32.totalorder %s17, 0
    %s20 = sadd.s32 %s19, 1
    %s21 = scalar_select %p18, %s19, %s20
    %p24 = pneg %p18
    %p25 = scmp.eq.s32.totalorder %s9, 1
    %p26 = por %p24, %p25
    %p27 = scmp.ne.s32.totalorder %s19, %s22
    %p28 = scmp.eq.s32.totalorder %s9, 0
    %p29 = por %p27, %p28
    %p30 = scmp.ne.s32.totalorder %s19, %s22
    %p31 = scmp.eq.s32.totalorder %s14, 1
    %p32 = por %p30, %p31
    %p33 = scmp.ne.s32.totalorder %s22, %s23
    %p34 = scmp.eq.s32.totalorder %s14, 0
    %p35 = por %p33, %p34
    %p36 = scmp.ne.s32.totalorder %s22, %s23
    %p37 = scmp.eq.s32.totalorder %s15, 1
    %p38 = por %p36, %p37
    %p40 = scmp.ne.s32.totalorder %s23, %s39
    %p41 = scmp.eq.s32.totalorder %s15, 0
    %p42 = por %p40, %p41
    %s44 = sadd.s32 %s43, 1
    %p47 = scmp.eq.s32.totalorder %s9, 1
    %p48 = scmp.ne.s32.totalorder %s43, %s45
    %p49 = scmp.eq.s32.totalorder %s9, 0
    %p50 = por %p48, %p49
    %p51 = scmp.ne.s32.totalorder %s43, %s45
    %p52 = scmp.eq.s32.totalorder %s14, 1
    %p53 = por %p51, %p52
    %p54 = scmp.ne.s32.totalorder %s45, %s46
    %p55 = scmp.eq.s32.totalorder %s14, 0
    %p56 = por %p54, %p55
    %p57 = scmp.ne.s32.totalorder %s45, %s46
    %p58 = scmp.eq.s32.totalorder %s15, 1
    %p59 = por %p57, %p58
    %p61 = scmp.ne.s32.totalorder %s46, %s60
    %p62 = scmp.eq.s32.totalorder %s15, 0
    %p63 = por %p61, %p62
    %s65 = sadd.s32 %s64, 1
    %p68 = scmp.eq.s32.totalorder %s9, 1
    %p69 = scmp.ne.s32.totalorder %s64, %s66
    %p70 = scmp.eq.s32.totalorder %s9, 0
    %p71 = por %p69, %p70
    %p72 = scmp.ne.s32.totalorder %s64, %s66
    %p73 = scmp.eq.s32.totalorder %s14, 1
    %p74 = por %p72, %p73
    %p75 = scmp.ne.s32.totalorder %s66, %s67
    %p76 = scmp.eq.s32.totalorder %s14, 0
    %p77 = por %p75, %p76
    %p78 = scmp.ne.s32.totalorder %s66, %s67
    %p79 = scmp.eq.s32.totalorder %s15, 1
    %p80 = por %p78, %p79
    %p82 = scmp.ne.s32.totalorder %s67, %s81
    %p83 = scmp.eq.s32.totalorder %s15, 0
    %p84 = por %p82, %p83
    %s85 = ssub.s32 %s9, %s16
    %p86 = scmp.eq.s32.totalorder %s85, 0
    %s88 = sadd.s32 %s87, 1
    %s89 = scalar_select %p86, %s87, %s88
    %p92 = pneg %p86
    %p93 = scmp.eq.s32.totalorder %s9, 1
    %p94 = por %p92, %p93
    %p95 = scmp.ne.s32.totalorder %s87, %s90
    %p96 = scmp.eq.s32.totalorder %s9, 0
    %p97 = por %p95, %p96
    %p98 = scmp.ne.s32.totalorder %s87, %s90
    %p99 = scmp.eq.s32.totalorder %s14, 1
    %p100 = por %p98, %p99
    %p101 = scmp.ne.s32.totalorder %s90, %s91
    %p102 = scmp.eq.s32.totalorder %s14, 0
    %p103 = por %p101, %p102
    %p104 = scmp.ne.s32.totalorder %s90, %s91
    %p105 = scmp.eq.s32.totalorder %s15, 1
    %p106 = por %p104, %p105
    %p108 = scmp.ne.s32.totalorder %s91, %s107
    %p109 = scmp.eq.s32.totalorder %s15, 0
    %p110 = por %p108, %p109
    %p111 = scmp.le.s32.totalorder 1, %s9
    %p112 = scmp.lt.s32.totalorder %s9, 3
    %p113 = pnand %p111, %p112
    %p114 = pneg %p113
    // Predicated region
    $region9: #{forward.10} parent=5 // pred_check
      _
    $region10: #{forward.10} parent=5 // pred_check_branch
      %116 = sbr.rel (%p113) target = $region12
    $region11: #{forward.10} parent=5 // pred_region
      %s117 = ssub.s32 %s9, 1
      // Predicated region
      $region13: #{forward.10} parent=11 // pred_check
        %p118 = pneg %p56
      $region14: #{forward.10} parent=11 // pred_check_branch
        %120 = sbr.rel (%p118) target = $region16
      $region15: #{forward.10} parent=11 // pred_region
        _
      $region16: #{forward.10} parent=11 // pred_fallthru
        _
      // Predicated region
      $region17: #{forward.10} parent=11 // pred_check
        %p121 = pneg %p77
      $region18: #{forward.10} parent=11 // pred_check_branch
        %123 = sbr.rel (%p121) target = $region20
      $region19: #{forward.10} parent=11 // pred_region
        _
      $region20: #{forward.10} parent=11 // pred_fallthru
        _
    $region12: #{forward.10} parent=5 // pred_fallthru
      _
    %p124 = scmp.lt.s32.totalorder %s9, 2
    // Predicated region
    $region21: #{forward.10} parent=5 // pred_check
      %p125 = pneg %p124
    $region22: #{forward.10} parent=5 // pred_check_branch
      %127 = sbr.rel (%p125) target = $region24
    $region23: #{forward.10} parent=5 // pred_region
      // Predicated region
      $region25: #{forward.10} parent=23 // pred_check
        %p128 = pneg %p29
      $region26: #{forward.10} parent=23 // pred_check_branch
        %130 = sbr.rel (%p128) target = $region28
      $region27: #{forward.10} parent=23 // pred_region
        %s131 = smul.u32 128, %s9
        %p132 = scmp.lt.s32.totalorder %s131, 255
        %s133 = scalar_select %p132, %s131, 255
        %s134 = smul.addr %s133, 4
        %s135 = scalar_lea.vmem %s0, %s134
        %s136 = smul.u32 128, %s9
      $region28: #{forward.10} parent=23 // pred_fallthru
        _
    $region24: #{forward.10} parent=5 // pred_fallthru
      _
    %p137 = scmp.le.s32.totalorder 1, %s9
    %p138 = scmp.lt.s32.totalorder %s9, 3
    %p139 = pnand %p137, %p138
    %p140 = pneg %p139
    // Predicated region
    $region29: #{forward.10} parent=5 // pred_check
      _
    $region30: #{forward.10} parent=5 // pred_check_branch
      %142 = sbr.rel (%p139) target = $region32
    $region31: #{forward.10} parent=5 // pred_region
      %s143 = ssub.s32 %s9, 1
      %s144 = smul.u32 128, %s14
      %p145 = scmp.lt.s32.totalorder %s144, 255
      %s146 = scalar_select %p145, %s144, 255
      %s147 = smul.addr %s146, 4
      %s148 = scalar_lea.vmem %s0, %s147
      %p149 = pneg %p35
      %p150 = pneg %p32
      %p151 = pneg %p56
      %p152 = pneg %p53
      %p153 = pneg %p77
      %p154 = pneg %p74
      %p155 = pneg %p103
      %p156 = pneg %p100
      %s157 = smul.u32 128, %s14
      %p158 = scmp.lt.s32.totalorder %s157, 255
      %s159 = scalar_select %p158, %s157, 255
      %s160 = smul.addr %s159, 4
      %s161 = scalar_lea.vmem %s3, %s160
      %s162 = smul.u32 128, %s14
      %p163 = scmp.lt.s32.totalorder %s162, 255
      %s164 = scalar_select %p163, %s162, 255
      %s165 = smul.addr %s164, 4
      %s166 = scalar_lea.vmem %s0, %s165
      %s167 = smul.u32 128, %s14
      %s168 = smul.u32 128, %s14
      %p169 = scmp.lt.s32.totalorder %s168, 255
      %s170 = scalar_select %p169, %s168, 255
      %s171 = smul.addr %s170, 4
      %s172 = scalar_lea.vmem %s3, %s171
      %s173 = smul.u32 128, %s14
      %v175 = vld [vmem:[%s166] sm:$0xf]
      %v176 = vld [vmem:[%s166 + $0x4] sm:$0xf]
      %v177 = vld [vmem:[%s166 + $0x8] sm:$0xf]
      %v178 = vld [vmem:[%s166 + $0xc] sm:$0xf]
      %v179 = vld [vmem:[%s166 + $0x10] sm:$0xf]
      %v180 = vld [vmem:[%s166 + $0x14] sm:$0xf]
      %v181 = vld [vmem:[%s166 + $0x18] sm:$0xf]
      %v182 = vld [vmem:[%s166 + $0x1c] sm:$0xf]
      %v183 = vld [vmem:[%s166 + $0x20] sm:$0xf]
      %v184 = vld [vmem:[%s166 + $0x24] sm:$0xf]
      %v185 = vld [vmem:[%s166 + $0x28] sm:$0xf]
      %v186 = vld [vmem:[%s166 + $0x2c] sm:$0xf]
      %v187 = vld [vmem:[%s166 + $0x30] sm:$0xf]
      %v188 = vld [vmem:[%s166 + $0x34] sm:$0xf]
      %v189 = vld [vmem:[%s166 + $0x38] sm:$0xf]
      %v190 = vld [vmem:[%s166 + $0x3c] sm:$0xf]
      %v191 = vld [vmem:[%s166 + $0x40] sm:$0xf]
      %v192 = vld [vmem:[%s166 + $0x44] sm:$0xf]
      %v193 = vld [vmem:[%s166 + $0x48] sm:$0xf]
      %v194 = vld [vmem:[%s166 + $0x4c] sm:$0xf]
      %v195 = vld [vmem:[%s166 + $0x50] sm:$0xf]
      %v196 = vld [vmem:[%s166 + $0x54] sm:$0xf]
      %v197 = vld [vmem:[%s166 + $0x58] sm:$0xf]
      %v198 = vld [vmem:[%s166 + $0x5c] sm:$0xf]
      %v199 = vld [vmem:[%s166 + $0x60] sm:$0xf]
      %v200 = vld [vmem:[%s166 + $0x64] sm:$0xf]
      %v201 = vld [vmem:[%s166 + $0x68] sm:$0xf]
      %v202 = vld [vmem:[%s166 + $0x6c] sm:$0xf]
      %v203 = vld [vmem:[%s166 + $0x70] sm:$0xf]
      %v204 = vld [vmem:[%s166 + $0x74] sm:$0xf]
      %v205 = vld [vmem:[%s166 + $0x78] sm:$0xf]
      %v206 = vld [vmem:[%s166 + $0x7c] sm:$0xf]
      %v207 = vld [vmem:[%s166 + $0x80] sm:$0xf]
      %v208 = vld [vmem:[%s166 + $0x84] sm:$0xf]
      %v209 = vld [vmem:[%s166 + $0x88] sm:$0xf]
      %v210 = vld [vmem:[%s166 + $0x8c] sm:$0xf]
      %v211 = vld [vmem:[%s166 + $0x90] sm:$0xf]
      %v212 = vld [vmem:[%s166 + $0x94] sm:$0xf]
      %v213 = vld [vmem:[%s166 + $0x98] sm:$0xf]
      %v214 = vld [vmem:[%s166 + $0x9c] sm:$0xf]
      %v215 = vld [vmem:[%s166 + $0xa0] sm:$0xf]
      %v216 = vld [vmem:[%s166 + $0xa4] sm:$0xf]
      %v217 = vld [vmem:[%s166 + $0xa8] sm:$0xf]
      %v218 = vld [vmem:[%s166 + $0xac] sm:$0xf]
      %v219 = vld [vmem:[%s166 + $0xb0] sm:$0xf]
      %v220 = vld [vmem:[%s166 + $0xb4] sm:$0xf]
      %v221 = vld [vmem:[%s166 + $0xb8] sm:$0xf]
      %v222 = vld [vmem:[%s166 + $0xbc] sm:$0xf]
      %v223 = vld [vmem:[%s166 + $0xc0] sm:$0xf]
      %v224 = vld [vmem:[%s166 + $0xc4] sm:$0xf]
      %v225 = vld [vmem:[%s166 + $0xc8] sm:$0xf]
      %v226 = vld [vmem:[%s166 + $0xcc] sm:$0xf]
      %v227 = vld [vmem:[%s166 + $0xd0] sm:$0xf]
      %v228 = vld [vmem:[%s166 + $0xd4] sm:$0xf]
      %v229 = vld [vmem:[%s166 + $0xd8] sm:$0xf]
      %v230 = vld [vmem:[%s166 + $0xdc] sm:$0xf]
      %v231 = vld [vmem:[%s166 + $0xe0] sm:$0xf]
      %v232 = vld [vmem:[%s166 + $0xe4] sm:$0xf]
      %v233 = vld [vmem:[%s166 + $0xe8] sm:$0xf]
      %v234 = vld [vmem:[%s166 + $0xec] sm:$0xf]
      %v235 = vld [vmem:[%s166 + $0xf0] sm:$0xf]
      %v236 = vld [vmem:[%s166 + $0xf4] sm:$0xf]
      %v237 = vld [vmem:[%s166 + $0xf8] sm:$0xf]
      %v238 = vld [vmem:[%s166 + $0xfc] sm:$0xf]
      %v239 = vld [vmem:[%s166 + $0x100] sm:$0xf]
      %v240 = vld [vmem:[%s166 + $0x104] sm:$0xf]
      %v241 = vld [vmem:[%s166 + $0x108] sm:$0xf]
      %v242 = vld [vmem:[%s166 + $0x10c] sm:$0xf]
      %v243 = vld [vmem:[%s166 + $0x110] sm:$0xf]
      %v244 = vld [vmem:[%s166 + $0x114] sm:$0xf]
      %v245 = vld [vmem:[%s166 + $0x118] sm:$0xf]
      %v246 = vld [vmem:[%s166 + $0x11c] sm:$0xf]
      %v247 = vld [vmem:[%s166 + $0x120] sm:$0xf]
      %v248 = vld [vmem:[%s166 + $0x124] sm:$0xf]
      %v249 = vld [vmem:[%s166 + $0x128] sm:$0xf]
      %v250 = vld [vmem:[%s166 + $0x12c] sm:$0xf]
      %v251 = vld [vmem:[%s166 + $0x130] sm:$0xf]
      %v252 = vld [vmem:[%s166 + $0x134] sm:$0xf]
      %v253 = vld [vmem:[%s166 + $0x138] sm:$0xf]
      %v254 = vld [vmem:[%s166 + $0x13c] sm:$0xf]
      %v255 = vld [vmem:[%s166 + $0x140] sm:$0xf]
      %v256 = vld [vmem:[%s166 + $0x144] sm:$0xf]
      %v257 = vld [vmem:[%s166 + $0x148] sm:$0xf]
      %v258 = vld [vmem:[%s166 + $0x14c] sm:$0xf]
      %v259 = vld [vmem:[%s166 + $0x150] sm:$0xf]
      %v260 = vld [vmem:[%s166 + $0x154] sm:$0xf]
      %v261 = vld [vmem:[%s166 + $0x158] sm:$0xf]
      %v262 = vld [vmem:[%s166 + $0x15c] sm:$0xf]
      %v263 = vld [vmem:[%s166 + $0x160] sm:$0xf]
      %v264 = vld [vmem:[%s166 + $0x164] sm:$0xf]
      %v265 = vld [vmem:[%s166 + $0x168] sm:$0xf]
      %v266 = vld [vmem:[%s166 + $0x16c] sm:$0xf]
      %v267 = vld [vmem:[%s166 + $0x170] sm:$0xf]
      %v268 = vld [vmem:[%s166 + $0x174] sm:$0xf]
      %v269 = vld [vmem:[%s166 + $0x178] sm:$0xf]
      %v270 = vld [vmem:[%s166 + $0x17c] sm:$0xf]
      %v271 = vld [vmem:[%s166 + $0x180] sm:$0xf]
      %v272 = vld [vmem:[%s166 + $0x184] sm:$0xf]
      %v273 = vld [vmem:[%s166 + $0x188] sm:$0xf]
      %v274 = vld [vmem:[%s166 + $0x18c] sm:$0xf]
      %v275 = vld [vmem:[%s166 + $0x190] sm:$0xf]
      %v276 = vld [vmem:[%s166 + $0x194] sm:$0xf]
      %v277 = vld [vmem:[%s166 + $0x198] sm:$0xf]
      %v278 = vld [vmem:[%s166 + $0x19c] sm:$0xf]
      %v279 = vld [vmem:[%s166 + $0x1a0] sm:$0xf]
      %v280 = vld [vmem:[%s166 + $0x1a4] sm:$0xf]
      %v281 = vld [vmem:[%s166 + $0x1a8] sm:$0xf]
      %v282 = vld [vmem:[%s166 + $0x1ac] sm:$0xf]
      %v283 = vld [vmem:[%s166 + $0x1b0] sm:$0xf]
      %v284 = vld [vmem:[%s166 + $0x1b4] sm:$0xf]
      %v285 = vld [vmem:[%s166 + $0x1b8] sm:$0xf]
      %v286 = vld [vmem:[%s166 + $0x1bc] sm:$0xf]
      %v287 = vld [vmem:[%s166 + $0x1c0] sm:$0xf]
      %v288 = vld [vmem:[%s166 + $0x1c4] sm:$0xf]
      %v289 = vld [vmem:[%s166 + $0x1c8] sm:$0xf]
      %v290 = vld [vmem:[%s166 + $0x1cc] sm:$0xf]
      %v291 = vld [vmem:[%s166 + $0x1d0] sm:$0xf]
      %v292 = vld [vmem:[%s166 + $0x1d4] sm:$0xf]
      %v293 = vld [vmem:[%s166 + $0x1d8] sm:$0xf]
      %v294 = vld [vmem:[%s166 + $0x1dc] sm:$0xf]
      %v295 = vld [vmem:[%s166 + $0x1e0] sm:$0xf]
      %v296 = vld [vmem:[%s166 + $0x1e4] sm:$0xf]
      %v297 = vld [vmem:[%s166 + $0x1e8] sm:$0xf]
      %v298 = vld [vmem:[%s166 + $0x1ec] sm:$0xf]
      %v299 = vld [vmem:[%s166 + $0x1f0] sm:$0xf]
      %v300 = vld [vmem:[%s166 + $0x1f4] sm:$0xf]
      %v301 = vld [vmem:[%s166 + $0x1f8] sm:$0xf]
      %v302 = vld [vmem:[%s166 + $0x1fc] sm:$0xf]
      %v303 = vld [vmem:[%s1] sm:$0xf]
      %v304 = vld [vmem:[%s1 + $0x4] sm:$0xf]
      %v305 = vld [vmem:[%s1 + $0x8] sm:$0xf]
      %v306 = vld [vmem:[%s1 + $0xc] sm:$0x3]
      %v307 = vld [vmem:[%s2] sm:$0x1]
      %v309 = vlaneseq
      %v310 = vshrl.u32 %v309, 7
      %v311 = vsub.s32 0, %v310
      %v312 = vrot.slane %v307, %v311
      %v442 = vunpack.c.l.b16 %v175
      %v443 = vunpack.c.l.b16 %v176
      %v444 = vunpack.c.l.b16 %v177
      %v445 = vunpack.c.l.b16 %v178
      %v446 = vunpack.c.l.b16 %v179
      %v447 = vunpack.c.l.b16 %v180
      %v448 = vunpack.c.l.b16 %v181
      %v449 = vunpack.c.l.b16 %v182
      %v450 = vunpack.c.l.b16 %v183
      %v451 = vunpack.c.l.b16 %v184
      %v452 = vunpack.c.l.b16 %v185
      %v453 = vunpack.c.l.b16 %v186
      %v454 = vunpack.c.l.b16 %v187
      %v455 = vunpack.c.l.b16 %v188
      %v456 = vunpack.c.l.b16 %v189
      %v457 = vunpack.c.l.b16 %v190
      %v458 = vunpack.c.l.b16 %v191
      %v459 = vunpack.c.l.b16 %v192
      %v460 = vunpack.c.l.b16 %v193
      %v461 = vunpack.c.l.b16 %v194
      %v462 = vunpack.c.l.b16 %v195
      %v463 = vunpack.c.l.b16 %v196
      %v464 = vunpack.c.l.b16 %v197
      %v465 = vunpack.c.l.b16 %v198
      %v466 = vunpack.c.l.b16 %v199
      %v467 = vunpack.c.l.b16 %v200
      %v468 = vunpack.c.l.b16 %v201
      %v469 = vunpack.c.l.b16 %v202
      %v470 = vunpack.c.l.b16 %v203
      %v471 = vunpack.c.l.b16 %v204
      %v472 = vunpack.c.l.b16 %v205
      %v473 = vunpack.c.l.b16 %v206
      %v474 = vunpack.c.l.b16 %v207
      %v475 = vunpack.c.l.b16 %v208
      %v476 = vunpack.c.l.b16 %v209
      %v477 = vunpack.c.l.b16 %v210
      %v478 = vunpack.c.l.b16 %v211
      %v479 = vunpack.c.l.b16 %v212
      %v480 = vunpack.c.l.b16 %v213
      %v481 = vunpack.c.l.b16 %v214
      %v482 = vunpack.c.l.b16 %v215
      %v483 = vunpack.c.l.b16 %v216
      %v484 = vunpack.c.l.b16 %v217
      %v485 = vunpack.c.l.b16 %v218
      %v486 = vunpack.c.l.b16 %v219
      %v487 = vunpack.c.l.b16 %v220
      %v488 = vunpack.c.l.b16 %v221
      %v489 = vunpack.c.l.b16 %v222
      %v490 = vunpack.c.l.b16 %v223
      %v491 = vunpack.c.l.b16 %v224
      %v492 = vunpack.c.l.b16 %v225
      %v493 = vunpack.c.l.b16 %v226
      %v494 = vunpack.c.l.b16 %v227
      %v495 = vunpack.c.l.b16 %v228
      %v496 = vunpack.c.l.b16 %v229
      %v497 = vunpack.c.l.b16 %v230
      %v498 = vunpack.c.l.b16 %v231
      %v499 = vunpack.c.l.b16 %v232
      %v500 = vunpack.c.l.b16 %v233
      %v501 = vunpack.c.l.b16 %v234
      %v502 = vunpack.c.l.b16 %v235
      %v503 = vunpack.c.l.b16 %v236
      %v504 = vunpack.c.l.b16 %v237
      %v505 = vunpack.c.l.b16 %v238
      %v506 = vunpack.c.l.b16 %v239
      %v507 = vunpack.c.l.b16 %v240
      %v508 = vunpack.c.l.b16 %v241
      %v509 = vunpack.c.l.b16 %v242
      %v510 = vunpack.c.l.b16 %v243
      %v511 = vunpack.c.l.b16 %v244
      %v512 = vunpack.c.l.b16 %v245
      %v513 = vunpack.c.l.b16 %v246
      %v514 = vunpack.c.l.b16 %v247
      %v515 = vunpack.c.l.b16 %v248
      %v516 = vunpack.c.l.b16 %v249
      %v517 = vunpack.c.l.b16 %v250
      %v518 = vunpack.c.l.b16 %v251
      %v519 = vunpack.c.l.b16 %v252
      %v520 = vunpack.c.l.b16 %v253
      %v521 = vunpack.c.l.b16 %v254
      %v522 = vunpack.c.l.b16 %v255
      %v523 = vunpack.c.l.b16 %v256
      %v524 = vunpack.c.l.b16 %v257
      %v525 = vunpack.c.l.b16 %v258
      %v526 = vunpack.c.l.b16 %v259
      %v527 = vunpack.c.l.b16 %v260
      %v528 = vunpack.c.l.b16 %v261
      %v529 = vunpack.c.l.b16 %v262
      %v530 = vunpack.c.l.b16 %v263
      %v531 = vunpack.c.l.b16 %v264
      %v532 = vunpack.c.l.b16 %v265
      %v533 = vunpack.c.l.b16 %v266
      %v534 = vunpack.c.l.b16 %v267
      %v535 = vunpack.c.l.b16 %v268
      %v536 = vunpack.c.l.b16 %v269
      %v537 = vunpack.c.l.b16 %v270
      %v538 = vunpack.c.l.b16 %v271
      %v539 = vunpack.c.l.b16 %v272
      %v540 = vunpack.c.l.b16 %v273
      %v541 = vunpack.c.l.b16 %v274
      %v542 = vunpack.c.l.b16 %v275
      %v543 = vunpack.c.l.b16 %v276
      %v544 = vunpack.c.l.b16 %v277
      %v545 = vunpack.c.l.b16 %v278
      %v546 = vunpack.c.l.b16 %v279
      %v547 = vunpack.c.l.b16 %v280
      %v548 = vunpack.c.l.b16 %v281
      %v549 = vunpack.c.l.b16 %v282
      %v550 = vunpack.c.l.b16 %v283
      %v551 = vunpack.c.l.b16 %v284
      %v552 = vunpack.c.l.b16 %v285
      %v553 = vunpack.c.l.b16 %v286
      %v554 = vunpack.c.l.b16 %v287
      %v555 = vunpack.c.l.b16 %v288
      %v556 = vunpack.c.l.b16 %v289
      %v557 = vunpack.c.l.b16 %v290
      %v558 = vunpack.c.l.b16 %v291
      %v559 = vunpack.c.l.b16 %v292
      %v560 = vunpack.c.l.b16 %v293
      %v561 = vunpack.c.l.b16 %v294
      %v562 = vunpack.c.l.b16 %v295
      %v563 = vunpack.c.l.b16 %v296
      %v564 = vunpack.c.l.b16 %v297
      %v565 = vunpack.c.l.b16 %v298
      %v566 = vunpack.c.l.b16 %v299
      %v567 = vunpack.c.l.b16 %v300
      %v568 = vunpack.c.l.b16 %v301
      %v569 = vunpack.c.l.b16 %v302
      %v570 = vpack.c.b16 %v443, %v442
      %v571 = vpack.c.b16 %v445, %v444
      %v572 = vpack.c.b16 %v447, %v446
      %v573 = vpack.c.b16 %v449, %v448
      %v574 = vpack.c.b16 %v451, %v450
      %v575 = vpack.c.b16 %v453, %v452
      %v576 = vpack.c.b16 %v455, %v454
      %v577 = vpack.c.b16 %v457, %v456
      %v578 = vpack.c.b16 %v459, %v458
      %v579 = vpack.c.b16 %v461, %v460
      %v580 = vpack.c.b16 %v463, %v462
      %v581 = vpack.c.b16 %v465, %v464
      %v582 = vpack.c.b16 %v467, %v466
      %v583 = vpack.c.b16 %v469, %v468
      %v584 = vpack.c.b16 %v471, %v470
      %v585 = vpack.c.b16 %v473, %v472
      %v586 = vpack.c.b16 %v475, %v474
      %v587 = vpack.c.b16 %v477, %v476
      %v588 = vpack.c.b16 %v479, %v478
      %v589 = vpack.c.b16 %v481, %v480
      %v590 = vpack.c.b16 %v483, %v482
      %v591 = vpack.c.b16 %v485, %v484
      %v592 = vpack.c.b16 %v487, %v486
      %v593 = vpack.c.b16 %v489, %v488
      %v594 = vpack.c.b16 %v491, %v490
      %v595 = vpack.c.b16 %v493, %v492
      %v596 = vpack.c.b16 %v495, %v494
      %v597 = vpack.c.b16 %v497, %v496
      %v598 = vpack.c.b16 %v499, %v498
      %v599 = vpack.c.b16 %v501, %v500
      %v600 = vpack.c.b16 %v503, %v502
      %v601 = vpack.c.b16 %v505, %v504
      %v602 = vpack.c.b16 %v507, %v506
      %v603 = vpack.c.b16 %v509, %v508
      %v604 = vpack.c.b16 %v511, %v510
      %v605 = vpack.c.b16 %v513, %v512
      %v606 = vpack.c.b16 %v515, %v514
      %v607 = vpack.c.b16 %v517, %v516
      %v608 = vpack.c.b16 %v519, %v518
      %v609 = vpack.c.b16 %v521, %v520
      %v610 = vpack.c.b16 %v523, %v522
      %v611 = vpack.c.b16 %v525, %v524
      %v612 = vpack.c.b16 %v527, %v526
      %v613 = vpack.c.b16 %v529, %v528
      %v614 = vpack.c.b16 %v531, %v530
      %v615 = vpack.c.b16 %v533, %v532
      %v616 = vpack.c.b16 %v535, %v534
      %v617 = vpack.c.b16 %v537, %v536
      %v618 = vpack.c.b16 %v539, %v538
      %v619 = vpack.c.b16 %v541, %v540
      %v620 = vpack.c.b16 %v543, %v542
      %v621 = vpack.c.b16 %v545, %v544
      %v622 = vpack.c.b16 %v547, %v546
      %v623 = vpack.c.b16 %v549, %v548
      %v624 = vpack.c.b16 %v551, %v550
      %v625 = vpack.c.b16 %v553, %v552
      %v626 = vpack.c.b16 %v555, %v554
      %v627 = vpack.c.b16 %v557, %v556
      %v628 = vpack.c.b16 %v559, %v558
      %v629 = vpack.c.b16 %v561, %v560
      %v630 = vpack.c.b16 %v563, %v562
      %v631 = vpack.c.b16 %v565, %v564
      %v632 = vpack.c.b16 %v567, %v566
      %v633 = vpack.c.b16 %v569, %v568
      %v638 = vunpack.c.l.b16 %v303
      %v639 = vunpack.c.l.b16 %v304
      %v640 = vunpack.c.l.b16 %v305
      %v641 = vunpack.c.l.b16 %v306
      %v642 = vpack.c.b16 %v639, %v638
      %v643 = vpack.c.b16 %v641, %v640
      %vm645 = vcmask 220160
      %v647 = vsel %vm645, %v570, 0
      %v650 = vsel %vm645, %v571, 0
      %v653 = vsel %vm645, %v572, 0
      %v656 = vsel %vm645, %v573, 0
      %v659 = vsel %vm645, %v574, 0
      %v662 = vsel %vm645, %v575, 0
      %v665 = vsel %vm645, %v576, 0
      %v668 = vsel %vm645, %v577, 0
      %v671 = vsel %vm645, %v578, 0
      %v674 = vsel %vm645, %v579, 0
      %v677 = vsel %vm645, %v580, 0
      %v680 = vsel %vm645, %v581, 0
      %v683 = vsel %vm645, %v582, 0
      %v686 = vsel %vm645, %v583, 0
      %v689 = vsel %vm645, %v584, 0
      %v692 = vsel %vm645, %v585, 0
      %v695 = vsel %vm645, %v586, 0
      %v698 = vsel %vm645, %v587, 0
      %v701 = vsel %vm645, %v588, 0
      %v704 = vsel %vm645, %v589, 0
      %v707 = vsel %vm645, %v590, 0
      %v710 = vsel %vm645, %v591, 0
      %v713 = vsel %vm645, %v592, 0
      %v716 = vsel %vm645, %v593, 0
      %v719 = vsel %vm645, %v594, 0
      %v722 = vsel %vm645, %v595, 0
      %v725 = vsel %vm645, %v596, 0
      %v728 = vsel %vm645, %v597, 0
      %v731 = vsel %vm645, %v598, 0
      %v734 = vsel %vm645, %v599, 0
      %v737 = vsel %vm645, %v600, 0
      %v740 = vsel %vm645, %v601, 0
      %v743 = vsel %vm645, %v602, 0
      %v746 = vsel %vm645, %v603, 0
      %v749 = vsel %vm645, %v604, 0
      %v752 = vsel %vm645, %v605, 0
      %v755 = vsel %vm645, %v606, 0
      %v758 = vsel %vm645, %v607, 0
      %v761 = vsel %vm645, %v608, 0
      %v764 = vsel %vm645, %v609, 0
      %v767 = vsel %vm645, %v610, 0
      %v770 = vsel %vm645, %v611, 0
      %v773 = vsel %vm645, %v612, 0
      %v776 = vsel %vm645, %v613, 0
      %v779 = vsel %vm645, %v614, 0
      %v782 = vsel %vm645, %v615, 0
      %v785 = vsel %vm645, %v616, 0
      %v788 = vsel %vm645, %v617, 0
      %v791 = vsel %vm645, %v618, 0
      %v794 = vsel %vm645, %v619, 0
      %v797 = vsel %vm645, %v620, 0
      %v800 = vsel %vm645, %v621, 0
      %v803 = vsel %vm645, %v622, 0
      %v806 = vsel %vm645, %v623, 0
      %v809 = vsel %vm645, %v624, 0
      %v812 = vsel %vm645, %v625, 0
      %v815 = vsel %vm645, %v626, 0
      %v818 = vsel %vm645, %v627, 0
      %v821 = vsel %vm645, %v628, 0
      %v824 = vsel %vm645, %v629, 0
      %v827 = vsel %vm645, %v630, 0
      %v830 = vsel %vm645, %v631, 0
      %v833 = vsel %vm645, %v632, 0
      %v836 = vsel %vm645, %v633, 0
      %vm838 = vcmask 1044480
      %vm839 = vcmask 1045504
      %v840 = vsel %vm838, 4294967295, 65535
      %v841 = vsel %vm839, %v840, 0
      %v843 = vand.u32 %v643, %v841
      %845 = vmatprep.subr.bf16.mxu0 0
      %846 = vmatpush1.bf16.msra.mxu0 %v642
      %847 = vmatprep.subr.bf16.mxu0 0
      %848 = vmatpush1.bf16.msra.mxu0 %v843
      %849 = vmatprep.subr.bf16.mxu0 0
      %850 = vmatpush1.bf16.msra.mxu0 0
      %851 = vmatprep.subr.bf16.mxu0 0
      %852 = vmatpush1.bf16.msra.mxu0 0
      %853 = vmatprep.subr.bf16.mxu0 0
      %854 = vmatpush1.bf16.msra.mxu0 0
      %855 = vmatprep.subr.bf16.mxu0 0
      %856 = vmatpush1.bf16.msra.mxu0 0
      %857 = vmatprep.subr.bf16.mxu0 0
      %858 = vmatpush1.bf16.msra.mxu0 0
      %859 = vmatprep.subr.bf16.mxu0 0
      %860 = vmatpush1.bf16.msra.mxu0 0
      %861 = vmatprep.subr.bf16.mxu0 0
      %862 = vmatpush1.bf16.msra.mxu0 0
      %863 = vmatprep.subr.bf16.mxu0 0
      %864 = vmatpush1.bf16.msra.mxu0 0
      %865 = vmatprep.subr.bf16.mxu0 0
      %866 = vmatpush1.bf16.msra.mxu0 0
      %867 = vmatprep.subr.bf16.mxu0 0
      %868 = vmatpush1.bf16.msra.mxu0 0
      %869 = vmatprep.subr.bf16.mxu0 0
      %870 = vmatpush1.bf16.msra.mxu0 0
      %871 = vmatprep.subr.bf16.mxu0 0
      %872 = vmatpush1.bf16.msra.mxu0 0
      %873 = vmatprep.subr.bf16.mxu0 0
      %874 = vmatpush1.bf16.msra.mxu0 0
      %875 = vmatprep.subr.bf16.mxu0 0
      %876 = vmatpush1.bf16.msra.mxu0 0
      %877 = vmatprep.mubr.bf16.mxu0 0
      %878 = vmatmul.mubr.bf16.gmra.mrb[0].mxu0 %v647
      %v879 = vpop.f32.mrb[0].mxu0
      %v880 = vadd.f32 %v312, %v879
      %v881 = vpop.f32.mrb[0].mxu0
      %v882 = vpop.f32.mrb[0].mxu0
      %v883 = vadd.f32 %v312, %v882
      %v884 = vpop.f32.mrb[0].mxu0
      %885 = vmatprep.mubr.bf16.mxu0 0
      %886 = vmatmul.mubr.bf16.gmra.mrb[0].mxu0 %v650
      %v887 = vpop.f32.mrb[0].mxu0
      %v888 = vadd.f32 %v312, %v887
      %v889 = vpop.f32.mrb[0].mxu0
      %v890 = vpop.f32.mrb[0].mxu0
      %v891 = vadd.f32 %v312, %v890
      %v892 = vpop.f32.mrb[0].mxu0
      %893 = vmatprep.mubr.bf16.mxu0 0
      %894 = vmatmul.mubr.bf16.gmra.mrb[0].mxu0 %v653
      %v895 = vpop.f32.mrb[0].mxu0
      %v896 = vadd.f32 %v312, %v895
      %v897 = vpop.f32.mrb[0].mxu0
      %v898 = vpop.f32.mrb[0].mxu0
      %v899 = vadd.f32 %v312, %v898
      %v900 = vpop.f32.mrb[0].mxu0
      %901 = vmatprep.mubr.bf16.mxu0 0
      %902 = vmatmul.mubr.bf16.gmra.mrb[0].mxu0 %v656
      %v903 = vpop.f32.mrb[0].mxu0
      %v904 = vadd.f32 %v312, %v903
      %v905 = vpop.f32.mrb[0].mxu0
      %v906 = vpop.f32.mrb[0].mxu0
      %v907 = vadd.f32 %v312, %v906
      %v908 = vpop.f32.mrb[0].mxu0
      %909 = vmatprep.mubr.bf16.mxu0 0
      %910 = vmatmul.mubr.bf16.gmra.mrb[0].mxu0 %v659
      %v911 = vpop.f32.mrb[0].mxu0
      %v912 = vadd.f32 %v312, %v911
      %v913 = vpop.f32.mrb[0].mxu0
      %v914 = vpop.f32.mrb[0].mxu0
      %v915 = vadd.f32 %v312, %v914
      %v916 = vpop.f32.mrb[0].mxu0
      %917 = vmatprep.mubr.bf16.mxu0 0
      %918 = vmatmul.mubr.bf16.gmra.mrb[0].mxu0 %v662
      %v919 = vpop.f32.mrb[0].mxu0
      %v920 = vadd.f32 %v312, %v919
      %v921 = vpop.f32.mrb[0].mxu0
      %v922 = vpop.f32.mrb[0].mxu0
      %v923 = vadd.f32 %v312, %v922
      %v924 = vpop.f32.mrb[0].mxu0
      %925 = vmatprep.mubr.bf16.mxu0 0
      %926 = vmatmul.mubr.bf16.gmra.mrb[0].mxu0 %v665
      %v927 = vpop.f32.mrb[0].mxu0
      %v928 = vadd.f32 %v312, %v927
      %v929 = vpop.f32.mrb[0].mxu0
      %v930 = vpop.f32.mrb[0].mxu0
      %v931 = vadd.f32 %v312, %v930
      %v932 = vpop.f32.mrb[0].mxu0
      %933 = vmatprep.mubr.bf16.mxu0 0
      %934 = vmatmul.mubr.bf16.gmra.mrb[0].mxu0 %v668
      %v935 = vpop.f32.mrb[0].mxu0
      %v936 = vadd.f32 %v312, %v935
      %v937 = vpop.f32.mrb[0].mxu0
      %v938 = vpop.f32.mrb[0].mxu0
      %v939 = vadd.f32 %v312, %v938
      %v940 = vpop.f32.mrb[0].mxu0
      %941 = vmatprep.mubr.bf16.mxu0 0
      %942 = vmatmul.mubr.bf16.gmra.mrb[0].mxu0 %v671
      %v943 = vpop.f32.mrb[0].mxu0
      %v944 = vadd.f32 %v312, %v943
      %v945 = vpop.f32.mrb[0].mxu0
      %v946 = vpop.f32.mrb[0].mxu0
      %v947 = vadd.f32 %v312, %v946
      %v948 = vpop.f32.mrb[0].mxu0
      %949 = vmatprep.mubr.bf16.mxu0 0
      %950 = vmatmul.mubr.bf16.gmra.mrb[0].mxu0 %v674
      %v951 = vpop.f32.mrb[0].mxu0
      %v952 = vadd.f32 %v312, %v951
      %v953 = vpop.f32.mrb[0].mxu0
      %v954 = vpop.f32.mrb[0].mxu0
      %v955 = vadd.f32 %v312, %v954
      %v956 = vpop.f32.mrb[0].mxu0
      %957 = vmatprep.mubr.bf16.mxu0 0
      %958 = vmatmul.mubr.bf16.gmra.mrb[0].mxu0 %v677
      %v959 = vpop.f32.mrb[0].mxu0
      %v960 = vadd.f32 %v312, %v959
      %v961 = vpop.f32.mrb[0].mxu0
      %v962 = vpop.f32.mrb[0].mxu0
      %v963 = vadd.f32 %v312, %v962
      %v964 = vpop.f32.mrb[0].mxu0
      %965 = vmatprep.mubr.bf16.mxu0 0
      %966 = vmatmul.mubr.bf16.gmra.mrb[0].mxu0 %v680
      %v967 = vpop.f32.mrb[0].mxu0
      %v968 = vadd.f32 %v312, %v967
      %v969 = vpop.f32.mrb[0].mxu0
      %v970 = vpop.f32.mrb[0].mxu0
      %v971 = vadd.f32 %v312, %v970
      %v972 = vpop.f32.mrb[0].mxu0
      %973 = vmatprep.mubr.bf16.mxu0 0
      %974 = vmatmul.mubr.bf16.gmra.mrb[0].mxu0 %v683
      %v975 = vpop.f32.mrb[0].mxu0
      %v976 = vadd.f32 %v312, %v975
      %v977 = vpop.f32.mrb[0].mxu0
      %v978 = vpop.f32.mrb[0].mxu0
      %v979 = vadd.f32 %v312, %v978
      %v980 = vpop.f32.mrb[0].mxu0
      %981 = vmatprep.mubr.bf16.mxu0 0
      %982 = vmatmul.mubr.bf16.gmra.mrb[0].mxu0 %v686
      %v983 = vpop.f32.mrb[0].mxu0
      %v984 = vadd.f32 %v312, %v983
      %v985 = vpop.f32.mrb[0].mxu0
      %v986 = vpop.f32.mrb[0].mxu0
      %v987 = vadd.f32 %v312, %v986
      %v988 = vpop.f32.mrb[0].mxu0
      %989 = vmatprep.mubr.bf16.mxu0 0
      %990 = vmatmul.mubr.bf16.gmra.mrb[0].mxu0 %v689
      %v991 = vpop.f32.mrb[0].mxu0
      %v992 = vadd.f32 %v312, %v991
      %v993 = vpop.f32.mrb[0].mxu0
      %v994 = vpop.f32.mrb[0].mxu0
      %v995 = vadd.f32 %v312, %v994
      %v996 = vpop.f32.mrb[0].mxu0
      %997 = vmatprep.mubr.bf16.mxu0 0
      %998 = vmatmul.mubr.bf16.gmra.mrb[0].mxu0 %v692
      %v999 = vpop.f32.mrb[0].mxu0
      %v1000 = vadd.f32 %v312, %v999
      %v1001 = vpop.f32.mrb[0].mxu0
      %v1002 = vpop.f32.mrb[0].mxu0
      %v1003 = vadd.f32 %v312, %v1002
      %v1004 = vpop.f32.mrb[0].mxu0
      %1005 = vmatprep.mubr.bf16.mxu0 0
      %1006 = vmatmul.mubr.bf16.gmra.mrb[0].mxu0 %v695
      %v1007 = vpop.f32.mrb[0].mxu0
      %v1008 = vadd.f32 %v312, %v1007
      %v1009 = vpop.f32.mrb[0].mxu0
      %v1010 = vpop.f32.mrb[0].mxu0
      %v1011 = vadd.f32 %v312, %v1010
      %v1012 = vpop.f32.mrb[0].mxu0
      %1013 = vmatprep.mubr.bf16.mxu0 0
      %1014 = vmatmul.mubr.bf16.gmra.mrb[0].mxu0 %v698
      %v1015 = vpop.f32.mrb[0].mxu0
      %v1016 = vadd.f32 %v312, %v1015
      %v1017 = vpop.f32.mrb[0].mxu0
      %v1018 = vpop.f32.mrb[0].mxu0
      %v1019 = vadd.f32 %v312, %v1018
      %v1020 = vpop.f32.mrb[0].mxu0
      %1021 = vmatprep.mubr.bf16.mxu0 0
      %1022 = vmatmul.mubr.bf16.gmra.mrb[0].mxu0 %v701
      %v1023 = vpop.f32.mrb[0].mxu0
      %v1024 = vadd.f32 %v312, %v1023
      %v1025 = vpop.f32.mrb[0].mxu0
      %v1026 = vpop.f32.mrb[0].mxu0
      %v1027 = vadd.f32 %v312, %v1026
      %v1028 = vpop.f32.mrb[0].mxu0
      %1029 = vmatprep.mubr.bf16.mxu0 0
      %1030 = vmatmul.mubr.bf16.gmra.mrb[0].mxu0 %v704
      %v1031 = vpop.f32.mrb[0].mxu0
      %v1032 = vadd.f32 %v312, %v1031
      %v1033 = vpop.f32.mrb[0].mxu0
      %v1034 = vpop.f32.mrb[0].mxu0
      %v1035 = vadd.f32 %v312, %v1034
      %v1036 = vpop.f32.mrb[0].mxu0
      %1037 = vmatprep.mubr.bf16.mxu0 0
      %1038 = vmatmul.mubr.bf16.gmra.mrb[0].mxu0 %v707
      %v1039 = vpop.f32.mrb[0].mxu0
      %v1040 = vadd.f32 %v312, %v1039
      %v1041 = vpop.f32.mrb[0].mxu0
      %v1042 = vpop.f32.mrb[0].mxu0
      %v1043 = vadd.f32 %v312, %v1042
      %v1044 = vpop.f32.mrb[0].mxu0
      %1045 = vmatprep.mubr.bf16.mxu0 0
      %1046 = vmatmul.mubr.bf16.gmra.mrb[0].mxu0 %v710
      %v1047 = vpop.f32.mrb[0].mxu0
      %v1048 = vadd.f32 %v312, %v1047
      %v1049 = vpop.f32.mrb[0].mxu0
      %v1050 = vpop.f32.mrb[0].mxu0
      %v1051 = vadd.f32 %v312, %v1050
      %v1052 = vpop.f32.mrb[0].mxu0
      %1053 = vmatprep.mubr.bf16.mxu0 0
      %1054 = vmatmul.mubr.bf16.gmra.mrb[0].mxu0 %v713
      %v1055 = vpop.f32.mrb[0].mxu0
      %v1056 = vadd.f32 %v312, %v1055
      %v1057 = vpop.f32.mrb[0].mxu0
      %v1058 = vpop.f32.mrb[0].mxu0
      %v1059 = vadd.f32 %v312, %v1058
      %v1060 = vpop.f32.mrb[0].mxu0
      %1061 = vmatprep.mubr.bf16.mxu0 0
      %1062 = vmatmul.mubr.bf16.gmra.mrb[0].mxu0 %v716
      %v1063 = vpop.f32.mrb[0].mxu0
      %v1064 = vadd.f32 %v312, %v1063
      %v1065 = vpop.f32.mrb[0].mxu0
      %v1066 = vpop.f32.mrb[0].mxu0
      %v1067 = vadd.f32 %v312, %v1066
      %v1068 = vpop.f32.mrb[0].mxu0
      %1069 = vmatprep.mubr.bf16.mxu0 0
      %1070 = vmatmul.mubr.bf16.gmra.mrb[0].mxu0 %v719
      %v1071 = vpop.f32.mrb[0].mxu0
      %v1072 = vadd.f32 %v312, %v1071
      %v1073 = vpop.f32.mrb[0].mxu0
      %v1074 = vpop.f32.mrb[0].mxu0
      %v1075 = vadd.f32 %v312, %v1074
      %v1076 = vpop.f32.mrb[0].mxu0
      %1077 = vmatprep.mubr.bf16.mxu0 0
      %1078 = vmatmul.mubr.bf16.gmra.mrb[0].mxu0 %v722
      %v1079 = vpop.f32.mrb[0].mxu0
      %v1080 = vadd.f32 %v312, %v1079
      %v1081 = vpop.f32.mrb[0].mxu0
      %v1082 = vpop.f32.mrb[0].mxu0
      %v1083 = vadd.f32 %v312, %v1082
      %v1084 = vpop.f32.mrb[0].mxu0
      %1085 = vmatprep.mubr.bf16.mxu0 0
      %1086 = vmatmul.mubr.bf16.gmra.mrb[0].mxu0 %v725
      %v1087 = vpop.f32.mrb[0].mxu0
      %v1088 = vadd.f32 %v312, %v1087
      %v1089 = vpop.f32.mrb[0].mxu0
      %v1090 = vpop.f32.mrb[0].mxu0
      %v1091 = vadd.f32 %v312, %v1090
      %v1092 = vpop.f32.mrb[0].mxu0
      %1093 = vmatprep.mubr.bf16.mxu0 0
      %1094 = vmatmul.mubr.bf16.gmra.mrb[0].mxu0 %v728
      %v1095 = vpop.f32.mrb[0].mxu0
      %v1096 = vadd.f32 %v312, %v1095
      %v1097 = vpop.f32.mrb[0].mxu0
      %v1098 = vpop.f32.mrb[0].mxu0
      %v1099 = vadd.f32 %v312, %v1098
      %v1100 = vpop.f32.mrb[0].mxu0
      %1101 = vmatprep.mubr.bf16.mxu0 0
      %1102 = vmatmul.mubr.bf16.gmra.mrb[0].mxu0 %v731
      %v1103 = vpop.f32.mrb[0].mxu0
      %v1104 = vadd.f32 %v312, %v1103
      %v1105 = vpop.f32.mrb[0].mxu0
      %v1106 = vpop.f32.mrb[0].mxu0
      %v1107 = vadd.f32 %v312, %v1106
      %v1108 = vpop.f32.mrb[0].mxu0
      %1109 = vmatprep.mubr.bf16.mxu0 0
      %1110 = vmatmul.mubr.bf16.gmra.mrb[0].mxu0 %v734
      %v1111 = vpop.f32.mrb[0].mxu0
      %v1112 = vadd.f32 %v312, %v1111
      %v1113 = vpop.f32.mrb[0].mxu0
      %v1114 = vpop.f32.mrb[0].mxu0
      %v1115 = vadd.f32 %v312, %v1114
      %v1116 = vpop.f32.mrb[0].mxu0
      %1117 = vmatprep.mubr.bf16.mxu0 0
      %1118 = vmatmul.mubr.bf16.gmra.mrb[0].mxu0 %v737
      %v1119 = vpop.f32.mrb[0].mxu0
      %v1120 = vadd.f32 %v312, %v1119
      %v1121 = vpop.f32.mrb[0].mxu0
      %v1122 = vpop.f32.mrb[0].mxu0
      %v1123 = vadd.f32 %v312, %v1122
      %v1124 = vpop.f32.mrb[0].mxu0
      %1125 = vmatprep.mubr.bf16.mxu0 0
      %1126 = vmatmul.mubr.bf16.gmra.mrb[0].mxu0 %v740
      %v1127 = vpop.f32.mrb[0].mxu0
      %v1128 = vadd.f32 %v312, %v1127
      %v1129 = vpop.f32.mrb[0].mxu0
      %v1130 = vpop.f32.mrb[0].mxu0
      %v1131 = vadd.f32 %v312, %v1130
      %v1132 = vpop.f32.mrb[0].mxu0
      %1133 = vmatprep.mubr.bf16.mxu0 0
      %1134 = vmatmul.mubr.bf16.gmra.mrb[0].mxu0 %v743
      %v1135 = vpop.f32.mrb[0].mxu0
      %v1136 = vadd.f32 %v312, %v1135
      %v1137 = vpop.f32.mrb[0].mxu0
      %v1138 = vpop.f32.mrb[0].mxu0
      %v1139 = vadd.f32 %v312, %v1138
      %v1140 = vpop.f32.mrb[0].mxu0
      %1141 = vmatprep.mubr.bf16.mxu0 0
      %1142 = vmatmul.mubr.bf16.gmra.mrb[0].mxu0 %v746
      %v1143 = vpop.f32.mrb[0].mxu0
      %v1144 = vadd.f32 %v312, %v1143
      %v1145 = vpop.f32.mrb[0].mxu0
      %v1146 = vpop.f32.mrb[0].mxu0
      %v1147 = vadd.f32 %v312, %v1146
      %v1148 = vpop.f32.mrb[0].mxu0
      %1149 = vmatprep.mubr.bf16.mxu0 0
      %1150 = vmatmul.mubr.bf16.gmra.mrb[0].mxu0 %v749
      %v1151 = vpop.f32.mrb[0].mxu0
      %v1152 = vadd.f32 %v312, %v1151
      %v1153 = vpop.f32.mrb[0].mxu0
      %v1154 = vpop.f32.mrb[0].mxu0
      %v1155 = vadd.f32 %v312, %v1154
      %v1156 = vpop.f32.mrb[0].mxu0
      %1157 = vmatprep.mubr.bf16.mxu0 0
      %1158 = vmatmul.mubr.bf16.gmra.mrb[0].mxu0 %v752
      %v1159 = vpop.f32.mrb[0].mxu0
      %v1160 = vadd.f32 %v312, %v1159
      %v1161 = vpop.f32.mrb[0].mxu0
      %v1162 = vpop.f32.mrb[0].mxu0
      %v1163 = vadd.f32 %v312, %v1162
      %v1164 = vpop.f32.mrb[0].mxu0
      %1165 = vmatprep.mubr.bf16.mxu0 0
      %1166 = vmatmul.mubr.bf16.gmra.mrb[0].mxu0 %v755
      %v1167 = vpop.f32.mrb[0].mxu0
      %v1168 = vadd.f32 %v312, %v1167
      %v1169 = vpop.f32.mrb[0].mxu0
      %v1170 = vpop.f32.mrb[0].mxu0
      %v1171 = vadd.f32 %v312, %v1170
      %v1172 = vpop.f32.mrb[0].mxu0
      %1173 = vmatprep.mubr.bf16.mxu0 0
      %1174 = vmatmul.mubr.bf16.gmra.mrb[0].mxu0 %v758
      %v1175 = vpop.f32.mrb[0].mxu0
      %v1176 = vadd.f32 %v312, %v1175
      %v1177 = vpop.f32.mrb[0].mxu0
      %v1178 = vpop.f32.mrb[0].mxu0
      %v1179 = vadd.f32 %v312, %v1178
      %v1180 = vpop.f32.mrb[0].mxu0
      %1181 = vmatprep.mubr.bf16.mxu0 0
      %1182 = vmatmul.mubr.bf16.gmra.mrb[0].mxu0 %v761
      %v1183 = vpop.f32.mrb[0].mxu0
      %v1184 = vadd.f32 %v312, %v1183
      %v1185 = vpop.f32.mrb[0].mxu0
      %v1186 = vpop.f32.mrb[0].mxu0
      %v1187 = vadd.f32 %v312, %v1186
      %v1188 = vpop.f32.mrb[0].mxu0
      %1189 = vmatprep.mubr.bf16.mxu0 0
      %1190 = vmatmul.mubr.bf16.gmra.mrb[0].mxu0 %v764
      %v1191 = vpop.f32.mrb[0].mxu0
      %v1192 = vadd.f32 %v312, %v1191
      %v1193 = vpop.f32.mrb[0].mxu0
      %v1194 = vpop.f32.mrb[0].mxu0
      %v1195 = vadd.f32 %v312, %v1194
      %v1196 = vpop.f32.mrb[0].mxu0
      %1197 = vmatprep.mubr.bf16.mxu0 0
      %1198 = vmatmul.mubr.bf16.gmra.mrb[0].mxu0 %v767
      %v1199 = vpop.f32.mrb[0].mxu0
      %v1200 = vadd.f32 %v312, %v1199
      %v1201 = vpop.f32.mrb[0].mxu0
      %v1202 = vpop.f32.mrb[0].mxu0
      %v1203 = vadd.f32 %v312, %v1202
      %v1204 = vpop.f32.mrb[0].mxu0
      %1205 = vmatprep.mubr.bf16.mxu0 0
      %1206 = vmatmul.mubr.bf16.gmra.mrb[0].mxu0 %v770
      %v1207 = vpop.f32.mrb[0].mxu0
      %v1208 = vadd.f32 %v312, %v1207
      %v1209 = vpop.f32.mrb[0].mxu0
      %v1210 = vpop.f32.mrb[0].mxu0
      %v1211 = vadd.f32 %v312, %v1210
      %v1212 = vpop.f32.mrb[0].mxu0
      %1213 = vmatprep.mubr.bf16.mxu0 0
      %1214 = vmatmul.mubr.bf16.gmra.mrb[0].mxu0 %v773
      %v1215 = vpop.f32.mrb[0].mxu0
      %v1216 = vadd.f32 %v312, %v1215
      %v1217 = vpop.f32.mrb[0].mxu0
      %v1218 = vpop.f32.mrb[0].mxu0
      %v1219 = vadd.f32 %v312, %v1218
      %v1220 = vpop.f32.mrb[0].mxu0
      %1221 = vmatprep.mubr.bf16.mxu0 0
      %1222 = vmatmul.mubr.bf16.gmra.mrb[0].mxu0 %v776
      %v1223 = vpop.f32.mrb[0].mxu0
      %v1224 = vadd.f32 %v312, %v1223
      %v1225 = vpop.f32.mrb[0].mxu0
      %v1226 = vpop.f32.mrb[0].mxu0
      %v1227 = vadd.f32 %v312, %v1226
      %v1228 = vpop.f32.mrb[0].mxu0
      %1229 = vmatprep.mubr.bf16.mxu0 0
      %1230 = vmatmul.mubr.bf16.gmra.mrb[0].mxu0 %v779
      %v1231 = vpop.f32.mrb[0].mxu0
      %v1232 = vadd.f32 %v312, %v1231
      %v1233 = vpop.f32.mrb[0].mxu0
      %v1234 = vpop.f32.mrb[0].mxu0
      %v1235 = vadd.f32 %v312, %v1234
      %v1236 = vpop.f32.mrb[0].mxu0
      %1237 = vmatprep.mubr.bf16.mxu0 0
      %1238 = vmatmul.mubr.bf16.gmra.mrb[0].mxu0 %v782
      %v1239 = vpop.f32.mrb[0].mxu0
      %v1240 = vadd.f32 %v312, %v1239
      %v1241 = vpop.f32.mrb[0].mxu0
      %v1242 = vpop.f32.mrb[0].mxu0
      %v1243 = vadd.f32 %v312, %v1242
      %v1244 = vpop.f32.mrb[0].mxu0
      %1245 = vmatprep.mubr.bf16.mxu0 0
      %1246 = vmatmul.mubr.bf16.gmra.mrb[0].mxu0 %v785
      %v1247 = vpop.f32.mrb[0].mxu0
      %v1248 = vadd.f32 %v312, %v1247
      %v1249 = vpop.f32.mrb[0].mxu0
      %v1250 = vpop.f32.mrb[0].mxu0
      %v1251 = vadd.f32 %v312, %v1250
      %v1252 = vpop.f32.mrb[0].mxu0
      %1253 = vmatprep.mubr.bf16.mxu0 0
      %1254 = vmatmul.mubr.bf16.gmra.mrb[0].mxu0 %v788
      %v1255 = vpop.f32.mrb[0].mxu0
      %v1256 = vadd.f32 %v312, %v1255
      %v1257 = vpop.f32.mrb[0].mxu0
      %v1258 = vpop.f32.mrb[0].mxu0
      %v1259 = vadd.f32 %v312, %v1258
      %v1260 = vpop.f32.mrb[0].mxu0
      %1261 = vmatprep.mubr.bf16.mxu0 0
      %1262 = vmatmul.mubr.bf16.gmra.mrb[0].mxu0 %v791
      %v1263 = vpop.f32.mrb[0].mxu0
      %v1264 = vadd.f32 %v312, %v1263
      %v1265 = vpop.f32.mrb[0].mxu0
      %v1266 = vpop.f32.mrb[0].mxu0
      %v1267 = vadd.f32 %v312, %v1266
      %v1268 = vpop.f32.mrb[0].mxu0
      %1269 = vmatprep.mubr.bf16.mxu0 0
      %1270 = vmatmul.mubr.bf16.gmra.mrb[0].mxu0 %v794
      %v1271 = vpop.f32.mrb[0].mxu0
      %v1272 = vadd.f32 %v312, %v1271
      %v1273 = vpop.f32.mrb[0].mxu0
      %v1274 = vpop.f32.mrb[0].mxu0
      %v1275 = vadd.f32 %v312, %v1274
      %v1276 = vpop.f32.mrb[0].mxu0
      %1277 = vmatprep.mubr.bf16.mxu0 0
      %1278 = vmatmul.mubr.bf16.gmra.mrb[0].mxu0 %v797
      %v1279 = vpop.f32.mrb[0].mxu0
      %v1280 = vadd.f32 %v312, %v1279
      %v1281 = vpop.f32.mrb[0].mxu0
      %v1282 = vpop.f32.mrb[0].mxu0
      %v1283 = vadd.f32 %v312, %v1282
      %v1284 = vpop.f32.mrb[0].mxu0
      %1285 = vmatprep.mubr.bf16.mxu0 0
      %1286 = vmatmul.mubr.bf16.gmra.mrb[0].mxu0 %v800
      %v1287 = vpop.f32.mrb[0].mxu0
      %v1288 = vadd.f32 %v312, %v1287
      %v1289 = vpop.f32.mrb[0].mxu0
      %v1290 = vpop.f32.mrb[0].mxu0
      %v1291 = vadd.f32 %v312, %v1290
      %v1292 = vpop.f32.mrb[0].mxu0
      %1293 = vmatprep.mubr.bf16.mxu0 0
      %1294 = vmatmul.mubr.bf16.gmra.mrb[0].mxu0 %v803
      %v1295 = vpop.f32.mrb[0].mxu0
      %v1296 = vadd.f32 %v312, %v1295
      %v1297 = vpop.f32.mrb[0].mxu0
      %v1298 = vpop.f32.mrb[0].mxu0
      %v1299 = vadd.f32 %v312, %v1298
      %v1300 = vpop.f32.mrb[0].mxu0
      %1301 = vmatprep.mubr.bf16.mxu0 0
      %1302 = vmatmul.mubr.bf16.gmra.mrb[0].mxu0 %v806
      %v1303 = vpop.f32.mrb[0].mxu0
      %v1304 = vadd.f32 %v312, %v1303
      %v1305 = vpop.f32.mrb[0].mxu0
      %v1306 = vpop.f32.mrb[0].mxu0
      %v1307 = vadd.f32 %v312, %v1306
      %v1308 = vpop.f32.mrb[0].mxu0
      %1309 = vmatprep.mubr.bf16.mxu0 0
      %1310 = vmatmul.mubr.bf16.gmra.mrb[0].mxu0 %v809
      %v1311 = vpop.f32.mrb[0].mxu0
      %v1312 = vadd.f32 %v312, %v1311
      %v1313 = vpop.f32.mrb[0].mxu0
      %v1314 = vpop.f32.mrb[0].mxu0
      %v1315 = vadd.f32 %v312, %v1314
      %v1316 = vpop.f32.mrb[0].mxu0
      %1317 = vmatprep.mubr.bf16.mxu0 0
      %1318 = vmatmul.mubr.bf16.gmra.mrb[0].mxu0 %v812
      %v1319 = vpop.f32.mrb[0].mxu0
      %v1320 = vadd.f32 %v312, %v1319
      %v1321 = vpop.f32.mrb[0].mxu0
      %v1322 = vpop.f32.mrb[0].mxu0
      %v1323 = vadd.f32 %v312, %v1322
      %v1324 = vpop.f32.mrb[0].mxu0
      %1325 = vmatprep.mubr.bf16.mxu0 0
      %1326 = vmatmul.mubr.bf16.gmra.mrb[0].mxu0 %v815
      %v1327 = vpop.f32.mrb[0].mxu0
      %v1328 = vadd.f32 %v312, %v1327
      %v1329 = vpop.f32.mrb[0].mxu0
      %v1330 = vpop.f32.mrb[0].mxu0
      %v1331 = vadd.f32 %v312, %v1330
      %v1332 = vpop.f32.mrb[0].mxu0
      %1333 = vmatprep.mubr.bf16.mxu0 0
      %1334 = vmatmul.mubr.bf16.gmra.mrb[0].mxu0 %v818
      %v1335 = vpop.f32.mrb[0].mxu0
      %v1336 = vadd.f32 %v312, %v1335
      %v1337 = vpop.f32.mrb[0].mxu0
      %v1338 = vpop.f32.mrb[0].mxu0
      %v1339 = vadd.f32 %v312, %v1338
      %v1340 = vpop.f32.mrb[0].mxu0
      %1341 = vmatprep.mubr.bf16.mxu0 0
      %1342 = vmatmul.mubr.bf16.gmra.mrb[0].mxu0 %v821
      %v1343 = vpop.f32.mrb[0].mxu0
      %v1344 = vadd.f32 %v312, %v1343
      %v1345 = vpop.f32.mrb[0].mxu0
      %v1346 = vpop.f32.mrb[0].mxu0
      %v1347 = vadd.f32 %v312, %v1346
      %v1348 = vpop.f32.mrb[0].mxu0
      %1349 = vmatprep.mubr.bf16.mxu0 0
      %1350 = vmatmul.mubr.bf16.gmra.mrb[0].mxu0 %v824
      %v1351 = vpop.f32.mrb[0].mxu0
      %v1352 = vadd.f32 %v312, %v1351
      %v1353 = vpop.f32.mrb[0].mxu0
      %v1354 = vpop.f32.mrb[0].mxu0
      %v1355 = vadd.f32 %v312, %v1354
      %v1356 = vpop.f32.mrb[0].mxu0
      %1357 = vmatprep.mubr.bf16.mxu0 0
      %1358 = vmatmul.mubr.bf16.gmra.mrb[0].mxu0 %v827
      %v1359 = vpop.f32.mrb[0].mxu0
      %v1360 = vadd.f32 %v312, %v1359
      %v1361 = vpop.f32.mrb[0].mxu0
      %v1362 = vpop.f32.mrb[0].mxu0
      %v1363 = vadd.f32 %v312, %v1362
      %v1364 = vpop.f32.mrb[0].mxu0
      %1365 = vmatprep.mubr.bf16.mxu0 0
      %1366 = vmatmul.mubr.bf16.gmra.mrb[0].mxu0 %v830
      %v1367 = vpop.f32.mrb[0].mxu0
      %v1368 = vadd.f32 %v312, %v1367
      %v1369 = vpop.f32.mrb[0].mxu0
      %v1370 = vpop.f32.mrb[0].mxu0
      %v1371 = vadd.f32 %v312, %v1370
      %v1372 = vpop.f32.mrb[0].mxu0
      %1373 = vmatprep.mubr.bf16.mxu0 0
      %1374 = vmatmul.mubr.bf16.gmra.mrb[0].mxu0 %v833
      %v1375 = vpop.f32.mrb[0].mxu0
      %v1376 = vadd.f32 %v312, %v1375
      %v1377 = vpop.f32.mrb[0].mxu0
      %v1378 = vpop.f32.mrb[0].mxu0
      %v1379 = vadd.f32 %v312, %v1378
      %v1380 = vpop.f32.mrb[0].mxu0
      %1381 = vmatprep.mubr.bf16.mxu0 0
      %1382 = vmatmul.mubr.bf16.gmra.mrb[0].mxu0 %v836
      %v1383 = vpop.f32.mrb[0].mxu0
      %v1384 = vadd.f32 %v312, %v1383
      %v1385 = vpop.f32.mrb[0].mxu0
      %v1386 = vpop.f32.mrb[0].mxu0
      %v1387 = vadd.f32 %v312, %v1386
      %v1388 = vpop.f32.mrb[0].mxu0
      %1389 = vdwg.mxu0
      %v1390 = vmax.f32 %v880, 0.0
      %v1391 = vmax.f32 %v883, 0.0
      %v1392 = vmax.f32 %v888, 0.0
      %v1393 = vmax.f32 %v891, 0.0
      %v1394 = vmax.f32 %v896, 0.0
      %v1395 = vmax.f32 %v899, 0.0
      %v1396 = vmax.f32 %v904, 0.0
      %v1397 = vmax.f32 %v907, 0.0
      %v1398 = vmax.f32 %v912, 0.0
      %v1399 = vmax.f32 %v915, 0.0
      %v1400 = vmax.f32 %v920, 0.0
      %v1401 = vmax.f32 %v923, 0.0
      %v1402 = vmax.f32 %v928, 0.0
      %v1403 = vmax.f32 %v931, 0.0
      %v1404 = vmax.f32 %v936, 0.0
      %v1405 = vmax.f32 %v939, 0.0
      %v1406 = vmax.f32 %v944, 0.0
      %v1407 = vmax.f32 %v947, 0.0
      %v1408 = vmax.f32 %v952, 0.0
      %v1409 = vmax.f32 %v955, 0.0
      %v1410 = vmax.f32 %v960, 0.0
      %v1411 = vmax.f32 %v963, 0.0
      %v1412 = vmax.f32 %v968, 0.0
      %v1413 = vmax.f32 %v971, 0.0
      %v1414 = vmax.f32 %v976, 0.0
      %v1415 = vmax.f32 %v979, 0.0
      %v1416 = vmax.f32 %v984, 0.0
      %v1417 = vmax.f32 %v987, 0.0
      %v1418 = vmax.f32 %v992, 0.0
      %v1419 = vmax.f32 %v995, 0.0
      %v1420 = vmax.f32 %v1000, 0.0
      %v1421 = vmax.f32 %v1003, 0.0
      %v1422 = vmax.f32 %v1008, 0.0
      %v1423 = vmax.f32 %v1011, 0.0
      %v1424 = vmax.f32 %v1016, 0.0
      %v1425 = vmax.f32 %v1019, 0.0
      %v1426 = vmax.f32 %v1024, 0.0
      %v1427 = vmax.f32 %v1027, 0.0
      %v1428 = vmax.f32 %v1032, 0.0
      %v1429 = vmax.f32 %v1035, 0.0
      %v1430 = vmax.f32 %v1040, 0.0
      %v1431 = vmax.f32 %v1043, 0.0
      %v1432 = vmax.f32 %v1048, 0.0
      %v1433 = vmax.f32 %v1051, 0.0
      %v1434 = vmax.f32 %v1056, 0.0
      %v1435 = vmax.f32 %v1059, 0.0
      %v1436 = vmax.f32 %v1064, 0.0
      %v1437 = vmax.f32 %v1067, 0.0
      %v1438 = vmax.f32 %v1072, 0.0
      %v1439 = vmax.f32 %v1075, 0.0
      %v1440 = vmax.f32 %v1080, 0.0
      %v1441 = vmax.f32 %v1083, 0.0
      %v1442 = vmax.f32 %v1088, 0.0
      %v1443 = vmax.f32 %v1091, 0.0
      %v1444 = vmax.f32 %v1096, 0.0
      %v1445 = vmax.f32 %v1099, 0.0
      %v1446 = vmax.f32 %v1104, 0.0
      %v1447 = vmax.f32 %v1107, 0.0
      %v1448 = vmax.f32 %v1112, 0.0
      %v1449 = vmax.f32 %v1115, 0.0
      %v1450 = vmax.f32 %v1120, 0.0
      %v1451 = vmax.f32 %v1123, 0.0
      %v1452 = vmax.f32 %v1128, 0.0
      %v1453 = vmax.f32 %v1131, 0.0
      %v1454 = vmax.f32 %v1136, 0.0
      %v1455 = vmax.f32 %v1139, 0.0
      %v1456 = vmax.f32 %v1144, 0.0
      %v1457 = vmax.f32 %v1147, 0.0
      %v1458 = vmax.f32 %v1152, 0.0
      %v1459 = vmax.f32 %v1155, 0.0
      %v1460 = vmax.f32 %v1160, 0.0
      %v1461 = vmax.f32 %v1163, 0.0
      %v1462 = vmax.f32 %v1168, 0.0
      %v1463 = vmax.f32 %v1171, 0.0
      %v1464 = vmax.f32 %v1176, 0.0
      %v1465 = vmax.f32 %v1179, 0.0
      %v1466 = vmax.f32 %v1184, 0.0
      %v1467 = vmax.f32 %v1187, 0.0
      %v1468 = vmax.f32 %v1192, 0.0
      %v1469 = vmax.f32 %v1195, 0.0
      %v1470 = vmax.f32 %v1200, 0.0
      %v1471 = vmax.f32 %v1203, 0.0
      %v1472 = vmax.f32 %v1208, 0.0
      %v1473 = vmax.f32 %v1211, 0.0
      %v1474 = vmax.f32 %v1216, 0.0
      %v1475 = vmax.f32 %v1219, 0.0
      %v1476 = vmax.f32 %v1224, 0.0
      %v1477 = vmax.f32 %v1227, 0.0
      %v1478 = vmax.f32 %v1232, 0.0
      %v1479 = vmax.f32 %v1235, 0.0
      %v1480 = vmax.f32 %v1240, 0.0
      %v1481 = vmax.f32 %v1243, 0.0
      %v1482 = vmax.f32 %v1248, 0.0
      %v1483 = vmax.f32 %v1251, 0.0
      %v1484 = vmax.f32 %v1256, 0.0
      %v1485 = vmax.f32 %v1259, 0.0
      %v1486 = vmax.f32 %v1264, 0.0
      %v1487 = vmax.f32 %v1267, 0.0
      %v1488 = vmax.f32 %v1272, 0.0
      %v1489 = vmax.f32 %v1275, 0.0
      %v1490 = vmax.f32 %v1280, 0.0
      %v1491 = vmax.f32 %v1283, 0.0
      %v1492 = vmax.f32 %v1288, 0.0
      %v1493 = vmax.f32 %v1291, 0.0
      %v1494 = vmax.f32 %v1296, 0.0
      %v1495 = vmax.f32 %v1299, 0.0
      %v1496 = vmax.f32 %v1304, 0.0
      %v1497 = vmax.f32 %v1307, 0.0
      %v1498 = vmax.f32 %v1312, 0.0
      %v1499 = vmax.f32 %v1315, 0.0
      %v1500 = vmax.f32 %v1320, 0.0
      %v1501 = vmax.f32 %v1323, 0.0
      %v1502 = vmax.f32 %v1328, 0.0
      %v1503 = vmax.f32 %v1331, 0.0
      %v1504 = vmax.f32 %v1336, 0.0
      %v1505 = vmax.f32 %v1339, 0.0
      %v1506 = vmax.f32 %v1344, 0.0
      %v1507 = vmax.f32 %v1347, 0.0
      %v1508 = vmax.f32 %v1352, 0.0
      %v1509 = vmax.f32 %v1355, 0.0
      %v1510 = vmax.f32 %v1360, 0.0
      %v1511 = vmax.f32 %v1363, 0.0
      %v1512 = vmax.f32 %v1368, 0.0
      %v1513 = vmax.f32 %v1371, 0.0
      %v1514 = vmax.f32 %v1376, 0.0
      %v1515 = vmax.f32 %v1379, 0.0
      %v1516 = vmax.f32 %v1384, 0.0
      %v1517 = vmax.f32 %v1387, 0.0
      %v1518 = vpack.c.bf16 %v1391, %v1390
      %v1519 = vpack.c.bf16 %v1393, %v1392
      %v1520 = vpack.c.bf16 %v1395, %v1394
      %v1521 = vpack.c.bf16 %v1397, %v1396
      %v1522 = vpack.c.bf16 %v1399, %v1398
      %v1523 = vpack.c.bf16 %v1401, %v1400
      %v1524 = vpack.c.bf16 %v1403, %v1402
      %v1525 = vpack.c.bf16 %v1405, %v1404
      %v1526 = vpack.c.bf16 %v1407, %v1406
      %v1527 = vpack.c.bf16 %v1409, %v1408
      %v1528 = vpack.c.bf16 %v1411, %v1410
      %v1529 = vpack.c.bf16 %v1413, %v1412
      %v1530 = vpack.c.bf16 %v1415, %v1414
      %v1531 = vpack.c.bf16 %v1417, %v1416
      %v1532 = vpack.c.bf16 %v1419, %v1418
      %v1533 = vpack.c.bf16 %v1421, %v1420
      %v1534 = vpack.c.bf16 %v1423, %v1422
      %v1535 = vpack.c.bf16 %v1425, %v1424
      %v1536 = vpack.c.bf16 %v1427, %v1426
      %v1537 = vpack.c.bf16 %v1429, %v1428
      %v1538 = vpack.c.bf16 %v1431, %v1430
      %v1539 = vpack.c.bf16 %v1433, %v1432
      %v1540 = vpack.c.bf16 %v1435, %v1434
      %v1541 = vpack.c.bf16 %v1437, %v1436
      %v1542 = vpack.c.bf16 %v1439, %v1438
      %v1543 = vpack.c.bf16 %v1441, %v1440
      %v1544 = vpack.c.bf16 %v1443, %v1442
      %v1545 = vpack.c.bf16 %v1445, %v1444
      %v1546 = vpack.c.bf16 %v1447, %v1446
      %v1547 = vpack.c.bf16 %v1449, %v1448
      %v1548 = vpack.c.bf16 %v1451, %v1450
      %v1549 = vpack.c.bf16 %v1453, %v1452
      %v1550 = vpack.c.bf16 %v1455, %v1454
      %v1551 = vpack.c.bf16 %v1457, %v1456
      %v1552 = vpack.c.bf16 %v1459, %v1458
      %v1553 = vpack.c.bf16 %v1461, %v1460
      %v1554 = vpack.c.bf16 %v1463, %v1462
      %v1555 = vpack.c.bf16 %v1465, %v1464
      %v1556 = vpack.c.bf16 %v1467, %v1466
      %v1557 = vpack.c.bf16 %v1469, %v1468
      %v1558 = vpack.c.bf16 %v1471, %v1470
      %v1559 = vpack.c.bf16 %v1473, %v1472
      %v1560 = vpack.c.bf16 %v1475, %v1474
      %v1561 = vpack.c.bf16 %v1477, %v1476
      %v1562 = vpack.c.bf16 %v1479, %v1478
      %v1563 = vpack.c.bf16 %v1481, %v1480
      %v1564 = vpack.c.bf16 %v1483, %v1482
      %v1565 = vpack.c.bf16 %v1485, %v1484
      %v1566 = vpack.c.bf16 %v1487, %v1486
      %v1567 = vpack.c.bf16 %v1489, %v1488
      %v1568 = vpack.c.bf16 %v1491, %v1490
      %v1569 = vpack.c.bf16 %v1493, %v1492
      %v1570 = vpack.c.bf16 %v1495, %v1494
      %v1571 = vpack.c.bf16 %v1497, %v1496
      %v1572 = vpack.c.bf16 %v1499, %v1498
      %v1573 = vpack.c.bf16 %v1501, %v1500
      %v1574 = vpack.c.bf16 %v1503, %v1502
      %v1575 = vpack.c.bf16 %v1505, %v1504
      %v1576 = vpack.c.bf16 %v1507, %v1506
      %v1577 = vpack.c.bf16 %v1509, %v1508
      %v1578 = vpack.c.bf16 %v1511, %v1510
      %v1579 = vpack.c.bf16 %v1513, %v1512
      %v1580 = vpack.c.bf16 %v1515, %v1514
      %v1581 = vpack.c.bf16 %v1517, %v1516
      %v1646 = vunpack.c.l.b16 %v1518
      %v1647 = vunpack.c.h.b16 %v1518
      %v1648 = vunpack.c.l.b16 %v1519
      %v1649 = vunpack.c.h.b16 %v1519
      %v1650 = vunpack.c.l.b16 %v1520
      %v1651 = vunpack.c.h.b16 %v1520
      %v1652 = vunpack.c.l.b16 %v1521
      %v1653 = vunpack.c.h.b16 %v1521
      %v1654 = vunpack.c.l.b16 %v1522
      %v1655 = vunpack.c.h.b16 %v1522
      %v1656 = vunpack.c.l.b16 %v1523
      %v1657 = vunpack.c.h.b16 %v1523
      %v1658 = vunpack.c.l.b16 %v1524
      %v1659 = vunpack.c.h.b16 %v1524
      %v1660 = vunpack.c.l.b16 %v1525
      %v1661 = vunpack.c.h.b16 %v1525
      %v1662 = vunpack.c.l.b16 %v1526
      %v1663 = vunpack.c.h.b16 %v1526
      %v1664 = vunpack.c.l.b16 %v1527
      %v1665 = vunpack.c.h.b16 %v1527
      %v1666 = vunpack.c.l.b16 %v1528
      %v1667 = vunpack.c.h.b16 %v1528
      %v1668 = vunpack.c.l.b16 %v1529
      %v1669 = vunpack.c.h.b16 %v1529
      %v1670 = vunpack.c.l.b16 %v1530
      %v1671 = vunpack.c.h.b16 %v1530
      %v1672 = vunpack.c.l.b16 %v1531
      %v1673 = vunpack.c.h.b16 %v1531
      %v1674 = vunpack.c.l.b16 %v1532
      %v1675 = vunpack.c.h.b16 %v1532
      %v1676 = vunpack.c.l.b16 %v1533
      %v1677 = vunpack.c.h.b16 %v1533
      %v1678 = vunpack.c.l.b16 %v1534
      %v1679 = vunpack.c.h.b16 %v1534
      %v1680 = vunpack.c.l.b16 %v1535
      %v1681 = vunpack.c.h.b16 %v1535
      %v1682 = vunpack.c.l.b16 %v1536
      %v1683 = vunpack.c.h.b16 %v1536
      %v1684 = vunpack.c.l.b16 %v1537
      %v1685 = vunpack.c.h.b16 %v1537
      %v1686 = vunpack.c.l.b16 %v1538
      %v1687 = vunpack.c.h.b16 %v1538
      %v1688 = vunpack.c.l.b16 %v1539
      %v1689 = vunpack.c.h.b16 %v1539
      %v1690 = vunpack.c.l.b16 %v1540
      %v1691 = vunpack.c.h.b16 %v1540
      %v1692 = vunpack.c.l.b16 %v1541
      %v1693 = vunpack.c.h.b16 %v1541
      %v1694 = vunpack.c.l.b16 %v1542
      %v1695 = vunpack.c.h.b16 %v1542
      %v1696 = vunpack.c.l.b16 %v1543
      %v1697 = vunpack.c.h.b16 %v1543
      %v1698 = vunpack.c.l.b16 %v1544
      %v1699 = vunpack.c.h.b16 %v1544
      %v1700 = vunpack.c.l.b16 %v1545
      %v1701 = vunpack.c.h.b16 %v1545
      %v1702 = vunpack.c.l.b16 %v1546
      %v1703 = vunpack.c.h.b16 %v1546
      %v1704 = vunpack.c.l.b16 %v1547
      %v1705 = vunpack.c.h.b16 %v1547
      %v1706 = vunpack.c.l.b16 %v1548
      %v1707 = vunpack.c.h.b16 %v1548
      %v1708 = vunpack.c.l.b16 %v1549
      %v1709 = vunpack.c.h.b16 %v1549
      %v1710 = vunpack.c.l.b16 %v1550
      %v1711 = vunpack.c.h.b16 %v1550
      %v1712 = vunpack.c.l.b16 %v1551
      %v1713 = vunpack.c.h.b16 %v1551
      %v1714 = vunpack.c.l.b16 %v1552
      %v1715 = vunpack.c.h.b16 %v1552
      %v1716 = vunpack.c.l.b16 %v1553
      %v1717 = vunpack.c.h.b16 %v1553
      %v1718 = vunpack.c.l.b16 %v1554
      %v1719 = vunpack.c.h.b16 %v1554
      %v1720 = vunpack.c.l.b16 %v1555
      %v1721 = vunpack.c.h.b16 %v1555
      %v1722 = vunpack.c.l.b16 %v1556
      %v1723 = vunpack.c.h.b16 %v1556
      %v1724 = vunpack.c.l.b16 %v1557
      %v1725 = vunpack.c.h.b16 %v1557
      %v1726 = vunpack.c.l.b16 %v1558
      %v1727 = vunpack.c.h.b16 %v1558
      %v1728 = vunpack.c.l.b16 %v1559
      %v1729 = vunpack.c.h.b16 %v1559
      %v1730 = vunpack.c.l.b16 %v1560
      %v1731 = vunpack.c.h.b16 %v1560
      %v1732 = vunpack.c.l.b16 %v1561
      %v1733 = vunpack.c.h.b16 %v1561
      %v1734 = vunpack.c.l.b16 %v1562
      %v1735 = vunpack.c.h.b16 %v1562
      %v1736 = vunpack.c.l.b16 %v1563
      %v1737 = vunpack.c.h.b16 %v1563
      %v1738 = vunpack.c.l.b16 %v1564
      %v1739 = vunpack.c.h.b16 %v1564
      %v1740 = vunpack.c.l.b16 %v1565
      %v1741 = vunpack.c.h.b16 %v1565
      %v1742 = vunpack.c.l.b16 %v1566
      %v1743 = vunpack.c.h.b16 %v1566
      %v1744 = vunpack.c.l.b16 %v1567
      %v1745 = vunpack.c.h.b16 %v1567
      %v1746 = vunpack.c.l.b16 %v1568
      %v1747 = vunpack.c.h.b16 %v1568
      %v1748 = vunpack.c.l.b16 %v1569
      %v1749 = vunpack.c.h.b16 %v1569
      %v1750 = vunpack.c.l.b16 %v1570
      %v1751 = vunpack.c.h.b16 %v1570
      %v1752 = vunpack.c.l.b16 %v1571
      %v1753 = vunpack.c.h.b16 %v1571
      %v1754 = vunpack.c.l.b16 %v1572
      %v1755 = vunpack.c.h.b16 %v1572
      %v1756 = vunpack.c.l.b16 %v1573
      %v1757 = vunpack.c.h.b16 %v1573
      %v1758 = vunpack.c.l.b16 %v1574
      %v1759 = vunpack.c.h.b16 %v1574
      %v1760 = vunpack.c.l.b16 %v1575
      %v1761 = vunpack.c.h.b16 %v1575
      %v1762 = vunpack.c.l.b16 %v1576
      %v1763 = vunpack.c.h.b16 %v1576
      %v1764 = vunpack.c.l.b16 %v1577
      %v1765 = vunpack.c.h.b16 %v1577
      %v1766 = vunpack.c.l.b16 %v1578
      %v1767 = vunpack.c.h.b16 %v1578
      %v1768 = vunpack.c.l.b16 %v1579
      %v1769 = vunpack.c.h.b16 %v1579
      %v1770 = vunpack.c.l.b16 %v1580
      %v1771 = vunpack.c.h.b16 %v1580
      %v1772 = vunpack.c.l.b16 %v1581
      %v1773 = vunpack.c.h.b16 %v1581
      %v1774 = vpack.c.b16 %v1646, %v1646
      %v1775 = vpack.c.b16 %v1647, %v1647
      %v1776 = vpack.c.b16 %v1648, %v1648
      %v1777 = vpack.c.b16 %v1649, %v1649
      %v1778 = vpack.c.b16 %v1650, %v1650
      %v1779 = vpack.c.b16 %v1651, %v1651
      %v1780 = vpack.c.b16 %v1652, %v1652
      %v1781 = vpack.c.b16 %v1653, %v1653
      %v1782 = vpack.c.b16 %v1654, %v1654
      %v1783 = vpack.c.b16 %v1655, %v1655
      %v1784 = vpack.c.b16 %v1656, %v1656
      %v1785 = vpack.c.b16 %v1657, %v1657
      %v1786 = vpack.c.b16 %v1658, %v1658
      %v1787 = vpack.c.b16 %v1659, %v1659
      %v1788 = vpack.c.b16 %v1660, %v1660
      %v1789 = vpack.c.b16 %v1661, %v1661
      %v1790 = vpack.c.b16 %v1662, %v1662
      %v1791 = vpack.c.b16 %v1663, %v1663
      %v1792 = vpack.c.b16 %v1664, %v1664
      %v1793 = vpack.c.b16 %v1665, %v1665
      %v1794 = vpack.c.b16 %v1666, %v1666
      %v1795 = vpack.c.b16 %v1667, %v1667
      %v1796 = vpack.c.b16 %v1668, %v1668
      %v1797 = vpack.c.b16 %v1669, %v1669
      %v1798 = vpack.c.b16 %v1670, %v1670
      %v1799 = vpack.c.b16 %v1671, %v1671
      %v1800 = vpack.c.b16 %v1672, %v1672
      %v1801 = vpack.c.b16 %v1673, %v1673
      %v1802 = vpack.c.b16 %v1674, %v1674
      %v1803 = vpack.c.b16 %v1675, %v1675
      %v1804 = vpack.c.b16 %v1676, %v1676
      %v1805 = vpack.c.b16 %v1677, %v1677
      %v1806 = vpack.c.b16 %v1678, %v1678
      %v1807 = vpack.c.b16 %v1679, %v1679
      %v1808 = vpack.c.b16 %v1680, %v1680
      %v1809 = vpack.c.b16 %v1681, %v1681
      %v1810 = vpack.c.b16 %v1682, %v1682
      %v1811 = vpack.c.b16 %v1683, %v1683
      %v1812 = vpack.c.b16 %v1684, %v1684
      %v1813 = vpack.c.b16 %v1685, %v1685
      %v1814 = vpack.c.b16 %v1686, %v1686
      %v1815 = vpack.c.b16 %v1687, %v1687
      %v1816 = vpack.c.b16 %v1688, %v1688
      %v1817 = vpack.c.b16 %v1689, %v1689
      %v1818 = vpack.c.b16 %v1690, %v1690
      %v1819 = vpack.c.b16 %v1691, %v1691
      %v1820 = vpack.c.b16 %v1692, %v1692
      %v1821 = vpack.c.b16 %v1693, %v1693
      %v1822 = vpack.c.b16 %v1694, %v1694
      %v1823 = vpack.c.b16 %v1695, %v1695
      %v1824 = vpack.c.b16 %v1696, %v1696
      %v1825 = vpack.c.b16 %v1697, %v1697
      %v1826 = vpack.c.b16 %v1698, %v1698
      %v1827 = vpack.c.b16 %v1699, %v1699
      %v1828 = vpack.c.b16 %v1700, %v1700
      %v1829 = vpack.c.b16 %v1701, %v1701
      %v1830 = vpack.c.b16 %v1702, %v1702
      %v1831 = vpack.c.b16 %v1703, %v1703
      %v1832 = vpack.c.b16 %v1704, %v1704
      %v1833 = vpack.c.b16 %v1705, %v1705
      %v1834 = vpack.c.b16 %v1706, %v1706
      %v1835 = vpack.c.b16 %v1707, %v1707
      %v1836 = vpack.c.b16 %v1708, %v1708
      %v1837 = vpack.c.b16 %v1709, %v1709
      %v1838 = vpack.c.b16 %v1710, %v1710
      %v1839 = vpack.c.b16 %v1711, %v1711
      %v1840 = vpack.c.b16 %v1712, %v1712
      %v1841 = vpack.c.b16 %v1713, %v1713
      %v1842 = vpack.c.b16 %v1714, %v1714
      %v1843 = vpack.c.b16 %v1715, %v1715
      %v1844 = vpack.c.b16 %v1716, %v1716
      %v1845 = vpack.c.b16 %v1717, %v1717
      %v1846 = vpack.c.b16 %v1718, %v1718
      %v1847 = vpack.c.b16 %v1719, %v1719
      %v1848 = vpack.c.b16 %v1720, %v1720
      %v1849 = vpack.c.b16 %v1721, %v1721
      %v1850 = vpack.c.b16 %v1722, %v1722
      %v1851 = vpack.c.b16 %v1723, %v1723
      %v1852 = vpack.c.b16 %v1724, %v1724
      %v1853 = vpack.c.b16 %v1725, %v1725
      %v1854 = vpack.c.b16 %v1726, %v1726
      %v1855 = vpack.c.b16 %v1727, %v1727
      %v1856 = vpack.c.b16 %v1728, %v1728
      %v1857 = vpack.c.b16 %v1729, %v1729
      %v1858 = vpack.c.b16 %v1730, %v1730
      %v1859 = vpack.c.b16 %v1731, %v1731
      %v1860 = vpack.c.b16 %v1732, %v1732
      %v1861 = vpack.c.b16 %v1733, %v1733
      %v1862 = vpack.c.b16 %v1734, %v1734
      %v1863 = vpack.c.b16 %v1735, %v1735
      %v1864 = vpack.c.b16 %v1736, %v1736
      %v1865 = vpack.c.b16 %v1737, %v1737
      %v1866 = vpack.c.b16 %v1738, %v1738
      %v1867 = vpack.c.b16 %v1739, %v1739
      %v1868 = vpack.c.b16 %v1740, %v1740
      %v1869 = vpack.c.b16 %v1741, %v1741
      %v1870 = vpack.c.b16 %v1742, %v1742
      %v1871 = vpack.c.b16 %v1743, %v1743
      %v1872 = vpack.c.b16 %v1744, %v1744
      %v1873 = vpack.c.b16 %v1745, %v1745
      %v1874 = vpack.c.b16 %v1746, %v1746
      %v1875 = vpack.c.b16 %v1747, %v1747
      %v1876 = vpack.c.b16 %v1748, %v1748
      %v1877 = vpack.c.b16 %v1749, %v1749
      %v1878 = vpack.c.b16 %v1750, %v1750
      %v1879 = vpack.c.b16 %v1751, %v1751
      %v1880 = vpack.c.b16 %v1752, %v1752
      %v1881 = vpack.c.b16 %v1753, %v1753
      %v1882 = vpack.c.b16 %v1754, %v1754
      %v1883 = vpack.c.b16 %v1755, %v1755
      %v1884 = vpack.c.b16 %v1756, %v1756
      %v1885 = vpack.c.b16 %v1757, %v1757
      %v1886 = vpack.c.b16 %v1758, %v1758
      %v1887 = vpack.c.b16 %v1759, %v1759
      %v1888 = vpack.c.b16 %v1760, %v1760
      %v1889 = vpack.c.b16 %v1761, %v1761
      %v1890 = vpack.c.b16 %v1762, %v1762
      %v1891 = vpack.c.b16 %v1763, %v1763
      %v1892 = vpack.c.b16 %v1764, %v1764
      %v1893 = vpack.c.b16 %v1765, %v1765
      %v1894 = vpack.c.b16 %v1766, %v1766
      %v1895 = vpack.c.b16 %v1767, %v1767
      %v1896 = vpack.c.b16 %v1768, %v1768
      %v1897 = vpack.c.b16 %v1769, %v1769
      %v1898 = vpack.c.b16 %v1770, %v1770
      %v1899 = vpack.c.b16 %v1771, %v1771
      %v1900 = vpack.c.b16 %v1772, %v1772
      %v1901 = vpack.c.b16 %v1773, %v1773
      %vm2030 = vcmask 125952
      %2031 = vst.msk [vmem:[%s172] sm:$0xf] %vm2030, %v1774
      %2032 = vst.msk [vmem:[%s172 + $0x4] sm:$0xf] %vm2030, %v1775
      %2033 = vst.msk [vmem:[%s172 + $0x8] sm:$0xf] %vm2030, %v1776
      %2034 = vst.msk [vmem:[%s172 + $0xc] sm:$0xf] %vm2030, %v1777
      %2035 = vst.msk [vmem:[%s172 + $0x10] sm:$0xf] %vm2030, %v1778
      %2036 = vst.msk [vmem:[%s172 + $0x14] sm:$0xf] %vm2030, %v1779
      %2037 = vst.msk [vmem:[%s172 + $0x18] sm:$0xf] %vm2030, %v1780
      %2038 = vst.msk [vmem:[%s172 + $0x1c] sm:$0xf] %vm2030, %v1781
      %2039 = vst.msk [vmem:[%s172 + $0x20] sm:$0xf] %vm2030, %v1782
      %2040 = vst.msk [vmem:[%s172 + $0x24] sm:$0xf] %vm2030, %v1783
      %2041 = vst.msk [vmem:[%s172 + $0x28] sm:$0xf] %vm2030, %v1784
      %2042 = vst.msk [vmem:[%s172 + $0x2c] sm:$0xf] %vm2030, %v1785
      %2043 = vst.msk [vmem:[%s172 + $0x30] sm:$0xf] %vm2030, %v1786
      %2044 = vst.msk [vmem:[%s172 + $0x34] sm:$0xf] %vm2030, %v1787
      %2045 = vst.msk [vmem:[%s172 + $0x38] sm:$0xf] %vm2030, %v1788
      %2046 = vst.msk [vmem:[%s172 + $0x3c] sm:$0xf] %vm2030, %v1789
      %2047 = vst.msk [vmem:[%s172 + $0x40] sm:$0xf] %vm2030, %v1790
      %2048 = vst.msk [vmem:[%s172 + $0x44] sm:$0xf] %vm2030, %v1791
      %2049 = vst.msk [vmem:[%s172 + $0x48] sm:$0xf] %vm2030, %v1792
      %2050 = vst.msk [vmem:[%s172 + $0x4c] sm:$0xf] %vm2030, %v1793
      %2051 = vst.msk [vmem:[%s172 + $0x50] sm:$0xf] %vm2030, %v1794
      %2052 = vst.msk [vmem:[%s172 + $0x54] sm:$0xf] %vm2030, %v1795
      %2053 = vst.msk [vmem:[%s172 + $0x58] sm:$0xf] %vm2030, %v1796
      %2054 = vst.msk [vmem:[%s172 + $0x5c] sm:$0xf] %vm2030, %v1797
      %2055 = vst.msk [vmem:[%s172 + $0x60] sm:$0xf] %vm2030, %v1798
      %2056 = vst.msk [vmem:[%s172 + $0x64] sm:$0xf] %vm2030, %v1799
      %2057 = vst.msk [vmem:[%s172 + $0x68] sm:$0xf] %vm2030, %v1800
      %2058 = vst.msk [vmem:[%s172 + $0x6c] sm:$0xf] %vm2030, %v1801
      %2059 = vst.msk [vmem:[%s172 + $0x70] sm:$0xf] %vm2030, %v1802
      %2060 = vst.msk [vmem:[%s172 + $0x74] sm:$0xf] %vm2030, %v1803
      %2061 = vst.msk [vmem:[%s172 + $0x78] sm:$0xf] %vm2030, %v1804
      %2062 = vst.msk [vmem:[%s172 + $0x7c] sm:$0xf] %vm2030, %v1805
      %2063 = vst.msk [vmem:[%s172 + $0x80] sm:$0xf] %vm2030, %v1806
      %2064 = vst.msk [vmem:[%s172 + $0x84] sm:$0xf] %vm2030, %v1807
      %2065 = vst.msk [vmem:[%s172 + $0x88] sm:$0xf] %vm2030, %v1808
      %2066 = vst.msk [vmem:[%s172 + $0x8c] sm:$0xf] %vm2030, %v1809
      %2067 = vst.msk [vmem:[%s172 + $0x90] sm:$0xf] %vm2030, %v1810
      %2068 = vst.msk [vmem:[%s172 + $0x94] sm:$0xf] %vm2030, %v1811
      %2069 = vst.msk [vmem:[%s172 + $0x98] sm:$0xf] %vm2030, %v1812
      %2070 = vst.msk [vmem:[%s172 + $0x9c] sm:$0xf] %vm2030, %v1813
      %2071 = vst.msk [vmem:[%s172 + $0xa0] sm:$0xf] %vm2030, %v1814
      %2072 = vst.msk [vmem:[%s172 + $0xa4] sm:$0xf] %vm2030, %v1815
      %2073 = vst.msk [vmem:[%s172 + $0xa8] sm:$0xf] %vm2030, %v1816
      %2074 = vst.msk [vmem:[%s172 + $0xac] sm:$0xf] %vm2030, %v1817
      %2075 = vst.msk [vmem:[%s172 + $0xb0] sm:$0xf] %vm2030, %v1818
      %2076 = vst.msk [vmem:[%s172 + $0xb4] sm:$0xf] %vm2030, %v1819
      %2077 = vst.msk [vmem:[%s172 + $0xb8] sm:$0xf] %vm2030, %v1820
      %2078 = vst.msk [vmem:[%s172 + $0xbc] sm:$0xf] %vm2030, %v1821
      %2079 = vst.msk [vmem:[%s172 + $0xc0] sm:$0xf] %vm2030, %v1822
      %2080 = vst.msk [vmem:[%s172 + $0xc4] sm:$0xf] %vm2030, %v1823
      %2081 = vst.msk [vmem:[%s172 + $0xc8] sm:$0xf] %vm2030, %v1824
      %2082 = vst.msk [vmem:[%s172 + $0xcc] sm:$0xf] %vm2030, %v1825
      %2083 = vst.msk [vmem:[%s172 + $0xd0] sm:$0xf] %vm2030, %v1826
      %2084 = vst.msk [vmem:[%s172 + $0xd4] sm:$0xf] %vm2030, %v1827
      %2085 = vst.msk [vmem:[%s172 + $0xd8] sm:$0xf] %vm2030, %v1828
      %2086 = vst.msk [vmem:[%s172 + $0xdc] sm:$0xf] %vm2030, %v1829
      %2087 = vst.msk [vmem:[%s172 + $0xe0] sm:$0xf] %vm2030, %v1830
      %2088 = vst.msk [vmem:[%s172 + $0xe4] sm:$0xf] %vm2030, %v1831
      %2089 = vst.msk [vmem:[%s172 + $0xe8] sm:$0xf] %vm2030, %v1832
      %2090 = vst.msk [vmem:[%s172 + $0xec] sm:$0xf] %vm2030, %v1833
      %2091 = vst.msk [vmem:[%s172 + $0xf0] sm:$0xf] %vm2030, %v1834
      %2092 = vst.msk [vmem:[%s172 + $0xf4] sm:$0xf] %vm2030, %v1835
      %2093 = vst.msk [vmem:[%s172 + $0xf8] sm:$0xf] %vm2030, %v1836
      %2094 = vst.msk [vmem:[%s172 + $0xfc] sm:$0xf] %vm2030, %v1837
      %2095 = vst.msk [vmem:[%s172 + $0x100] sm:$0xf] %vm2030, %v1838
      %2096 = vst.msk [vmem:[%s172 + $0x104] sm:$0xf] %vm2030, %v1839
      %2097 = vst.msk [vmem:[%s172 + $0x108] sm:$0xf] %vm2030, %v1840
      %2098 = vst.msk [vmem:[%s172 + $0x10c] sm:$0xf] %vm2030, %v1841
      %2099 = vst.msk [vmem:[%s172 + $0x110] sm:$0xf] %vm2030, %v1842
      %2100 = vst.msk [vmem:[%s172 + $0x114] sm:$0xf] %vm2030, %v1843
      %2101 = vst.msk [vmem:[%s172 + $0x118] sm:$0xf] %vm2030, %v1844
      %2102 = vst.msk [vmem:[%s172 + $0x11c] sm:$0xf] %vm2030, %v1845
      %2103 = vst.msk [vmem:[%s172 + $0x120] sm:$0xf] %vm2030, %v1846
      %2104 = vst.msk [vmem:[%s172 + $0x124] sm:$0xf] %vm2030, %v1847
      %2105 = vst.msk [vmem:[%s172 + $0x128] sm:$0xf] %vm2030, %v1848
      %2106 = vst.msk [vmem:[%s172 + $0x12c] sm:$0xf] %vm2030, %v1849
      %2107 = vst.msk [vmem:[%s172 + $0x130] sm:$0xf] %vm2030, %v1850
      %2108 = vst.msk [vmem:[%s172 + $0x134] sm:$0xf] %vm2030, %v1851
      %2109 = vst.msk [vmem:[%s172 + $0x138] sm:$0xf] %vm2030, %v1852
      %2110 = vst.msk [vmem:[%s172 + $0x13c] sm:$0xf] %vm2030, %v1853
      %2111 = vst.msk [vmem:[%s172 + $0x140] sm:$0xf] %vm2030, %v1854
      %2112 = vst.msk [vmem:[%s172 + $0x144] sm:$0xf] %vm2030, %v1855
      %2113 = vst.msk [vmem:[%s172 + $0x148] sm:$0xf] %vm2030, %v1856
      %2114 = vst.msk [vmem:[%s172 + $0x14c] sm:$0xf] %vm2030, %v1857
      %2115 = vst.msk [vmem:[%s172 + $0x150] sm:$0xf] %vm2030, %v1858
      %2116 = vst.msk [vmem:[%s172 + $0x154] sm:$0xf] %vm2030, %v1859
      %2117 = vst.msk [vmem:[%s172 + $0x158] sm:$0xf] %vm2030, %v1860
      %2118 = vst.msk [vmem:[%s172 + $0x15c] sm:$0xf] %vm2030, %v1861
      %2119 = vst.msk [vmem:[%s172 + $0x160] sm:$0xf] %vm2030, %v1862
      %2120 = vst.msk [vmem:[%s172 + $0x164] sm:$0xf] %vm2030, %v1863
      %2121 = vst.msk [vmem:[%s172 + $0x168] sm:$0xf] %vm2030, %v1864
      %2122 = vst.msk [vmem:[%s172 + $0x16c] sm:$0xf] %vm2030, %v1865
      %2123 = vst.msk [vmem:[%s172 + $0x170] sm:$0xf] %vm2030, %v1866
      %2124 = vst.msk [vmem:[%s172 + $0x174] sm:$0xf] %vm2030, %v1867
      %2125 = vst.msk [vmem:[%s172 + $0x178] sm:$0xf] %vm2030, %v1868
      %2126 = vst.msk [vmem:[%s172 + $0x17c] sm:$0xf] %vm2030, %v1869
      %2127 = vst.msk [vmem:[%s172 + $0x180] sm:$0xf] %vm2030, %v1870
      %2128 = vst.msk [vmem:[%s172 + $0x184] sm:$0xf] %vm2030, %v1871
      %2129 = vst.msk [vmem:[%s172 + $0x188] sm:$0xf] %vm2030, %v1872
      %2130 = vst.msk [vmem:[%s172 + $0x18c] sm:$0xf] %vm2030, %v1873
      %2131 = vst.msk [vmem:[%s172 + $0x190] sm:$0xf] %vm2030, %v1874
      %2132 = vst.msk [vmem:[%s172 + $0x194] sm:$0xf] %vm2030, %v1875
      %2133 = vst.msk [vmem:[%s172 + $0x198] sm:$0xf] %vm2030, %v1876
      %2134 = vst.msk [vmem:[%s172 + $0x19c] sm:$0xf] %vm2030, %v1877
      %2135 = vst.msk [vmem:[%s172 + $0x1a0] sm:$0xf] %vm2030, %v1878
      %2136 = vst.msk [vmem:[%s172 + $0x1a4] sm:$0xf] %vm2030, %v1879
      %2137 = vst.msk [vmem:[%s172 + $0x1a8] sm:$0xf] %vm2030, %v1880
      %2138 = vst.msk [vmem:[%s172 + $0x1ac] sm:$0xf] %vm2030, %v1881
      %2139 = vst.msk [vmem:[%s172 + $0x1b0] sm:$0xf] %vm2030, %v1882
      %2140 = vst.msk [vmem:[%s172 + $0x1b4] sm:$0xf] %vm2030, %v1883
      %2141 = vst.msk [vmem:[%s172 + $0x1b8] sm:$0xf] %vm2030, %v1884
      %2142 = vst.msk [vmem:[%s172 + $0x1bc] sm:$0xf] %vm2030, %v1885
      %2143 = vst.msk [vmem:[%s172 + $0x1c0] sm:$0xf] %vm2030, %v1886
      %2144 = vst.msk [vmem:[%s172 + $0x1c4] sm:$0xf] %vm2030, %v1887
      %2145 = vst.msk [vmem:[%s172 + $0x1c8] sm:$0xf] %vm2030, %v1888
      %2146 = vst.msk [vmem:[%s172 + $0x1cc] sm:$0xf] %vm2030, %v1889
      %2147 = vst.msk [vmem:[%s172 + $0x1d0] sm:$0xf] %vm2030, %v1890
      %2148 = vst.msk [vmem:[%s172 + $0x1d4] sm:$0xf] %vm2030, %v1891
      %2149 = vst.msk [vmem:[%s172 + $0x1d8] sm:$0xf] %vm2030, %v1892
      %2150 = vst.msk [vmem:[%s172 + $0x1dc] sm:$0xf] %vm2030, %v1893
      %2151 = vst.msk [vmem:[%s172 + $0x1e0] sm:$0xf] %vm2030, %v1894
      %2152 = vst.msk [vmem:[%s172 + $0x1e4] sm:$0xf] %vm2030, %v1895
      %2153 = vst.msk [vmem:[%s172 + $0x1e8] sm:$0xf] %vm2030, %v1896
      %2154 = vst.msk [vmem:[%s172 + $0x1ec] sm:$0xf] %vm2030, %v1897
      %2155 = vst.msk [vmem:[%s172 + $0x1f0] sm:$0xf] %vm2030, %v1898
      %2156 = vst.msk [vmem:[%s172 + $0x1f4] sm:$0xf] %vm2030, %v1899
      %2157 = vst.msk [vmem:[%s172 + $0x1f8] sm:$0xf] %vm2030, %v1900
      %2158 = vst.msk [vmem:[%s172 + $0x1fc] sm:$0xf] %vm2030, %v1901
      %s2159 = smul.u32 128, %s14
      %p2160 = scmp.lt.s32.totalorder %s2159, 255
      %s2161 = scalar_select %p2160, %s2159, 255
      %s2162 = smul.addr %s2161, 4
      %s2163 = scalar_lea.vmem %s3, %s2162
      // Predicated region
      $region33: #{forward.10} parent=31 // pred_check
        %p2164 = pneg %p100
      $region34: #{forward.10} parent=31 // pred_check_branch
        %2166 = sbr.rel (%p2164) target = $region36
      $region35: #{forward.10} parent=31 // pred_region
        %s2167 = smul.u32 128, %s14
      $region36: #{forward.10} parent=31 // pred_fallthru
        _
    $region32: #{forward.10} parent=5 // pred_fallthru
      _
    %p2168 = scmp.le.s32.totalorder 2, %s9
    // Predicated region
    $region37: #{forward.10} parent=5 // pred_check
      %p2169 = pneg %p2168
    $region38: #{forward.10} parent=5 // pred_check_branch
      %2171 = sbr.rel (%p2169) target = $region40
    $region39: #{forward.10} parent=5 // pred_region
      %s2172 = ssub.s32 %s9, 2
      // Predicated region
      $region41: #{forward.10} parent=39 // pred_check
        %p2173 = pneg %p106
      $region42: #{forward.10} parent=39 // pred_check_branch
        %2175 = sbr.rel (%p2173) target = $region44
      $region43: #{forward.10} parent=39 // pred_region
        %s2176 = smul.u32 128, %s15
        %p2177 = scmp.lt.s32.totalorder %s2176, 255
        %s2178 = scalar_select %p2177, %s2176, 255
        %s2179 = smul.addr %s2178, 4
        %s2180 = scalar_lea.vmem %s3, %s2179
      $region44: #{forward.10} parent=39 // pred_fallthru
        _
    $region40: #{forward.10} parent=5 // pred_fallthru
      _
  $region6: #{forward.10} parent=0 // loop_footer
    %s13 = sadd.s32 1, %s9
  $region7: #{forward.10} parent=0 // loop_footer_branch
    %8 = sbr.rel target = $region3
  $region8: #{forward.10} parent=0 // loop_exit
    _

// kernel: forward.11
$region0: #{forward.11}
  #allocation0 [shape = 'u32[]', space=smem, size = 0x4, offset = 0x4, fixed_abs, tag = 'smem constant byte address 0x4 - core index']
  #allocation1 [shape = 'u32[144,128]{1,0:T(1,128)}', space=vmem, size = 0x12000, scoped, tag = 'internal scratch']
  %s0 = inlined_call_operand.vmem [shape: bf16[2048,144], index: 0, kind: input, shape index: {}]
  %s1 = inlined_call_operand.vmem [shape: bf16[144,16], index: 1, kind: input, shape index: {}]
  %s2 = inlined_call_operand.vmem [shape: f32[1,16], index: 2, kind: input, shape index: {}]
  %s3 = inlined_call_operand.vmem [shape: bf16[2048,16], index: 3, kind: output, shape index: {}]
  %s4 = sld [smem:[#allocation0]]
  $region45: #{forward.11} parent=0
    _
  %s6 = ssub.s32 1, %s4
  %s7 = scalar_select 0, %s6, %s4
  loop: start=0, step=1, limit=4
  $region2: #{forward.11} parent=0 // loop_pre_header
    _
  $region3: #{forward.11} parent=0 // loop_header
    %s9 = sphi 0, %s13
    %p10 = scmp.ge.s32.totalorder %s9, 4
    %s19 = sphi 0, %s21
    %s22 = sphi 0, %s19
    %s23 = sphi 0, %s22
    %s39 = sphi 0, %s23
    %s43 = sphi 0, %s43
    %s45 = sphi 0, %s43
    %s46 = sphi 0, %s45
    %s60 = sphi 0, %s46
    %s64 = sphi 0, %s64
    %s66 = sphi 0, %s64
    %s67 = sphi 0, %s66
    %s81 = sphi 0, %s67
    %s87 = sphi 0, %s89
    %s90 = sphi 0, %s87
    %s91 = sphi 0, %s90
    %s107 = sphi 0, %s91
  $region4: #{forward.11} parent=0 // loop_header_branch
    %12 = sbr.rel (%p10) target = $region8
  $region5: #{forward.11} parent=0 // loop_body
    %s14 = ssub.s32 %s9, 1
    %s15 = ssub.s32 %s9, 2
    %s16 = sadd.s32 %s9, 1
    %s17 = ssub.s32 %s9, %s16
    %p18 = scmp.eq.s32.totalorder %s17, 0
    %s20 = sadd.s32 %s19, 1
    %s21 = scalar_select %p18, %s19, %s20
    %p24 = pneg %p18
    %p25 = scmp.eq.s32.totalorder %s9, 1
    %p26 = por %p24, %p25
    %p27 = scmp.ne.s32.totalorder %s19, %s22
    %p28 = scmp.eq.s32.totalorder %s9, 0
    %p29 = por %p27, %p28
    %p30 = scmp.ne.s32.totalorder %s19, %s22
    %p31 = scmp.eq.s32.totalorder %s14, 1
    %p32 = por %p30, %p31
    %p33 = scmp.ne.s32.totalorder %s22, %s23
    %p34 = scmp.eq.s32.totalorder %s14, 0
    %p35 = por %p33, %p34
    %p36 = scmp.ne.s32.totalorder %s22, %s23
    %p37 = scmp.eq.s32.totalorder %s15, 1
    %p38 = por %p36, %p37
    %p40 = scmp.ne.s32.totalorder %s23, %s39
    %p41 = scmp.eq.s32.totalorder %s15, 0
    %p42 = por %p40, %p41
    %s44 = sadd.s32 %s43, 1
    %p47 = scmp.eq.s32.totalorder %s9, 1
    %p48 = scmp.ne.s32.totalorder %s43, %s45
    %p49 = scmp.eq.s32.totalorder %s9, 0
    %p50 = por %p48, %p49
    %p51 = scmp.ne.s32.totalorder %s43, %s45
    %p52 = scmp.eq.s32.totalorder %s14, 1
    %p53 = por %p51, %p52
    %p54 = scmp.ne.s32.totalorder %s45, %s46
    %p55 = scmp.eq.s32.totalorder %s14, 0
    %p56 = por %p54, %p55
    %p57 = scmp.ne.s32.totalorder %s45, %s46
    %p58 = scmp.eq.s32.totalorder %s15, 1
    %p59 = por %p57, %p58
    %p61 = scmp.ne.s32.totalorder %s46, %s60
    %p62 = scmp.eq.s32.totalorder %s15, 0
    %p63 = por %p61, %p62
    %s65 = sadd.s32 %s64, 1
    %p68 = scmp.eq.s32.totalorder %s9, 1
    %p69 = scmp.ne.s32.totalorder %s64, %s66
    %p70 = scmp.eq.s32.totalorder %s9, 0
    %p71 = por %p69, %p70
    %p72 = scmp.ne.s32.totalorder %s64, %s66
    %p73 = scmp.eq.s32.totalorder %s14, 1
    %p74 = por %p72, %p73
    %p75 = scmp.ne.s32.totalorder %s66, %s67
    %p76 = scmp.eq.s32.totalorder %s14, 0
    %p77 = por %p75, %p76
    %p78 = scmp.ne.s32.totalorder %s66, %s67
    %p79 = scmp.eq.s32.totalorder %s15, 1
    %p80 = por %p78, %p79
    %p82 = scmp.ne.s32.totalorder %s67, %s81
    %p83 = scmp.eq.s32.totalorder %s15, 0
    %p84 = por %p82, %p83
    %s85 = ssub.s32 %s9, %s16
    %p86 = scmp.eq.s32.totalorder %s85, 0
    %s88 = sadd.s32 %s87, 1
    %s89 = scalar_select %p86, %s87, %s88
    %p92 = pneg %p86
    %p93 = scmp.eq.s32.totalorder %s9, 1
    %p94 = por %p92, %p93
    %p95 = scmp.ne.s32.totalorder %s87, %s90
    %p96 = scmp.eq.s32.totalorder %s9, 0
    %p97 = por %p95, %p96
    %p98 = scmp.ne.s32.totalorder %s87, %s90
    %p99 = scmp.eq.s32.totalorder %s14, 1
    %p100 = por %p98, %p99
    %p101 = scmp.ne.s32.totalorder %s90, %s91
    %p102 = scmp.eq.s32.totalorder %s14, 0
    %p103 = por %p101, %p102
    %p104 = scmp.ne.s32.totalorder %s90, %s91
    %p105 = scmp.eq.s32.totalorder %s15, 1
    %p106 = por %p104, %p105
    %p108 = scmp.ne.s32.totalorder %s91, %s107
    %p109 = scmp.eq.s32.totalorder %s15, 0
    %p110 = por %p108, %p109
    %p111 = scmp.le.s32.totalorder 1, %s9
    %p112 = scmp.lt.s32.totalorder %s9, 3
    %p113 = pnand %p111, %p112
    %p114 = pneg %p113
    // Predicated region
    $region9: #{forward.11} parent=5 // pred_check
      _
    $region10: #{forward.11} parent=5 // pred_check_branch
      %116 = sbr.rel (%p113) target = $region12
    $region11: #{forward.11} parent=5 // pred_region
      %s117 = ssub.s32 %s9, 1
      // Predicated region
      $region13: #{forward.11} parent=11 // pred_check
        %p118 = pneg %p56
      $region14: #{forward.11} parent=11 // pred_check_branch
        %120 = sbr.rel (%p118) target = $region16
      $region15: #{forward.11} parent=11 // pred_region
        _
      $region16: #{forward.11} parent=11 // pred_fallthru
        _
      // Predicated region
      $region17: #{forward.11} parent=11 // pred_check
        %p121 = pneg %p77
      $region18: #{forward.11} parent=11 // pred_check_branch
        %123 = sbr.rel (%p121) target = $region20
      $region19: #{forward.11} parent=11 // pred_region
        _
      $region20: #{forward.11} parent=11 // pred_fallthru
        _
    $region12: #{forward.11} parent=5 // pred_fallthru
      _
    %p124 = scmp.lt.s32.totalorder %s9, 2
    // Predicated region
    $region21: #{forward.11} parent=5 // pred_check
      %p125 = pneg %p124
    $region22: #{forward.11} parent=5 // pred_check_branch
      %127 = sbr.rel (%p125) target = $region24
    $region23: #{forward.11} parent=5 // pred_region
      // Predicated region
      $region25: #{forward.11} parent=23 // pred_check
        %p128 = pneg %p29
      $region26: #{forward.11} parent=23 // pred_check_branch
        %130 = sbr.rel (%p128) target = $region28
      $region27: #{forward.11} parent=23 // pred_region
        %s131 = smul.u32 128, %s9
        %p132 = scmp.lt.s32.totalorder %s131, 255
        %s133 = scalar_select %p132, %s131, 255
        %s134 = smul.addr %s133, 2
        %s135 = smul.addr %s134, 4
        %s136 = scalar_lea.vmem %s0, %s135
        %s137 = smul.u32 128, %s9
      $region28: #{forward.11} parent=23 // pred_fallthru
        _
    $region24: #{forward.11} parent=5 // pred_fallthru
      _
    %p138 = scmp.le.s32.totalorder 1, %s9
    %p139 = scmp.lt.s32.totalorder %s9, 3
    %p140 = pnand %p138, %p139
    %p141 = pneg %p140
    // Predicated region
    $region29: #{forward.11} parent=5 // pred_check
      _
    $region30: #{forward.11} parent=5 // pred_check_branch
      %143 = sbr.rel (%p140) target = $region32
    $region31: #{forward.11} parent=5 // pred_region
      %s144 = ssub.s32 %s9, 1
      %s145 = smul.u32 128, %s14
      %p146 = scmp.lt.s32.totalorder %s145, 255
      %s147 = scalar_select %p146, %s145, 255
      %s148 = smul.addr %s147, 2
      %s149 = smul.addr %s148, 4
      %s150 = scalar_lea.vmem %s0, %s149
      %p151 = pneg %p35
      %p152 = pneg %p32
      %p153 = pneg %p56
      %p154 = pneg %p53
      %p155 = pneg %p77
      %p156 = pneg %p74
      %p157 = pneg %p103
      %p158 = pneg %p100
      %s159 = smul.u32 128, %s14
      %p160 = scmp.lt.s32.totalorder %s159, 255
      %s161 = scalar_select %p160, %s159, 255
      %s162 = smul.addr %s161, 4
      %s163 = scalar_lea.vmem %s3, %s162
      %s164 = smul.u32 128, %s14
      %p165 = scmp.lt.s32.totalorder %s164, 255
      %s166 = scalar_select %p165, %s164, 255
      %s167 = smul.addr %s166, 2
      %s168 = smul.addr %s167, 4
      %s169 = scalar_lea.vmem %s0, %s168
      %s170 = smul.u32 128, %s14
      %s171 = smul.u32 128, %s14
      %p172 = scmp.lt.s32.totalorder %s171, 255
      %s173 = scalar_select %p172, %s171, 255
      %s174 = smul.addr %s173, 4
      %s175 = scalar_lea.vmem %s3, %s174
      %s176 = smul.u32 128, %s14
      %v178 = vld [vmem:[%s169] sm:$0xff]
      %v179 = vld [vmem:[%s169 + $0x8] sm:$0xff]
      %v180 = vld [vmem:[%s169 + $0x10] sm:$0xff]
      %v181 = vld [vmem:[%s169 + $0x18] sm:$0xff]
      %v182 = vld [vmem:[%s169 + $0x20] sm:$0xff]
      %v183 = vld [vmem:[%s169 + $0x28] sm:$0xff]
      %v184 = vld [vmem:[%s169 + $0x30] sm:$0xff]
      %v185 = vld [vmem:[%s169 + $0x38] sm:$0xff]
      %v186 = vld [vmem:[%s169 + $0x40] sm:$0xff]
      %v187 = vld [vmem:[%s169 + $0x48] sm:$0xff]
      %v188 = vld [vmem:[%s169 + $0x50] sm:$0xff]
      %v189 = vld [vmem:[%s169 + $0x58] sm:$0xff]
      %v190 = vld [vmem:[%s169 + $0x60] sm:$0xff]
      %v191 = vld [vmem:[%s169 + $0x68] sm:$0xff]
      %v192 = vld [vmem:[%s169 + $0x70] sm:$0xff]
      %v193 = vld [vmem:[%s169 + $0x78] sm:$0xff]
      %v194 = vld [vmem:[%s169 + $0x80] sm:$0xff]
      %v195 = vld [vmem:[%s169 + $0x88] sm:$0xff]
      %v196 = vld [vmem:[%s169 + $0x90] sm:$0xff]
      %v197 = vld [vmem:[%s169 + $0x98] sm:$0xff]
      %v198 = vld [vmem:[%s169 + $0xa0] sm:$0xff]
      %v199 = vld [vmem:[%s169 + $0xa8] sm:$0xff]
      %v200 = vld [vmem:[%s169 + $0xb0] sm:$0xff]
      %v201 = vld [vmem:[%s169 + $0xb8] sm:$0xff]
      %v202 = vld [vmem:[%s169 + $0xc0] sm:$0xff]
      %v203 = vld [vmem:[%s169 + $0xc8] sm:$0xff]
      %v204 = vld [vmem:[%s169 + $0xd0] sm:$0xff]
      %v205 = vld [vmem:[%s169 + $0xd8] sm:$0xff]
      %v206 = vld [vmem:[%s169 + $0xe0] sm:$0xff]
      %v207 = vld [vmem:[%s169 + $0xe8] sm:$0xff]
      %v208 = vld [vmem:[%s169 + $0xf0] sm:$0xff]
      %v209 = vld [vmem:[%s169 + $0xf8] sm:$0xff]
      %v210 = vld [vmem:[%s169 + $0x100] sm:$0xff]
      %v211 = vld [vmem:[%s169 + $0x108] sm:$0xff]
      %v212 = vld [vmem:[%s169 + $0x110] sm:$0xff]
      %v213 = vld [vmem:[%s169 + $0x118] sm:$0xff]
      %v214 = vld [vmem:[%s169 + $0x120] sm:$0xff]
      %v215 = vld [vmem:[%s169 + $0x128] sm:$0xff]
      %v216 = vld [vmem:[%s169 + $0x130] sm:$0xff]
      %v217 = vld [vmem:[%s169 + $0x138] sm:$0xff]
      %v218 = vld [vmem:[%s169 + $0x140] sm:$0xff]
      %v219 = vld [vmem:[%s169 + $0x148] sm:$0xff]
      %v220 = vld [vmem:[%s169 + $0x150] sm:$0xff]
      %v221 = vld [vmem:[%s169 + $0x158] sm:$0xff]
      %v222 = vld [vmem:[%s169 + $0x160] sm:$0xff]
      %v223 = vld [vmem:[%s169 + $0x168] sm:$0xff]
      %v224 = vld [vmem:[%s169 + $0x170] sm:$0xff]
      %v225 = vld [vmem:[%s169 + $0x178] sm:$0xff]
      %v226 = vld [vmem:[%s169 + $0x180] sm:$0xff]
      %v227 = vld [vmem:[%s169 + $0x188] sm:$0xff]
      %v228 = vld [vmem:[%s169 + $0x190] sm:$0xff]
      %v229 = vld [vmem:[%s169 + $0x198] sm:$0xff]
      %v230 = vld [vmem:[%s169 + $0x1a0] sm:$0xff]
      %v231 = vld [vmem:[%s169 + $0x1a8] sm:$0xff]
      %v232 = vld [vmem:[%s169 + $0x1b0] sm:$0xff]
      %v233 = vld [vmem:[%s169 + $0x1b8] sm:$0xff]
      %v234 = vld [vmem:[%s169 + $0x1c0] sm:$0xff]
      %v235 = vld [vmem:[%s169 + $0x1c8] sm:$0xff]
      %v236 = vld [vmem:[%s169 + $0x1d0] sm:$0xff]
      %v237 = vld [vmem:[%s169 + $0x1d8] sm:$0xff]
      %v238 = vld [vmem:[%s169 + $0x1e0] sm:$0xff]
      %v239 = vld [vmem:[%s169 + $0x1e8] sm:$0xff]
      %v240 = vld [vmem:[%s169 + $0x1f0] sm:$0xff]
      %v241 = vld [vmem:[%s169 + $0x1f8] sm:$0xff]
      %v242 = vld [vmem:[%s169 + $0x200] sm:$0xff]
      %v243 = vld [vmem:[%s169 + $0x208] sm:$0xff]
      %v244 = vld [vmem:[%s169 + $0x210] sm:$0xff]
      %v245 = vld [vmem:[%s169 + $0x218] sm:$0xff]
      %v246 = vld [vmem:[%s169 + $0x220] sm:$0xff]
      %v247 = vld [vmem:[%s169 + $0x228] sm:$0xff]
      %v248 = vld [vmem:[%s169 + $0x230] sm:$0xff]
      %v249 = vld [vmem:[%s169 + $0x238] sm:$0xff]
      %v250 = vld [vmem:[%s169 + $0x240] sm:$0xff]
      %v251 = vld [vmem:[%s169 + $0x248] sm:$0xff]
      %v252 = vld [vmem:[%s169 + $0x250] sm:$0xff]
      %v253 = vld [vmem:[%s169 + $0x258] sm:$0xff]
      %v254 = vld [vmem:[%s169 + $0x260] sm:$0xff]
      %v255 = vld [vmem:[%s169 + $0x268] sm:$0xff]
      %v256 = vld [vmem:[%s169 + $0x270] sm:$0xff]
      %v257 = vld [vmem:[%s169 + $0x278] sm:$0xff]
      %v258 = vld [vmem:[%s169 + $0x280] sm:$0xff]
      %v259 = vld [vmem:[%s169 + $0x288] sm:$0xff]
      %v260 = vld [vmem:[%s169 + $0x290] sm:$0xff]
      %v261 = vld [vmem:[%s169 + $0x298] sm:$0xff]
      %v262 = vld [vmem:[%s169 + $0x2a0] sm:$0xff]
      %v263 = vld [vmem:[%s169 + $0x2a8] sm:$0xff]
      %v264 = vld [vmem:[%s169 + $0x2b0] sm:$0xff]
      %v265 = vld [vmem:[%s169 + $0x2b8] sm:$0xff]
      %v266 = vld [vmem:[%s169 + $0x2c0] sm:$0xff]
      %v267 = vld [vmem:[%s169 + $0x2c8] sm:$0xff]
      %v268 = vld [vmem:[%s169 + $0x2d0] sm:$0xff]
      %v269 = vld [vmem:[%s169 + $0x2d8] sm:$0xff]
      %v270 = vld [vmem:[%s169 + $0x2e0] sm:$0xff]
      %v271 = vld [vmem:[%s169 + $0x2e8] sm:$0xff]
      %v272 = vld [vmem:[%s169 + $0x2f0] sm:$0xff]
      %v273 = vld [vmem:[%s169 + $0x2f8] sm:$0xff]
      %v274 = vld [vmem:[%s169 + $0x300] sm:$0xff]
      %v275 = vld [vmem:[%s169 + $0x308] sm:$0xff]
      %v276 = vld [vmem:[%s169 + $0x310] sm:$0xff]
      %v277 = vld [vmem:[%s169 + $0x318] sm:$0xff]
      %v278 = vld [vmem:[%s169 + $0x320] sm:$0xff]
      %v279 = vld [vmem:[%s169 + $0x328] sm:$0xff]
      %v280 = vld [vmem:[%s169 + $0x330] sm:$0xff]
      %v281 = vld [vmem:[%s169 + $0x338] sm:$0xff]
      %v282 = vld [vmem:[%s169 + $0x340] sm:$0xff]
      %v283 = vld [vmem:[%s169 + $0x348] sm:$0xff]
      %v284 = vld [vmem:[%s169 + $0x350] sm:$0xff]
      %v285 = vld [vmem:[%s169 + $0x358] sm:$0xff]
      %v286 = vld [vmem:[%s169 + $0x360] sm:$0xff]
      %v287 = vld [vmem:[%s169 + $0x368] sm:$0xff]
      %v288 = vld [vmem:[%s169 + $0x370] sm:$0xff]
      %v289 = vld [vmem:[%s169 + $0x378] sm:$0xff]
      %v290 = vld [vmem:[%s169 + $0x380] sm:$0xff]
      %v291 = vld [vmem:[%s169 + $0x388] sm:$0xff]
      %v292 = vld [vmem:[%s169 + $0x390] sm:$0xff]
      %v293 = vld [vmem:[%s169 + $0x398] sm:$0xff]
      %v294 = vld [vmem:[%s169 + $0x3a0] sm:$0xff]
      %v295 = vld [vmem:[%s169 + $0x3a8] sm:$0xff]
      %v296 = vld [vmem:[%s169 + $0x3b0] sm:$0xff]
      %v297 = vld [vmem:[%s169 + $0x3b8] sm:$0xff]
      %v298 = vld [vmem:[%s169 + $0x3c0] sm:$0xff]
      %v299 = vld [vmem:[%s169 + $0x3c8] sm:$0xff]
      %v300 = vld [vmem:[%s169 + $0x3d0] sm:$0xff]
      %v301 = vld [vmem:[%s169 + $0x3d8] sm:$0xff]
      %v302 = vld [vmem:[%s169 + $0x3e0] sm:$0xff]
      %v303 = vld [vmem:[%s169 + $0x3e8] sm:$0xff]
      %v304 = vld [vmem:[%s169 + $0x3f0] sm:$0xff]
      %v305 = vld [vmem:[%s169 + $0x3f8] sm:$0xff]
      %v306 = vld [vmem:[%s1] sm:$0xf]
      %v307 = vld [vmem:[%s1 + $0x4] sm:$0xf]
      %v308 = vld [vmem:[%s1 + $0x8] sm:$0xf]
      %v309 = vld [vmem:[%s1 + $0xc] sm:$0xf]
      %v310 = vld [vmem:[%s1 + $0x10] sm:$0xf]
      %v311 = vld [vmem:[%s1 + $0x14] sm:$0xf]
      %v312 = vld [vmem:[%s1 + $0x18] sm:$0xf]
      %v313 = vld [vmem:[%s1 + $0x1c] sm:$0xf]
      %v314 = vld [vmem:[%s1 + $0x20] sm:$0xf]
      %v315 = vld [vmem:[%s1 + $0x24] sm:$0xf]
      %v316 = vld [vmem:[%s1 + $0x28] sm:$0xf]
      %v317 = vld [vmem:[%s1 + $0x2c] sm:$0xf]
      %v318 = vld [vmem:[%s1 + $0x30] sm:$0xf]
      %v319 = vld [vmem:[%s1 + $0x34] sm:$0xf]
      %v320 = vld [vmem:[%s1 + $0x38] sm:$0xf]
      %v321 = vld [vmem:[%s1 + $0x3c] sm:$0xf]
      %v322 = vld [vmem:[%s1 + $0x40] sm:$0xf]
      %v323 = vld [vmem:[%s1 + $0x44] sm:$0xf]
      %v324 = vld [vmem:[%s2] sm:$0x1]
      %v326 = vlaneseq
      %v327 = vshrl.u32 %v326, 7
      %v328 = vsub.s32 0, %v327
      %v329 = vrot.slane %v324, %v328
      %v459 = vunpack.c.l.b16 %v178
      %v460 = vunpack.c.h.b16 %v178
      %v461 = vunpack.c.l.b16 %v179
      %v462 = vunpack.c.h.b16 %v179
      %v463 = vunpack.c.l.b16 %v180
      %v464 = vunpack.c.h.b16 %v180
      %v465 = vunpack.c.l.b16 %v181
      %v466 = vunpack.c.h.b16 %v181
      %v467 = vunpack.c.l.b16 %v182
      %v468 = vunpack.c.h.b16 %v182
      %v469 = vunpack.c.l.b16 %v183
      %v470 = vunpack.c.h.b16 %v183
      %v471 = vunpack.c.l.b16 %v184
      %v472 = vunpack.c.h.b16 %v184
      %v473 = vunpack.c.l.b16 %v185
      %v474 = vunpack.c.h.b16 %v185
      %v475 = vunpack.c.l.b16 %v186
      %v476 = vunpack.c.h.b16 %v186
      %v477 = vunpack.c.l.b16 %v187
      %v478 = vunpack.c.h.b16 %v187
      %v479 = vunpack.c.l.b16 %v188
      %v480 = vunpack.c.h.b16 %v188
      %v481 = vunpack.c.l.b16 %v189
      %v482 = vunpack.c.h.b16 %v189
      %v483 = vunpack.c.l.b16 %v190
      %v484 = vunpack.c.h.b16 %v190
      %v485 = vunpack.c.l.b16 %v191
      %v486 = vunpack.c.h.b16 %v191
      %v487 = vunpack.c.l.b16 %v192
      %v488 = vunpack.c.h.b16 %v192
      %v489 = vunpack.c.l.b16 %v193
      %v490 = vunpack.c.h.b16 %v193
      %v491 = vunpack.c.l.b16 %v194
      %v492 = vunpack.c.h.b16 %v194
      %v493 = vunpack.c.l.b16 %v195
      %v494 = vunpack.c.h.b16 %v195
      %v495 = vunpack.c.l.b16 %v196
      %v496 = vunpack.c.h.b16 %v196
      %v497 = vunpack.c.l.b16 %v197
      %v498 = vunpack.c.h.b16 %v197
      %v499 = vunpack.c.l.b16 %v198
      %v500 = vunpack.c.h.b16 %v198
      %v501 = vunpack.c.l.b16 %v199
      %v502 = vunpack.c.h.b16 %v199
      %v503 = vunpack.c.l.b16 %v200
      %v504 = vunpack.c.h.b16 %v200
      %v505 = vunpack.c.l.b16 %v201
      %v506 = vunpack.c.h.b16 %v201
      %v507 = vunpack.c.l.b16 %v202
      %v508 = vunpack.c.h.b16 %v202
      %v509 = vunpack.c.l.b16 %v203
      %v510 = vunpack.c.h.b16 %v203
      %v511 = vunpack.c.l.b16 %v204
      %v512 = vunpack.c.h.b16 %v204
      %v513 = vunpack.c.l.b16 %v205
      %v514 = vunpack.c.h.b16 %v205
      %v515 = vunpack.c.l.b16 %v206
      %v516 = vunpack.c.h.b16 %v206
      %v517 = vunpack.c.l.b16 %v207
      %v518 = vunpack.c.h.b16 %v207
      %v519 = vunpack.c.l.b16 %v208
      %v520 = vunpack.c.h.b16 %v208
      %v521 = vunpack.c.l.b16 %v209
      %v522 = vunpack.c.h.b16 %v209
      %v523 = vunpack.c.l.b16 %v210
      %v524 = vunpack.c.h.b16 %v210
      %v525 = vunpack.c.l.b16 %v211
      %v526 = vunpack.c.h.b16 %v211
      %v527 = vunpack.c.l.b16 %v212
      %v528 = vunpack.c.h.b16 %v212
      %v529 = vunpack.c.l.b16 %v213
      %v530 = vunpack.c.h.b16 %v213
      %v531 = vunpack.c.l.b16 %v214
      %v532 = vunpack.c.h.b16 %v214
      %v533 = vunpack.c.l.b16 %v215
      %v534 = vunpack.c.h.b16 %v215
      %v535 = vunpack.c.l.b16 %v216
      %v536 = vunpack.c.h.b16 %v216
      %v537 = vunpack.c.l.b16 %v217
      %v538 = vunpack.c.h.b16 %v217
      %v539 = vunpack.c.l.b16 %v218
      %v540 = vunpack.c.h.b16 %v218
      %v541 = vunpack.c.l.b16 %v219
      %v542 = vunpack.c.h.b16 %v219
      %v543 = vunpack.c.l.b16 %v220
      %v544 = vunpack.c.h.b16 %v220
      %v545 = vunpack.c.l.b16 %v221
      %v546 = vunpack.c.h.b16 %v221
      %v547 = vunpack.c.l.b16 %v222
      %v548 = vunpack.c.h.b16 %v222
      %v549 = vunpack.c.l.b16 %v223
      %v550 = vunpack.c.h.b16 %v223
      %v551 = vunpack.c.l.b16 %v224
      %v552 = vunpack.c.h.b16 %v224
      %v553 = vunpack.c.l.b16 %v225
      %v554 = vunpack.c.h.b16 %v225
      %v555 = vunpack.c.l.b16 %v226
      %v556 = vunpack.c.h.b16 %v226
      %v557 = vunpack.c.l.b16 %v227
      %v558 = vunpack.c.h.b16 %v227
      %v559 = vunpack.c.l.b16 %v228
      %v560 = vunpack.c.h.b16 %v228
      %v561 = vunpack.c.l.b16 %v229
      %v562 = vunpack.c.h.b16 %v229
      %v563 = vunpack.c.l.b16 %v230
      %v564 = vunpack.c.h.b16 %v230
      %v565 = vunpack.c.l.b16 %v231
      %v566 = vunpack.c.h.b16 %v231
      %v567 = vunpack.c.l.b16 %v232
      %v568 = vunpack.c.h.b16 %v232
      %v569 = vunpack.c.l.b16 %v233
      %v570 = vunpack.c.h.b16 %v233
      %v571 = vunpack.c.l.b16 %v234
      %v572 = vunpack.c.h.b16 %v234
      %v573 = vunpack.c.l.b16 %v235
      %v574 = vunpack.c.h.b16 %v235
      %v575 = vunpack.c.l.b16 %v236
      %v576 = vunpack.c.h.b16 %v236
      %v577 = vunpack.c.l.b16 %v237
      %v578 = vunpack.c.h.b16 %v237
      %v579 = vunpack.c.l.b16 %v238
      %v580 = vunpack.c.h.b16 %v238
      %v581 = vunpack.c.l.b16 %v239
      %v582 = vunpack.c.h.b16 %v239
      %v583 = vunpack.c.l.b16 %v240
      %v584 = vunpack.c.h.b16 %v240
      %v585 = vunpack.c.l.b16 %v241
      %v586 = vunpack.c.h.b16 %v241
      %v587 = vunpack.c.l.b16 %v242
      %v588 = vunpack.c.h.b16 %v242
      %v589 = vunpack.c.l.b16 %v243
      %v590 = vunpack.c.h.b16 %v243
      %v591 = vunpack.c.l.b16 %v244
      %v592 = vunpack.c.h.b16 %v244
      %v593 = vunpack.c.l.b16 %v245
      %v594 = vunpack.c.h.b16 %v245
      %v595 = vunpack.c.l.b16 %v246
      %v596 = vunpack.c.h.b16 %v246
      %v597 = vunpack.c.l.b16 %v247
      %v598 = vunpack.c.h.b16 %v247
      %v599 = vunpack.c.l.b16 %v248
      %v600 = vunpack.c.h.b16 %v248
      %v601 = vunpack.c.l.b16 %v249
      %v602 = vunpack.c.h.b16 %v249
      %v603 = vunpack.c.l.b16 %v250
      %v604 = vunpack.c.h.b16 %v250
      %v605 = vunpack.c.l.b16 %v251
      %v606 = vunpack.c.h.b16 %v251
      %v607 = vunpack.c.l.b16 %v252
      %v608 = vunpack.c.h.b16 %v252
      %v609 = vunpack.c.l.b16 %v253
      %v610 = vunpack.c.h.b16 %v253
      %v611 = vunpack.c.l.b16 %v254
      %v612 = vunpack.c.h.b16 %v254
      %v613 = vunpack.c.l.b16 %v255
      %v614 = vunpack.c.h.b16 %v255
      %v615 = vunpack.c.l.b16 %v256
      %v616 = vunpack.c.h.b16 %v256
      %v617 = vunpack.c.l.b16 %v257
      %v618 = vunpack.c.h.b16 %v257
      %v619 = vunpack.c.l.b16 %v258
      %v620 = vunpack.c.h.b16 %v258
      %v621 = vunpack.c.l.b16 %v259
      %v622 = vunpack.c.h.b16 %v259
      %v623 = vunpack.c.l.b16 %v260
      %v624 = vunpack.c.h.b16 %v260
      %v625 = vunpack.c.l.b16 %v261
      %v626 = vunpack.c.h.b16 %v261
      %v627 = vunpack.c.l.b16 %v262
      %v628 = vunpack.c.h.b16 %v262
      %v629 = vunpack.c.l.b16 %v263
      %v630 = vunpack.c.h.b16 %v263
      %v631 = vunpack.c.l.b16 %v264
      %v632 = vunpack.c.h.b16 %v264
      %v633 = vunpack.c.l.b16 %v265
      %v634 = vunpack.c.h.b16 %v265
      %v635 = vunpack.c.l.b16 %v266
      %v636 = vunpack.c.h.b16 %v266
      %v637 = vunpack.c.l.b16 %v267
      %v638 = vunpack.c.h.b16 %v267
      %v639 = vunpack.c.l.b16 %v268
      %v640 = vunpack.c.h.b16 %v268
      %v641 = vunpack.c.l.b16 %v269
      %v642 = vunpack.c.h.b16 %v269
      %v643 = vunpack.c.l.b16 %v270
      %v644 = vunpack.c.h.b16 %v270
      %v645 = vunpack.c.l.b16 %v271
      %v646 = vunpack.c.h.b16 %v271
      %v647 = vunpack.c.l.b16 %v272
      %v648 = vunpack.c.h.b16 %v272
      %v649 = vunpack.c.l.b16 %v273
      %v650 = vunpack.c.h.b16 %v273
      %v651 = vunpack.c.l.b16 %v274
      %v652 = vunpack.c.h.b16 %v274
      %v653 = vunpack.c.l.b16 %v275
      %v654 = vunpack.c.h.b16 %v275
      %v655 = vunpack.c.l.b16 %v276
      %v656 = vunpack.c.h.b16 %v276
      %v657 = vunpack.c.l.b16 %v277
      %v658 = vunpack.c.h.b16 %v277
      %v659 = vunpack.c.l.b16 %v278
      %v660 = vunpack.c.h.b16 %v278
      %v661 = vunpack.c.l.b16 %v279
      %v662 = vunpack.c.h.b16 %v279
      %v663 = vunpack.c.l.b16 %v280
      %v664 = vunpack.c.h.b16 %v280
      %v665 = vunpack.c.l.b16 %v281
      %v666 = vunpack.c.h.b16 %v281
      %v667 = vunpack.c.l.b16 %v282
      %v668 = vunpack.c.h.b16 %v282
      %v669 = vunpack.c.l.b16 %v283
      %v670 = vunpack.c.h.b16 %v283
      %v671 = vunpack.c.l.b16 %v284
      %v672 = vunpack.c.h.b16 %v284
      %v673 = vunpack.c.l.b16 %v285
      %v674 = vunpack.c.h.b16 %v285
      %v675 = vunpack.c.l.b16 %v286
      %v676 = vunpack.c.h.b16 %v286
      %v677 = vunpack.c.l.b16 %v287
      %v678 = vunpack.c.h.b16 %v287
      %v679 = vunpack.c.l.b16 %v288
      %v680 = vunpack.c.h.b16 %v288
      %v681 = vunpack.c.l.b16 %v289
      %v682 = vunpack.c.h.b16 %v289
      %v683 = vunpack.c.l.b16 %v290
      %v684 = vunpack.c.h.b16 %v290
      %v685 = vunpack.c.l.b16 %v291
      %v686 = vunpack.c.h.b16 %v291
      %v687 = vunpack.c.l.b16 %v292
      %v688 = vunpack.c.h.b16 %v292
      %v689 = vunpack.c.l.b16 %v293
      %v690 = vunpack.c.h.b16 %v293
      %v691 = vunpack.c.l.b16 %v294
      %v692 = vunpack.c.h.b16 %v294
      %v693 = vunpack.c.l.b16 %v295
      %v694 = vunpack.c.h.b16 %v295
      %v695 = vunpack.c.l.b16 %v296
      %v696 = vunpack.c.h.b16 %v296
      %v697 = vunpack.c.l.b16 %v297
      %v698 = vunpack.c.h.b16 %v297
      %v699 = vunpack.c.l.b16 %v298
      %v700 = vunpack.c.h.b16 %v298
      %v701 = vunpack.c.l.b16 %v299
      %v702 = vunpack.c.h.b16 %v299
      %v703 = vunpack.c.l.b16 %v300
      %v704 = vunpack.c.h.b16 %v300
      %v705 = vunpack.c.l.b16 %v301
      %v706 = vunpack.c.h.b16 %v301
      %v707 = vunpack.c.l.b16 %v302
      %v708 = vunpack.c.h.b16 %v302
      %v709 = vunpack.c.l.b16 %v303
      %v710 = vunpack.c.h.b16 %v303
      %v711 = vunpack.c.l.b16 %v304
      %v712 = vunpack.c.h.b16 %v304
      %v713 = vunpack.c.l.b16 %v305
      %v714 = vunpack.c.h.b16 %v305
      %v715 = vpack.c.b16 %v461, %v459
      %v716 = vpack.c.b16 %v462, %v460
      %v717 = vpack.c.b16 %v465, %v463
      %v718 = vpack.c.b16 %v466, %v464
      %v719 = vpack.c.b16 %v469, %v467
      %v720 = vpack.c.b16 %v470, %v468
      %v721 = vpack.c.b16 %v473, %v471
      %v722 = vpack.c.b16 %v474, %v472
      %v723 = vpack.c.b16 %v477, %v475
      %v724 = vpack.c.b16 %v478, %v476
      %v725 = vpack.c.b16 %v481, %v479
      %v726 = vpack.c.b16 %v482, %v480
      %v727 = vpack.c.b16 %v485, %v483
      %v728 = vpack.c.b16 %v486, %v484
      %v729 = vpack.c.b16 %v489, %v487
      %v730 = vpack.c.b16 %v490, %v488
      %v731 = vpack.c.b16 %v493, %v491
      %v732 = vpack.c.b16 %v494, %v492
      %v733 = vpack.c.b16 %v497, %v495
      %v734 = vpack.c.b16 %v498, %v496
      %v735 = vpack.c.b16 %v501, %v499
      %v736 = vpack.c.b16 %v502, %v500
      %v737 = vpack.c.b16 %v505, %v503
      %v738 = vpack.c.b16 %v506, %v504
      %v739 = vpack.c.b16 %v509, %v507
      %v740 = vpack.c.b16 %v510, %v508
      %v741 = vpack.c.b16 %v513, %v511
      %v742 = vpack.c.b16 %v514, %v512
      %v743 = vpack.c.b16 %v517, %v515
      %v744 = vpack.c.b16 %v518, %v516
      %v745 = vpack.c.b16 %v521, %v519
      %v746 = vpack.c.b16 %v522, %v520
      %v747 = vpack.c.b16 %v525, %v523
      %v748 = vpack.c.b16 %v526, %v524
      %v749 = vpack.c.b16 %v529, %v527
      %v750 = vpack.c.b16 %v530, %v528
      %v751 = vpack.c.b16 %v533, %v531
      %v752 = vpack.c.b16 %v534, %v532
      %v753 = vpack.c.b16 %v537, %v535
      %v754 = vpack.c.b16 %v538, %v536
      %v755 = vpack.c.b16 %v541, %v539
      %v756 = vpack.c.b16 %v542, %v540
      %v757 = vpack.c.b16 %v545, %v543
      %v758 = vpack.c.b16 %v546, %v544
      %v759 = vpack.c.b16 %v549, %v547
      %v760 = vpack.c.b16 %v550, %v548
      %v761 = vpack.c.b16 %v553, %v551
      %v762 = vpack.c.b16 %v554, %v552
      %v763 = vpack.c.b16 %v557, %v555
      %v764 = vpack.c.b16 %v558, %v556
      %v765 = vpack.c.b16 %v561, %v559
      %v766 = vpack.c.b16 %v562, %v560
      %v767 = vpack.c.b16 %v565, %v563
      %v768 = vpack.c.b16 %v566, %v564
      %v769 = vpack.c.b16 %v569, %v567
      %v770 = vpack.c.b16 %v570, %v568
      %v771 = vpack.c.b16 %v573, %v571
      %v772 = vpack.c.b16 %v574, %v572
      %v773 = vpack.c.b16 %v577, %v575
      %v774 = vpack.c.b16 %v578, %v576
      %v775 = vpack.c.b16 %v581, %v579
      %v776 = vpack.c.b16 %v582, %v580
      %v777 = vpack.c.b16 %v585, %v583
      %v778 = vpack.c.b16 %v586, %v584
      %v779 = vpack.c.b16 %v589, %v587
      %v780 = vpack.c.b16 %v590, %v588
      %v781 = vpack.c.b16 %v593, %v591
      %v782 = vpack.c.b16 %v594, %v592
      %v783 = vpack.c.b16 %v597, %v595
      %v784 = vpack.c.b16 %v598, %v596
      %v785 = vpack.c.b16 %v601, %v599
      %v786 = vpack.c.b16 %v602, %v600
      %v787 = vpack.c.b16 %v605, %v603
      %v788 = vpack.c.b16 %v606, %v604
      %v789 = vpack.c.b16 %v609, %v607
      %v790 = vpack.c.b16 %v610, %v608
      %v791 = vpack.c.b16 %v613, %v611
      %v792 = vpack.c.b16 %v614, %v612
      %v793 = vpack.c.b16 %v617, %v615
      %v794 = vpack.c.b16 %v618, %v616
      %v795 = vpack.c.b16 %v621, %v619
      %v796 = vpack.c.b16 %v622, %v620
      %v797 = vpack.c.b16 %v625, %v623
      %v798 = vpack.c.b16 %v626, %v624
      %v799 = vpack.c.b16 %v629, %v627
      %v800 = vpack.c.b16 %v630, %v628
      %v801 = vpack.c.b16 %v633, %v631
      %v802 = vpack.c.b16 %v634, %v632
      %v803 = vpack.c.b16 %v637, %v635
      %v804 = vpack.c.b16 %v638, %v636
      %v805 = vpack.c.b16 %v641, %v639
      %v806 = vpack.c.b16 %v642, %v640
      %v807 = vpack.c.b16 %v645, %v643
      %v808 = vpack.c.b16 %v646, %v644
      %v809 = vpack.c.b16 %v649, %v647
      %v810 = vpack.c.b16 %v650, %v648
      %v811 = vpack.c.b16 %v653, %v651
      %v812 = vpack.c.b16 %v654, %v652
      %v813 = vpack.c.b16 %v657, %v655
      %v814 = vpack.c.b16 %v658, %v656
      %v815 = vpack.c.b16 %v661, %v659
      %v816 = vpack.c.b16 %v662, %v660
      %v817 = vpack.c.b16 %v665, %v663
      %v818 = vpack.c.b16 %v666, %v664
      %v819 = vpack.c.b16 %v669, %v667
      %v820 = vpack.c.b16 %v670, %v668
      %v821 = vpack.c.b16 %v673, %v671
      %v822 = vpack.c.b16 %v674, %v672
      %v823 = vpack.c.b16 %v677, %v675
      %v824 = vpack.c.b16 %v678, %v676
      %v825 = vpack.c.b16 %v681, %v679
      %v826 = vpack.c.b16 %v682, %v680
      %v827 = vpack.c.b16 %v685, %v683
      %v828 = vpack.c.b16 %v686, %v684
      %v829 = vpack.c.b16 %v689, %v687
      %v830 = vpack.c.b16 %v690, %v688
      %v831 = vpack.c.b16 %v693, %v691
      %v832 = vpack.c.b16 %v694, %v692
      %v833 = vpack.c.b16 %v697, %v695
      %v834 = vpack.c.b16 %v698, %v696
      %v835 = vpack.c.b16 %v701, %v699
      %v836 = vpack.c.b16 %v702, %v700
      %v837 = vpack.c.b16 %v705, %v703
      %v838 = vpack.c.b16 %v706, %v704
      %v839 = vpack.c.b16 %v709, %v707
      %v840 = vpack.c.b16 %v710, %v708
      %v841 = vpack.c.b16 %v713, %v711
      %v842 = vpack.c.b16 %v714, %v712
      %v925 = vunpack.c.l.b16 %v306
      %v926 = vunpack.c.l.b16 %v307
      %v927 = vunpack.c.l.b16 %v308
      %v928 = vunpack.c.l.b16 %v309
      %v929 = vunpack.c.l.b16 %v310
      %v930 = vunpack.c.l.b16 %v311
      %v931 = vunpack.c.l.b16 %v312
      %v932 = vunpack.c.l.b16 %v313
      %v933 = vunpack.c.l.b16 %v314
      %v934 = vunpack.c.l.b16 %v315
      %v935 = vunpack.c.l.b16 %v316
      %v936 = vunpack.c.l.b16 %v317
      %v937 = vunpack.c.l.b16 %v318
      %v938 = vunpack.c.l.b16 %v319
      %v939 = vunpack.c.l.b16 %v320
      %v940 = vunpack.c.l.b16 %v321
      %v941 = vunpack.c.l.b16 %v322
      %v942 = vunpack.c.l.b16 %v323
      %v943 = vpack.c.b16 %v926, %v925
      %v944 = vpack.c.b16 %v928, %v927
      %v945 = vpack.c.b16 %v930, %v929
      %v946 = vpack.c.b16 %v932, %v931
      %v947 = vpack.c.b16 %v934, %v933
      %v948 = vpack.c.b16 %v936, %v935
      %v949 = vpack.c.b16 %v938, %v937
      %v950 = vpack.c.b16 %v940, %v939
      %v951 = vpack.c.b16 %v942, %v941
      %vm961 = vcmask 130048
      %v963 = vsel %vm961, %v716, 0
      %v966 = vsel %vm961, %v718, 0
      %v969 = vsel %vm961, %v720, 0
      %v972 = vsel %vm961, %v722, 0
      %v975 = vsel %vm961, %v724, 0
      %v978 = vsel %vm961, %v726, 0
      %v981 = vsel %vm961, %v728, 0
      %v984 = vsel %vm961, %v730, 0
      %v987 = vsel %vm961, %v732, 0
      %v990 = vsel %vm961, %v734, 0
      %v993 = vsel %vm961, %v736, 0
      %v996 = vsel %vm961, %v738, 0
      %v999 = vsel %vm961, %v740, 0
      %v1002 = vsel %vm961, %v742, 0
      %v1005 = vsel %vm961, %v744, 0
      %v1008 = vsel %vm961, %v746, 0
      %v1011 = vsel %vm961, %v748, 0
      %v1014 = vsel %vm961, %v750, 0
      %v1017 = vsel %vm961, %v752, 0
      %v1020 = vsel %vm961, %v754, 0
      %v1023 = vsel %vm961, %v756, 0
      %v1026 = vsel %vm961, %v758, 0
      %v1029 = vsel %vm961, %v760, 0
      %v1032 = vsel %vm961, %v762, 0
      %v1035 = vsel %vm961, %v764, 0
      %v1038 = vsel %vm961, %v766, 0
      %v1041 = vsel %vm961, %v768, 0
      %v1044 = vsel %vm961, %v770, 0
      %v1047 = vsel %vm961, %v772, 0
      %v1050 = vsel %vm961, %v774, 0
      %v1053 = vsel %vm961, %v776, 0
      %v1056 = vsel %vm961, %v778, 0
      %v1059 = vsel %vm961, %v780, 0
      %v1062 = vsel %vm961, %v782, 0
      %v1065 = vsel %vm961, %v784, 0
      %v1068 = vsel %vm961, %v786, 0
      %v1071 = vsel %vm961, %v788, 0
      %v1074 = vsel %vm961, %v790, 0
      %v1077 = vsel %vm961, %v792, 0
      %v1080 = vsel %vm961, %v794, 0
      %v1083 = vsel %vm961, %v796, 0
      %v1086 = vsel %vm961, %v798, 0
      %v1089 = vsel %vm961, %v800, 0
      %v1092 = vsel %vm961, %v802, 0
      %v1095 = vsel %vm961, %v804, 0
      %v1098 = vsel %vm961, %v806, 0
      %v1101 = vsel %vm961, %v808, 0
      %v1104 = vsel %vm961, %v810, 0
      %v1107 = vsel %vm961, %v812, 0
      %v1110 = vsel %vm961, %v814, 0
      %v1113 = vsel %vm961, %v816, 0
      %v1116 = vsel %vm961, %v818, 0
      %v1119 = vsel %vm961, %v820, 0
      %v1122 = vsel %vm961, %v822, 0
      %v1125 = vsel %vm961, %v824, 0
      %v1128 = vsel %vm961, %v826, 0
      %v1131 = vsel %vm961, %v828, 0
      %v1134 = vsel %vm961, %v830, 0
      %v1137 = vsel %vm961, %v832, 0
      %v1140 = vsel %vm961, %v834, 0
      %v1143 = vsel %vm961, %v836, 0
      %v1146 = vsel %vm961, %v838, 0
      %v1149 = vsel %vm961, %v840, 0
      %v1152 = vsel %vm961, %v842, 0
      %1154 = vmatprep.subr.bf16.mxu0 0
      %1155 = vmatpush1.bf16.msra.mxu0 %v943
      %1156 = vmatprep.subr.bf16.mxu0 0
      %1157 = vmatpush1.bf16.msra.mxu0 %v944
      %1158 = vmatprep.subr.bf16.mxu0 0
      %1159 = vmatpush1.bf16.msra.mxu0 %v945
      %1160 = vmatprep.subr.bf16.mxu0 0
      %1161 = vmatpush1.bf16.msra.mxu0 %v946
      %1162 = vmatprep.subr.bf16.mxu0 0
      %1163 = vmatpush1.bf16.msra.mxu0 %v947
      %1164 = vmatprep.subr.bf16.mxu0 0
      %1165 = vmatpush1.bf16.msra.mxu0 %v948
      %1166 = vmatprep.subr.bf16.mxu0 0
      %1167 = vmatpush1.bf16.msra.mxu0 %v949
      %1168 = vmatprep.subr.bf16.mxu0 0
      %1169 = vmatpush1.bf16.msra.mxu0 %v950
      %1170 = vmatprep.subr.bf16.mxu0 0
      %1171 = vmatpush1.bf16.msra.mxu0 %v951
      %1172 = vmatprep.subr.bf16.mxu0 0
      %1173 = vmatpush1.bf16.msra.mxu0 0
      %1174 = vmatprep.subr.bf16.mxu0 0
      %1175 = vmatpush1.bf16.msra.mxu0 0
      %1176 = vmatprep.subr.bf16.mxu0 0
      %1177 = vmatpush1.bf16.msra.mxu0 0
      %1178 = vmatprep.subr.bf16.mxu0 0
      %1179 = vmatpush1.bf16.msra.mxu0 0
      %1180 = vmatprep.subr.bf16.mxu0 0
      %1181 = vmatpush1.bf16.msra.mxu0 0
      %1182 = vmatprep.subr.bf16.mxu0 0
      %1183 = vmatpush1.bf16.msra.mxu0 0
      %1184 = vmatprep.subr.bf16.mxu0 0
      %1185 = vmatpush1.bf16.msra.mxu0 0
      %1186 = vmatprep.mubr.bf16.mxu0 %v963
      %1187 = vmatmul.mubr.bf16.gmra.mrb[0].mxu0 %v715
      %v1188 = vpop.f32.mrb[0].mxu0
      %v1189 = vadd.f32 %v329, %v1188
      %v1190 = vpop.f32.mrb[0].mxu0
      %v1191 = vpop.f32.mrb[0].mxu0
      %v1192 = vadd.f32 %v329, %v1191
      %v1193 = vpop.f32.mrb[0].mxu0
      %1194 = vmatprep.mubr.bf16.mxu0 %v966
      %1195 = vmatmul.mubr.bf16.gmra.mrb[0].mxu0 %v717
      %v1196 = vpop.f32.mrb[0].mxu0
      %v1197 = vadd.f32 %v329, %v1196
      %v1198 = vpop.f32.mrb[0].mxu0
      %v1199 = vpop.f32.mrb[0].mxu0
      %v1200 = vadd.f32 %v329, %v1199
      %v1201 = vpop.f32.mrb[0].mxu0
      %1202 = vmatprep.mubr.bf16.mxu0 %v969
      %1203 = vmatmul.mubr.bf16.gmra.mrb[0].mxu0 %v719
      %v1204 = vpop.f32.mrb[0].mxu0
      %v1205 = vadd.f32 %v329, %v1204
      %v1206 = vpop.f32.mrb[0].mxu0
      %v1207 = vpop.f32.mrb[0].mxu0
      %v1208 = vadd.f32 %v329, %v1207
      %v1209 = vpop.f32.mrb[0].mxu0
      %1210 = vmatprep.mubr.bf16.mxu0 %v972
      %1211 = vmatmul.mubr.bf16.gmra.mrb[0].mxu0 %v721
      %v1212 = vpop.f32.mrb[0].mxu0
      %v1213 = vadd.f32 %v329, %v1212
      %v1214 = vpop.f32.mrb[0].mxu0
      %v1215 = vpop.f32.mrb[0].mxu0
      %v1216 = vadd.f32 %v329, %v1215
      %v1217 = vpop.f32.mrb[0].mxu0
      %1218 = vmatprep.mubr.bf16.mxu0 %v975
      %1219 = vmatmul.mubr.bf16.gmra.mrb[0].mxu0 %v723
      %v1220 = vpop.f32.mrb[0].mxu0
      %v1221 = vadd.f32 %v329, %v1220
      %v1222 = vpop.f32.mrb[0].mxu0
      %v1223 = vpop.f32.mrb[0].mxu0
      %v1224 = vadd.f32 %v329, %v1223
      %v1225 = vpop.f32.mrb[0].mxu0
      %1226 = vmatprep.mubr.bf16.mxu0 %v978
      %1227 = vmatmul.mubr.bf16.gmra.mrb[0].mxu0 %v725
      %v1228 = vpop.f32.mrb[0].mxu0
      %v1229 = vadd.f32 %v329, %v1228
      %v1230 = vpop.f32.mrb[0].mxu0
      %v1231 = vpop.f32.mrb[0].mxu0
      %v1232 = vadd.f32 %v329, %v1231
      %v1233 = vpop.f32.mrb[0].mxu0
      %1234 = vmatprep.mubr.bf16.mxu0 %v981
      %1235 = vmatmul.mubr.bf16.gmra.mrb[0].mxu0 %v727
      %v1236 = vpop.f32.mrb[0].mxu0
      %v1237 = vadd.f32 %v329, %v1236
      %v1238 = vpop.f32.mrb[0].mxu0
      %v1239 = vpop.f32.mrb[0].mxu0
      %v1240 = vadd.f32 %v329, %v1239
      %v1241 = vpop.f32.mrb[0].mxu0
      %1242 = vmatprep.mubr.bf16.mxu0 %v984
      %1243 = vmatmul.mubr.bf16.gmra.mrb[0].mxu0 %v729
      %v1244 = vpop.f32.mrb[0].mxu0
      %v1245 = vadd.f32 %v329, %v1244
      %v1246 = vpop.f32.mrb[0].mxu0
      %v1247 = vpop.f32.mrb[0].mxu0
      %v1248 = vadd.f32 %v329, %v1247
      %v1249 = vpop.f32.mrb[0].mxu0
      %1250 = vmatprep.mubr.bf16.mxu0 %v987
      %1251 = vmatmul.mubr.bf16.gmra.mrb[0].mxu0 %v731
      %v1252 = vpop.f32.mrb[0].mxu0
      %v1253 = vadd.f32 %v329, %v1252
      %v1254 = vpop.f32.mrb[0].mxu0
      %v1255 = vpop.f32.mrb[0].mxu0
      %v1256 = vadd.f32 %v329, %v1255
      %v1257 = vpop.f32.mrb[0].mxu0
      %1258 = vmatprep.mubr.bf16.mxu0 %v990
      %1259 = vmatmul.mubr.bf16.gmra.mrb[0].mxu0 %v733
      %v1260 = vpop.f32.mrb[0].mxu0
      %v1261 = vadd.f32 %v329, %v1260
      %v1262 = vpop.f32.mrb[0].mxu0
      %v1263 = vpop.f32.mrb[0].mxu0
      %v1264 = vadd.f32 %v329, %v1263
      %v1265 = vpop.f32.mrb[0].mxu0
      %1266 = vmatprep.mubr.bf16.mxu0 %v993
      %1267 = vmatmul.mubr.bf16.gmra.mrb[0].mxu0 %v735
      %v1268 = vpop.f32.mrb[0].mxu0
      %v1269 = vadd.f32 %v329, %v1268
      %v1270 = vpop.f32.mrb[0].mxu0
      %v1271 = vpop.f32.mrb[0].mxu0
      %v1272 = vadd.f32 %v329, %v1271
      %v1273 = vpop.f32.mrb[0].mxu0
      %1274 = vmatprep.mubr.bf16.mxu0 %v996
      %1275 = vmatmul.mubr.bf16.gmra.mrb[0].mxu0 %v737
      %v1276 = vpop.f32.mrb[0].mxu0
      %v1277 = vadd.f32 %v329, %v1276
      %v1278 = vpop.f32.mrb[0].mxu0
      %v1279 = vpop.f32.mrb[0].mxu0
      %v1280 = vadd.f32 %v329, %v1279
      %v1281 = vpop.f32.mrb[0].mxu0
      %1282 = vmatprep.mubr.bf16.mxu0 %v999
      %1283 = vmatmul.mubr.bf16.gmra.mrb[0].mxu0 %v739
      %v1284 = vpop.f32.mrb[0].mxu0
      %v1285 = vadd.f32 %v329, %v1284
      %v1286 = vpop.f32.mrb[0].mxu0
      %v1287 = vpop.f32.mrb[0].mxu0
      %v1288 = vadd.f32 %v329, %v1287
      %v1289 = vpop.f32.mrb[0].mxu0
      %1290 = vmatprep.mubr.bf16.mxu0 %v1002
      %1291 = vmatmul.mubr.bf16.gmra.mrb[0].mxu0 %v741
      %v1292 = vpop.f32.mrb[0].mxu0
      %v1293 = vadd.f32 %v329, %v1292
      %v1294 = vpop.f32.mrb[0].mxu0
      %v1295 = vpop.f32.mrb[0].mxu0
      %v1296 = vadd.f32 %v329, %v1295
      %v1297 = vpop.f32.mrb[0].mxu0
      %1298 = vmatprep.mubr.bf16.mxu0 %v1005
      %1299 = vmatmul.mubr.bf16.gmra.mrb[0].mxu0 %v743
      %v1300 = vpop.f32.mrb[0].mxu0
      %v1301 = vadd.f32 %v329, %v1300
      %v1302 = vpop.f32.mrb[0].mxu0
      %v1303 = vpop.f32.mrb[0].mxu0
      %v1304 = vadd.f32 %v329, %v1303
      %v1305 = vpop.f32.mrb[0].mxu0
      %1306 = vmatprep.mubr.bf16.mxu0 %v1008
      %1307 = vmatmul.mubr.bf16.gmra.mrb[0].mxu0 %v745
      %v1308 = vpop.f32.mrb[0].mxu0
      %v1309 = vadd.f32 %v329, %v1308
      %v1310 = vpop.f32.mrb[0].mxu0
      %v1311 = vpop.f32.mrb[0].mxu0
      %v1312 = vadd.f32 %v329, %v1311
      %v1313 = vpop.f32.mrb[0].mxu0
      %1314 = vmatprep.mubr.bf16.mxu0 %v1011
      %1315 = vmatmul.mubr.bf16.gmra.mrb[0].mxu0 %v747
      %v1316 = vpop.f32.mrb[0].mxu0
      %v1317 = vadd.f32 %v329, %v1316
      %v1318 = vpop.f32.mrb[0].mxu0
      %v1319 = vpop.f32.mrb[0].mxu0
      %v1320 = vadd.f32 %v329, %v1319
      %v1321 = vpop.f32.mrb[0].mxu0
      %1322 = vmatprep.mubr.bf16.mxu0 %v1014
      %1323 = vmatmul.mubr.bf16.gmra.mrb[0].mxu0 %v749
      %v1324 = vpop.f32.mrb[0].mxu0
      %v1325 = vadd.f32 %v329, %v1324
      %v1326 = vpop.f32.mrb[0].mxu0
      %v1327 = vpop.f32.mrb[0].mxu0
      %v1328 = vadd.f32 %v329, %v1327
      %v1329 = vpop.f32.mrb[0].mxu0
      %1330 = vmatprep.mubr.bf16.mxu0 %v1017
      %1331 = vmatmul.mubr.bf16.gmra.mrb[0].mxu0 %v751
      %v1332 = vpop.f32.mrb[0].mxu0
      %v1333 = vadd.f32 %v329, %v1332
      %v1334 = vpop.f32.mrb[0].mxu0
      %v1335 = vpop.f32.mrb[0].mxu0
      %v1336 = vadd.f32 %v329, %v1335
      %v1337 = vpop.f32.mrb[0].mxu0
      %1338 = vmatprep.mubr.bf16.mxu0 %v1020
      %1339 = vmatmul.mubr.bf16.gmra.mrb[0].mxu0 %v753
      %v1340 = vpop.f32.mrb[0].mxu0
      %v1341 = vadd.f32 %v329, %v1340
      %v1342 = vpop.f32.mrb[0].mxu0
      %v1343 = vpop.f32.mrb[0].mxu0
      %v1344 = vadd.f32 %v329, %v1343
      %v1345 = vpop.f32.mrb[0].mxu0
      %1346 = vmatprep.mubr.bf16.mxu0 %v1023
      %1347 = vmatmul.mubr.bf16.gmra.mrb[0].mxu0 %v755
      %v1348 = vpop.f32.mrb[0].mxu0
      %v1349 = vadd.f32 %v329, %v1348
      %v1350 = vpop.f32.mrb[0].mxu0
      %v1351 = vpop.f32.mrb[0].mxu0
      %v1352 = vadd.f32 %v329, %v1351
      %v1353 = vpop.f32.mrb[0].mxu0
      %1354 = vmatprep.mubr.bf16.mxu0 %v1026
      %1355 = vmatmul.mubr.bf16.gmra.mrb[0].mxu0 %v757
      %v1356 = vpop.f32.mrb[0].mxu0
      %v1357 = vadd.f32 %v329, %v1356
      %v1358 = vpop.f32.mrb[0].mxu0
      %v1359 = vpop.f32.mrb[0].mxu0
      %v1360 = vadd.f32 %v329, %v1359
      %v1361 = vpop.f32.mrb[0].mxu0
      %1362 = vmatprep.mubr.bf16.mxu0 %v1029
      %1363 = vmatmul.mubr.bf16.gmra.mrb[0].mxu0 %v759
      %v1364 = vpop.f32.mrb[0].mxu0
      %v1365 = vadd.f32 %v329, %v1364
      %v1366 = vpop.f32.mrb[0].mxu0
      %v1367 = vpop.f32.mrb[0].mxu0
      %v1368 = vadd.f32 %v329, %v1367
      %v1369 = vpop.f32.mrb[0].mxu0
      %1370 = vmatprep.mubr.bf16.mxu0 %v1032
      %1371 = vmatmul.mubr.bf16.gmra.mrb[0].mxu0 %v761
      %v1372 = vpop.f32.mrb[0].mxu0
      %v1373 = vadd.f32 %v329, %v1372
      %v1374 = vpop.f32.mrb[0].mxu0
      %v1375 = vpop.f32.mrb[0].mxu0
      %v1376 = vadd.f32 %v329, %v1375
      %v1377 = vpop.f32.mrb[0].mxu0
      %1378 = vmatprep.mubr.bf16.mxu0 %v1035
      %1379 = vmatmul.mubr.bf16.gmra.mrb[0].mxu0 %v763
      %v1380 = vpop.f32.mrb[0].mxu0
      %v1381 = vadd.f32 %v329, %v1380
      %v1382 = vpop.f32.mrb[0].mxu0
      %v1383 = vpop.f32.mrb[0].mxu0
      %v1384 = vadd.f32 %v329, %v1383
      %v1385 = vpop.f32.mrb[0].mxu0
      %1386 = vmatprep.mubr.bf16.mxu0 %v1038
      %1387 = vmatmul.mubr.bf16.gmra.mrb[0].mxu0 %v765
      %v1388 = vpop.f32.mrb[0].mxu0
      %v1389 = vadd.f32 %v329, %v1388
      %v1390 = vpop.f32.mrb[0].mxu0
      %v1391 = vpop.f32.mrb[0].mxu0
      %v1392 = vadd.f32 %v329, %v1391
      %v1393 = vpop.f32.mrb[0].mxu0
      %1394 = vmatprep.mubr.bf16.mxu0 %v1041
      %1395 = vmatmul.mubr.bf16.gmra.mrb[0].mxu0 %v767
      %v1396 = vpop.f32.mrb[0].mxu0
      %v1397 = vadd.f32 %v329, %v1396
      %v1398 = vpop.f32.mrb[0].mxu0
      %v1399 = vpop.f32.mrb[0].mxu0
      %v1400 = vadd.f32 %v329, %v1399
      %v1401 = vpop.f32.mrb[0].mxu0
      %1402 = vmatprep.mubr.bf16.mxu0 %v1044
      %1403 = vmatmul.mubr.bf16.gmra.mrb[0].mxu0 %v769
      %v1404 = vpop.f32.mrb[0].mxu0
      %v1405 = vadd.f32 %v329, %v1404
      %v1406 = vpop.f32.mrb[0].mxu0
      %v1407 = vpop.f32.mrb[0].mxu0
      %v1408 = vadd.f32 %v329, %v1407
      %v1409 = vpop.f32.mrb[0].mxu0
      %1410 = vmatprep.mubr.bf16.mxu0 %v1047
      %1411 = vmatmul.mubr.bf16.gmra.mrb[0].mxu0 %v771
      %v1412 = vpop.f32.mrb[0].mxu0
      %v1413 = vadd.f32 %v329, %v1412
      %v1414 = vpop.f32.mrb[0].mxu0
      %v1415 = vpop.f32.mrb[0].mxu0
      %v1416 = vadd.f32 %v329, %v1415
      %v1417 = vpop.f32.mrb[0].mxu0
      %1418 = vmatprep.mubr.bf16.mxu0 %v1050
      %1419 = vmatmul.mubr.bf16.gmra.mrb[0].mxu0 %v773
      %v1420 = vpop.f32.mrb[0].mxu0
      %v1421 = vadd.f32 %v329, %v1420
      %v1422 = vpop.f32.mrb[0].mxu0
      %v1423 = vpop.f32.mrb[0].mxu0
      %v1424 = vadd.f32 %v329, %v1423
      %v1425 = vpop.f32.mrb[0].mxu0
      %1426 = vmatprep.mubr.bf16.mxu0 %v1053
      %1427 = vmatmul.mubr.bf16.gmra.mrb[0].mxu0 %v775
      %v1428 = vpop.f32.mrb[0].mxu0
      %v1429 = vadd.f32 %v329, %v1428
      %v1430 = vpop.f32.mrb[0].mxu0
      %v1431 = vpop.f32.mrb[0].mxu0
      %v1432 = vadd.f32 %v329, %v1431
      %v1433 = vpop.f32.mrb[0].mxu0
      %1434 = vmatprep.mubr.bf16.mxu0 %v1056
      %1435 = vmatmul.mubr.bf16.gmra.mrb[0].mxu0 %v777
      %v1436 = vpop.f32.mrb[0].mxu0
      %v1437 = vadd.f32 %v329, %v1436
      %v1438 = vpop.f32.mrb[0].mxu0
      %v1439 = vpop.f32.mrb[0].mxu0
      %v1440 = vadd.f32 %v329, %v1439
      %v1441 = vpop.f32.mrb[0].mxu0
      %1442 = vmatprep.mubr.bf16.mxu0 %v1059
      %1443 = vmatmul.mubr.bf16.gmra.mrb[0].mxu0 %v779
      %v1444 = vpop.f32.mrb[0].mxu0
      %v1445 = vadd.f32 %v329, %v1444
      %v1446 = vpop.f32.mrb[0].mxu0
      %v1447 = vpop.f32.mrb[0].mxu0
      %v1448 = vadd.f32 %v329, %v1447
      %v1449 = vpop.f32.mrb[0].mxu0
      %1450 = vmatprep.mubr.bf16.mxu0 %v1062
      %1451 = vmatmul.mubr.bf16.gmra.mrb[0].mxu0 %v781
      %v1452 = vpop.f32.mrb[0].mxu0
      %v1453 = vadd.f32 %v329, %v1452
      %v1454 = vpop.f32.mrb[0].mxu0
      %v1455 = vpop.f32.mrb[0].mxu0
      %v1456 = vadd.f32 %v329, %v1455
      %v1457 = vpop.f32.mrb[0].mxu0
      %1458 = vmatprep.mubr.bf16.mxu0 %v1065
      %1459 = vmatmul.mubr.bf16.gmra.mrb[0].mxu0 %v783
      %v1460 = vpop.f32.mrb[0].mxu0
      %v1461 = vadd.f32 %v329, %v1460
      %v1462 = vpop.f32.mrb[0].mxu0
      %v1463 = vpop.f32.mrb[0].mxu0
      %v1464 = vadd.f32 %v329, %v1463
      %v1465 = vpop.f32.mrb[0].mxu0
      %1466 = vmatprep.mubr.bf16.mxu0 %v1068
      %1467 = vmatmul.mubr.bf16.gmra.mrb[0].mxu0 %v785
      %v1468 = vpop.f32.mrb[0].mxu0
      %v1469 = vadd.f32 %v329, %v1468
      %v1470 = vpop.f32.mrb[0].mxu0
      %v1471 = vpop.f32.mrb[0].mxu0
      %v1472 = vadd.f32 %v329, %v1471
      %v1473 = vpop.f32.mrb[0].mxu0
      %1474 = vmatprep.mubr.bf16.mxu0 %v1071
      %1475 = vmatmul.mubr.bf16.gmra.mrb[0].mxu0 %v787
      %v1476 = vpop.f32.mrb[0].mxu0
      %v1477 = vadd.f32 %v329, %v1476
      %v1478 = vpop.f32.mrb[0].mxu0
      %v1479 = vpop.f32.mrb[0].mxu0
      %v1480 = vadd.f32 %v329, %v1479
      %v1481 = vpop.f32.mrb[0].mxu0
      %1482 = vmatprep.mubr.bf16.mxu0 %v1074
      %1483 = vmatmul.mubr.bf16.gmra.mrb[0].mxu0 %v789
      %v1484 = vpop.f32.mrb[0].mxu0
      %v1485 = vadd.f32 %v329, %v1484
      %v1486 = vpop.f32.mrb[0].mxu0
      %v1487 = vpop.f32.mrb[0].mxu0
      %v1488 = vadd.f32 %v329, %v1487
      %v1489 = vpop.f32.mrb[0].mxu0
      %1490 = vmatprep.mubr.bf16.mxu0 %v1077
      %1491 = vmatmul.mubr.bf16.gmra.mrb[0].mxu0 %v791
      %v1492 = vpop.f32.mrb[0].mxu0
      %v1493 = vadd.f32 %v329, %v1492
      %v1494 = vpop.f32.mrb[0].mxu0
      %v1495 = vpop.f32.mrb[0].mxu0
      %v1496 = vadd.f32 %v329, %v1495
      %v1497 = vpop.f32.mrb[0].mxu0
      %1498 = vmatprep.mubr.bf16.mxu0 %v1080
      %1499 = vmatmul.mubr.bf16.gmra.mrb[0].mxu0 %v793
      %v1500 = vpop.f32.mrb[0].mxu0
      %v1501 = vadd.f32 %v329, %v1500
      %v1502 = vpop.f32.mrb[0].mxu0
      %v1503 = vpop.f32.mrb[0].mxu0
      %v1504 = vadd.f32 %v329, %v1503
      %v1505 = vpop.f32.mrb[0].mxu0
      %1506 = vmatprep.mubr.bf16.mxu0 %v1083
      %1507 = vmatmul.mubr.bf16.gmra.mrb[0].mxu0 %v795
      %v1508 = vpop.f32.mrb[0].mxu0
      %v1509 = vadd.f32 %v329, %v1508
      %v1510 = vpop.f32.mrb[0].mxu0
      %v1511 = vpop.f32.mrb[0].mxu0
      %v1512 = vadd.f32 %v329, %v1511
      %v1513 = vpop.f32.mrb[0].mxu0
      %1514 = vmatprep.mubr.bf16.mxu0 %v1086
      %1515 = vmatmul.mubr.bf16.gmra.mrb[0].mxu0 %v797
      %v1516 = vpop.f32.mrb[0].mxu0
      %v1517 = vadd.f32 %v329, %v1516
      %v1518 = vpop.f32.mrb[0].mxu0
      %v1519 = vpop.f32.mrb[0].mxu0
      %v1520 = vadd.f32 %v329, %v1519
      %v1521 = vpop.f32.mrb[0].mxu0
      %1522 = vmatprep.mubr.bf16.mxu0 %v1089
      %1523 = vmatmul.mubr.bf16.gmra.mrb[0].mxu0 %v799
      %v1524 = vpop.f32.mrb[0].mxu0
      %v1525 = vadd.f32 %v329, %v1524
      %v1526 = vpop.f32.mrb[0].mxu0
      %v1527 = vpop.f32.mrb[0].mxu0
      %v1528 = vadd.f32 %v329, %v1527
      %v1529 = vpop.f32.mrb[0].mxu0
      %1530 = vmatprep.mubr.bf16.mxu0 %v1092
      %1531 = vmatmul.mubr.bf16.gmra.mrb[0].mxu0 %v801
      %v1532 = vpop.f32.mrb[0].mxu0
      %v1533 = vadd.f32 %v329, %v1532
      %v1534 = vpop.f32.mrb[0].mxu0
      %v1535 = vpop.f32.mrb[0].mxu0
      %v1536 = vadd.f32 %v329, %v1535
      %v1537 = vpop.f32.mrb[0].mxu0
      %1538 = vmatprep.mubr.bf16.mxu0 %v1095
      %1539 = vmatmul.mubr.bf16.gmra.mrb[0].mxu0 %v803
      %v1540 = vpop.f32.mrb[0].mxu0
      %v1541 = vadd.f32 %v329, %v1540
      %v1542 = vpop.f32.mrb[0].mxu0
      %v1543 = vpop.f32.mrb[0].mxu0
      %v1544 = vadd.f32 %v329, %v1543
      %v1545 = vpop.f32.mrb[0].mxu0
      %1546 = vmatprep.mubr.bf16.mxu0 %v1098
      %1547 = vmatmul.mubr.bf16.gmra.mrb[0].mxu0 %v805
      %v1548 = vpop.f32.mrb[0].mxu0
      %v1549 = vadd.f32 %v329, %v1548
      %v1550 = vpop.f32.mrb[0].mxu0
      %v1551 = vpop.f32.mrb[0].mxu0
      %v1552 = vadd.f32 %v329, %v1551
      %v1553 = vpop.f32.mrb[0].mxu0
      %1554 = vmatprep.mubr.bf16.mxu0 %v1101
      %1555 = vmatmul.mubr.bf16.gmra.mrb[0].mxu0 %v807
      %v1556 = vpop.f32.mrb[0].mxu0
      %v1557 = vadd.f32 %v329, %v1556
      %v1558 = vpop.f32.mrb[0].mxu0
      %v1559 = vpop.f32.mrb[0].mxu0
      %v1560 = vadd.f32 %v329, %v1559
      %v1561 = vpop.f32.mrb[0].mxu0
      %1562 = vmatprep.mubr.bf16.mxu0 %v1104
      %1563 = vmatmul.mubr.bf16.gmra.mrb[0].mxu0 %v809
      %v1564 = vpop.f32.mrb[0].mxu0
      %v1565 = vadd.f32 %v329, %v1564
      %v1566 = vpop.f32.mrb[0].mxu0
      %v1567 = vpop.f32.mrb[0].mxu0
      %v1568 = vadd.f32 %v329, %v1567
      %v1569 = vpop.f32.mrb[0].mxu0
      %1570 = vmatprep.mubr.bf16.mxu0 %v1107
      %1571 = vmatmul.mubr.bf16.gmra.mrb[0].mxu0 %v811
      %v1572 = vpop.f32.mrb[0].mxu0
      %v1573 = vadd.f32 %v329, %v1572
      %v1574 = vpop.f32.mrb[0].mxu0
      %v1575 = vpop.f32.mrb[0].mxu0
      %v1576 = vadd.f32 %v329, %v1575
      %v1577 = vpop.f32.mrb[0].mxu0
      %1578 = vmatprep.mubr.bf16.mxu0 %v1110
      %1579 = vmatmul.mubr.bf16.gmra.mrb[0].mxu0 %v813
      %v1580 = vpop.f32.mrb[0].mxu0
      %v1581 = vadd.f32 %v329, %v1580
      %v1582 = vpop.f32.mrb[0].mxu0
      %v1583 = vpop.f32.mrb[0].mxu0
      %v1584 = vadd.f32 %v329, %v1583
      %v1585 = vpop.f32.mrb[0].mxu0
      %1586 = vmatprep.mubr.bf16.mxu0 %v1113
      %1587 = vmatmul.mubr.bf16.gmra.mrb[0].mxu0 %v815
      %v1588 = vpop.f32.mrb[0].mxu0
      %v1589 = vadd.f32 %v329, %v1588
      %v1590 = vpop.f32.mrb[0].mxu0
      %v1591 = vpop.f32.mrb[0].mxu0
      %v1592 = vadd.f32 %v329, %v1591
      %v1593 = vpop.f32.mrb[0].mxu0
      %1594 = vmatprep.mubr.bf16.mxu0 %v1116
      %1595 = vmatmul.mubr.bf16.gmra.mrb[0].mxu0 %v817
      %v1596 = vpop.f32.mrb[0].mxu0
      %v1597 = vadd.f32 %v329, %v1596
      %v1598 = vpop.f32.mrb[0].mxu0
      %v1599 = vpop.f32.mrb[0].mxu0
      %v1600 = vadd.f32 %v329, %v1599
      %v1601 = vpop.f32.mrb[0].mxu0
      %1602 = vmatprep.mubr.bf16.mxu0 %v1119
      %1603 = vmatmul.mubr.bf16.gmra.mrb[0].mxu0 %v819
      %v1604 = vpop.f32.mrb[0].mxu0
      %v1605 = vadd.f32 %v329, %v1604
      %v1606 = vpop.f32.mrb[0].mxu0
      %v1607 = vpop.f32.mrb[0].mxu0
      %v1608 = vadd.f32 %v329, %v1607
      %v1609 = vpop.f32.mrb[0].mxu0
      %1610 = vmatprep.mubr.bf16.mxu0 %v1122
      %1611 = vmatmul.mubr.bf16.gmra.mrb[0].mxu0 %v821
      %v1612 = vpop.f32.mrb[0].mxu0
      %v1613 = vadd.f32 %v329, %v1612
      %v1614 = vpop.f32.mrb[0].mxu0
      %v1615 = vpop.f32.mrb[0].mxu0
      %v1616 = vadd.f32 %v329, %v1615
      %v1617 = vpop.f32.mrb[0].mxu0
      %1618 = vmatprep.mubr.bf16.mxu0 %v1125
      %1619 = vmatmul.mubr.bf16.gmra.mrb[0].mxu0 %v823
      %v1620 = vpop.f32.mrb[0].mxu0
      %v1621 = vadd.f32 %v329, %v1620
      %v1622 = vpop.f32.mrb[0].mxu0
      %v1623 = vpop.f32.mrb[0].mxu0
      %v1624 = vadd.f32 %v329, %v1623
      %v1625 = vpop.f32.mrb[0].mxu0
      %1626 = vmatprep.mubr.bf16.mxu0 %v1128
      %1627 = vmatmul.mubr.bf16.gmra.mrb[0].mxu0 %v825
      %v1628 = vpop.f32.mrb[0].mxu0
      %v1629 = vadd.f32 %v329, %v1628
      %v1630 = vpop.f32.mrb[0].mxu0
      %v1631 = vpop.f32.mrb[0].mxu0
      %v1632 = vadd.f32 %v329, %v1631
      %v1633 = vpop.f32.mrb[0].mxu0
      %1634 = vmatprep.mubr.bf16.mxu0 %v1131
      %1635 = vmatmul.mubr.bf16.gmra.mrb[0].mxu0 %v827
      %v1636 = vpop.f32.mrb[0].mxu0
      %v1637 = vadd.f32 %v329, %v1636
      %v1638 = vpop.f32.mrb[0].mxu0
      %v1639 = vpop.f32.mrb[0].mxu0
      %v1640 = vadd.f32 %v329, %v1639
      %v1641 = vpop.f32.mrb[0].mxu0
      %1642 = vmatprep.mubr.bf16.mxu0 %v1134
      %1643 = vmatmul.mubr.bf16.gmra.mrb[0].mxu0 %v829
      %v1644 = vpop.f32.mrb[0].mxu0
      %v1645 = vadd.f32 %v329, %v1644
      %v1646 = vpop.f32.mrb[0].mxu0
      %v1647 = vpop.f32.mrb[0].mxu0
      %v1648 = vadd.f32 %v329, %v1647
      %v1649 = vpop.f32.mrb[0].mxu0
      %1650 = vmatprep.mubr.bf16.mxu0 %v1137
      %1651 = vmatmul.mubr.bf16.gmra.mrb[0].mxu0 %v831
      %v1652 = vpop.f32.mrb[0].mxu0
      %v1653 = vadd.f32 %v329, %v1652
      %v1654 = vpop.f32.mrb[0].mxu0
      %v1655 = vpop.f32.mrb[0].mxu0
      %v1656 = vadd.f32 %v329, %v1655
      %v1657 = vpop.f32.mrb[0].mxu0
      %1658 = vmatprep.mubr.bf16.mxu0 %v1140
      %1659 = vmatmul.mubr.bf16.gmra.mrb[0].mxu0 %v833
      %v1660 = vpop.f32.mrb[0].mxu0
      %v1661 = vadd.f32 %v329, %v1660
      %v1662 = vpop.f32.mrb[0].mxu0
      %v1663 = vpop.f32.mrb[0].mxu0
      %v1664 = vadd.f32 %v329, %v1663
      %v1665 = vpop.f32.mrb[0].mxu0
      %1666 = vmatprep.mubr.bf16.mxu0 %v1143
      %1667 = vmatmul.mubr.bf16.gmra.mrb[0].mxu0 %v835
      %v1668 = vpop.f32.mrb[0].mxu0
      %v1669 = vadd.f32 %v329, %v1668
      %v1670 = vpop.f32.mrb[0].mxu0
      %v1671 = vpop.f32.mrb[0].mxu0
      %v1672 = vadd.f32 %v329, %v1671
      %v1673 = vpop.f32.mrb[0].mxu0
      %1674 = vmatprep.mubr.bf16.mxu0 %v1146
      %1675 = vmatmul.mubr.bf16.gmra.mrb[0].mxu0 %v837
      %v1676 = vpop.f32.mrb[0].mxu0
      %v1677 = vadd.f32 %v329, %v1676
      %v1678 = vpop.f32.mrb[0].mxu0
      %v1679 = vpop.f32.mrb[0].mxu0
      %v1680 = vadd.f32 %v329, %v1679
      %v1681 = vpop.f32.mrb[0].mxu0
      %1682 = vmatprep.mubr.bf16.mxu0 %v1149
      %1683 = vmatmul.mubr.bf16.gmra.mrb[0].mxu0 %v839
      %v1684 = vpop.f32.mrb[0].mxu0
      %v1685 = vadd.f32 %v329, %v1684
      %v1686 = vpop.f32.mrb[0].mxu0
      %v1687 = vpop.f32.mrb[0].mxu0
      %v1688 = vadd.f32 %v329, %v1687
      %v1689 = vpop.f32.mrb[0].mxu0
      %1690 = vmatprep.mubr.bf16.mxu0 %v1152
      %1691 = vmatmul.mubr.bf16.gmra.mrb[0].mxu0 %v841
      %v1692 = vpop.f32.mrb[0].mxu0
      %v1693 = vadd.f32 %v329, %v1692
      %v1694 = vpop.f32.mrb[0].mxu0
      %v1695 = vpop.f32.mrb[0].mxu0
      %v1696 = vadd.f32 %v329, %v1695
      %v1697 = vpop.f32.mrb[0].mxu0
      %1698 = vdwg.mxu0
      %v1699 = vmax.f32 %v1189, 0.0
      %v1700 = vmax.f32 %v1192, 0.0
      %v1701 = vmax.f32 %v1197, 0.0
      %v1702 = vmax.f32 %v1200, 0.0
      %v1703 = vmax.f32 %v1205, 0.0
      %v1704 = vmax.f32 %v1208, 0.0
      %v1705 = vmax.f32 %v1213, 0.0
      %v1706 = vmax.f32 %v1216, 0.0
      %v1707 = vmax.f32 %v1221, 0.0
      %v1708 = vmax.f32 %v1224, 0.0
      %v1709 = vmax.f32 %v1229, 0.0
      %v1710 = vmax.f32 %v1232, 0.0
      %v1711 = vmax.f32 %v1237, 0.0
      %v1712 = vmax.f32 %v1240, 0.0
      %v1713 = vmax.f32 %v1245, 0.0
      %v1714 = vmax.f32 %v1248, 0.0
      %v1715 = vmax.f32 %v1253, 0.0
      %v1716 = vmax.f32 %v1256, 0.0
      %v1717 = vmax.f32 %v1261, 0.0
      %v1718 = vmax.f32 %v1264, 0.0
      %v1719 = vmax.f32 %v1269, 0.0
      %v1720 = vmax.f32 %v1272, 0.0
      %v1721 = vmax.f32 %v1277, 0.0
      %v1722 = vmax.f32 %v1280, 0.0
      %v1723 = vmax.f32 %v1285, 0.0
      %v1724 = vmax.f32 %v1288, 0.0
      %v1725 = vmax.f32 %v1293, 0.0
      %v1726 = vmax.f32 %v1296, 0.0
      %v1727 = vmax.f32 %v1301, 0.0
      %v1728 = vmax.f32 %v1304, 0.0
      %v1729 = vmax.f32 %v1309, 0.0
      %v1730 = vmax.f32 %v1312, 0.0
      %v1731 = vmax.f32 %v1317, 0.0
      %v1732 = vmax.f32 %v1320, 0.0
      %v1733 = vmax.f32 %v1325, 0.0
      %v1734 = vmax.f32 %v1328, 0.0
      %v1735 = vmax.f32 %v1333, 0.0
      %v1736 = vmax.f32 %v1336, 0.0
      %v1737 = vmax.f32 %v1341, 0.0
      %v1738 = vmax.f32 %v1344, 0.0
      %v1739 = vmax.f32 %v1349, 0.0
      %v1740 = vmax.f32 %v1352, 0.0
      %v1741 = vmax.f32 %v1357, 0.0
      %v1742 = vmax.f32 %v1360, 0.0
      %v1743 = vmax.f32 %v1365, 0.0
      %v1744 = vmax.f32 %v1368, 0.0
      %v1745 = vmax.f32 %v1373, 0.0
      %v1746 = vmax.f32 %v1376, 0.0
      %v1747 = vmax.f32 %v1381, 0.0
      %v1748 = vmax.f32 %v1384, 0.0
      %v1749 = vmax.f32 %v1389, 0.0
      %v1750 = vmax.f32 %v1392, 0.0
      %v1751 = vmax.f32 %v1397, 0.0
      %v1752 = vmax.f32 %v1400, 0.0
      %v1753 = vmax.f32 %v1405, 0.0
      %v1754 = vmax.f32 %v1408, 0.0
      %v1755 = vmax.f32 %v1413, 0.0
      %v1756 = vmax.f32 %v1416, 0.0
      %v1757 = vmax.f32 %v1421, 0.0
      %v1758 = vmax.f32 %v1424, 0.0
      %v1759 = vmax.f32 %v1429, 0.0
      %v1760 = vmax.f32 %v1432, 0.0
      %v1761 = vmax.f32 %v1437, 0.0
      %v1762 = vmax.f32 %v1440, 0.0
      %v1763 = vmax.f32 %v1445, 0.0
      %v1764 = vmax.f32 %v1448, 0.0
      %v1765 = vmax.f32 %v1453, 0.0
      %v1766 = vmax.f32 %v1456, 0.0
      %v1767 = vmax.f32 %v1461, 0.0
      %v1768 = vmax.f32 %v1464, 0.0
      %v1769 = vmax.f32 %v1469, 0.0
      %v1770 = vmax.f32 %v1472, 0.0
      %v1771 = vmax.f32 %v1477, 0.0
      %v1772 = vmax.f32 %v1480, 0.0
      %v1773 = vmax.f32 %v1485, 0.0
      %v1774 = vmax.f32 %v1488, 0.0
      %v1775 = vmax.f32 %v1493, 0.0
      %v1776 = vmax.f32 %v1496, 0.0
      %v1777 = vmax.f32 %v1501, 0.0
      %v1778 = vmax.f32 %v1504, 0.0
      %v1779 = vmax.f32 %v1509, 0.0
      %v1780 = vmax.f32 %v1512, 0.0
      %v1781 = vmax.f32 %v1517, 0.0
      %v1782 = vmax.f32 %v1520, 0.0
      %v1783 = vmax.f32 %v1525, 0.0
      %v1784 = vmax.f32 %v1528, 0.0
      %v1785 = vmax.f32 %v1533, 0.0
      %v1786 = vmax.f32 %v1536, 0.0
      %v1787 = vmax.f32 %v1541, 0.0
      %v1788 = vmax.f32 %v1544, 0.0
      %v1789 = vmax.f32 %v1549, 0.0
      %v1790 = vmax.f32 %v1552, 0.0
      %v1791 = vmax.f32 %v1557, 0.0
      %v1792 = vmax.f32 %v1560, 0.0
      %v1793 = vmax.f32 %v1565, 0.0
      %v1794 = vmax.f32 %v1568, 0.0
      %v1795 = vmax.f32 %v1573, 0.0
      %v1796 = vmax.f32 %v1576, 0.0
      %v1797 = vmax.f32 %v1581, 0.0
      %v1798 = vmax.f32 %v1584, 0.0
      %v1799 = vmax.f32 %v1589, 0.0
      %v1800 = vmax.f32 %v1592, 0.0
      %v1801 = vmax.f32 %v1597, 0.0
      %v1802 = vmax.f32 %v1600, 0.0
      %v1803 = vmax.f32 %v1605, 0.0
      %v1804 = vmax.f32 %v1608, 0.0
      %v1805 = vmax.f32 %v1613, 0.0
      %v1806 = vmax.f32 %v1616, 0.0
      %v1807 = vmax.f32 %v1621, 0.0
      %v1808 = vmax.f32 %v1624, 0.0
      %v1809 = vmax.f32 %v1629, 0.0
      %v1810 = vmax.f32 %v1632, 0.0
      %v1811 = vmax.f32 %v1637, 0.0
      %v1812 = vmax.f32 %v1640, 0.0
      %v1813 = vmax.f32 %v1645, 0.0
      %v1814 = vmax.f32 %v1648, 0.0
      %v1815 = vmax.f32 %v1653, 0.0
      %v1816 = vmax.f32 %v1656, 0.0
      %v1817 = vmax.f32 %v1661, 0.0
      %v1818 = vmax.f32 %v1664, 0.0
      %v1819 = vmax.f32 %v1669, 0.0
      %v1820 = vmax.f32 %v1672, 0.0
      %v1821 = vmax.f32 %v1677, 0.0
      %v1822 = vmax.f32 %v1680, 0.0
      %v1823 = vmax.f32 %v1685, 0.0
      %v1824 = vmax.f32 %v1688, 0.0
      %v1825 = vmax.f32 %v1693, 0.0
      %v1826 = vmax.f32 %v1696, 0.0
      %v1827 = vpack.c.bf16 %v1700, %v1699
      %v1828 = vpack.c.bf16 %v1702, %v1701
      %v1829 = vpack.c.bf16 %v1704, %v1703
      %v1830 = vpack.c.bf16 %v1706, %v1705
      %v1831 = vpack.c.bf16 %v1708, %v1707
      %v1832 = vpack.c.bf16 %v1710, %v1709
      %v1833 = vpack.c.bf16 %v1712, %v1711
      %v1834 = vpack.c.bf16 %v1714, %v1713
      %v1835 = vpack.c.bf16 %v1716, %v1715
      %v1836 = vpack.c.bf16 %v1718, %v1717
      %v1837 = vpack.c.bf16 %v1720, %v1719
      %v1838 = vpack.c.bf16 %v1722, %v1721
      %v1839 = vpack.c.bf16 %v1724, %v1723
      %v1840 = vpack.c.bf16 %v1726, %v1725
      %v1841 = vpack.c.bf16 %v1728, %v1727
      %v1842 = vpack.c.bf16 %v1730, %v1729
      %v1843 = vpack.c.bf16 %v1732, %v1731
      %v1844 = vpack.c.bf16 %v1734, %v1733
      %v1845 = vpack.c.bf16 %v1736, %v1735
      %v1846 = vpack.c.bf16 %v1738, %v1737
      %v1847 = vpack.c.bf16 %v1740, %v1739
      %v1848 = vpack.c.bf16 %v1742, %v1741
      %v1849 = vpack.c.bf16 %v1744, %v1743
      %v1850 = vpack.c.bf16 %v1746, %v1745
      %v1851 = vpack.c.bf16 %v1748, %v1747
      %v1852 = vpack.c.bf16 %v1750, %v1749
      %v1853 = vpack.c.bf16 %v1752, %v1751
      %v1854 = vpack.c.bf16 %v1754, %v1753
      %v1855 = vpack.c.bf16 %v1756, %v1755
      %v1856 = vpack.c.bf16 %v1758, %v1757
      %v1857 = vpack.c.bf16 %v1760, %v1759
      %v1858 = vpack.c.bf16 %v1762, %v1761
      %v1859 = vpack.c.bf16 %v1764, %v1763
      %v1860 = vpack.c.bf16 %v1766, %v1765
      %v1861 = vpack.c.bf16 %v1768, %v1767
      %v1862 = vpack.c.bf16 %v1770, %v1769
      %v1863 = vpack.c.bf16 %v1772, %v1771
      %v1864 = vpack.c.bf16 %v1774, %v1773
      %v1865 = vpack.c.bf16 %v1776, %v1775
      %v1866 = vpack.c.bf16 %v1778, %v1777
      %v1867 = vpack.c.bf16 %v1780, %v1779
      %v1868 = vpack.c.bf16 %v1782, %v1781
      %v1869 = vpack.c.bf16 %v1784, %v1783
      %v1870 = vpack.c.bf16 %v1786, %v1785
      %v1871 = vpack.c.bf16 %v1788, %v1787
      %v1872 = vpack.c.bf16 %v1790, %v1789
      %v1873 = vpack.c.bf16 %v1792, %v1791
      %v1874 = vpack.c.bf16 %v1794, %v1793
      %v1875 = vpack.c.bf16 %v1796, %v1795
      %v1876 = vpack.c.bf16 %v1798, %v1797
      %v1877 = vpack.c.bf16 %v1800, %v1799
      %v1878 = vpack.c.bf16 %v1802, %v1801
      %v1879 = vpack.c.bf16 %v1804, %v1803
      %v1880 = vpack.c.bf16 %v1806, %v1805
      %v1881 = vpack.c.bf16 %v1808, %v1807
      %v1882 = vpack.c.bf16 %v1810, %v1809
      %v1883 = vpack.c.bf16 %v1812, %v1811
      %v1884 = vpack.c.bf16 %v1814, %v1813
      %v1885 = vpack.c.bf16 %v1816, %v1815
      %v1886 = vpack.c.bf16 %v1818, %v1817
      %v1887 = vpack.c.bf16 %v1820, %v1819
      %v1888 = vpack.c.bf16 %v1822, %v1821
      %v1889 = vpack.c.bf16 %v1824, %v1823
      %v1890 = vpack.c.bf16 %v1826, %v1825
      %v1955 = vunpack.c.l.b16 %v1827
      %v1956 = vunpack.c.h.b16 %v1827
      %v1957 = vunpack.c.l.b16 %v1828
      %v1958 = vunpack.c.h.b16 %v1828
      %v1959 = vunpack.c.l.b16 %v1829
      %v1960 = vunpack.c.h.b16 %v1829
      %v1961 = vunpack.c.l.b16 %v1830
      %v1962 = vunpack.c.h.b16 %v1830
      %v1963 = vunpack.c.l.b16 %v1831
      %v1964 = vunpack.c.h.b16 %v1831
      %v1965 = vunpack.c.l.b16 %v1832
      %v1966 = vunpack.c.h.b16 %v1832
      %v1967 = vunpack.c.l.b16 %v1833
      %v1968 = vunpack.c.h.b16 %v1833
      %v1969 = vunpack.c.l.b16 %v1834
      %v1970 = vunpack.c.h.b16 %v1834
      %v1971 = vunpack.c.l.b16 %v1835
      %v1972 = vunpack.c.h.b16 %v1835
      %v1973 = vunpack.c.l.b16 %v1836
      %v1974 = vunpack.c.h.b16 %v1836
      %v1975 = vunpack.c.l.b16 %v1837
      %v1976 = vunpack.c.h.b16 %v1837
      %v1977 = vunpack.c.l.b16 %v1838
      %v1978 = vunpack.c.h.b16 %v1838
      %v1979 = vunpack.c.l.b16 %v1839
      %v1980 = vunpack.c.h.b16 %v1839
      %v1981 = vunpack.c.l.b16 %v1840
      %v1982 = vunpack.c.h.b16 %v1840
      %v1983 = vunpack.c.l.b16 %v1841
      %v1984 = vunpack.c.h.b16 %v1841
      %v1985 = vunpack.c.l.b16 %v1842
      %v1986 = vunpack.c.h.b16 %v1842
      %v1987 = vunpack.c.l.b16 %v1843
      %v1988 = vunpack.c.h.b16 %v1843
      %v1989 = vunpack.c.l.b16 %v1844
      %v1990 = vunpack.c.h.b16 %v1844
      %v1991 = vunpack.c.l.b16 %v1845
      %v1992 = vunpack.c.h.b16 %v1845
      %v1993 = vunpack.c.l.b16 %v1846
      %v1994 = vunpack.c.h.b16 %v1846
      %v1995 = vunpack.c.l.b16 %v1847
      %v1996 = vunpack.c.h.b16 %v1847
      %v1997 = vunpack.c.l.b16 %v1848
      %v1998 = vunpack.c.h.b16 %v1848
      %v1999 = vunpack.c.l.b16 %v1849
      %v2000 = vunpack.c.h.b16 %v1849
      %v2001 = vunpack.c.l.b16 %v1850
      %v2002 = vunpack.c.h.b16 %v1850
      %v2003 = vunpack.c.l.b16 %v1851
      %v2004 = vunpack.c.h.b16 %v1851
      %v2005 = vunpack.c.l.b16 %v1852
      %v2006 = vunpack.c.h.b16 %v1852
      %v2007 = vunpack.c.l.b16 %v1853
      %v2008 = vunpack.c.h.b16 %v1853
      %v2009 = vunpack.c.l.b16 %v1854
      %v2010 = vunpack.c.h.b16 %v1854
      %v2011 = vunpack.c.l.b16 %v1855
      %v2012 = vunpack.c.h.b16 %v1855
      %v2013 = vunpack.c.l.b16 %v1856
      %v2014 = vunpack.c.h.b16 %v1856
      %v2015 = vunpack.c.l.b16 %v1857
      %v2016 = vunpack.c.h.b16 %v1857
      %v2017 = vunpack.c.l.b16 %v1858
      %v2018 = vunpack.c.h.b16 %v1858
      %v2019 = vunpack.c.l.b16 %v1859
      %v2020 = vunpack.c.h.b16 %v1859
      %v2021 = vunpack.c.l.b16 %v1860
      %v2022 = vunpack.c.h.b16 %v1860
      %v2023 = vunpack.c.l.b16 %v1861
      %v2024 = vunpack.c.h.b16 %v1861
      %v2025 = vunpack.c.l.b16 %v1862
      %v2026 = vunpack.c.h.b16 %v1862
      %v2027 = vunpack.c.l.b16 %v1863
      %v2028 = vunpack.c.h.b16 %v1863
      %v2029 = vunpack.c.l.b16 %v1864
      %v2030 = vunpack.c.h.b16 %v1864
      %v2031 = vunpack.c.l.b16 %v1865
      %v2032 = vunpack.c.h.b16 %v1865
      %v2033 = vunpack.c.l.b16 %v1866
      %v2034 = vunpack.c.h.b16 %v1866
      %v2035 = vunpack.c.l.b16 %v1867
      %v2036 = vunpack.c.h.b16 %v1867
      %v2037 = vunpack.c.l.b16 %v1868
      %v2038 = vunpack.c.h.b16 %v1868
      %v2039 = vunpack.c.l.b16 %v1869
      %v2040 = vunpack.c.h.b16 %v1869
      %v2041 = vunpack.c.l.b16 %v1870
      %v2042 = vunpack.c.h.b16 %v1870
      %v2043 = vunpack.c.l.b16 %v1871
      %v2044 = vunpack.c.h.b16 %v1871
      %v2045 = vunpack.c.l.b16 %v1872
      %v2046 = vunpack.c.h.b16 %v1872
      %v2047 = vunpack.c.l.b16 %v1873
      %v2048 = vunpack.c.h.b16 %v1873
      %v2049 = vunpack.c.l.b16 %v1874
      %v2050 = vunpack.c.h.b16 %v1874
      %v2051 = vunpack.c.l.b16 %v1875
      %v2052 = vunpack.c.h.b16 %v1875
      %v2053 = vunpack.c.l.b16 %v1876
      %v2054 = vunpack.c.h.b16 %v1876
      %v2055 = vunpack.c.l.b16 %v1877
      %v2056 = vunpack.c.h.b16 %v1877
      %v2057 = vunpack.c.l.b16 %v1878
      %v2058 = vunpack.c.h.b16 %v1878
      %v2059 = vunpack.c.l.b16 %v1879
      %v2060 = vunpack.c.h.b16 %v1879
      %v2061 = vunpack.c.l.b16 %v1880
      %v2062 = vunpack.c.h.b16 %v1880
      %v2063 = vunpack.c.l.b16 %v1881
      %v2064 = vunpack.c.h.b16 %v1881
      %v2065 = vunpack.c.l.b16 %v1882
      %v2066 = vunpack.c.h.b16 %v1882
      %v2067 = vunpack.c.l.b16 %v1883
      %v2068 = vunpack.c.h.b16 %v1883
      %v2069 = vunpack.c.l.b16 %v1884
      %v2070 = vunpack.c.h.b16 %v1884
      %v2071 = vunpack.c.l.b16 %v1885
      %v2072 = vunpack.c.h.b16 %v1885
      %v2073 = vunpack.c.l.b16 %v1886
      %v2074 = vunpack.c.h.b16 %v1886
      %v2075 = vunpack.c.l.b16 %v1887
      %v2076 = vunpack.c.h.b16 %v1887
      %v2077 = vunpack.c.l.b16 %v1888
      %v2078 = vunpack.c.h.b16 %v1888
      %v2079 = vunpack.c.l.b16 %v1889
      %v2080 = vunpack.c.h.b16 %v1889
      %v2081 = vunpack.c.l.b16 %v1890
      %v2082 = vunpack.c.h.b16 %v1890
      %v2083 = vpack.c.b16 %v1955, %v1955
      %v2084 = vpack.c.b16 %v1956, %v1956
      %v2085 = vpack.c.b16 %v1957, %v1957
      %v2086 = vpack.c.b16 %v1958, %v1958
      %v2087 = vpack.c.b16 %v1959, %v1959
      %v2088 = vpack.c.b16 %v1960, %v1960
      %v2089 = vpack.c.b16 %v1961, %v1961
      %v2090 = vpack.c.b16 %v1962, %v1962
      %v2091 = vpack.c.b16 %v1963, %v1963
      %v2092 = vpack.c.b16 %v1964, %v1964
      %v2093 = vpack.c.b16 %v1965, %v1965
      %v2094 = vpack.c.b16 %v1966, %v1966
      %v2095 = vpack.c.b16 %v1967, %v1967
      %v2096 = vpack.c.b16 %v1968, %v1968
      %v2097 = vpack.c.b16 %v1969, %v1969
      %v2098 = vpack.c.b16 %v1970, %v1970
      %v2099 = vpack.c.b16 %v1971, %v1971
      %v2100 = vpack.c.b16 %v1972, %v1972
      %v2101 = vpack.c.b16 %v1973, %v1973
      %v2102 = vpack.c.b16 %v1974, %v1974
      %v2103 = vpack.c.b16 %v1975, %v1975
      %v2104 = vpack.c.b16 %v1976, %v1976
      %v2105 = vpack.c.b16 %v1977, %v1977
      %v2106 = vpack.c.b16 %v1978, %v1978
      %v2107 = vpack.c.b16 %v1979, %v1979
      %v2108 = vpack.c.b16 %v1980, %v1980
      %v2109 = vpack.c.b16 %v1981, %v1981
      %v2110 = vpack.c.b16 %v1982, %v1982
      %v2111 = vpack.c.b16 %v1983, %v1983
      %v2112 = vpack.c.b16 %v1984, %v1984
      %v2113 = vpack.c.b16 %v1985, %v1985
      %v2114 = vpack.c.b16 %v1986, %v1986
      %v2115 = vpack.c.b16 %v1987, %v1987
      %v2116 = vpack.c.b16 %v1988, %v1988
      %v2117 = vpack.c.b16 %v1989, %v1989
      %v2118 = vpack.c.b16 %v1990, %v1990
      %v2119 = vpack.c.b16 %v1991, %v1991
      %v2120 = vpack.c.b16 %v1992, %v1992
      %v2121 = vpack.c.b16 %v1993, %v1993
      %v2122 = vpack.c.b16 %v1994, %v1994
      %v2123 = vpack.c.b16 %v1995, %v1995
      %v2124 = vpack.c.b16 %v1996, %v1996
      %v2125 = vpack.c.b16 %v1997, %v1997
      %v2126 = vpack.c.b16 %v1998, %v1998
      %v2127 = vpack.c.b16 %v1999, %v1999
      %v2128 = vpack.c.b16 %v2000, %v2000
      %v2129 = vpack.c.b16 %v2001, %v2001
      %v2130 = vpack.c.b16 %v2002, %v2002
      %v2131 = vpack.c.b16 %v2003, %v2003
      %v2132 = vpack.c.b16 %v2004, %v2004
      %v2133 = vpack.c.b16 %v2005, %v2005
      %v2134 = vpack.c.b16 %v2006, %v2006
      %v2135 = vpack.c.b16 %v2007, %v2007
      %v2136 = vpack.c.b16 %v2008, %v2008
      %v2137 = vpack.c.b16 %v2009, %v2009
      %v2138 = vpack.c.b16 %v2010, %v2010
      %v2139 = vpack.c.b16 %v2011, %v2011
      %v2140 = vpack.c.b16 %v2012, %v2012
      %v2141 = vpack.c.b16 %v2013, %v2013
      %v2142 = vpack.c.b16 %v2014, %v2014
      %v2143 = vpack.c.b16 %v2015, %v2015
      %v2144 = vpack.c.b16 %v2016, %v2016
      %v2145 = vpack.c.b16 %v2017, %v2017
      %v2146 = vpack.c.b16 %v2018, %v2018
      %v2147 = vpack.c.b16 %v2019, %v2019
      %v2148 = vpack.c.b16 %v2020, %v2020
      %v2149 = vpack.c.b16 %v2021, %v2021
      %v2150 = vpack.c.b16 %v2022, %v2022
      %v2151 = vpack.c.b16 %v2023, %v2023
      %v2152 = vpack.c.b16 %v2024, %v2024
      %v2153 = vpack.c.b16 %v2025, %v2025
      %v2154 = vpack.c.b16 %v2026, %v2026
      %v2155 = vpack.c.b16 %v2027, %v2027
      %v2156 = vpack.c.b16 %v2028, %v2028
      %v2157 = vpack.c.b16 %v2029, %v2029
      %v2158 = vpack.c.b16 %v2030, %v2030
      %v2159 = vpack.c.b16 %v2031, %v2031
      %v2160 = vpack.c.b16 %v2032, %v2032
      %v2161 = vpack.c.b16 %v2033, %v2033
      %v2162 = vpack.c.b16 %v2034, %v2034
      %v2163 = vpack.c.b16 %v2035, %v2035
      %v2164 = vpack.c.b16 %v2036, %v2036
      %v2165 = vpack.c.b16 %v2037, %v2037
      %v2166 = vpack.c.b16 %v2038, %v2038
      %v2167 = vpack.c.b16 %v2039, %v2039
      %v2168 = vpack.c.b16 %v2040, %v2040
      %v2169 = vpack.c.b16 %v2041, %v2041
      %v2170 = vpack.c.b16 %v2042, %v2042
      %v2171 = vpack.c.b16 %v2043, %v2043
      %v2172 = vpack.c.b16 %v2044, %v2044
      %v2173 = vpack.c.b16 %v2045, %v2045
      %v2174 = vpack.c.b16 %v2046, %v2046
      %v2175 = vpack.c.b16 %v2047, %v2047
      %v2176 = vpack.c.b16 %v2048, %v2048
      %v2177 = vpack.c.b16 %v2049, %v2049
      %v2178 = vpack.c.b16 %v2050, %v2050
      %v2179 = vpack.c.b16 %v2051, %v2051
      %v2180 = vpack.c.b16 %v2052, %v2052
      %v2181 = vpack.c.b16 %v2053, %v2053
      %v2182 = vpack.c.b16 %v2054, %v2054
      %v2183 = vpack.c.b16 %v2055, %v2055
      %v2184 = vpack.c.b16 %v2056, %v2056
      %v2185 = vpack.c.b16 %v2057, %v2057
      %v2186 = vpack.c.b16 %v2058, %v2058
      %v2187 = vpack.c.b16 %v2059, %v2059
      %v2188 = vpack.c.b16 %v2060, %v2060
      %v2189 = vpack.c.b16 %v2061, %v2061
      %v2190 = vpack.c.b16 %v2062, %v2062
      %v2191 = vpack.c.b16 %v2063, %v2063
      %v2192 = vpack.c.b16 %v2064, %v2064
      %v2193 = vpack.c.b16 %v2065, %v2065
      %v2194 = vpack.c.b16 %v2066, %v2066
      %v2195 = vpack.c.b16 %v2067, %v2067
      %v2196 = vpack.c.b16 %v2068, %v2068
      %v2197 = vpack.c.b16 %v2069, %v2069
      %v2198 = vpack.c.b16 %v2070, %v2070
      %v2199 = vpack.c.b16 %v2071, %v2071
      %v2200 = vpack.c.b16 %v2072, %v2072
      %v2201 = vpack.c.b16 %v2073, %v2073
      %v2202 = vpack.c.b16 %v2074, %v2074
      %v2203 = vpack.c.b16 %v2075, %v2075
      %v2204 = vpack.c.b16 %v2076, %v2076
      %v2205 = vpack.c.b16 %v2077, %v2077
      %v2206 = vpack.c.b16 %v2078, %v2078
      %v2207 = vpack.c.b16 %v2079, %v2079
      %v2208 = vpack.c.b16 %v2080, %v2080
      %v2209 = vpack.c.b16 %v2081, %v2081
      %v2210 = vpack.c.b16 %v2082, %v2082
      %vm2339 = vcmask 125952
      %2340 = vst.msk [vmem:[%s175] sm:$0xf] %vm2339, %v2083
      %2341 = vst.msk [vmem:[%s175 + $0x4] sm:$0xf] %vm2339, %v2084
      %2342 = vst.msk [vmem:[%s175 + $0x8] sm:$0xf] %vm2339, %v2085
      %2343 = vst.msk [vmem:[%s175 + $0xc] sm:$0xf] %vm2339, %v2086
      %2344 = vst.msk [vmem:[%s175 + $0x10] sm:$0xf] %vm2339, %v2087
      %2345 = vst.msk [vmem:[%s175 + $0x14] sm:$0xf] %vm2339, %v2088
      %2346 = vst.msk [vmem:[%s175 + $0x18] sm:$0xf] %vm2339, %v2089
      %2347 = vst.msk [vmem:[%s175 + $0x1c] sm:$0xf] %vm2339, %v2090
      %2348 = vst.msk [vmem:[%s175 + $0x20] sm:$0xf] %vm2339, %v2091
      %2349 = vst.msk [vmem:[%s175 + $0x24] sm:$0xf] %vm2339, %v2092
      %2350 = vst.msk [vmem:[%s175 + $0x28] sm:$0xf] %vm2339, %v2093
      %2351 = vst.msk [vmem:[%s175 + $0x2c] sm:$0xf] %vm2339, %v2094
      %2352 = vst.msk [vmem:[%s175 + $0x30] sm:$0xf] %vm2339, %v2095
      %2353 = vst.msk [vmem:[%s175 + $0x34] sm:$0xf] %vm2339, %v2096
      %2354 = vst.msk [vmem:[%s175 + $0x38] sm:$0xf] %vm2339, %v2097
      %2355 = vst.msk [vmem:[%s175 + $0x3c] sm:$0xf] %vm2339, %v2098
      %2356 = vst.msk [vmem:[%s175 + $0x40] sm:$0xf] %vm2339, %v2099
      %2357 = vst.msk [vmem:[%s175 + $0x44] sm:$0xf] %vm2339, %v2100
      %2358 = vst.msk [vmem:[%s175 + $0x48] sm:$0xf] %vm2339, %v2101
      %2359 = vst.msk [vmem:[%s175 + $0x4c] sm:$0xf] %vm2339, %v2102
      %2360 = vst.msk [vmem:[%s175 + $0x50] sm:$0xf] %vm2339, %v2103
      %2361 = vst.msk [vmem:[%s175 + $0x54] sm:$0xf] %vm2339, %v2104
      %2362 = vst.msk [vmem:[%s175 + $0x58] sm:$0xf] %vm2339, %v2105
      %2363 = vst.msk [vmem:[%s175 + $0x5c] sm:$0xf] %vm2339, %v2106
      %2364 = vst.msk [vmem:[%s175 + $0x60] sm:$0xf] %vm2339, %v2107
      %2365 = vst.msk [vmem:[%s175 + $0x64] sm:$0xf] %vm2339, %v2108
      %2366 = vst.msk [vmem:[%s175 + $0x68] sm:$0xf] %vm2339, %v2109
      %2367 = vst.msk [vmem:[%s175 + $0x6c] sm:$0xf] %vm2339, %v2110
      %2368 = vst.msk [vmem:[%s175 + $0x70] sm:$0xf] %vm2339, %v2111
      %2369 = vst.msk [vmem:[%s175 + $0x74] sm:$0xf] %vm2339, %v2112
      %2370 = vst.msk [vmem:[%s175 + $0x78] sm:$0xf] %vm2339, %v2113
      %2371 = vst.msk [vmem:[%s175 + $0x7c] sm:$0xf] %vm2339, %v2114
      %2372 = vst.msk [vmem:[%s175 + $0x80] sm:$0xf] %vm2339, %v2115
      %2373 = vst.msk [vmem:[%s175 + $0x84] sm:$0xf] %vm2339, %v2116
      %2374 = vst.msk [vmem:[%s175 + $0x88] sm:$0xf] %vm2339, %v2117
      %2375 = vst.msk [vmem:[%s175 + $0x8c] sm:$0xf] %vm2339, %v2118
      %2376 = vst.msk [vmem:[%s175 + $0x90] sm:$0xf] %vm2339, %v2119
      %2377 = vst.msk [vmem:[%s175 + $0x94] sm:$0xf] %vm2339, %v2120
      %2378 = vst.msk [vmem:[%s175 + $0x98] sm:$0xf] %vm2339, %v2121
      %2379 = vst.msk [vmem:[%s175 + $0x9c] sm:$0xf] %vm2339, %v2122
      %2380 = vst.msk [vmem:[%s175 + $0xa0] sm:$0xf] %vm2339, %v2123
      %2381 = vst.msk [vmem:[%s175 + $0xa4] sm:$0xf] %vm2339, %v2124
      %2382 = vst.msk [vmem:[%s175 + $0xa8] sm:$0xf] %vm2339, %v2125
      %2383 = vst.msk [vmem:[%s175 + $0xac] sm:$0xf] %vm2339, %v2126
      %2384 = vst.msk [vmem:[%s175 + $0xb0] sm:$0xf] %vm2339, %v2127
      %2385 = vst.msk [vmem:[%s175 + $0xb4] sm:$0xf] %vm2339, %v2128
      %2386 = vst.msk [vmem:[%s175 + $0xb8] sm:$0xf] %vm2339, %v2129
      %2387 = vst.msk [vmem:[%s175 + $0xbc] sm:$0xf] %vm2339, %v2130
      %2388 = vst.msk [vmem:[%s175 + $0xc0] sm:$0xf] %vm2339, %v2131
      %2389 = vst.msk [vmem:[%s175 + $0xc4] sm:$0xf] %vm2339, %v2132
      %2390 = vst.msk [vmem:[%s175 + $0xc8] sm:$0xf] %vm2339, %v2133
      %2391 = vst.msk [vmem:[%s175 + $0xcc] sm:$0xf] %vm2339, %v2134
      %2392 = vst.msk [vmem:[%s175 + $0xd0] sm:$0xf] %vm2339, %v2135
      %2393 = vst.msk [vmem:[%s175 + $0xd4] sm:$0xf] %vm2339, %v2136
      %2394 = vst.msk [vmem:[%s175 + $0xd8] sm:$0xf] %vm2339, %v2137
      %2395 = vst.msk [vmem:[%s175 + $0xdc] sm:$0xf] %vm2339, %v2138
      %2396 = vst.msk [vmem:[%s175 + $0xe0] sm:$0xf] %vm2339, %v2139
      %2397 = vst.msk [vmem:[%s175 + $0xe4] sm:$0xf] %vm2339, %v2140
      %2398 = vst.msk [vmem:[%s175 + $0xe8] sm:$0xf] %vm2339, %v2141
      %2399 = vst.msk [vmem:[%s175 + $0xec] sm:$0xf] %vm2339, %v2142
      %2400 = vst.msk [vmem:[%s175 + $0xf0] sm:$0xf] %vm2339, %v2143
      %2401 = vst.msk [vmem:[%s175 + $0xf4] sm:$0xf] %vm2339, %v2144
      %2402 = vst.msk [vmem:[%s175 + $0xf8] sm:$0xf] %vm2339, %v2145
      %2403 = vst.msk [vmem:[%s175 + $0xfc] sm:$0xf] %vm2339, %v2146
      %2404 = vst.msk [vmem:[%s175 + $0x100] sm:$0xf] %vm2339, %v2147
      %2405 = vst.msk [vmem:[%s175 + $0x104] sm:$0xf] %vm2339, %v2148
      %2406 = vst.msk [vmem:[%s175 + $0x108] sm:$0xf] %vm2339, %v2149
      %2407 = vst.msk [vmem:[%s175 + $0x10c] sm:$0xf] %vm2339, %v2150
      %2408 = vst.msk [vmem:[%s175 + $0x110] sm:$0xf] %vm2339, %v2151
      %2409 = vst.msk [vmem:[%s175 + $0x114] sm:$0xf] %vm2339, %v2152
      %2410 = vst.msk [vmem:[%s175 + $0x118] sm:$0xf] %vm2339, %v2153
      %2411 = vst.msk [vmem:[%s175 + $0x11c] sm:$0xf] %vm2339, %v2154
      %2412 = vst.msk [vmem:[%s175 + $0x120] sm:$0xf] %vm2339, %v2155
      %2413 = vst.msk [vmem:[%s175 + $0x124] sm:$0xf] %vm2339, %v2156
      %2414 = vst.msk [vmem:[%s175 + $0x128] sm:$0xf] %vm2339, %v2157
      %2415 = vst.msk [vmem:[%s175 + $0x12c] sm:$0xf] %vm2339, %v2158
      %2416 = vst.msk [vmem:[%s175 + $0x130] sm:$0xf] %vm2339, %v2159
      %2417 = vst.msk [vmem:[%s175 + $0x134] sm:$0xf] %vm2339, %v2160
      %2418 = vst.msk [vmem:[%s175 + $0x138] sm:$0xf] %vm2339, %v2161
      %2419 = vst.msk [vmem:[%s175 + $0x13c] sm:$0xf] %vm2339, %v2162
      %2420 = vst.msk [vmem:[%s175 + $0x140] sm:$0xf] %vm2339, %v2163
      %2421 = vst.msk [vmem:[%s175 + $0x144] sm:$0xf] %vm2339, %v2164
      %2422 = vst.msk [vmem:[%s175 + $0x148] sm:$0xf] %vm2339, %v2165
      %2423 = vst.msk [vmem:[%s175 + $0x14c] sm:$0xf] %vm2339, %v2166
      %2424 = vst.msk [vmem:[%s175 + $0x150] sm:$0xf] %vm2339, %v2167
      %2425 = vst.msk [vmem:[%s175 + $0x154] sm:$0xf] %vm2339, %v2168
      %2426 = vst.msk [vmem:[%s175 + $0x158] sm:$0xf] %vm2339, %v2169
      %2427 = vst.msk [vmem:[%s175 + $0x15c] sm:$0xf] %vm2339, %v2170
      %2428 = vst.msk [vmem:[%s175 + $0x160] sm:$0xf] %vm2339, %v2171
      %2429 = vst.msk [vmem:[%s175 + $0x164] sm:$0xf] %vm2339, %v2172
      %2430 = vst.msk [vmem:[%s175 + $0x168] sm:$0xf] %vm2339, %v2173
      %2431 = vst.msk [vmem:[%s175 + $0x16c] sm:$0xf] %vm2339, %v2174
      %2432 = vst.msk [vmem:[%s175 + $0x170] sm:$0xf] %vm2339, %v2175
      %2433 = vst.msk [vmem:[%s175 + $0x174] sm:$0xf] %vm2339, %v2176
      %2434 = vst.msk [vmem:[%s175 + $0x178] sm:$0xf] %vm2339, %v2177
      %2435 = vst.msk [vmem:[%s175 + $0x17c] sm:$0xf] %vm2339, %v2178
      %2436 = vst.msk [vmem:[%s175 + $0x180] sm:$0xf] %vm2339, %v2179
      %2437 = vst.msk [vmem:[%s175 + $0x184] sm:$0xf] %vm2339, %v2180
      %2438 = vst.msk [vmem:[%s175 + $0x188] sm:$0xf] %vm2339, %v2181
      %2439 = vst.msk [vmem:[%s175 + $0x18c] sm:$0xf] %vm2339, %v2182
      %2440 = vst.msk [vmem:[%s175 + $0x190] sm:$0xf] %vm2339, %v2183
      %2441 = vst.msk [vmem:[%s175 + $0x194] sm:$0xf] %vm2339, %v2184
      %2442 = vst.msk [vmem:[%s175 + $0x198] sm:$0xf] %vm2339, %v2185
      %2443 = vst.msk [vmem:[%s175 + $0x19c] sm:$0xf] %vm2339, %v2186
      %2444 = vst.msk [vmem:[%s175 + $0x1a0] sm:$0xf] %vm2339, %v2187
      %2445 = vst.msk [vmem:[%s175 + $0x1a4] sm:$0xf] %vm2339, %v2188
      %2446 = vst.msk [vmem:[%s175 + $0x1a8] sm:$0xf] %vm2339, %v2189
      %2447 = vst.msk [vmem:[%s175 + $0x1ac] sm:$0xf] %vm2339, %v2190
      %2448 = vst.msk [vmem:[%s175 + $0x1b0] sm:$0xf] %vm2339, %v2191
      %2449 = vst.msk [vmem:[%s175 + $0x1b4] sm:$0xf] %vm2339, %v2192
      %2450 = vst.msk [vmem:[%s175 + $0x1b8] sm:$0xf] %vm2339, %v2193
      %2451 = vst.msk [vmem:[%s175 + $0x1bc] sm:$0xf] %vm2339, %v2194
      %2452 = vst.msk [vmem:[%s175 + $0x1c0] sm:$0xf] %vm2339, %v2195
      %2453 = vst.msk [vmem:[%s175 + $0x1c4] sm:$0xf] %vm2339, %v2196
      %2454 = vst.msk [vmem:[%s175 + $0x1c8] sm:$0xf] %vm2339, %v2197
      %2455 = vst.msk [vmem:[%s175 + $0x1cc] sm:$0xf] %vm2339, %v2198
      %2456 = vst.msk [vmem:[%s175 + $0x1d0] sm:$0xf] %vm2339, %v2199
      %2457 = vst.msk [vmem:[%s175 + $0x1d4] sm:$0xf] %vm2339, %v2200
      %2458 = vst.msk [vmem:[%s175 + $0x1d8] sm:$0xf] %vm2339, %v2201
      %2459 = vst.msk [vmem:[%s175 + $0x1dc] sm:$0xf] %vm2339, %v2202
      %2460 = vst.msk [vmem:[%s175 + $0x1e0] sm:$0xf] %vm2339, %v2203
      %2461 = vst.msk [vmem:[%s175 + $0x1e4] sm:$0xf] %vm2339, %v2204
      %2462 = vst.msk [vmem:[%s175 + $0x1e8] sm:$0xf] %vm2339, %v2205
      %2463 = vst.msk [vmem:[%s175 + $0x1ec] sm:$0xf] %vm2339, %v2206
      %2464 = vst.msk [vmem:[%s175 + $0x1f0] sm:$0xf] %vm2339, %v2207
      %2465 = vst.msk [vmem:[%s175 + $0x1f4] sm:$0xf] %vm2339, %v2208
      %2466 = vst.msk [vmem:[%s175 + $0x1f8] sm:$0xf] %vm2339, %v2209
      %2467 = vst.msk [vmem:[%s175 + $0x1fc] sm:$0xf] %vm2339, %v2210
      %s2468 = smul.u32 128, %s14
      %p2469 = scmp.lt.s32.totalorder %s2468, 255
      %s2470 = scalar_select %p2469, %s2468, 255
      %s2471 = smul.addr %s2470, 4
      %s2472 = scalar_lea.vmem %s3, %s2471
      // Predicated region
      $region33: #{forward.11} parent=31 // pred_check
        %p2473 = pneg %p100
      $region34: #{forward.11} parent=31 // pred_check_branch
        %2475 = sbr.rel (%p2473) target = $region36
      $region35: #{forward.11} parent=31 // pred_region
        %s2476 = smul.u32 128, %s14
      $region36: #{forward.11} parent=31 // pred_fallthru
        _
    $region32: #{forward.11} parent=5 // pred_fallthru
      _
    %p2477 = scmp.le.s32.totalorder 2, %s9
    // Predicated region
    $region37: #{forward.11} parent=5 // pred_check
      %p2478 = pneg %p2477
    $region38: #{forward.11} parent=5 // pred_check_branch
      %2480 = sbr.rel (%p2478) target = $region40
    $region39: #{forward.11} parent=5 // pred_region
      %s2481 = ssub.s32 %s9, 2
      // Predicated region
      $region41: #{forward.11} parent=39 // pred_check
        %p2482 = pneg %p106
      $region42: #{forward.11} parent=39 // pred_check_branch
        %2484 = sbr.rel (%p2482) target = $region44
      $region43: #{forward.11} parent=39 // pred_region
        %s2485 = smul.u32 128, %s15
        %p2486 = scmp.lt.s32.totalorder %s2485, 255
        %s2487 = scalar_select %p2486, %s2485, 255
        %s2488 = smul.addr %s2487, 4
        %s2489 = scalar_lea.vmem %s3, %s2488
      $region44: #{forward.11} parent=39 // pred_fallthru
        _
    $region40: #{forward.11} parent=5 // pred_fallthru
      _
  $region6: #{forward.11} parent=0 // loop_footer
    %s13 = sadd.s32 1, %s9
  $region7: #{forward.11} parent=0 // loop_footer_branch
    %8 = sbr.rel target = $region3
  $region8: #{forward.11} parent=0 // loop_exit
    _

// kernel: forward.12
$region0: #{forward.12}
  #allocation0 [shape = 'u32[]', space=smem, size = 0x4, offset = 0x4, fixed_abs, tag = 'smem constant byte address 0x4 - core index']
  #allocation1 [shape = 'u32[144,128]{1,0:T(1,128)}', space=vmem, size = 0x12000, scoped, tag = 'internal scratch']
  %s0 = inlined_call_operand.vmem [shape: bf16[2048,144], index: 0, kind: input, shape index: {}]
  %s1 = inlined_call_operand.vmem [shape: bf16[144,16], index: 1, kind: input, shape index: {}]
  %s2 = inlined_call_operand.vmem [shape: f32[1,16], index: 2, kind: input, shape index: {}]
  %s3 = inlined_call_operand.vmem [shape: bf16[2048,16], index: 3, kind: input, shape index: {}]
  %s4 = inlined_call_operand.vmem [shape: bf16[2048,16], index: 4, kind: output, shape index: {}]
  %s5 = sld [smem:[#allocation0]]
  $region49: #{forward.12} parent=0
    _
  %s7 = ssub.s32 1, %s5
  %s8 = scalar_select 0, %s7, %s5
  loop: start=0, step=1, limit=4
  $region2: #{forward.12} parent=0 // loop_pre_header
    _
  $region3: #{forward.12} parent=0 // loop_header
    %s10 = sphi 0, %s14
    %p11 = scmp.ge.s32.totalorder %s10, 4
    %s20 = sphi 0, %s22
    %s23 = sphi 0, %s20
    %s24 = sphi 0, %s23
    %s40 = sphi 0, %s24
    %s44 = sphi 0, %s44
    %s46 = sphi 0, %s44
    %s47 = sphi 0, %s46
    %s61 = sphi 0, %s47
    %s65 = sphi 0, %s65
    %s67 = sphi 0, %s65
    %s68 = sphi 0, %s67
    %s82 = sphi 0, %s68
    %s88 = sphi 0, %s90
    %s91 = sphi 0, %s88
    %s92 = sphi 0, %s91
    %s108 = sphi 0, %s92
    %s114 = sphi 0, %s116
    %s117 = sphi 0, %s114
    %s118 = sphi 0, %s117
    %s134 = sphi 0, %s118
  $region4: #{forward.12} parent=0 // loop_header_branch
    %13 = sbr.rel (%p11) target = $region8
  $region5: #{forward.12} parent=0 // loop_body
    %s15 = ssub.s32 %s10, 1
    %s16 = ssub.s32 %s10, 2
    %s17 = sadd.s32 %s10, 1
    %s18 = ssub.s32 %s10, %s17
    %p19 = scmp.eq.s32.totalorder %s18, 0
    %s21 = sadd.s32 %s20, 1
    %s22 = scalar_select %p19, %s20, %s21
    %p25 = pneg %p19
    %p26 = scmp.eq.s32.totalorder %s10, 1
    %p27 = por %p25, %p26
    %p28 = scmp.ne.s32.totalorder %s20, %s23
    %p29 = scmp.eq.s32.totalorder %s10, 0
    %p30 = por %p28, %p29
    %p31 = scmp.ne.s32.totalorder %s20, %s23
    %p32 = scmp.eq.s32.totalorder %s15, 1
    %p33 = por %p31, %p32
    %p34 = scmp.ne.s32.totalorder %s23, %s24
    %p35 = scmp.eq.s32.totalorder %s15, 0
    %p36 = por %p34, %p35
    %p37 = scmp.ne.s32.totalorder %s23, %s24
    %p38 = scmp.eq.s32.totalorder %s16, 1
    %p39 = por %p37, %p38
    %p41 = scmp.ne.s32.totalorder %s24, %s40
    %p42 = scmp.eq.s32.totalorder %s16, 0
    %p43 = por %p41, %p42
    %s45 = sadd.s32 %s44, 1
    %p48 = scmp.eq.s32.totalorder %s10, 1
    %p49 = scmp.ne.s32.totalorder %s44, %s46
    %p50 = scmp.eq.s32.totalorder %s10, 0
    %p51 = por %p49, %p50
    %p52 = scmp.ne.s32.totalorder %s44, %s46
    %p53 = scmp.eq.s32.totalorder %s15, 1
    %p54 = por %p52, %p53
    %p55 = scmp.ne.s32.totalorder %s46, %s47
    %p56 = scmp.eq.s32.totalorder %s15, 0
    %p57 = por %p55, %p56
    %p58 = scmp.ne.s32.totalorder %s46, %s47
    %p59 = scmp.eq.s32.totalorder %s16, 1
    %p60 = por %p58, %p59
    %p62 = scmp.ne.s32.totalorder %s47, %s61
    %p63 = scmp.eq.s32.totalorder %s16, 0
    %p64 = por %p62, %p63
    %s66 = sadd.s32 %s65, 1
    %p69 = scmp.eq.s32.totalorder %s10, 1
    %p70 = scmp.ne.s32.totalorder %s65, %s67
    %p71 = scmp.eq.s32.totalorder %s10, 0
    %p72 = por %p70, %p71
    %p73 = scmp.ne.s32.totalorder %s65, %s67
    %p74 = scmp.eq.s32.totalorder %s15, 1
    %p75 = por %p73, %p74
    %p76 = scmp.ne.s32.totalorder %s67, %s68
    %p77 = scmp.eq.s32.totalorder %s15, 0
    %p78 = por %p76, %p77
    %p79 = scmp.ne.s32.totalorder %s67, %s68
    %p80 = scmp.eq.s32.totalorder %s16, 1
    %p81 = por %p79, %p80
    %p83 = scmp.ne.s32.totalorder %s68, %s82
    %p84 = scmp.eq.s32.totalorder %s16, 0
    %p85 = por %p83, %p84
    %s86 = ssub.s32 %s10, %s17
    %p87 = scmp.eq.s32.totalorder %s86, 0
    %s89 = sadd.s32 %s88, 1
    %s90 = scalar_select %p87, %s88, %s89
    %p93 = pneg %p87
    %p94 = scmp.eq.s32.totalorder %s10, 1
    %p95 = por %p93, %p94
    %p96 = scmp.ne.s32.totalorder %s88, %s91
    %p97 = scmp.eq.s32.totalorder %s10, 0
    %p98 = por %p96, %p97
    %p99 = scmp.ne.s32.totalorder %s88, %s91
    %p100 = scmp.eq.s32.totalorder %s15, 1
    %p101 = por %p99, %p100
    %p102 = scmp.ne.s32.totalorder %s91, %s92
    %p103 = scmp.eq.s32.totalorder %s15, 0
    %p104 = por %p102, %p103
    %p105 = scmp.ne.s32.totalorder %s91, %s92
    %p106 = scmp.eq.s32.totalorder %s16, 1
    %p107 = por %p105, %p106
    %p109 = scmp.ne.s32.totalorder %s92, %s108
    %p110 = scmp.eq.s32.totalorder %s16, 0
    %p111 = por %p109, %p110
    %s112 = ssub.s32 %s10, %s17
    %p113 = scmp.eq.s32.totalorder %s112, 0
    %s115 = sadd.s32 %s114, 1
    %s116 = scalar_select %p113, %s114, %s115
    %p119 = pneg %p113
    %p120 = scmp.eq.s32.totalorder %s10, 1
    %p121 = por %p119, %p120
    %p122 = scmp.ne.s32.totalorder %s114, %s117
    %p123 = scmp.eq.s32.totalorder %s10, 0
    %p124 = por %p122, %p123
    %p125 = scmp.ne.s32.totalorder %s114, %s117
    %p126 = scmp.eq.s32.totalorder %s15, 1
    %p127 = por %p125, %p126
    %p128 = scmp.ne.s32.totalorder %s117, %s118
    %p129 = scmp.eq.s32.totalorder %s15, 0
    %p130 = por %p128, %p129
    %p131 = scmp.ne.s32.totalorder %s117, %s118
    %p132 = scmp.eq.s32.totalorder %s16, 1
    %p133 = por %p131, %p132
    %p135 = scmp.ne.s32.totalorder %s118, %s134
    %p136 = scmp.eq.s32.totalorder %s16, 0
    %p137 = por %p135, %p136
    %p138 = scmp.le.s32.totalorder 1, %s10
    %p139 = scmp.lt.s32.totalorder %s10, 3
    %p140 = pnand %p138, %p139
    %p141 = pneg %p140
    // Predicated region
    $region9: #{forward.12} parent=5 // pred_check
      _
    $region10: #{forward.12} parent=5 // pred_check_branch
      %143 = sbr.rel (%p140) target = $region12
    $region11: #{forward.12} parent=5 // pred_region
      %s144 = ssub.s32 %s10, 1
      // Predicated region
      $region13: #{forward.12} parent=11 // pred_check
        %p145 = pneg %p57
      $region14: #{forward.12} parent=11 // pred_check_branch
        %147 = sbr.rel (%p145) target = $region16
      $region15: #{forward.12} parent=11 // pred_region
        _
      $region16: #{forward.12} parent=11 // pred_fallthru
        _
      // Predicated region
      $region17: #{forward.12} parent=11 // pred_check
        %p148 = pneg %p78
      $region18: #{forward.12} parent=11 // pred_check_branch
        %150 = sbr.rel (%p148) target = $region20
      $region19: #{forward.12} parent=11 // pred_region
        _
      $region20: #{forward.12} parent=11 // pred_fallthru
        _
    $region12: #{forward.12} parent=5 // pred_fallthru
      _
    %p151 = scmp.lt.s32.totalorder %s10, 2
    // Predicated region
    $region21: #{forward.12} parent=5 // pred_check
      %p152 = pneg %p151
    $region22: #{forward.12} parent=5 // pred_check_branch
      %154 = sbr.rel (%p152) target = $region24
    $region23: #{forward.12} parent=5 // pred_region
      // Predicated region
      $region25: #{forward.12} parent=23 // pred_check
        %p155 = pneg %p30
      $region26: #{forward.12} parent=23 // pred_check_branch
        %157 = sbr.rel (%p155) target = $region28
      $region27: #{forward.12} parent=23 // pred_region
        %s158 = smul.u32 128, %s10
        %p159 = scmp.lt.s32.totalorder %s158, 255
        %s160 = scalar_select %p159, %s158, 255
        %s161 = smul.addr %s160, 2
        %s162 = smul.addr %s161, 4
        %s163 = scalar_lea.vmem %s0, %s162
        %s164 = smul.u32 128, %s10
      $region28: #{forward.12} parent=23 // pred_fallthru
        _
      // Predicated region
      $region29: #{forward.12} parent=23 // pred_check
        %p165 = pneg %p98
      $region30: #{forward.12} parent=23 // pred_check_branch
        %167 = sbr.rel (%p165) target = $region32
      $region31: #{forward.12} parent=23 // pred_region
        %s168 = smul.u32 128, %s10
        %p169 = scmp.lt.s32.totalorder %s168, 255
        %s170 = scalar_select %p169, %s168, 255
        %s171 = smul.addr %s170, 4
        %s172 = scalar_lea.vmem %s3, %s171
        %s173 = smul.u32 128, %s10
      $region32: #{forward.12} parent=23 // pred_fallthru
        _
    $region24: #{forward.12} parent=5 // pred_fallthru
      _
    %p174 = scmp.le.s32.totalorder 1, %s10
    %p175 = scmp.lt.s32.totalorder %s10, 3
    %p176 = pnand %p174, %p175
    %p177 = pneg %p176
    // Predicated region
    $region33: #{forward.12} parent=5 // pred_check
      _
    $region34: #{forward.12} parent=5 // pred_check_branch
      %179 = sbr.rel (%p176) target = $region36
    $region35: #{forward.12} parent=5 // pred_region
      %s180 = ssub.s32 %s10, 1
      %s181 = smul.u32 128, %s15
      %p182 = scmp.lt.s32.totalorder %s181, 255
      %s183 = scalar_select %p182, %s181, 255
      %s184 = smul.addr %s183, 2
      %s185 = smul.addr %s184, 4
      %s186 = scalar_lea.vmem %s0, %s185
      %p187 = pneg %p36
      %p188 = pneg %p33
      %p189 = pneg %p57
      %p190 = pneg %p54
      %p191 = pneg %p78
      %p192 = pneg %p75
      %s193 = smul.u32 128, %s15
      %p194 = scmp.lt.s32.totalorder %s193, 255
      %s195 = scalar_select %p194, %s193, 255
      %s196 = smul.addr %s195, 4
      %s197 = scalar_lea.vmem %s3, %s196
      %p198 = pneg %p104
      %p199 = pneg %p101
      %p200 = pneg %p130
      %p201 = pneg %p127
      %s202 = smul.u32 128, %s15
      %p203 = scmp.lt.s32.totalorder %s202, 255
      %s204 = scalar_select %p203, %s202, 255
      %s205 = smul.addr %s204, 4
      %s206 = scalar_lea.vmem %s4, %s205
      %s207 = smul.u32 128, %s15
      %p208 = scmp.lt.s32.totalorder %s207, 255
      %s209 = scalar_select %p208, %s207, 255
      %s210 = smul.addr %s209, 2
      %s211 = smul.addr %s210, 4
      %s212 = scalar_lea.vmem %s0, %s211
      %s213 = smul.u32 128, %s15
      %s214 = smul.u32 128, %s15
      %p215 = scmp.lt.s32.totalorder %s214, 255
      %s216 = scalar_select %p215, %s214, 255
      %s217 = smul.addr %s216, 4
      %s218 = scalar_lea.vmem %s3, %s217
      %s219 = smul.u32 128, %s15
      %s220 = smul.u32 128, %s15
      %p221 = scmp.lt.s32.totalorder %s220, 255
      %s222 = scalar_select %p221, %s220, 255
      %s223 = smul.addr %s222, 4
      %s224 = scalar_lea.vmem %s4, %s223
      %s225 = smul.u32 128, %s15
      %v227 = vld [vmem:[%s212] sm:$0xff]
      %v228 = vld [vmem:[%s212 + $0x8] sm:$0xff]
      %v229 = vld [vmem:[%s212 + $0x10] sm:$0xff]
      %v230 = vld [vmem:[%s212 + $0x18] sm:$0xff]
      %v231 = vld [vmem:[%s212 + $0x20] sm:$0xff]
      %v232 = vld [vmem:[%s212 + $0x28] sm:$0xff]
      %v233 = vld [vmem:[%s212 + $0x30] sm:$0xff]
      %v234 = vld [vmem:[%s212 + $0x38] sm:$0xff]
      %v235 = vld [vmem:[%s212 + $0x40] sm:$0xff]
      %v236 = vld [vmem:[%s212 + $0x48] sm:$0xff]
      %v237 = vld [vmem:[%s212 + $0x50] sm:$0xff]
      %v238 = vld [vmem:[%s212 + $0x58] sm:$0xff]
      %v239 = vld [vmem:[%s212 + $0x60] sm:$0xff]
      %v240 = vld [vmem:[%s212 + $0x68] sm:$0xff]
      %v241 = vld [vmem:[%s212 + $0x70] sm:$0xff]
      %v242 = vld [vmem:[%s212 + $0x78] sm:$0xff]
      %v243 = vld [vmem:[%s212 + $0x80] sm:$0xff]
      %v244 = vld [vmem:[%s212 + $0x88] sm:$0xff]
      %v245 = vld [vmem:[%s212 + $0x90] sm:$0xff]
      %v246 = vld [vmem:[%s212 + $0x98] sm:$0xff]
      %v247 = vld [vmem:[%s212 + $0xa0] sm:$0xff]
      %v248 = vld [vmem:[%s212 + $0xa8] sm:$0xff]
      %v249 = vld [vmem:[%s212 + $0xb0] sm:$0xff]
      %v250 = vld [vmem:[%s212 + $0xb8] sm:$0xff]
      %v251 = vld [vmem:[%s212 + $0xc0] sm:$0xff]
      %v252 = vld [vmem:[%s212 + $0xc8] sm:$0xff]
      %v253 = vld [vmem:[%s212 + $0xd0] sm:$0xff]
      %v254 = vld [vmem:[%s212 + $0xd8] sm:$0xff]
      %v255 = vld [vmem:[%s212 + $0xe0] sm:$0xff]
      %v256 = vld [vmem:[%s212 + $0xe8] sm:$0xff]
      %v257 = vld [vmem:[%s212 + $0xf0] sm:$0xff]
      %v258 = vld [vmem:[%s212 + $0xf8] sm:$0xff]
      %v259 = vld [vmem:[%s212 + $0x100] sm:$0xff]
      %v260 = vld [vmem:[%s212 + $0x108] sm:$0xff]
      %v261 = vld [vmem:[%s212 + $0x110] sm:$0xff]
      %v262 = vld [vmem:[%s212 + $0x118] sm:$0xff]
      %v263 = vld [vmem:[%s212 + $0x120] sm:$0xff]
      %v264 = vld [vmem:[%s212 + $0x128] sm:$0xff]
      %v265 = vld [vmem:[%s212 + $0x130] sm:$0xff]
      %v266 = vld [vmem:[%s212 + $0x138] sm:$0xff]
      %v267 = vld [vmem:[%s212 + $0x140] sm:$0xff]
      %v268 = vld [vmem:[%s212 + $0x148] sm:$0xff]
      %v269 = vld [vmem:[%s212 + $0x150] sm:$0xff]
      %v270 = vld [vmem:[%s212 + $0x158] sm:$0xff]
      %v271 = vld [vmem:[%s212 + $0x160] sm:$0xff]
      %v272 = vld [vmem:[%s212 + $0x168] sm:$0xff]
      %v273 = vld [vmem:[%s212 + $0x170] sm:$0xff]
      %v274 = vld [vmem:[%s212 + $0x178] sm:$0xff]
      %v275 = vld [vmem:[%s212 + $0x180] sm:$0xff]
      %v276 = vld [vmem:[%s212 + $0x188] sm:$0xff]
      %v277 = vld [vmem:[%s212 + $0x190] sm:$0xff]
      %v278 = vld [vmem:[%s212 + $0x198] sm:$0xff]
      %v279 = vld [vmem:[%s212 + $0x1a0] sm:$0xff]
      %v280 = vld [vmem:[%s212 + $0x1a8] sm:$0xff]
      %v281 = vld [vmem:[%s212 + $0x1b0] sm:$0xff]
      %v282 = vld [vmem:[%s212 + $0x1b8] sm:$0xff]
      %v283 = vld [vmem:[%s212 + $0x1c0] sm:$0xff]
      %v284 = vld [vmem:[%s212 + $0x1c8] sm:$0xff]
      %v285 = vld [vmem:[%s212 + $0x1d0] sm:$0xff]
      %v286 = vld [vmem:[%s212 + $0x1d8] sm:$0xff]
      %v287 = vld [vmem:[%s212 + $0x1e0] sm:$0xff]
      %v288 = vld [vmem:[%s212 + $0x1e8] sm:$0xff]
      %v289 = vld [vmem:[%s212 + $0x1f0] sm:$0xff]
      %v290 = vld [vmem:[%s212 + $0x1f8] sm:$0xff]
      %v291 = vld [vmem:[%s212 + $0x200] sm:$0xff]
      %v292 = vld [vmem:[%s212 + $0x208] sm:$0xff]
      %v293 = vld [vmem:[%s212 + $0x210] sm:$0xff]
      %v294 = vld [vmem:[%s212 + $0x218] sm:$0xff]
      %v295 = vld [vmem:[%s212 + $0x220] sm:$0xff]
      %v296 = vld [vmem:[%s212 + $0x228] sm:$0xff]
      %v297 = vld [vmem:[%s212 + $0x230] sm:$0xff]
      %v298 = vld [vmem:[%s212 + $0x238] sm:$0xff]
      %v299 = vld [vmem:[%s212 + $0x240] sm:$0xff]
      %v300 = vld [vmem:[%s212 + $0x248] sm:$0xff]
      %v301 = vld [vmem:[%s212 + $0x250] sm:$0xff]
      %v302 = vld [vmem:[%s212 + $0x258] sm:$0xff]
      %v303 = vld [vmem:[%s212 + $0x260] sm:$0xff]
      %v304 = vld [vmem:[%s212 + $0x268] sm:$0xff]
      %v305 = vld [vmem:[%s212 + $0x270] sm:$0xff]
      %v306 = vld [vmem:[%s212 + $0x278] sm:$0xff]
      %v307 = vld [vmem:[%s212 + $0x280] sm:$0xff]
      %v308 = vld [vmem:[%s212 + $0x288] sm:$0xff]
      %v309 = vld [vmem:[%s212 + $0x290] sm:$0xff]
      %v310 = vld [vmem:[%s212 + $0x298] sm:$0xff]
      %v311 = vld [vmem:[%s212 + $0x2a0] sm:$0xff]
      %v312 = vld [vmem:[%s212 + $0x2a8] sm:$0xff]
      %v313 = vld [vmem:[%s212 + $0x2b0] sm:$0xff]
      %v314 = vld [vmem:[%s212 + $0x2b8] sm:$0xff]
      %v315 = vld [vmem:[%s212 + $0x2c0] sm:$0xff]
      %v316 = vld [vmem:[%s212 + $0x2c8] sm:$0xff]
      %v317 = vld [vmem:[%s212 + $0x2d0] sm:$0xff]
      %v318 = vld [vmem:[%s212 + $0x2d8] sm:$0xff]
      %v319 = vld [vmem:[%s212 + $0x2e0] sm:$0xff]
      %v320 = vld [vmem:[%s212 + $0x2e8] sm:$0xff]
      %v321 = vld [vmem:[%s212 + $0x2f0] sm:$0xff]
      %v322 = vld [vmem:[%s212 + $0x2f8] sm:$0xff]
      %v323 = vld [vmem:[%s212 + $0x300] sm:$0xff]
      %v324 = vld [vmem:[%s212 + $0x308] sm:$0xff]
      %v325 = vld [vmem:[%s212 + $0x310] sm:$0xff]
      %v326 = vld [vmem:[%s212 + $0x318] sm:$0xff]
      %v327 = vld [vmem:[%s212 + $0x320] sm:$0xff]
      %v328 = vld [vmem:[%s212 + $0x328] sm:$0xff]
      %v329 = vld [vmem:[%s212 + $0x330] sm:$0xff]
      %v330 = vld [vmem:[%s212 + $0x338] sm:$0xff]
      %v331 = vld [vmem:[%s212 + $0x340] sm:$0xff]
      %v332 = vld [vmem:[%s212 + $0x348] sm:$0xff]
      %v333 = vld [vmem:[%s212 + $0x350] sm:$0xff]
      %v334 = vld [vmem:[%s212 + $0x358] sm:$0xff]
      %v335 = vld [vmem:[%s212 + $0x360] sm:$0xff]
      %v336 = vld [vmem:[%s212 + $0x368] sm:$0xff]
      %v337 = vld [vmem:[%s212 + $0x370] sm:$0xff]
      %v338 = vld [vmem:[%s212 + $0x378] sm:$0xff]
      %v339 = vld [vmem:[%s212 + $0x380] sm:$0xff]
      %v340 = vld [vmem:[%s212 + $0x388] sm:$0xff]
      %v341 = vld [vmem:[%s212 + $0x390] sm:$0xff]
      %v342 = vld [vmem:[%s212 + $0x398] sm:$0xff]
      %v343 = vld [vmem:[%s212 + $0x3a0] sm:$0xff]
      %v344 = vld [vmem:[%s212 + $0x3a8] sm:$0xff]
      %v345 = vld [vmem:[%s212 + $0x3b0] sm:$0xff]
      %v346 = vld [vmem:[%s212 + $0x3b8] sm:$0xff]
      %v347 = vld [vmem:[%s212 + $0x3c0] sm:$0xff]
      %v348 = vld [vmem:[%s212 + $0x3c8] sm:$0xff]
      %v349 = vld [vmem:[%s212 + $0x3d0] sm:$0xff]
      %v350 = vld [vmem:[%s212 + $0x3d8] sm:$0xff]
      %v351 = vld [vmem:[%s212 + $0x3e0] sm:$0xff]
      %v352 = vld [vmem:[%s212 + $0x3e8] sm:$0xff]
      %v353 = vld [vmem:[%s212 + $0x3f0] sm:$0xff]
      %v354 = vld [vmem:[%s212 + $0x3f8] sm:$0xff]
      %v355 = vld [vmem:[%s1] sm:$0xf]
      %v356 = vld [vmem:[%s1 + $0x4] sm:$0xf]
      %v357 = vld [vmem:[%s1 + $0x8] sm:$0xf]
      %v358 = vld [vmem:[%s1 + $0xc] sm:$0xf]
      %v359 = vld [vmem:[%s1 + $0x10] sm:$0xf]
      %v360 = vld [vmem:[%s1 + $0x14] sm:$0xf]
      %v361 = vld [vmem:[%s1 + $0x18] sm:$0xf]
      %v362 = vld [vmem:[%s1 + $0x1c] sm:$0xf]
      %v363 = vld [vmem:[%s1 + $0x20] sm:$0xf]
      %v364 = vld [vmem:[%s1 + $0x24] sm:$0xf]
      %v365 = vld [vmem:[%s1 + $0x28] sm:$0xf]
      %v366 = vld [vmem:[%s1 + $0x2c] sm:$0xf]
      %v367 = vld [vmem:[%s1 + $0x30] sm:$0xf]
      %v368 = vld [vmem:[%s1 + $0x34] sm:$0xf]
      %v369 = vld [vmem:[%s1 + $0x38] sm:$0xf]
      %v370 = vld [vmem:[%s1 + $0x3c] sm:$0xf]
      %v371 = vld [vmem:[%s1 + $0x40] sm:$0xf]
      %v372 = vld [vmem:[%s1 + $0x44] sm:$0xf]
      %v373 = vld [vmem:[%s2] sm:$0x1]
      %v375 = vlaneseq
      %v376 = vshrl.u32 %v375, 7
      %v377 = vsub.s32 0, %v376
      %v378 = vrot.slane %v373, %v377
      %v508 = vunpack.c.l.b16 %v227
      %v509 = vunpack.c.h.b16 %v227
      %v510 = vunpack.c.l.b16 %v228
      %v511 = vunpack.c.h.b16 %v228
      %v512 = vunpack.c.l.b16 %v229
      %v513 = vunpack.c.h.b16 %v229
      %v514 = vunpack.c.l.b16 %v230
      %v515 = vunpack.c.h.b16 %v230
      %v516 = vunpack.c.l.b16 %v231
      %v517 = vunpack.c.h.b16 %v231
      %v518 = vunpack.c.l.b16 %v232
      %v519 = vunpack.c.h.b16 %v232
      %v520 = vunpack.c.l.b16 %v233
      %v521 = vunpack.c.h.b16 %v233
      %v522 = vunpack.c.l.b16 %v234
      %v523 = vunpack.c.h.b16 %v234
      %v524 = vunpack.c.l.b16 %v235
      %v525 = vunpack.c.h.b16 %v235
      %v526 = vunpack.c.l.b16 %v236
      %v527 = vunpack.c.h.b16 %v236
      %v528 = vunpack.c.l.b16 %v237
      %v529 = vunpack.c.h.b16 %v237
      %v530 = vunpack.c.l.b16 %v238
      %v531 = vunpack.c.h.b16 %v238
      %v532 = vunpack.c.l.b16 %v239
      %v533 = vunpack.c.h.b16 %v239
      %v534 = vunpack.c.l.b16 %v240
      %v535 = vunpack.c.h.b16 %v240
      %v536 = vunpack.c.l.b16 %v241
      %v537 = vunpack.c.h.b16 %v241
      %v538 = vunpack.c.l.b16 %v242
      %v539 = vunpack.c.h.b16 %v242
      %v540 = vunpack.c.l.b16 %v243
      %v541 = vunpack.c.h.b16 %v243
      %v542 = vunpack.c.l.b16 %v244
      %v543 = vunpack.c.h.b16 %v244
      %v544 = vunpack.c.l.b16 %v245
      %v545 = vunpack.c.h.b16 %v245
      %v546 = vunpack.c.l.b16 %v246
      %v547 = vunpack.c.h.b16 %v246
      %v548 = vunpack.c.l.b16 %v247
      %v549 = vunpack.c.h.b16 %v247
      %v550 = vunpack.c.l.b16 %v248
      %v551 = vunpack.c.h.b16 %v248
      %v552 = vunpack.c.l.b16 %v249
      %v553 = vunpack.c.h.b16 %v249
      %v554 = vunpack.c.l.b16 %v250
      %v555 = vunpack.c.h.b16 %v250
      %v556 = vunpack.c.l.b16 %v251
      %v557 = vunpack.c.h.b16 %v251
      %v558 = vunpack.c.l.b16 %v252
      %v559 = vunpack.c.h.b16 %v252
      %v560 = vunpack.c.l.b16 %v253
      %v561 = vunpack.c.h.b16 %v253
      %v562 = vunpack.c.l.b16 %v254
      %v563 = vunpack.c.h.b16 %v254
      %v564 = vunpack.c.l.b16 %v255
      %v565 = vunpack.c.h.b16 %v255
      %v566 = vunpack.c.l.b16 %v256
      %v567 = vunpack.c.h.b16 %v256
      %v568 = vunpack.c.l.b16 %v257
      %v569 = vunpack.c.h.b16 %v257
      %v570 = vunpack.c.l.b16 %v258
      %v571 = vunpack.c.h.b16 %v258
      %v572 = vunpack.c.l.b16 %v259
      %v573 = vunpack.c.h.b16 %v259
      %v574 = vunpack.c.l.b16 %v260
      %v575 = vunpack.c.h.b16 %v260
      %v576 = vunpack.c.l.b16 %v261
      %v577 = vunpack.c.h.b16 %v261
      %v578 = vunpack.c.l.b16 %v262
      %v579 = vunpack.c.h.b16 %v262
      %v580 = vunpack.c.l.b16 %v263
      %v581 = vunpack.c.h.b16 %v263
      %v582 = vunpack.c.l.b16 %v264
      %v583 = vunpack.c.h.b16 %v264
      %v584 = vunpack.c.l.b16 %v265
      %v585 = vunpack.c.h.b16 %v265
      %v586 = vunpack.c.l.b16 %v266
      %v587 = vunpack.c.h.b16 %v266
      %v588 = vunpack.c.l.b16 %v267
      %v589 = vunpack.c.h.b16 %v267
      %v590 = vunpack.c.l.b16 %v268
      %v591 = vunpack.c.h.b16 %v268
      %v592 = vunpack.c.l.b16 %v269
      %v593 = vunpack.c.h.b16 %v269
      %v594 = vunpack.c.l.b16 %v270
      %v595 = vunpack.c.h.b16 %v270
      %v596 = vunpack.c.l.b16 %v271
      %v597 = vunpack.c.h.b16 %v271
      %v598 = vunpack.c.l.b16 %v272
      %v599 = vunpack.c.h.b16 %v272
      %v600 = vunpack.c.l.b16 %v273
      %v601 = vunpack.c.h.b16 %v273
      %v602 = vunpack.c.l.b16 %v274
      %v603 = vunpack.c.h.b16 %v274
      %v604 = vunpack.c.l.b16 %v275
      %v605 = vunpack.c.h.b16 %v275
      %v606 = vunpack.c.l.b16 %v276
      %v607 = vunpack.c.h.b16 %v276
      %v608 = vunpack.c.l.b16 %v277
      %v609 = vunpack.c.h.b16 %v277
      %v610 = vunpack.c.l.b16 %v278
      %v611 = vunpack.c.h.b16 %v278
      %v612 = vunpack.c.l.b16 %v279
      %v613 = vunpack.c.h.b16 %v279
      %v614 = vunpack.c.l.b16 %v280
      %v615 = vunpack.c.h.b16 %v280
      %v616 = vunpack.c.l.b16 %v281
      %v617 = vunpack.c.h.b16 %v281
      %v618 = vunpack.c.l.b16 %v282
      %v619 = vunpack.c.h.b16 %v282
      %v620 = vunpack.c.l.b16 %v283
      %v621 = vunpack.c.h.b16 %v283
      %v622 = vunpack.c.l.b16 %v284
      %v623 = vunpack.c.h.b16 %v284
      %v624 = vunpack.c.l.b16 %v285
      %v625 = vunpack.c.h.b16 %v285
      %v626 = vunpack.c.l.b16 %v286
      %v627 = vunpack.c.h.b16 %v286
      %v628 = vunpack.c.l.b16 %v287
      %v629 = vunpack.c.h.b16 %v287
      %v630 = vunpack.c.l.b16 %v288
      %v631 = vunpack.c.h.b16 %v288
      %v632 = vunpack.c.l.b16 %v289
      %v633 = vunpack.c.h.b16 %v289
      %v634 = vunpack.c.l.b16 %v290
      %v635 = vunpack.c.h.b16 %v290
      %v636 = vunpack.c.l.b16 %v291
      %v637 = vunpack.c.h.b16 %v291
      %v638 = vunpack.c.l.b16 %v292
      %v639 = vunpack.c.h.b16 %v292
      %v640 = vunpack.c.l.b16 %v293
      %v641 = vunpack.c.h.b16 %v293
      %v642 = vunpack.c.l.b16 %v294
      %v643 = vunpack.c.h.b16 %v294
      %v644 = vunpack.c.l.b16 %v295
      %v645 = vunpack.c.h.b16 %v295
      %v646 = vunpack.c.l.b16 %v296
      %v647 = vunpack.c.h.b16 %v296
      %v648 = vunpack.c.l.b16 %v297
      %v649 = vunpack.c.h.b16 %v297
      %v650 = vunpack.c.l.b16 %v298
      %v651 = vunpack.c.h.b16 %v298
      %v652 = vunpack.c.l.b16 %v299
      %v653 = vunpack.c.h.b16 %v299
      %v654 = vunpack.c.l.b16 %v300
      %v655 = vunpack.c.h.b16 %v300
      %v656 = vunpack.c.l.b16 %v301
      %v657 = vunpack.c.h.b16 %v301
      %v658 = vunpack.c.l.b16 %v302
      %v659 = vunpack.c.h.b16 %v302
      %v660 = vunpack.c.l.b16 %v303
      %v661 = vunpack.c.h.b16 %v303
      %v662 = vunpack.c.l.b16 %v304
      %v663 = vunpack.c.h.b16 %v304
      %v664 = vunpack.c.l.b16 %v305
      %v665 = vunpack.c.h.b16 %v305
      %v666 = vunpack.c.l.b16 %v306
      %v667 = vunpack.c.h.b16 %v306
      %v668 = vunpack.c.l.b16 %v307
      %v669 = vunpack.c.h.b16 %v307
      %v670 = vunpack.c.l.b16 %v308
      %v671 = vunpack.c.h.b16 %v308
      %v672 = vunpack.c.l.b16 %v309
      %v673 = vunpack.c.h.b16 %v309
      %v674 = vunpack.c.l.b16 %v310
      %v675 = vunpack.c.h.b16 %v310
      %v676 = vunpack.c.l.b16 %v311
      %v677 = vunpack.c.h.b16 %v311
      %v678 = vunpack.c.l.b16 %v312
      %v679 = vunpack.c.h.b16 %v312
      %v680 = vunpack.c.l.b16 %v313
      %v681 = vunpack.c.h.b16 %v313
      %v682 = vunpack.c.l.b16 %v314
      %v683 = vunpack.c.h.b16 %v314
      %v684 = vunpack.c.l.b16 %v315
      %v685 = vunpack.c.h.b16 %v315
      %v686 = vunpack.c.l.b16 %v316
      %v687 = vunpack.c.h.b16 %v316
      %v688 = vunpack.c.l.b16 %v317
      %v689 = vunpack.c.h.b16 %v317
      %v690 = vunpack.c.l.b16 %v318
      %v691 = vunpack.c.h.b16 %v318
      %v692 = vunpack.c.l.b16 %v319
      %v693 = vunpack.c.h.b16 %v319
      %v694 = vunpack.c.l.b16 %v320
      %v695 = vunpack.c.h.b16 %v320
      %v696 = vunpack.c.l.b16 %v321
      %v697 = vunpack.c.h.b16 %v321
      %v698 = vunpack.c.l.b16 %v322
      %v699 = vunpack.c.h.b16 %v322
      %v700 = vunpack.c.l.b16 %v323
      %v701 = vunpack.c.h.b16 %v323
      %v702 = vunpack.c.l.b16 %v324
      %v703 = vunpack.c.h.b16 %v324
      %v704 = vunpack.c.l.b16 %v325
      %v705 = vunpack.c.h.b16 %v325
      %v706 = vunpack.c.l.b16 %v326
      %v707 = vunpack.c.h.b16 %v326
      %v708 = vunpack.c.l.b16 %v327
      %v709 = vunpack.c.h.b16 %v327
      %v710 = vunpack.c.l.b16 %v328
      %v711 = vunpack.c.h.b16 %v328
      %v712 = vunpack.c.l.b16 %v329
      %v713 = vunpack.c.h.b16 %v329
      %v714 = vunpack.c.l.b16 %v330
      %v715 = vunpack.c.h.b16 %v330
      %v716 = vunpack.c.l.b16 %v331
      %v717 = vunpack.c.h.b16 %v331
      %v718 = vunpack.c.l.b16 %v332
      %v719 = vunpack.c.h.b16 %v332
      %v720 = vunpack.c.l.b16 %v333
      %v721 = vunpack.c.h.b16 %v333
      %v722 = vunpack.c.l.b16 %v334
      %v723 = vunpack.c.h.b16 %v334
      %v724 = vunpack.c.l.b16 %v335
      %v725 = vunpack.c.h.b16 %v335
      %v726 = vunpack.c.l.b16 %v336
      %v727 = vunpack.c.h.b16 %v336
      %v728 = vunpack.c.l.b16 %v337
      %v729 = vunpack.c.h.b16 %v337
      %v730 = vunpack.c.l.b16 %v338
      %v731 = vunpack.c.h.b16 %v338
      %v732 = vunpack.c.l.b16 %v339
      %v733 = vunpack.c.h.b16 %v339
      %v734 = vunpack.c.l.b16 %v340
      %v735 = vunpack.c.h.b16 %v340
      %v736 = vunpack.c.l.b16 %v341
      %v737 = vunpack.c.h.b16 %v341
      %v738 = vunpack.c.l.b16 %v342
      %v739 = vunpack.c.h.b16 %v342
      %v740 = vunpack.c.l.b16 %v343
      %v741 = vunpack.c.h.b16 %v343
      %v742 = vunpack.c.l.b16 %v344
      %v743 = vunpack.c.h.b16 %v344
      %v744 = vunpack.c.l.b16 %v345
      %v745 = vunpack.c.h.b16 %v345
      %v746 = vunpack.c.l.b16 %v346
      %v747 = vunpack.c.h.b16 %v346
      %v748 = vunpack.c.l.b16 %v347
      %v749 = vunpack.c.h.b16 %v347
      %v750 = vunpack.c.l.b16 %v348
      %v751 = vunpack.c.h.b16 %v348
      %v752 = vunpack.c.l.b16 %v349
      %v753 = vunpack.c.h.b16 %v349
      %v754 = vunpack.c.l.b16 %v350
      %v755 = vunpack.c.h.b16 %v350
      %v756 = vunpack.c.l.b16 %v351
      %v757 = vunpack.c.h.b16 %v351
      %v758 = vunpack.c.l.b16 %v352
      %v759 = vunpack.c.h.b16 %v352
      %v760 = vunpack.c.l.b16 %v353
      %v761 = vunpack.c.h.b16 %v353
      %v762 = vunpack.c.l.b16 %v354
      %v763 = vunpack.c.h.b16 %v354
      %v764 = vpack.c.b16 %v510, %v508
      %v765 = vpack.c.b16 %v511, %v509
      %v766 = vpack.c.b16 %v514, %v512
      %v767 = vpack.c.b16 %v515, %v513
      %v768 = vpack.c.b16 %v518, %v516
      %v769 = vpack.c.b16 %v519, %v517
      %v770 = vpack.c.b16 %v522, %v520
      %v771 = vpack.c.b16 %v523, %v521
      %v772 = vpack.c.b16 %v526, %v524
      %v773 = vpack.c.b16 %v527, %v525
      %v774 = vpack.c.b16 %v530, %v528
      %v775 = vpack.c.b16 %v531, %v529
      %v776 = vpack.c.b16 %v534, %v532
      %v777 = vpack.c.b16 %v535, %v533
      %v778 = vpack.c.b16 %v538, %v536
      %v779 = vpack.c.b16 %v539, %v537
      %v780 = vpack.c.b16 %v542, %v540
      %v781 = vpack.c.b16 %v543, %v541
      %v782 = vpack.c.b16 %v546, %v544
      %v783 = vpack.c.b16 %v547, %v545
      %v784 = vpack.c.b16 %v550, %v548
      %v785 = vpack.c.b16 %v551, %v549
      %v786 = vpack.c.b16 %v554, %v552
      %v787 = vpack.c.b16 %v555, %v553
      %v788 = vpack.c.b16 %v558, %v556
      %v789 = vpack.c.b16 %v559, %v557
      %v790 = vpack.c.b16 %v562, %v560
      %v791 = vpack.c.b16 %v563, %v561
      %v792 = vpack.c.b16 %v566, %v564
      %v793 = vpack.c.b16 %v567, %v565
      %v794 = vpack.c.b16 %v570, %v568
      %v795 = vpack.c.b16 %v571, %v569
      %v796 = vpack.c.b16 %v574, %v572
      %v797 = vpack.c.b16 %v575, %v573
      %v798 = vpack.c.b16 %v578, %v576
      %v799 = vpack.c.b16 %v579, %v577
      %v800 = vpack.c.b16 %v582, %v580
      %v801 = vpack.c.b16 %v583, %v581
      %v802 = vpack.c.b16 %v586, %v584
      %v803 = vpack.c.b16 %v587, %v585
      %v804 = vpack.c.b16 %v590, %v588
      %v805 = vpack.c.b16 %v591, %v589
      %v806 = vpack.c.b16 %v594, %v592
      %v807 = vpack.c.b16 %v595, %v593
      %v808 = vpack.c.b16 %v598, %v596
      %v809 = vpack.c.b16 %v599, %v597
      %v810 = vpack.c.b16 %v602, %v600
      %v811 = vpack.c.b16 %v603, %v601
      %v812 = vpack.c.b16 %v606, %v604
      %v813 = vpack.c.b16 %v607, %v605
      %v814 = vpack.c.b16 %v610, %v608
      %v815 = vpack.c.b16 %v611, %v609
      %v816 = vpack.c.b16 %v614, %v612
      %v817 = vpack.c.b16 %v615, %v613
      %v818 = vpack.c.b16 %v618, %v616
      %v819 = vpack.c.b16 %v619, %v617
      %v820 = vpack.c.b16 %v622, %v620
      %v821 = vpack.c.b16 %v623, %v621
      %v822 = vpack.c.b16 %v626, %v624
      %v823 = vpack.c.b16 %v627, %v625
      %v824 = vpack.c.b16 %v630, %v628
      %v825 = vpack.c.b16 %v631, %v629
      %v826 = vpack.c.b16 %v634, %v632
      %v827 = vpack.c.b16 %v635, %v633
      %v828 = vpack.c.b16 %v638, %v636
      %v829 = vpack.c.b16 %v639, %v637
      %v830 = vpack.c.b16 %v642, %v640
      %v831 = vpack.c.b16 %v643, %v641
      %v832 = vpack.c.b16 %v646, %v644
      %v833 = vpack.c.b16 %v647, %v645
      %v834 = vpack.c.b16 %v650, %v648
      %v835 = vpack.c.b16 %v651, %v649
      %v836 = vpack.c.b16 %v654, %v652
      %v837 = vpack.c.b16 %v655, %v653
      %v838 = vpack.c.b16 %v658, %v656
      %v839 = vpack.c.b16 %v659, %v657
      %v840 = vpack.c.b16 %v662, %v660
      %v841 = vpack.c.b16 %v663, %v661
      %v842 = vpack.c.b16 %v666, %v664
      %v843 = vpack.c.b16 %v667, %v665
      %v844 = vpack.c.b16 %v670, %v668
      %v845 = vpack.c.b16 %v671, %v669
      %v846 = vpack.c.b16 %v674, %v672
      %v847 = vpack.c.b16 %v675, %v673
      %v848 = vpack.c.b16 %v678, %v676
      %v849 = vpack.c.b16 %v679, %v677
      %v850 = vpack.c.b16 %v682, %v680
      %v851 = vpack.c.b16 %v683, %v681
      %v852 = vpack.c.b16 %v686, %v684
      %v853 = vpack.c.b16 %v687, %v685
      %v854 = vpack.c.b16 %v690, %v688
      %v855 = vpack.c.b16 %v691, %v689
      %v856 = vpack.c.b16 %v694, %v692
      %v857 = vpack.c.b16 %v695, %v693
      %v858 = vpack.c.b16 %v698, %v696
      %v859 = vpack.c.b16 %v699, %v697
      %v860 = vpack.c.b16 %v702, %v700
      %v861 = vpack.c.b16 %v703, %v701
      %v862 = vpack.c.b16 %v706, %v704
      %v863 = vpack.c.b16 %v707, %v705
      %v864 = vpack.c.b16 %v710, %v708
      %v865 = vpack.c.b16 %v711, %v709
      %v866 = vpack.c.b16 %v714, %v712
      %v867 = vpack.c.b16 %v715, %v713
      %v868 = vpack.c.b16 %v718, %v716
      %v869 = vpack.c.b16 %v719, %v717
      %v870 = vpack.c.b16 %v722, %v720
      %v871 = vpack.c.b16 %v723, %v721
      %v872 = vpack.c.b16 %v726, %v724
      %v873 = vpack.c.b16 %v727, %v725
      %v874 = vpack.c.b16 %v730, %v728
      %v875 = vpack.c.b16 %v731, %v729
      %v876 = vpack.c.b16 %v734, %v732
      %v877 = vpack.c.b16 %v735, %v733
      %v878 = vpack.c.b16 %v738, %v736
      %v879 = vpack.c.b16 %v739, %v737
      %v880 = vpack.c.b16 %v742, %v740
      %v881 = vpack.c.b16 %v743, %v741
      %v882 = vpack.c.b16 %v746, %v744
      %v883 = vpack.c.b16 %v747, %v745
      %v884 = vpack.c.b16 %v750, %v748
      %v885 = vpack.c.b16 %v751, %v749
      %v886 = vpack.c.b16 %v754, %v752
      %v887 = vpack.c.b16 %v755, %v753
      %v888 = vpack.c.b16 %v758, %v756
      %v889 = vpack.c.b16 %v759, %v757
      %v890 = vpack.c.b16 %v762, %v760
      %v891 = vpack.c.b16 %v763, %v761
      %v974 = vunpack.c.l.b16 %v355
      %v975 = vunpack.c.l.b16 %v356
      %v976 = vunpack.c.l.b16 %v357
      %v977 = vunpack.c.l.b16 %v358
      %v978 = vunpack.c.l.b16 %v359
      %v979 = vunpack.c.l.b16 %v360
      %v980 = vunpack.c.l.b16 %v361
      %v981 = vunpack.c.l.b16 %v362
      %v982 = vunpack.c.l.b16 %v363
      %v983 = vunpack.c.l.b16 %v364
      %v984 = vunpack.c.l.b16 %v365
      %v985 = vunpack.c.l.b16 %v366
      %v986 = vunpack.c.l.b16 %v367
      %v987 = vunpack.c.l.b16 %v368
      %v988 = vunpack.c.l.b16 %v369
      %v989 = vunpack.c.l.b16 %v370
      %v990 = vunpack.c.l.b16 %v371
      %v991 = vunpack.c.l.b16 %v372
      %v992 = vpack.c.b16 %v975, %v974
      %v993 = vpack.c.b16 %v977, %v976
      %v994 = vpack.c.b16 %v979, %v978
      %v995 = vpack.c.b16 %v981, %v980
      %v996 = vpack.c.b16 %v983, %v982
      %v997 = vpack.c.b16 %v985, %v984
      %v998 = vpack.c.b16 %v987, %v986
      %v999 = vpack.c.b16 %v989, %v988
      %v1000 = vpack.c.b16 %v991, %v990
      %vm1010 = vcmask 130048
      %v1012 = vsel %vm1010, %v765, 0
      %v1015 = vsel %vm1010, %v767, 0
      %v1018 = vsel %vm1010, %v769, 0
      %v1021 = vsel %vm1010, %v771, 0
      %v1024 = vsel %vm1010, %v773, 0
      %v1027 = vsel %vm1010, %v775, 0
      %v1030 = vsel %vm1010, %v777, 0
      %v1033 = vsel %vm1010, %v779, 0
      %v1036 = vsel %vm1010, %v781, 0
      %v1039 = vsel %vm1010, %v783, 0
      %v1042 = vsel %vm1010, %v785, 0
      %v1045 = vsel %vm1010, %v787, 0
      %v1048 = vsel %vm1010, %v789, 0
      %v1051 = vsel %vm1010, %v791, 0
      %v1054 = vsel %vm1010, %v793, 0
      %v1057 = vsel %vm1010, %v795, 0
      %v1060 = vsel %vm1010, %v797, 0
      %v1063 = vsel %vm1010, %v799, 0
      %v1066 = vsel %vm1010, %v801, 0
      %v1069 = vsel %vm1010, %v803, 0
      %v1072 = vsel %vm1010, %v805, 0
      %v1075 = vsel %vm1010, %v807, 0
      %v1078 = vsel %vm1010, %v809, 0
      %v1081 = vsel %vm1010, %v811, 0
      %v1084 = vsel %vm1010, %v813, 0
      %v1087 = vsel %vm1010, %v815, 0
      %v1090 = vsel %vm1010, %v817, 0
      %v1093 = vsel %vm1010, %v819, 0
      %v1096 = vsel %vm1010, %v821, 0
      %v1099 = vsel %vm1010, %v823, 0
      %v1102 = vsel %vm1010, %v825, 0
      %v1105 = vsel %vm1010, %v827, 0
      %v1108 = vsel %vm1010, %v829, 0
      %v1111 = vsel %vm1010, %v831, 0
      %v1114 = vsel %vm1010, %v833, 0
      %v1117 = vsel %vm1010, %v835, 0
      %v1120 = vsel %vm1010, %v837, 0
      %v1123 = vsel %vm1010, %v839, 0
      %v1126 = vsel %vm1010, %v841, 0
      %v1129 = vsel %vm1010, %v843, 0
      %v1132 = vsel %vm1010, %v845, 0
      %v1135 = vsel %vm1010, %v847, 0
      %v1138 = vsel %vm1010, %v849, 0
      %v1141 = vsel %vm1010, %v851, 0
      %v1144 = vsel %vm1010, %v853, 0
      %v1147 = vsel %vm1010, %v855, 0
      %v1150 = vsel %vm1010, %v857, 0
      %v1153 = vsel %vm1010, %v859, 0
      %v1156 = vsel %vm1010, %v861, 0
      %v1159 = vsel %vm1010, %v863, 0
      %v1162 = vsel %vm1010, %v865, 0
      %v1165 = vsel %vm1010, %v867, 0
      %v1168 = vsel %vm1010, %v869, 0
      %v1171 = vsel %vm1010, %v871, 0
      %v1174 = vsel %vm1010, %v873, 0
      %v1177 = vsel %vm1010, %v875, 0
      %v1180 = vsel %vm1010, %v877, 0
      %v1183 = vsel %vm1010, %v879, 0
      %v1186 = vsel %vm1010, %v881, 0
      %v1189 = vsel %vm1010, %v883, 0
      %v1192 = vsel %vm1010, %v885, 0
      %v1195 = vsel %vm1010, %v887, 0
      %v1198 = vsel %vm1010, %v889, 0
      %v1201 = vsel %vm1010, %v891, 0
      %1203 = vmatprep.subr.bf16.mxu0 0
      %1204 = vmatpush1.bf16.msra.mxu0 %v992
      %1205 = vmatprep.subr.bf16.mxu0 0
      %1206 = vmatpush1.bf16.msra.mxu0 %v993
      %1207 = vmatprep.subr.bf16.mxu0 0
      %1208 = vmatpush1.bf16.msra.mxu0 %v994
      %1209 = vmatprep.subr.bf16.mxu0 0
      %1210 = vmatpush1.bf16.msra.mxu0 %v995
      %1211 = vmatprep.subr.bf16.mxu0 0
      %1212 = vmatpush1.bf16.msra.mxu0 %v996
      %1213 = vmatprep.subr.bf16.mxu0 0
      %1214 = vmatpush1.bf16.msra.mxu0 %v997
      %1215 = vmatprep.subr.bf16.mxu0 0
      %1216 = vmatpush1.bf16.msra.mxu0 %v998
      %1217 = vmatprep.subr.bf16.mxu0 0
      %1218 = vmatpush1.bf16.msra.mxu0 %v999
      %1219 = vmatprep.subr.bf16.mxu0 0
      %1220 = vmatpush1.bf16.msra.mxu0 %v1000
      %1221 = vmatprep.subr.bf16.mxu0 0
      %1222 = vmatpush1.bf16.msra.mxu0 0
      %1223 = vmatprep.subr.bf16.mxu0 0
      %1224 = vmatpush1.bf16.msra.mxu0 0
      %1225 = vmatprep.subr.bf16.mxu0 0
      %1226 = vmatpush1.bf16.msra.mxu0 0
      %1227 = vmatprep.subr.bf16.mxu0 0
      %1228 = vmatpush1.bf16.msra.mxu0 0
      %1229 = vmatprep.subr.bf16.mxu0 0
      %1230 = vmatpush1.bf16.msra.mxu0 0
      %1231 = vmatprep.subr.bf16.mxu0 0
      %1232 = vmatpush1.bf16.msra.mxu0 0
      %1233 = vmatprep.subr.bf16.mxu0 0
      %1234 = vmatpush1.bf16.msra.mxu0 0
      %1235 = vmatprep.mubr.bf16.mxu0 %v1012
      %1236 = vmatmul.mubr.bf16.gmra.mrb[0].mxu0 %v764
      %v1237 = vpop.f32.mrb[0].mxu0
      %v1238 = vadd.f32 %v378, %v1237
      %v1239 = vpop.f32.mrb[0].mxu0
      %v1240 = vpop.f32.mrb[0].mxu0
      %v1241 = vadd.f32 %v378, %v1240
      %v1242 = vpop.f32.mrb[0].mxu0
      %1243 = vmatprep.mubr.bf16.mxu0 %v1015
      %1244 = vmatmul.mubr.bf16.gmra.mrb[0].mxu0 %v766
      %v1245 = vpop.f32.mrb[0].mxu0
      %v1246 = vadd.f32 %v378, %v1245
      %v1247 = vpop.f32.mrb[0].mxu0
      %v1248 = vpop.f32.mrb[0].mxu0
      %v1249 = vadd.f32 %v378, %v1248
      %v1250 = vpop.f32.mrb[0].mxu0
      %1251 = vmatprep.mubr.bf16.mxu0 %v1018
      %1252 = vmatmul.mubr.bf16.gmra.mrb[0].mxu0 %v768
      %v1253 = vpop.f32.mrb[0].mxu0
      %v1254 = vadd.f32 %v378, %v1253
      %v1255 = vpop.f32.mrb[0].mxu0
      %v1256 = vpop.f32.mrb[0].mxu0
      %v1257 = vadd.f32 %v378, %v1256
      %v1258 = vpop.f32.mrb[0].mxu0
      %1259 = vmatprep.mubr.bf16.mxu0 %v1021
      %1260 = vmatmul.mubr.bf16.gmra.mrb[0].mxu0 %v770
      %v1261 = vpop.f32.mrb[0].mxu0
      %v1262 = vadd.f32 %v378, %v1261
      %v1263 = vpop.f32.mrb[0].mxu0
      %v1264 = vpop.f32.mrb[0].mxu0
      %v1265 = vadd.f32 %v378, %v1264
      %v1266 = vpop.f32.mrb[0].mxu0
      %1267 = vmatprep.mubr.bf16.mxu0 %v1024
      %1268 = vmatmul.mubr.bf16.gmra.mrb[0].mxu0 %v772
      %v1269 = vpop.f32.mrb[0].mxu0
      %v1270 = vadd.f32 %v378, %v1269
      %v1271 = vpop.f32.mrb[0].mxu0
      %v1272 = vpop.f32.mrb[0].mxu0
      %v1273 = vadd.f32 %v378, %v1272
      %v1274 = vpop.f32.mrb[0].mxu0
      %1275 = vmatprep.mubr.bf16.mxu0 %v1027
      %1276 = vmatmul.mubr.bf16.gmra.mrb[0].mxu0 %v774
      %v1277 = vpop.f32.mrb[0].mxu0
      %v1278 = vadd.f32 %v378, %v1277
      %v1279 = vpop.f32.mrb[0].mxu0
      %v1280 = vpop.f32.mrb[0].mxu0
      %v1281 = vadd.f32 %v378, %v1280
      %v1282 = vpop.f32.mrb[0].mxu0
      %1283 = vmatprep.mubr.bf16.mxu0 %v1030
      %1284 = vmatmul.mubr.bf16.gmra.mrb[0].mxu0 %v776
      %v1285 = vpop.f32.mrb[0].mxu0
      %v1286 = vadd.f32 %v378, %v1285
      %v1287 = vpop.f32.mrb[0].mxu0
      %v1288 = vpop.f32.mrb[0].mxu0
      %v1289 = vadd.f32 %v378, %v1288
      %v1290 = vpop.f32.mrb[0].mxu0
      %1291 = vmatprep.mubr.bf16.mxu0 %v1033
      %1292 = vmatmul.mubr.bf16.gmra.mrb[0].mxu0 %v778
      %v1293 = vpop.f32.mrb[0].mxu0
      %v1294 = vadd.f32 %v378, %v1293
      %v1295 = vpop.f32.mrb[0].mxu0
      %v1296 = vpop.f32.mrb[0].mxu0
      %v1297 = vadd.f32 %v378, %v1296
      %v1298 = vpop.f32.mrb[0].mxu0
      %1299 = vmatprep.mubr.bf16.mxu0 %v1036
      %1300 = vmatmul.mubr.bf16.gmra.mrb[0].mxu0 %v780
      %v1301 = vpop.f32.mrb[0].mxu0
      %v1302 = vadd.f32 %v378, %v1301
      %v1303 = vpop.f32.mrb[0].mxu0
      %v1304 = vpop.f32.mrb[0].mxu0
      %v1305 = vadd.f32 %v378, %v1304
      %v1306 = vpop.f32.mrb[0].mxu0
      %1307 = vmatprep.mubr.bf16.mxu0 %v1039
      %1308 = vmatmul.mubr.bf16.gmra.mrb[0].mxu0 %v782
      %v1309 = vpop.f32.mrb[0].mxu0
      %v1310 = vadd.f32 %v378, %v1309
      %v1311 = vpop.f32.mrb[0].mxu0
      %v1312 = vpop.f32.mrb[0].mxu0
      %v1313 = vadd.f32 %v378, %v1312
      %v1314 = vpop.f32.mrb[0].mxu0
      %1315 = vmatprep.mubr.bf16.mxu0 %v1042
      %1316 = vmatmul.mubr.bf16.gmra.mrb[0].mxu0 %v784
      %v1317 = vpop.f32.mrb[0].mxu0
      %v1318 = vadd.f32 %v378, %v1317
      %v1319 = vpop.f32.mrb[0].mxu0
      %v1320 = vpop.f32.mrb[0].mxu0
      %v1321 = vadd.f32 %v378, %v1320
      %v1322 = vpop.f32.mrb[0].mxu0
      %1323 = vmatprep.mubr.bf16.mxu0 %v1045
      %1324 = vmatmul.mubr.bf16.gmra.mrb[0].mxu0 %v786
      %v1325 = vpop.f32.mrb[0].mxu0
      %v1326 = vadd.f32 %v378, %v1325
      %v1327 = vpop.f32.mrb[0].mxu0
      %v1328 = vpop.f32.mrb[0].mxu0
      %v1329 = vadd.f32 %v378, %v1328
      %v1330 = vpop.f32.mrb[0].mxu0
      %1331 = vmatprep.mubr.bf16.mxu0 %v1048
      %1332 = vmatmul.mubr.bf16.gmra.mrb[0].mxu0 %v788
      %v1333 = vpop.f32.mrb[0].mxu0
      %v1334 = vadd.f32 %v378, %v1333
      %v1335 = vpop.f32.mrb[0].mxu0
      %v1336 = vpop.f32.mrb[0].mxu0
      %v1337 = vadd.f32 %v378, %v1336
      %v1338 = vpop.f32.mrb[0].mxu0
      %1339 = vmatprep.mubr.bf16.mxu0 %v1051
      %1340 = vmatmul.mubr.bf16.gmra.mrb[0].mxu0 %v790
      %v1341 = vpop.f32.mrb[0].mxu0
      %v1342 = vadd.f32 %v378, %v1341
      %v1343 = vpop.f32.mrb[0].mxu0
      %v1344 = vpop.f32.mrb[0].mxu0
      %v1345 = vadd.f32 %v378, %v1344
      %v1346 = vpop.f32.mrb[0].mxu0
      %1347 = vmatprep.mubr.bf16.mxu0 %v1054
      %1348 = vmatmul.mubr.bf16.gmra.mrb[0].mxu0 %v792
      %v1349 = vpop.f32.mrb[0].mxu0
      %v1350 = vadd.f32 %v378, %v1349
      %v1351 = vpop.f32.mrb[0].mxu0
      %v1352 = vpop.f32.mrb[0].mxu0
      %v1353 = vadd.f32 %v378, %v1352
      %v1354 = vpop.f32.mrb[0].mxu0
      %1355 = vmatprep.mubr.bf16.mxu0 %v1057
      %1356 = vmatmul.mubr.bf16.gmra.mrb[0].mxu0 %v794
      %v1357 = vpop.f32.mrb[0].mxu0
      %v1358 = vadd.f32 %v378, %v1357
      %v1359 = vpop.f32.mrb[0].mxu0
      %v1360 = vpop.f32.mrb[0].mxu0
      %v1361 = vadd.f32 %v378, %v1360
      %v1362 = vpop.f32.mrb[0].mxu0
      %1363 = vmatprep.mubr.bf16.mxu0 %v1060
      %1364 = vmatmul.mubr.bf16.gmra.mrb[0].mxu0 %v796
      %v1365 = vpop.f32.mrb[0].mxu0
      %v1366 = vadd.f32 %v378, %v1365
      %v1367 = vpop.f32.mrb[0].mxu0
      %v1368 = vpop.f32.mrb[0].mxu0
      %v1369 = vadd.f32 %v378, %v1368
      %v1370 = vpop.f32.mrb[0].mxu0
      %1371 = vmatprep.mubr.bf16.mxu0 %v1063
      %1372 = vmatmul.mubr.bf16.gmra.mrb[0].mxu0 %v798
      %v1373 = vpop.f32.mrb[0].mxu0
      %v1374 = vadd.f32 %v378, %v1373
      %v1375 = vpop.f32.mrb[0].mxu0
      %v1376 = vpop.f32.mrb[0].mxu0
      %v1377 = vadd.f32 %v378, %v1376
      %v1378 = vpop.f32.mrb[0].mxu0
      %1379 = vmatprep.mubr.bf16.mxu0 %v1066
      %1380 = vmatmul.mubr.bf16.gmra.mrb[0].mxu0 %v800
      %v1381 = vpop.f32.mrb[0].mxu0
      %v1382 = vadd.f32 %v378, %v1381
      %v1383 = vpop.f32.mrb[0].mxu0
      %v1384 = vpop.f32.mrb[0].mxu0
      %v1385 = vadd.f32 %v378, %v1384
      %v1386 = vpop.f32.mrb[0].mxu0
      %1387 = vmatprep.mubr.bf16.mxu0 %v1069
      %1388 = vmatmul.mubr.bf16.gmra.mrb[0].mxu0 %v802
      %v1389 = vpop.f32.mrb[0].mxu0
      %v1390 = vadd.f32 %v378, %v1389
      %v1391 = vpop.f32.mrb[0].mxu0
      %v1392 = vpop.f32.mrb[0].mxu0
      %v1393 = vadd.f32 %v378, %v1392
      %v1394 = vpop.f32.mrb[0].mxu0
      %1395 = vmatprep.mubr.bf16.mxu0 %v1072
      %1396 = vmatmul.mubr.bf16.gmra.mrb[0].mxu0 %v804
      %v1397 = vpop.f32.mrb[0].mxu0
      %v1398 = vadd.f32 %v378, %v1397
      %v1399 = vpop.f32.mrb[0].mxu0
      %v1400 = vpop.f32.mrb[0].mxu0
      %v1401 = vadd.f32 %v378, %v1400
      %v1402 = vpop.f32.mrb[0].mxu0
      %1403 = vmatprep.mubr.bf16.mxu0 %v1075
      %1404 = vmatmul.mubr.bf16.gmra.mrb[0].mxu0 %v806
      %v1405 = vpop.f32.mrb[0].mxu0
      %v1406 = vadd.f32 %v378, %v1405
      %v1407 = vpop.f32.mrb[0].mxu0
      %v1408 = vpop.f32.mrb[0].mxu0
      %v1409 = vadd.f32 %v378, %v1408
      %v1410 = vpop.f32.mrb[0].mxu0
      %1411 = vmatprep.mubr.bf16.mxu0 %v1078
      %1412 = vmatmul.mubr.bf16.gmra.mrb[0].mxu0 %v808
      %v1413 = vpop.f32.mrb[0].mxu0
      %v1414 = vadd.f32 %v378, %v1413
      %v1415 = vpop.f32.mrb[0].mxu0
      %v1416 = vpop.f32.mrb[0].mxu0
      %v1417 = vadd.f32 %v378, %v1416
      %v1418 = vpop.f32.mrb[0].mxu0
      %1419 = vmatprep.mubr.bf16.mxu0 %v1081
      %1420 = vmatmul.mubr.bf16.gmra.mrb[0].mxu0 %v810
      %v1421 = vpop.f32.mrb[0].mxu0
      %v1422 = vadd.f32 %v378, %v1421
      %v1423 = vpop.f32.mrb[0].mxu0
      %v1424 = vpop.f32.mrb[0].mxu0
      %v1425 = vadd.f32 %v378, %v1424
      %v1426 = vpop.f32.mrb[0].mxu0
      %1427 = vmatprep.mubr.bf16.mxu0 %v1084
      %1428 = vmatmul.mubr.bf16.gmra.mrb[0].mxu0 %v812
      %v1429 = vpop.f32.mrb[0].mxu0
      %v1430 = vadd.f32 %v378, %v1429
      %v1431 = vpop.f32.mrb[0].mxu0
      %v1432 = vpop.f32.mrb[0].mxu0
      %v1433 = vadd.f32 %v378, %v1432
      %v1434 = vpop.f32.mrb[0].mxu0
      %1435 = vmatprep.mubr.bf16.mxu0 %v1087
      %1436 = vmatmul.mubr.bf16.gmra.mrb[0].mxu0 %v814
      %v1437 = vpop.f32.mrb[0].mxu0
      %v1438 = vadd.f32 %v378, %v1437
      %v1439 = vpop.f32.mrb[0].mxu0
      %v1440 = vpop.f32.mrb[0].mxu0
      %v1441 = vadd.f32 %v378, %v1440
      %v1442 = vpop.f32.mrb[0].mxu0
      %1443 = vmatprep.mubr.bf16.mxu0 %v1090
      %1444 = vmatmul.mubr.bf16.gmra.mrb[0].mxu0 %v816
      %v1445 = vpop.f32.mrb[0].mxu0
      %v1446 = vadd.f32 %v378, %v1445
      %v1447 = vpop.f32.mrb[0].mxu0
      %v1448 = vpop.f32.mrb[0].mxu0
      %v1449 = vadd.f32 %v378, %v1448
      %v1450 = vpop.f32.mrb[0].mxu0
      %1451 = vmatprep.mubr.bf16.mxu0 %v1093
      %1452 = vmatmul.mubr.bf16.gmra.mrb[0].mxu0 %v818
      %v1453 = vpop.f32.mrb[0].mxu0
      %v1454 = vadd.f32 %v378, %v1453
      %v1455 = vpop.f32.mrb[0].mxu0
      %v1456 = vpop.f32.mrb[0].mxu0
      %v1457 = vadd.f32 %v378, %v1456
      %v1458 = vpop.f32.mrb[0].mxu0
      %1459 = vmatprep.mubr.bf16.mxu0 %v1096
      %1460 = vmatmul.mubr.bf16.gmra.mrb[0].mxu0 %v820
      %v1461 = vpop.f32.mrb[0].mxu0
      %v1462 = vadd.f32 %v378, %v1461
      %v1463 = vpop.f32.mrb[0].mxu0
      %v1464 = vpop.f32.mrb[0].mxu0
      %v1465 = vadd.f32 %v378, %v1464
      %v1466 = vpop.f32.mrb[0].mxu0
      %1467 = vmatprep.mubr.bf16.mxu0 %v1099
      %1468 = vmatmul.mubr.bf16.gmra.mrb[0].mxu0 %v822
      %v1469 = vpop.f32.mrb[0].mxu0
      %v1470 = vadd.f32 %v378, %v1469
      %v1471 = vpop.f32.mrb[0].mxu0
      %v1472 = vpop.f32.mrb[0].mxu0
      %v1473 = vadd.f32 %v378, %v1472
      %v1474 = vpop.f32.mrb[0].mxu0
      %1475 = vmatprep.mubr.bf16.mxu0 %v1102
      %1476 = vmatmul.mubr.bf16.gmra.mrb[0].mxu0 %v824
      %v1477 = vpop.f32.mrb[0].mxu0
      %v1478 = vadd.f32 %v378, %v1477
      %v1479 = vpop.f32.mrb[0].mxu0
      %v1480 = vpop.f32.mrb[0].mxu0
      %v1481 = vadd.f32 %v378, %v1480
      %v1482 = vpop.f32.mrb[0].mxu0
      %1483 = vmatprep.mubr.bf16.mxu0 %v1105
      %1484 = vmatmul.mubr.bf16.gmra.mrb[0].mxu0 %v826
      %v1485 = vpop.f32.mrb[0].mxu0
      %v1486 = vadd.f32 %v378, %v1485
      %v1487 = vpop.f32.mrb[0].mxu0
      %v1488 = vpop.f32.mrb[0].mxu0
      %v1489 = vadd.f32 %v378, %v1488
      %v1490 = vpop.f32.mrb[0].mxu0
      %1491 = vmatprep.mubr.bf16.mxu0 %v1108
      %1492 = vmatmul.mubr.bf16.gmra.mrb[0].mxu0 %v828
      %v1493 = vpop.f32.mrb[0].mxu0
      %v1494 = vadd.f32 %v378, %v1493
      %v1495 = vpop.f32.mrb[0].mxu0
      %v1496 = vpop.f32.mrb[0].mxu0
      %v1497 = vadd.f32 %v378, %v1496
      %v1498 = vpop.f32.mrb[0].mxu0
      %1499 = vmatprep.mubr.bf16.mxu0 %v1111
      %1500 = vmatmul.mubr.bf16.gmra.mrb[0].mxu0 %v830
      %v1501 = vpop.f32.mrb[0].mxu0
      %v1502 = vadd.f32 %v378, %v1501
      %v1503 = vpop.f32.mrb[0].mxu0
      %v1504 = vpop.f32.mrb[0].mxu0
      %v1505 = vadd.f32 %v378, %v1504
      %v1506 = vpop.f32.mrb[0].mxu0
      %1507 = vmatprep.mubr.bf16.mxu0 %v1114
      %1508 = vmatmul.mubr.bf16.gmra.mrb[0].mxu0 %v832
      %v1509 = vpop.f32.mrb[0].mxu0
      %v1510 = vadd.f32 %v378, %v1509
      %v1511 = vpop.f32.mrb[0].mxu0
      %v1512 = vpop.f32.mrb[0].mxu0
      %v1513 = vadd.f32 %v378, %v1512
      %v1514 = vpop.f32.mrb[0].mxu0
      %1515 = vmatprep.mubr.bf16.mxu0 %v1117
      %1516 = vmatmul.mubr.bf16.gmra.mrb[0].mxu0 %v834
      %v1517 = vpop.f32.mrb[0].mxu0
      %v1518 = vadd.f32 %v378, %v1517
      %v1519 = vpop.f32.mrb[0].mxu0
      %v1520 = vpop.f32.mrb[0].mxu0
      %v1521 = vadd.f32 %v378, %v1520
      %v1522 = vpop.f32.mrb[0].mxu0
      %1523 = vmatprep.mubr.bf16.mxu0 %v1120
      %1524 = vmatmul.mubr.bf16.gmra.mrb[0].mxu0 %v836
      %v1525 = vpop.f32.mrb[0].mxu0
      %v1526 = vadd.f32 %v378, %v1525
      %v1527 = vpop.f32.mrb[0].mxu0
      %v1528 = vpop.f32.mrb[0].mxu0
      %v1529 = vadd.f32 %v378, %v1528
      %v1530 = vpop.f32.mrb[0].mxu0
      %1531 = vmatprep.mubr.bf16.mxu0 %v1123
      %1532 = vmatmul.mubr.bf16.gmra.mrb[0].mxu0 %v838
      %v1533 = vpop.f32.mrb[0].mxu0
      %v1534 = vadd.f32 %v378, %v1533
      %v1535 = vpop.f32.mrb[0].mxu0
      %v1536 = vpop.f32.mrb[0].mxu0
      %v1537 = vadd.f32 %v378, %v1536
      %v1538 = vpop.f32.mrb[0].mxu0
      %1539 = vmatprep.mubr.bf16.mxu0 %v1126
      %1540 = vmatmul.mubr.bf16.gmra.mrb[0].mxu0 %v840
      %v1541 = vpop.f32.mrb[0].mxu0
      %v1542 = vadd.f32 %v378, %v1541
      %v1543 = vpop.f32.mrb[0].mxu0
      %v1544 = vpop.f32.mrb[0].mxu0
      %v1545 = vadd.f32 %v378, %v1544
      %v1546 = vpop.f32.mrb[0].mxu0
      %1547 = vmatprep.mubr.bf16.mxu0 %v1129
      %1548 = vmatmul.mubr.bf16.gmra.mrb[0].mxu0 %v842
      %v1549 = vpop.f32.mrb[0].mxu0
      %v1550 = vadd.f32 %v378, %v1549
      %v1551 = vpop.f32.mrb[0].mxu0
      %v1552 = vpop.f32.mrb[0].mxu0
      %v1553 = vadd.f32 %v378, %v1552
      %v1554 = vpop.f32.mrb[0].mxu0
      %1555 = vmatprep.mubr.bf16.mxu0 %v1132
      %1556 = vmatmul.mubr.bf16.gmra.mrb[0].mxu0 %v844
      %v1557 = vpop.f32.mrb[0].mxu0
      %v1558 = vadd.f32 %v378, %v1557
      %v1559 = vpop.f32.mrb[0].mxu0
      %v1560 = vpop.f32.mrb[0].mxu0
      %v1561 = vadd.f32 %v378, %v1560
      %v1562 = vpop.f32.mrb[0].mxu0
      %1563 = vmatprep.mubr.bf16.mxu0 %v1135
      %1564 = vmatmul.mubr.bf16.gmra.mrb[0].mxu0 %v846
      %v1565 = vpop.f32.mrb[0].mxu0
      %v1566 = vadd.f32 %v378, %v1565
      %v1567 = vpop.f32.mrb[0].mxu0
      %v1568 = vpop.f32.mrb[0].mxu0
      %v1569 = vadd.f32 %v378, %v1568
      %v1570 = vpop.f32.mrb[0].mxu0
      %1571 = vmatprep.mubr.bf16.mxu0 %v1138
      %1572 = vmatmul.mubr.bf16.gmra.mrb[0].mxu0 %v848
      %v1573 = vpop.f32.mrb[0].mxu0
      %v1574 = vadd.f32 %v378, %v1573
      %v1575 = vpop.f32.mrb[0].mxu0
      %v1576 = vpop.f32.mrb[0].mxu0
      %v1577 = vadd.f32 %v378, %v1576
      %v1578 = vpop.f32.mrb[0].mxu0
      %1579 = vmatprep.mubr.bf16.mxu0 %v1141
      %1580 = vmatmul.mubr.bf16.gmra.mrb[0].mxu0 %v850
      %v1581 = vpop.f32.mrb[0].mxu0
      %v1582 = vadd.f32 %v378, %v1581
      %v1583 = vpop.f32.mrb[0].mxu0
      %v1584 = vpop.f32.mrb[0].mxu0
      %v1585 = vadd.f32 %v378, %v1584
      %v1586 = vpop.f32.mrb[0].mxu0
      %1587 = vmatprep.mubr.bf16.mxu0 %v1144
      %1588 = vmatmul.mubr.bf16.gmra.mrb[0].mxu0 %v852
      %v1589 = vpop.f32.mrb[0].mxu0
      %v1590 = vadd.f32 %v378, %v1589
      %v1591 = vpop.f32.mrb[0].mxu0
      %v1592 = vpop.f32.mrb[0].mxu0
      %v1593 = vadd.f32 %v378, %v1592
      %v1594 = vpop.f32.mrb[0].mxu0
      %1595 = vmatprep.mubr.bf16.mxu0 %v1147
      %1596 = vmatmul.mubr.bf16.gmra.mrb[0].mxu0 %v854
      %v1597 = vpop.f32.mrb[0].mxu0
      %v1598 = vadd.f32 %v378, %v1597
      %v1599 = vpop.f32.mrb[0].mxu0
      %v1600 = vpop.f32.mrb[0].mxu0
      %v1601 = vadd.f32 %v378, %v1600
      %v1602 = vpop.f32.mrb[0].mxu0
      %1603 = vmatprep.mubr.bf16.mxu0 %v1150
      %1604 = vmatmul.mubr.bf16.gmra.mrb[0].mxu0 %v856
      %v1605 = vpop.f32.mrb[0].mxu0
      %v1606 = vadd.f32 %v378, %v1605
      %v1607 = vpop.f32.mrb[0].mxu0
      %v1608 = vpop.f32.mrb[0].mxu0
      %v1609 = vadd.f32 %v378, %v1608
      %v1610 = vpop.f32.mrb[0].mxu0
      %1611 = vmatprep.mubr.bf16.mxu0 %v1153
      %1612 = vmatmul.mubr.bf16.gmra.mrb[0].mxu0 %v858
      %v1613 = vpop.f32.mrb[0].mxu0
      %v1614 = vadd.f32 %v378, %v1613
      %v1615 = vpop.f32.mrb[0].mxu0
      %v1616 = vpop.f32.mrb[0].mxu0
      %v1617 = vadd.f32 %v378, %v1616
      %v1618 = vpop.f32.mrb[0].mxu0
      %1619 = vmatprep.mubr.bf16.mxu0 %v1156
      %1620 = vmatmul.mubr.bf16.gmra.mrb[0].mxu0 %v860
      %v1621 = vpop.f32.mrb[0].mxu0
      %v1622 = vadd.f32 %v378, %v1621
      %v1623 = vpop.f32.mrb[0].mxu0
      %v1624 = vpop.f32.mrb[0].mxu0
      %v1625 = vadd.f32 %v378, %v1624
      %v1626 = vpop.f32.mrb[0].mxu0
      %1627 = vmatprep.mubr.bf16.mxu0 %v1159
      %1628 = vmatmul.mubr.bf16.gmra.mrb[0].mxu0 %v862
      %v1629 = vpop.f32.mrb[0].mxu0
      %v1630 = vadd.f32 %v378, %v1629
      %v1631 = vpop.f32.mrb[0].mxu0
      %v1632 = vpop.f32.mrb[0].mxu0
      %v1633 = vadd.f32 %v378, %v1632
      %v1634 = vpop.f32.mrb[0].mxu0
      %1635 = vmatprep.mubr.bf16.mxu0 %v1162
      %1636 = vmatmul.mubr.bf16.gmra.mrb[0].mxu0 %v864
      %v1637 = vpop.f32.mrb[0].mxu0
      %v1638 = vadd.f32 %v378, %v1637
      %v1639 = vpop.f32.mrb[0].mxu0
      %v1640 = vpop.f32.mrb[0].mxu0
      %v1641 = vadd.f32 %v378, %v1640
      %v1642 = vpop.f32.mrb[0].mxu0
      %1643 = vmatprep.mubr.bf16.mxu0 %v1165
      %1644 = vmatmul.mubr.bf16.gmra.mrb[0].mxu0 %v866
      %v1645 = vpop.f32.mrb[0].mxu0
      %v1646 = vadd.f32 %v378, %v1645
      %v1647 = vpop.f32.mrb[0].mxu0
      %v1648 = vpop.f32.mrb[0].mxu0
      %v1649 = vadd.f32 %v378, %v1648
      %v1650 = vpop.f32.mrb[0].mxu0
      %1651 = vmatprep.mubr.bf16.mxu0 %v1168
      %1652 = vmatmul.mubr.bf16.gmra.mrb[0].mxu0 %v868
      %v1653 = vpop.f32.mrb[0].mxu0
      %v1654 = vadd.f32 %v378, %v1653
      %v1655 = vpop.f32.mrb[0].mxu0
      %v1656 = vpop.f32.mrb[0].mxu0
      %v1657 = vadd.f32 %v378, %v1656
      %v1658 = vpop.f32.mrb[0].mxu0
      %1659 = vmatprep.mubr.bf16.mxu0 %v1171
      %1660 = vmatmul.mubr.bf16.gmra.mrb[0].mxu0 %v870
      %v1661 = vpop.f32.mrb[0].mxu0
      %v1662 = vadd.f32 %v378, %v1661
      %v1663 = vpop.f32.mrb[0].mxu0
      %v1664 = vpop.f32.mrb[0].mxu0
      %v1665 = vadd.f32 %v378, %v1664
      %v1666 = vpop.f32.mrb[0].mxu0
      %1667 = vmatprep.mubr.bf16.mxu0 %v1174
      %1668 = vmatmul.mubr.bf16.gmra.mrb[0].mxu0 %v872
      %v1669 = vpop.f32.mrb[0].mxu0
      %v1670 = vadd.f32 %v378, %v1669
      %v1671 = vpop.f32.mrb[0].mxu0
      %v1672 = vpop.f32.mrb[0].mxu0
      %v1673 = vadd.f32 %v378, %v1672
      %v1674 = vpop.f32.mrb[0].mxu0
      %1675 = vmatprep.mubr.bf16.mxu0 %v1177
      %1676 = vmatmul.mubr.bf16.gmra.mrb[0].mxu0 %v874
      %v1677 = vpop.f32.mrb[0].mxu0
      %v1678 = vadd.f32 %v378, %v1677
      %v1679 = vpop.f32.mrb[0].mxu0
      %v1680 = vpop.f32.mrb[0].mxu0
      %v1681 = vadd.f32 %v378, %v1680
      %v1682 = vpop.f32.mrb[0].mxu0
      %1683 = vmatprep.mubr.bf16.mxu0 %v1180
      %1684 = vmatmul.mubr.bf16.gmra.mrb[0].mxu0 %v876
      %v1685 = vpop.f32.mrb[0].mxu0
      %v1686 = vadd.f32 %v378, %v1685
      %v1687 = vpop.f32.mrb[0].mxu0
      %v1688 = vpop.f32.mrb[0].mxu0
      %v1689 = vadd.f32 %v378, %v1688
      %v1690 = vpop.f32.mrb[0].mxu0
      %1691 = vmatprep.mubr.bf16.mxu0 %v1183
      %1692 = vmatmul.mubr.bf16.gmra.mrb[0].mxu0 %v878
      %v1693 = vpop.f32.mrb[0].mxu0
      %v1694 = vadd.f32 %v378, %v1693
      %v1695 = vpop.f32.mrb[0].mxu0
      %v1696 = vpop.f32.mrb[0].mxu0
      %v1697 = vadd.f32 %v378, %v1696
      %v1698 = vpop.f32.mrb[0].mxu0
      %1699 = vmatprep.mubr.bf16.mxu0 %v1186
      %1700 = vmatmul.mubr.bf16.gmra.mrb[0].mxu0 %v880
      %v1701 = vpop.f32.mrb[0].mxu0
      %v1702 = vadd.f32 %v378, %v1701
      %v1703 = vpop.f32.mrb[0].mxu0
      %v1704 = vpop.f32.mrb[0].mxu0
      %v1705 = vadd.f32 %v378, %v1704
      %v1706 = vpop.f32.mrb[0].mxu0
      %1707 = vmatprep.mubr.bf16.mxu0 %v1189
      %1708 = vmatmul.mubr.bf16.gmra.mrb[0].mxu0 %v882
      %v1709 = vpop.f32.mrb[0].mxu0
      %v1710 = vadd.f32 %v378, %v1709
      %v1711 = vpop.f32.mrb[0].mxu0
      %v1712 = vpop.f32.mrb[0].mxu0
      %v1713 = vadd.f32 %v378, %v1712
      %v1714 = vpop.f32.mrb[0].mxu0
      %1715 = vmatprep.mubr.bf16.mxu0 %v1192
      %1716 = vmatmul.mubr.bf16.gmra.mrb[0].mxu0 %v884
      %v1717 = vpop.f32.mrb[0].mxu0
      %v1718 = vadd.f32 %v378, %v1717
      %v1719 = vpop.f32.mrb[0].mxu0
      %v1720 = vpop.f32.mrb[0].mxu0
      %v1721 = vadd.f32 %v378, %v1720
      %v1722 = vpop.f32.mrb[0].mxu0
      %1723 = vmatprep.mubr.bf16.mxu0 %v1195
      %1724 = vmatmul.mubr.bf16.gmra.mrb[0].mxu0 %v886
      %v1725 = vpop.f32.mrb[0].mxu0
      %v1726 = vadd.f32 %v378, %v1725
      %v1727 = vpop.f32.mrb[0].mxu0
      %v1728 = vpop.f32.mrb[0].mxu0
      %v1729 = vadd.f32 %v378, %v1728
      %v1730 = vpop.f32.mrb[0].mxu0
      %1731 = vmatprep.mubr.bf16.mxu0 %v1198
      %1732 = vmatmul.mubr.bf16.gmra.mrb[0].mxu0 %v888
      %v1733 = vpop.f32.mrb[0].mxu0
      %v1734 = vadd.f32 %v378, %v1733
      %v1735 = vpop.f32.mrb[0].mxu0
      %v1736 = vpop.f32.mrb[0].mxu0
      %v1737 = vadd.f32 %v378, %v1736
      %v1738 = vpop.f32.mrb[0].mxu0
      %1739 = vmatprep.mubr.bf16.mxu0 %v1201
      %1740 = vmatmul.mubr.bf16.gmra.mrb[0].mxu0 %v890
      %v1741 = vpop.f32.mrb[0].mxu0
      %v1742 = vadd.f32 %v378, %v1741
      %v1743 = vpop.f32.mrb[0].mxu0
      %v1744 = vpop.f32.mrb[0].mxu0
      %v1745 = vadd.f32 %v378, %v1744
      %v1746 = vpop.f32.mrb[0].mxu0
      %1747 = vdwg.mxu0
      %v1748 = vld [vmem:[%s218] sm:$0xf]
      %v1749 = vld [vmem:[%s218 + $0x4] sm:$0xf]
      %v1750 = vld [vmem:[%s218 + $0x8] sm:$0xf]
      %v1751 = vld [vmem:[%s218 + $0xc] sm:$0xf]
      %v1752 = vld [vmem:[%s218 + $0x10] sm:$0xf]
      %v1753 = vld [vmem:[%s218 + $0x14] sm:$0xf]
      %v1754 = vld [vmem:[%s218 + $0x18] sm:$0xf]
      %v1755 = vld [vmem:[%s218 + $0x1c] sm:$0xf]
      %v1756 = vld [vmem:[%s218 + $0x20] sm:$0xf]
      %v1757 = vld [vmem:[%s218 + $0x24] sm:$0xf]
      %v1758 = vld [vmem:[%s218 + $0x28] sm:$0xf]
      %v1759 = vld [vmem:[%s218 + $0x2c] sm:$0xf]
      %v1760 = vld [vmem:[%s218 + $0x30] sm:$0xf]
      %v1761 = vld [vmem:[%s218 + $0x34] sm:$0xf]
      %v1762 = vld [vmem:[%s218 + $0x38] sm:$0xf]
      %v1763 = vld [vmem:[%s218 + $0x3c] sm:$0xf]
      %v1764 = vld [vmem:[%s218 + $0x40] sm:$0xf]
      %v1765 = vld [vmem:[%s218 + $0x44] sm:$0xf]
      %v1766 = vld [vmem:[%s218 + $0x48] sm:$0xf]
      %v1767 = vld [vmem:[%s218 + $0x4c] sm:$0xf]
      %v1768 = vld [vmem:[%s218 + $0x50] sm:$0xf]
      %v1769 = vld [vmem:[%s218 + $0x54] sm:$0xf]
      %v1770 = vld [vmem:[%s218 + $0x58] sm:$0xf]
      %v1771 = vld [vmem:[%s218 + $0x5c] sm:$0xf]
      %v1772 = vld [vmem:[%s218 + $0x60] sm:$0xf]
      %v1773 = vld [vmem:[%s218 + $0x64] sm:$0xf]
      %v1774 = vld [vmem:[%s218 + $0x68] sm:$0xf]
      %v1775 = vld [vmem:[%s218 + $0x6c] sm:$0xf]
      %v1776 = vld [vmem:[%s218 + $0x70] sm:$0xf]
      %v1777 = vld [vmem:[%s218 + $0x74] sm:$0xf]
      %v1778 = vld [vmem:[%s218 + $0x78] sm:$0xf]
      %v1779 = vld [vmem:[%s218 + $0x7c] sm:$0xf]
      %v1780 = vld [vmem:[%s218 + $0x80] sm:$0xf]
      %v1781 = vld [vmem:[%s218 + $0x84] sm:$0xf]
      %v1782 = vld [vmem:[%s218 + $0x88] sm:$0xf]
      %v1783 = vld [vmem:[%s218 + $0x8c] sm:$0xf]
      %v1784 = vld [vmem:[%s218 + $0x90] sm:$0xf]
      %v1785 = vld [vmem:[%s218 + $0x94] sm:$0xf]
      %v1786 = vld [vmem:[%s218 + $0x98] sm:$0xf]
      %v1787 = vld [vmem:[%s218 + $0x9c] sm:$0xf]
      %v1788 = vld [vmem:[%s218 + $0xa0] sm:$0xf]
      %v1789 = vld [vmem:[%s218 + $0xa4] sm:$0xf]
      %v1790 = vld [vmem:[%s218 + $0xa8] sm:$0xf]
      %v1791 = vld [vmem:[%s218 + $0xac] sm:$0xf]
      %v1792 = vld [vmem:[%s218 + $0xb0] sm:$0xf]
      %v1793 = vld [vmem:[%s218 + $0xb4] sm:$0xf]
      %v1794 = vld [vmem:[%s218 + $0xb8] sm:$0xf]
      %v1795 = vld [vmem:[%s218 + $0xbc] sm:$0xf]
      %v1796 = vld [vmem:[%s218 + $0xc0] sm:$0xf]
      %v1797 = vld [vmem:[%s218 + $0xc4] sm:$0xf]
      %v1798 = vld [vmem:[%s218 + $0xc8] sm:$0xf]
      %v1799 = vld [vmem:[%s218 + $0xcc] sm:$0xf]
      %v1800 = vld [vmem:[%s218 + $0xd0] sm:$0xf]
      %v1801 = vld [vmem:[%s218 + $0xd4] sm:$0xf]
      %v1802 = vld [vmem:[%s218 + $0xd8] sm:$0xf]
      %v1803 = vld [vmem:[%s218 + $0xdc] sm:$0xf]
      %v1804 = vld [vmem:[%s218 + $0xe0] sm:$0xf]
      %v1805 = vld [vmem:[%s218 + $0xe4] sm:$0xf]
      %v1806 = vld [vmem:[%s218 + $0xe8] sm:$0xf]
      %v1807 = vld [vmem:[%s218 + $0xec] sm:$0xf]
      %v1808 = vld [vmem:[%s218 + $0xf0] sm:$0xf]
      %v1809 = vld [vmem:[%s218 + $0xf4] sm:$0xf]
      %v1810 = vld [vmem:[%s218 + $0xf8] sm:$0xf]
      %v1811 = vld [vmem:[%s218 + $0xfc] sm:$0xf]
      %v1812 = vld [vmem:[%s218 + $0x100] sm:$0xf]
      %v1813 = vld [vmem:[%s218 + $0x104] sm:$0xf]
      %v1814 = vld [vmem:[%s218 + $0x108] sm:$0xf]
      %v1815 = vld [vmem:[%s218 + $0x10c] sm:$0xf]
      %v1816 = vld [vmem:[%s218 + $0x110] sm:$0xf]
      %v1817 = vld [vmem:[%s218 + $0x114] sm:$0xf]
      %v1818 = vld [vmem:[%s218 + $0x118] sm:$0xf]
      %v1819 = vld [vmem:[%s218 + $0x11c] sm:$0xf]
      %v1820 = vld [vmem:[%s218 + $0x120] sm:$0xf]
      %v1821 = vld [vmem:[%s218 + $0x124] sm:$0xf]
      %v1822 = vld [vmem:[%s218 + $0x128] sm:$0xf]
      %v1823 = vld [vmem:[%s218 + $0x12c] sm:$0xf]
      %v1824 = vld [vmem:[%s218 + $0x130] sm:$0xf]
      %v1825 = vld [vmem:[%s218 + $0x134] sm:$0xf]
      %v1826 = vld [vmem:[%s218 + $0x138] sm:$0xf]
      %v1827 = vld [vmem:[%s218 + $0x13c] sm:$0xf]
      %v1828 = vld [vmem:[%s218 + $0x140] sm:$0xf]
      %v1829 = vld [vmem:[%s218 + $0x144] sm:$0xf]
      %v1830 = vld [vmem:[%s218 + $0x148] sm:$0xf]
      %v1831 = vld [vmem:[%s218 + $0x14c] sm:$0xf]
      %v1832 = vld [vmem:[%s218 + $0x150] sm:$0xf]
      %v1833 = vld [vmem:[%s218 + $0x154] sm:$0xf]
      %v1834 = vld [vmem:[%s218 + $0x158] sm:$0xf]
      %v1835 = vld [vmem:[%s218 + $0x15c] sm:$0xf]
      %v1836 = vld [vmem:[%s218 + $0x160] sm:$0xf]
      %v1837 = vld [vmem:[%s218 + $0x164] sm:$0xf]
      %v1838 = vld [vmem:[%s218 + $0x168] sm:$0xf]
      %v1839 = vld [vmem:[%s218 + $0x16c] sm:$0xf]
      %v1840 = vld [vmem:[%s218 + $0x170] sm:$0xf]
      %v1841 = vld [vmem:[%s218 + $0x174] sm:$0xf]
      %v1842 = vld [vmem:[%s218 + $0x178] sm:$0xf]
      %v1843 = vld [vmem:[%s218 + $0x17c] sm:$0xf]
      %v1844 = vld [vmem:[%s218 + $0x180] sm:$0xf]
      %v1845 = vld [vmem:[%s218 + $0x184] sm:$0xf]
      %v1846 = vld [vmem:[%s218 + $0x188] sm:$0xf]
      %v1847 = vld [vmem:[%s218 + $0x18c] sm:$0xf]
      %v1848 = vld [vmem:[%s218 + $0x190] sm:$0xf]
      %v1849 = vld [vmem:[%s218 + $0x194] sm:$0xf]
      %v1850 = vld [vmem:[%s218 + $0x198] sm:$0xf]
      %v1851 = vld [vmem:[%s218 + $0x19c] sm:$0xf]
      %v1852 = vld [vmem:[%s218 + $0x1a0] sm:$0xf]
      %v1853 = vld [vmem:[%s218 + $0x1a4] sm:$0xf]
      %v1854 = vld [vmem:[%s218 + $0x1a8] sm:$0xf]
      %v1855 = vld [vmem:[%s218 + $0x1ac] sm:$0xf]
      %v1856 = vld [vmem:[%s218 + $0x1b0] sm:$0xf]
      %v1857 = vld [vmem:[%s218 + $0x1b4] sm:$0xf]
      %v1858 = vld [vmem:[%s218 + $0x1b8] sm:$0xf]
      %v1859 = vld [vmem:[%s218 + $0x1bc] sm:$0xf]
      %v1860 = vld [vmem:[%s218 + $0x1c0] sm:$0xf]
      %v1861 = vld [vmem:[%s218 + $0x1c4] sm:$0xf]
      %v1862 = vld [vmem:[%s218 + $0x1c8] sm:$0xf]
      %v1863 = vld [vmem:[%s218 + $0x1cc] sm:$0xf]
      %v1864 = vld [vmem:[%s218 + $0x1d0] sm:$0xf]
      %v1865 = vld [vmem:[%s218 + $0x1d4] sm:$0xf]
      %v1866 = vld [vmem:[%s218 + $0x1d8] sm:$0xf]
      %v1867 = vld [vmem:[%s218 + $0x1dc] sm:$0xf]
      %v1868 = vld [vmem:[%s218 + $0x1e0] sm:$0xf]
      %v1869 = vld [vmem:[%s218 + $0x1e4] sm:$0xf]
      %v1870 = vld [vmem:[%s218 + $0x1e8] sm:$0xf]
      %v1871 = vld [vmem:[%s218 + $0x1ec] sm:$0xf]
      %v1872 = vld [vmem:[%s218 + $0x1f0] sm:$0xf]
      %v1873 = vld [vmem:[%s218 + $0x1f4] sm:$0xf]
      %v1874 = vld [vmem:[%s218 + $0x1f8] sm:$0xf]
      %v1875 = vld [vmem:[%s218 + $0x1fc] sm:$0xf]
      %v1876 = vunpack.c.l.bf16 %v1748
      %v1877 = vunpack.c.l.bf16 %v1749
      %v1878 = vunpack.c.l.bf16 %v1750
      %v1879 = vunpack.c.l.bf16 %v1751
      %v1880 = vunpack.c.l.bf16 %v1752
      %v1881 = vunpack.c.l.bf16 %v1753
      %v1882 = vunpack.c.l.bf16 %v1754
      %v1883 = vunpack.c.l.bf16 %v1755
      %v1884 = vunpack.c.l.bf16 %v1756
      %v1885 = vunpack.c.l.bf16 %v1757
      %v1886 = vunpack.c.l.bf16 %v1758
      %v1887 = vunpack.c.l.bf16 %v1759
      %v1888 = vunpack.c.l.bf16 %v1760
      %v1889 = vunpack.c.l.bf16 %v1761
      %v1890 = vunpack.c.l.bf16 %v1762
      %v1891 = vunpack.c.l.bf16 %v1763
      %v1892 = vunpack.c.l.bf16 %v1764
      %v1893 = vunpack.c.l.bf16 %v1765
      %v1894 = vunpack.c.l.bf16 %v1766
      %v1895 = vunpack.c.l.bf16 %v1767
      %v1896 = vunpack.c.l.bf16 %v1768
      %v1897 = vunpack.c.l.bf16 %v1769
      %v1898 = vunpack.c.l.bf16 %v1770
      %v1899 = vunpack.c.l.bf16 %v1771
      %v1900 = vunpack.c.l.bf16 %v1772
      %v1901 = vunpack.c.l.bf16 %v1773
      %v1902 = vunpack.c.l.bf16 %v1774
      %v1903 = vunpack.c.l.bf16 %v1775
      %v1904 = vunpack.c.l.bf16 %v1776
      %v1905 = vunpack.c.l.bf16 %v1777
      %v1906 = vunpack.c.l.bf16 %v1778
      %v1907 = vunpack.c.l.bf16 %v1779
      %v1908 = vunpack.c.l.bf16 %v1780
      %v1909 = vunpack.c.l.bf16 %v1781
      %v1910 = vunpack.c.l.bf16 %v1782
      %v1911 = vunpack.c.l.bf16 %v1783
      %v1912 = vunpack.c.l.bf16 %v1784
      %v1913 = vunpack.c.l.bf16 %v1785
      %v1914 = vunpack.c.l.bf16 %v1786
      %v1915 = vunpack.c.l.bf16 %v1787
      %v1916 = vunpack.c.l.bf16 %v1788
      %v1917 = vunpack.c.l.bf16 %v1789
      %v1918 = vunpack.c.l.bf16 %v1790
      %v1919 = vunpack.c.l.bf16 %v1791
      %v1920 = vunpack.c.l.bf16 %v1792
      %v1921 = vunpack.c.l.bf16 %v1793
      %v1922 = vunpack.c.l.bf16 %v1794
      %v1923 = vunpack.c.l.bf16 %v1795
      %v1924 = vunpack.c.l.bf16 %v1796
      %v1925 = vunpack.c.l.bf16 %v1797
      %v1926 = vunpack.c.l.bf16 %v1798
      %v1927 = vunpack.c.l.bf16 %v1799
      %v1928 = vunpack.c.l.bf16 %v1800
      %v1929 = vunpack.c.l.bf16 %v1801
      %v1930 = vunpack.c.l.bf16 %v1802
      %v1931 = vunpack.c.l.bf16 %v1803
      %v1932 = vunpack.c.l.bf16 %v1804
      %v1933 = vunpack.c.l.bf16 %v1805
      %v1934 = vunpack.c.l.bf16 %v1806
      %v1935 = vunpack.c.l.bf16 %v1807
      %v1936 = vunpack.c.l.bf16 %v1808
      %v1937 = vunpack.c.l.bf16 %v1809
      %v1938 = vunpack.c.l.bf16 %v1810
      %v1939 = vunpack.c.l.bf16 %v1811
      %v1940 = vunpack.c.l.bf16 %v1812
      %v1941 = vunpack.c.l.bf16 %v1813
      %v1942 = vunpack.c.l.bf16 %v1814
      %v1943 = vunpack.c.l.bf16 %v1815
      %v1944 = vunpack.c.l.bf16 %v1816
      %v1945 = vunpack.c.l.bf16 %v1817
      %v1946 = vunpack.c.l.bf16 %v1818
      %v1947 = vunpack.c.l.bf16 %v1819
      %v1948 = vunpack.c.l.bf16 %v1820
      %v1949 = vunpack.c.l.bf16 %v1821
      %v1950 = vunpack.c.l.bf16 %v1822
      %v1951 = vunpack.c.l.bf16 %v1823
      %v1952 = vunpack.c.l.bf16 %v1824
      %v1953 = vunpack.c.l.bf16 %v1825
      %v1954 = vunpack.c.l.bf16 %v1826
      %v1955 = vunpack.c.l.bf16 %v1827
      %v1956 = vunpack.c.l.bf16 %v1828
      %v1957 = vunpack.c.l.bf16 %v1829
      %v1958 = vunpack.c.l.bf16 %v1830
      %v1959 = vunpack.c.l.bf16 %v1831
      %v1960 = vunpack.c.l.bf16 %v1832
      %v1961 = vunpack.c.l.bf16 %v1833
      %v1962 = vunpack.c.l.bf16 %v1834
      %v1963 = vunpack.c.l.bf16 %v1835
      %v1964 = vunpack.c.l.bf16 %v1836
      %v1965 = vunpack.c.l.bf16 %v1837
      %v1966 = vunpack.c.l.bf16 %v1838
      %v1967 = vunpack.c.l.bf16 %v1839
      %v1968 = vunpack.c.l.bf16 %v1840
      %v1969 = vunpack.c.l.bf16 %v1841
      %v1970 = vunpack.c.l.bf16 %v1842
      %v1971 = vunpack.c.l.bf16 %v1843
      %v1972 = vunpack.c.l.bf16 %v1844
      %v1973 = vunpack.c.l.bf16 %v1845
      %v1974 = vunpack.c.l.bf16 %v1846
      %v1975 = vunpack.c.l.bf16 %v1847
      %v1976 = vunpack.c.l.bf16 %v1848
      %v1977 = vunpack.c.l.bf16 %v1849
      %v1978 = vunpack.c.l.bf16 %v1850
      %v1979 = vunpack.c.l.bf16 %v1851
      %v1980 = vunpack.c.l.bf16 %v1852
      %v1981 = vunpack.c.l.bf16 %v1853
      %v1982 = vunpack.c.l.bf16 %v1854
      %v1983 = vunpack.c.l.bf16 %v1855
      %v1984 = vunpack.c.l.bf16 %v1856
      %v1985 = vunpack.c.l.bf16 %v1857
      %v1986 = vunpack.c.l.bf16 %v1858
      %v1987 = vunpack.c.l.bf16 %v1859
      %v1988 = vunpack.c.l.bf16 %v1860
      %v1989 = vunpack.c.l.bf16 %v1861
      %v1990 = vunpack.c.l.bf16 %v1862
      %v1991 = vunpack.c.l.bf16 %v1863
      %v1992 = vunpack.c.l.bf16 %v1864
      %v1993 = vunpack.c.l.bf16 %v1865
      %v1994 = vunpack.c.l.bf16 %v1866
      %v1995 = vunpack.c.l.bf16 %v1867
      %v1996 = vunpack.c.l.bf16 %v1868
      %v1997 = vunpack.c.l.bf16 %v1869
      %v1998 = vunpack.c.l.bf16 %v1870
      %v1999 = vunpack.c.l.bf16 %v1871
      %v2000 = vunpack.c.l.bf16 %v1872
      %v2001 = vunpack.c.l.bf16 %v1873
      %v2002 = vunpack.c.l.bf16 %v1874
      %v2003 = vunpack.c.l.bf16 %v1875
      %v2004 = vadd.f32 %v1238, %v1876
      %v2005 = vadd.f32 %v1241, %v1877
      %v2006 = vadd.f32 %v1246, %v1878
      %v2007 = vadd.f32 %v1249, %v1879
      %v2008 = vadd.f32 %v1254, %v1880
      %v2009 = vadd.f32 %v1257, %v1881
      %v2010 = vadd.f32 %v1262, %v1882
      %v2011 = vadd.f32 %v1265, %v1883
      %v2012 = vadd.f32 %v1270, %v1884
      %v2013 = vadd.f32 %v1273, %v1885
      %v2014 = vadd.f32 %v1278, %v1886
      %v2015 = vadd.f32 %v1281, %v1887
      %v2016 = vadd.f32 %v1286, %v1888
      %v2017 = vadd.f32 %v1289, %v1889
      %v2018 = vadd.f32 %v1294, %v1890
      %v2019 = vadd.f32 %v1297, %v1891
      %v2020 = vadd.f32 %v1302, %v1892
      %v2021 = vadd.f32 %v1305, %v1893
      %v2022 = vadd.f32 %v1310, %v1894
      %v2023 = vadd.f32 %v1313, %v1895
      %v2024 = vadd.f32 %v1318, %v1896
      %v2025 = vadd.f32 %v1321, %v1897
      %v2026 = vadd.f32 %v1326, %v1898
      %v2027 = vadd.f32 %v1329, %v1899
      %v2028 = vadd.f32 %v1334, %v1900
      %v2029 = vadd.f32 %v1337, %v1901
      %v2030 = vadd.f32 %v1342, %v1902
      %v2031 = vadd.f32 %v1345, %v1903
      %v2032 = vadd.f32 %v1350, %v1904
      %v2033 = vadd.f32 %v1353, %v1905
      %v2034 = vadd.f32 %v1358, %v1906
      %v2035 = vadd.f32 %v1361, %v1907
      %v2036 = vadd.f32 %v1366, %v1908
      %v2037 = vadd.f32 %v1369, %v1909
      %v2038 = vadd.f32 %v1374, %v1910
      %v2039 = vadd.f32 %v1377, %v1911
      %v2040 = vadd.f32 %v1382, %v1912
      %v2041 = vadd.f32 %v1385, %v1913
      %v2042 = vadd.f32 %v1390, %v1914
      %v2043 = vadd.f32 %v1393, %v1915
      %v2044 = vadd.f32 %v1398, %v1916
      %v2045 = vadd.f32 %v1401, %v1917
      %v2046 = vadd.f32 %v1406, %v1918
      %v2047 = vadd.f32 %v1409, %v1919
      %v2048 = vadd.f32 %v1414, %v1920
      %v2049 = vadd.f32 %v1417, %v1921
      %v2050 = vadd.f32 %v1422, %v1922
      %v2051 = vadd.f32 %v1425, %v1923
      %v2052 = vadd.f32 %v1430, %v1924
      %v2053 = vadd.f32 %v1433, %v1925
      %v2054 = vadd.f32 %v1438, %v1926
      %v2055 = vadd.f32 %v1441, %v1927
      %v2056 = vadd.f32 %v1446, %v1928
      %v2057 = vadd.f32 %v1449, %v1929
      %v2058 = vadd.f32 %v1454, %v1930
      %v2059 = vadd.f32 %v1457, %v1931
      %v2060 = vadd.f32 %v1462, %v1932
      %v2061 = vadd.f32 %v1465, %v1933
      %v2062 = vadd.f32 %v1470, %v1934
      %v2063 = vadd.f32 %v1473, %v1935
      %v2064 = vadd.f32 %v1478, %v1936
      %v2065 = vadd.f32 %v1481, %v1937
      %v2066 = vadd.f32 %v1486, %v1938
      %v2067 = vadd.f32 %v1489, %v1939
      %v2068 = vadd.f32 %v1494, %v1940
      %v2069 = vadd.f32 %v1497, %v1941
      %v2070 = vadd.f32 %v1502, %v1942
      %v2071 = vadd.f32 %v1505, %v1943
      %v2072 = vadd.f32 %v1510, %v1944
      %v2073 = vadd.f32 %v1513, %v1945
      %v2074 = vadd.f32 %v1518, %v1946
      %v2075 = vadd.f32 %v1521, %v1947
      %v2076 = vadd.f32 %v1526, %v1948
      %v2077 = vadd.f32 %v1529, %v1949
      %v2078 = vadd.f32 %v1534, %v1950
      %v2079 = vadd.f32 %v1537, %v1951
      %v2080 = vadd.f32 %v1542, %v1952
      %v2081 = vadd.f32 %v1545, %v1953
      %v2082 = vadd.f32 %v1550, %v1954
      %v2083 = vadd.f32 %v1553, %v1955
      %v2084 = vadd.f32 %v1558, %v1956
      %v2085 = vadd.f32 %v1561, %v1957
      %v2086 = vadd.f32 %v1566, %v1958
      %v2087 = vadd.f32 %v1569, %v1959
      %v2088 = vadd.f32 %v1574, %v1960
      %v2089 = vadd.f32 %v1577, %v1961
      %v2090 = vadd.f32 %v1582, %v1962
      %v2091 = vadd.f32 %v1585, %v1963
      %v2092 = vadd.f32 %v1590, %v1964
      %v2093 = vadd.f32 %v1593, %v1965
      %v2094 = vadd.f32 %v1598, %v1966
      %v2095 = vadd.f32 %v1601, %v1967
      %v2096 = vadd.f32 %v1606, %v1968
      %v2097 = vadd.f32 %v1609, %v1969
      %v2098 = vadd.f32 %v1614, %v1970
      %v2099 = vadd.f32 %v1617, %v1971
      %v2100 = vadd.f32 %v1622, %v1972
      %v2101 = vadd.f32 %v1625, %v1973
      %v2102 = vadd.f32 %v1630, %v1974
      %v2103 = vadd.f32 %v1633, %v1975
      %v2104 = vadd.f32 %v1638, %v1976
      %v2105 = vadd.f32 %v1641, %v1977
      %v2106 = vadd.f32 %v1646, %v1978
      %v2107 = vadd.f32 %v1649, %v1979
      %v2108 = vadd.f32 %v1654, %v1980
      %v2109 = vadd.f32 %v1657, %v1981
      %v2110 = vadd.f32 %v1662, %v1982
      %v2111 = vadd.f32 %v1665, %v1983
      %v2112 = vadd.f32 %v1670, %v1984
      %v2113 = vadd.f32 %v1673, %v1985
      %v2114 = vadd.f32 %v1678, %v1986
      %v2115 = vadd.f32 %v1681, %v1987
      %v2116 = vadd.f32 %v1686, %v1988
      %v2117 = vadd.f32 %v1689, %v1989
      %v2118 = vadd.f32 %v1694, %v1990
      %v2119 = vadd.f32 %v1697, %v1991
      %v2120 = vadd.f32 %v1702, %v1992
      %v2121 = vadd.f32 %v1705, %v1993
      %v2122 = vadd.f32 %v1710, %v1994
      %v2123 = vadd.f32 %v1713, %v1995
      %v2124 = vadd.f32 %v1718, %v1996
      %v2125 = vadd.f32 %v1721, %v1997
      %v2126 = vadd.f32 %v1726, %v1998
      %v2127 = vadd.f32 %v1729, %v1999
      %v2128 = vadd.f32 %v1734, %v2000
      %v2129 = vadd.f32 %v1737, %v2001
      %v2130 = vadd.f32 %v1742, %v2002
      %v2131 = vadd.f32 %v1745, %v2003
      %v2132 = vmax.f32 %v2004, 0.0
      %v2133 = vmax.f32 %v2005, 0.0
      %v2134 = vmax.f32 %v2006, 0.0
      %v2135 = vmax.f32 %v2007, 0.0
      %v2136 = vmax.f32 %v2008, 0.0
      %v2137 = vmax.f32 %v2009, 0.0
      %v2138 = vmax.f32 %v2010, 0.0
      %v2139 = vmax.f32 %v2011, 0.0
      %v2140 = vmax.f32 %v2012, 0.0
      %v2141 = vmax.f32 %v2013, 0.0
      %v2142 = vmax.f32 %v2014, 0.0
      %v2143 = vmax.f32 %v2015, 0.0
      %v2144 = vmax.f32 %v2016, 0.0
      %v2145 = vmax.f32 %v2017, 0.0
      %v2146 = vmax.f32 %v2018, 0.0
      %v2147 = vmax.f32 %v2019, 0.0
      %v2148 = vmax.f32 %v2020, 0.0
      %v2149 = vmax.f32 %v2021, 0.0
      %v2150 = vmax.f32 %v2022, 0.0
      %v2151 = vmax.f32 %v2023, 0.0
      %v2152 = vmax.f32 %v2024, 0.0
      %v2153 = vmax.f32 %v2025, 0.0
      %v2154 = vmax.f32 %v2026, 0.0
      %v2155 = vmax.f32 %v2027, 0.0
      %v2156 = vmax.f32 %v2028, 0.0
      %v2157 = vmax.f32 %v2029, 0.0
      %v2158 = vmax.f32 %v2030, 0.0
      %v2159 = vmax.f32 %v2031, 0.0
      %v2160 = vmax.f32 %v2032, 0.0
      %v2161 = vmax.f32 %v2033, 0.0
      %v2162 = vmax.f32 %v2034, 0.0
      %v2163 = vmax.f32 %v2035, 0.0
      %v2164 = vmax.f32 %v2036, 0.0
      %v2165 = vmax.f32 %v2037, 0.0
      %v2166 = vmax.f32 %v2038, 0.0
      %v2167 = vmax.f32 %v2039, 0.0
      %v2168 = vmax.f32 %v2040, 0.0
      %v2169 = vmax.f32 %v2041, 0.0
      %v2170 = vmax.f32 %v2042, 0.0
      %v2171 = vmax.f32 %v2043, 0.0
      %v2172 = vmax.f32 %v2044, 0.0
      %v2173 = vmax.f32 %v2045, 0.0
      %v2174 = vmax.f32 %v2046, 0.0
      %v2175 = vmax.f32 %v2047, 0.0
      %v2176 = vmax.f32 %v2048, 0.0
      %v2177 = vmax.f32 %v2049, 0.0
      %v2178 = vmax.f32 %v2050, 0.0
      %v2179 = vmax.f32 %v2051, 0.0
      %v2180 = vmax.f32 %v2052, 0.0
      %v2181 = vmax.f32 %v2053, 0.0
      %v2182 = vmax.f32 %v2054, 0.0
      %v2183 = vmax.f32 %v2055, 0.0
      %v2184 = vmax.f32 %v2056, 0.0
      %v2185 = vmax.f32 %v2057, 0.0
      %v2186 = vmax.f32 %v2058, 0.0
      %v2187 = vmax.f32 %v2059, 0.0
      %v2188 = vmax.f32 %v2060, 0.0
      %v2189 = vmax.f32 %v2061, 0.0
      %v2190 = vmax.f32 %v2062, 0.0
      %v2191 = vmax.f32 %v2063, 0.0
      %v2192 = vmax.f32 %v2064, 0.0
      %v2193 = vmax.f32 %v2065, 0.0
      %v2194 = vmax.f32 %v2066, 0.0
      %v2195 = vmax.f32 %v2067, 0.0
      %v2196 = vmax.f32 %v2068, 0.0
      %v2197 = vmax.f32 %v2069, 0.0
      %v2198 = vmax.f32 %v2070, 0.0
      %v2199 = vmax.f32 %v2071, 0.0
      %v2200 = vmax.f32 %v2072, 0.0
      %v2201 = vmax.f32 %v2073, 0.0
      %v2202 = vmax.f32 %v2074, 0.0
      %v2203 = vmax.f32 %v2075, 0.0
      %v2204 = vmax.f32 %v2076, 0.0
      %v2205 = vmax.f32 %v2077, 0.0
      %v2206 = vmax.f32 %v2078, 0.0
      %v2207 = vmax.f32 %v2079, 0.0
      %v2208 = vmax.f32 %v2080, 0.0
      %v2209 = vmax.f32 %v2081, 0.0
      %v2210 = vmax.f32 %v2082, 0.0
      %v2211 = vmax.f32 %v2083, 0.0
      %v2212 = vmax.f32 %v2084, 0.0
      %v2213 = vmax.f32 %v2085, 0.0
      %v2214 = vmax.f32 %v2086, 0.0
      %v2215 = vmax.f32 %v2087, 0.0
      %v2216 = vmax.f32 %v2088, 0.0
      %v2217 = vmax.f32 %v2089, 0.0
      %v2218 = vmax.f32 %v2090, 0.0
      %v2219 = vmax.f32 %v2091, 0.0
      %v2220 = vmax.f32 %v2092, 0.0
      %v2221 = vmax.f32 %v2093, 0.0
      %v2222 = vmax.f32 %v2094, 0.0
      %v2223 = vmax.f32 %v2095, 0.0
      %v2224 = vmax.f32 %v2096, 0.0
      %v2225 = vmax.f32 %v2097, 0.0
      %v2226 = vmax.f32 %v2098, 0.0
      %v2227 = vmax.f32 %v2099, 0.0
      %v2228 = vmax.f32 %v2100, 0.0
      %v2229 = vmax.f32 %v2101, 0.0
      %v2230 = vmax.f32 %v2102, 0.0
      %v2231 = vmax.f32 %v2103, 0.0
      %v2232 = vmax.f32 %v2104, 0.0
      %v2233 = vmax.f32 %v2105, 0.0
      %v2234 = vmax.f32 %v2106, 0.0
      %v2235 = vmax.f32 %v2107, 0.0
      %v2236 = vmax.f32 %v2108, 0.0
      %v2237 = vmax.f32 %v2109, 0.0
      %v2238 = vmax.f32 %v2110, 0.0
      %v2239 = vmax.f32 %v2111, 0.0
      %v2240 = vmax.f32 %v2112, 0.0
      %v2241 = vmax.f32 %v2113, 0.0
      %v2242 = vmax.f32 %v2114, 0.0
      %v2243 = vmax.f32 %v2115, 0.0
      %v2244 = vmax.f32 %v2116, 0.0
      %v2245 = vmax.f32 %v2117, 0.0
      %v2246 = vmax.f32 %v2118, 0.0
      %v2247 = vmax.f32 %v2119, 0.0
      %v2248 = vmax.f32 %v2120, 0.0
      %v2249 = vmax.f32 %v2121, 0.0
      %v2250 = vmax.f32 %v2122, 0.0
      %v2251 = vmax.f32 %v2123, 0.0
      %v2252 = vmax.f32 %v2124, 0.0
      %v2253 = vmax.f32 %v2125, 0.0
      %v2254 = vmax.f32 %v2126, 0.0
      %v2255 = vmax.f32 %v2127, 0.0
      %v2256 = vmax.f32 %v2128, 0.0
      %v2257 = vmax.f32 %v2129, 0.0
      %v2258 = vmax.f32 %v2130, 0.0
      %v2259 = vmax.f32 %v2131, 0.0
      %v2260 = vpack.c.bf16 %v2133, %v2132
      %v2261 = vpack.c.bf16 %v2135, %v2134
      %v2262 = vpack.c.bf16 %v2137, %v2136
      %v2263 = vpack.c.bf16 %v2139, %v2138
      %v2264 = vpack.c.bf16 %v2141, %v2140
      %v2265 = vpack.c.bf16 %v2143, %v2142
      %v2266 = vpack.c.bf16 %v2145, %v2144
      %v2267 = vpack.c.bf16 %v2147, %v2146
      %v2268 = vpack.c.bf16 %v2149, %v2148
      %v2269 = vpack.c.bf16 %v2151, %v2150
      %v2270 = vpack.c.bf16 %v2153, %v2152
      %v2271 = vpack.c.bf16 %v2155, %v2154
      %v2272 = vpack.c.bf16 %v2157, %v2156
      %v2273 = vpack.c.bf16 %v2159, %v2158
      %v2274 = vpack.c.bf16 %v2161, %v2160
      %v2275 = vpack.c.bf16 %v2163, %v2162
      %v2276 = vpack.c.bf16 %v2165, %v2164
      %v2277 = vpack.c.bf16 %v2167, %v2166
      %v2278 = vpack.c.bf16 %v2169, %v2168
      %v2279 = vpack.c.bf16 %v2171, %v2170
      %v2280 = vpack.c.bf16 %v2173, %v2172
      %v2281 = vpack.c.bf16 %v2175, %v2174
      %v2282 = vpack.c.bf16 %v2177, %v2176
      %v2283 = vpack.c.bf16 %v2179, %v2178
      %v2284 = vpack.c.bf16 %v2181, %v2180
      %v2285 = vpack.c.bf16 %v2183, %v2182
      %v2286 = vpack.c.bf16 %v2185, %v2184
      %v2287 = vpack.c.bf16 %v2187, %v2186
      %v2288 = vpack.c.bf16 %v2189, %v2188
      %v2289 = vpack.c.bf16 %v2191, %v2190
      %v2290 = vpack.c.bf16 %v2193, %v2192
      %v2291 = vpack.c.bf16 %v2195, %v2194
      %v2292 = vpack.c.bf16 %v2197, %v2196
      %v2293 = vpack.c.bf16 %v2199, %v2198
      %v2294 = vpack.c.bf16 %v2201, %v2200
      %v2295 = vpack.c.bf16 %v2203, %v2202
      %v2296 = vpack.c.bf16 %v2205, %v2204
      %v2297 = vpack.c.bf16 %v2207, %v2206
      %v2298 = vpack.c.bf16 %v2209, %v2208
      %v2299 = vpack.c.bf16 %v2211, %v2210
      %v2300 = vpack.c.bf16 %v2213, %v2212
      %v2301 = vpack.c.bf16 %v2215, %v2214
      %v2302 = vpack.c.bf16 %v2217, %v2216
      %v2303 = vpack.c.bf16 %v2219, %v2218
      %v2304 = vpack.c.bf16 %v2221, %v2220
      %v2305 = vpack.c.bf16 %v2223, %v2222
      %v2306 = vpack.c.bf16 %v2225, %v2224
      %v2307 = vpack.c.bf16 %v2227, %v2226
      %v2308 = vpack.c.bf16 %v2229, %v2228
      %v2309 = vpack.c.bf16 %v2231, %v2230
      %v2310 = vpack.c.bf16 %v2233, %v2232
      %v2311 = vpack.c.bf16 %v2235, %v2234
      %v2312 = vpack.c.bf16 %v2237, %v2236
      %v2313 = vpack.c.bf16 %v2239, %v2238
      %v2314 = vpack.c.bf16 %v2241, %v2240
      %v2315 = vpack.c.bf16 %v2243, %v2242
      %v2316 = vpack.c.bf16 %v2245, %v2244
      %v2317 = vpack.c.bf16 %v2247, %v2246
      %v2318 = vpack.c.bf16 %v2249, %v2248
      %v2319 = vpack.c.bf16 %v2251, %v2250
      %v2320 = vpack.c.bf16 %v2253, %v2252
      %v2321 = vpack.c.bf16 %v2255, %v2254
      %v2322 = vpack.c.bf16 %v2257, %v2256
      %v2323 = vpack.c.bf16 %v2259, %v2258
      %v2388 = vunpack.c.l.b16 %v2260
      %v2389 = vunpack.c.h.b16 %v2260
      %v2390 = vunpack.c.l.b16 %v2261
      %v2391 = vunpack.c.h.b16 %v2261
      %v2392 = vunpack.c.l.b16 %v2262
      %v2393 = vunpack.c.h.b16 %v2262
      %v2394 = vunpack.c.l.b16 %v2263
      %v2395 = vunpack.c.h.b16 %v2263
      %v2396 = vunpack.c.l.b16 %v2264
      %v2397 = vunpack.c.h.b16 %v2264
      %v2398 = vunpack.c.l.b16 %v2265
      %v2399 = vunpack.c.h.b16 %v2265
      %v2400 = vunpack.c.l.b16 %v2266
      %v2401 = vunpack.c.h.b16 %v2266
      %v2402 = vunpack.c.l.b16 %v2267
      %v2403 = vunpack.c.h.b16 %v2267
      %v2404 = vunpack.c.l.b16 %v2268
      %v2405 = vunpack.c.h.b16 %v2268
      %v2406 = vunpack.c.l.b16 %v2269
      %v2407 = vunpack.c.h.b16 %v2269
      %v2408 = vunpack.c.l.b16 %v2270
      %v2409 = vunpack.c.h.b16 %v2270
      %v2410 = vunpack.c.l.b16 %v2271
      %v2411 = vunpack.c.h.b16 %v2271
      %v2412 = vunpack.c.l.b16 %v2272
      %v2413 = vunpack.c.h.b16 %v2272
      %v2414 = vunpack.c.l.b16 %v2273
      %v2415 = vunpack.c.h.b16 %v2273
      %v2416 = vunpack.c.l.b16 %v2274
      %v2417 = vunpack.c.h.b16 %v2274
      %v2418 = vunpack.c.l.b16 %v2275
      %v2419 = vunpack.c.h.b16 %v2275
      %v2420 = vunpack.c.l.b16 %v2276
      %v2421 = vunpack.c.h.b16 %v2276
      %v2422 = vunpack.c.l.b16 %v2277
      %v2423 = vunpack.c.h.b16 %v2277
      %v2424 = vunpack.c.l.b16 %v2278
      %v2425 = vunpack.c.h.b16 %v2278
      %v2426 = vunpack.c.l.b16 %v2279
      %v2427 = vunpack.c.h.b16 %v2279
      %v2428 = vunpack.c.l.b16 %v2280
      %v2429 = vunpack.c.h.b16 %v2280
      %v2430 = vunpack.c.l.b16 %v2281
      %v2431 = vunpack.c.h.b16 %v2281
      %v2432 = vunpack.c.l.b16 %v2282
      %v2433 = vunpack.c.h.b16 %v2282
      %v2434 = vunpack.c.l.b16 %v2283
      %v2435 = vunpack.c.h.b16 %v2283
      %v2436 = vunpack.c.l.b16 %v2284
      %v2437 = vunpack.c.h.b16 %v2284
      %v2438 = vunpack.c.l.b16 %v2285
      %v2439 = vunpack.c.h.b16 %v2285
      %v2440 = vunpack.c.l.b16 %v2286
      %v2441 = vunpack.c.h.b16 %v2286
      %v2442 = vunpack.c.l.b16 %v2287
      %v2443 = vunpack.c.h.b16 %v2287
      %v2444 = vunpack.c.l.b16 %v2288
      %v2445 = vunpack.c.h.b16 %v2288
      %v2446 = vunpack.c.l.b16 %v2289
      %v2447 = vunpack.c.h.b16 %v2289
      %v2448 = vunpack.c.l.b16 %v2290
      %v2449 = vunpack.c.h.b16 %v2290
      %v2450 = vunpack.c.l.b16 %v2291
      %v2451 = vunpack.c.h.b16 %v2291
      %v2452 = vunpack.c.l.b16 %v2292
      %v2453 = vunpack.c.h.b16 %v2292
      %v2454 = vunpack.c.l.b16 %v2293
      %v2455 = vunpack.c.h.b16 %v2293
      %v2456 = vunpack.c.l.b16 %v2294
      %v2457 = vunpack.c.h.b16 %v2294
      %v2458 = vunpack.c.l.b16 %v2295
      %v2459 = vunpack.c.h.b16 %v2295
      %v2460 = vunpack.c.l.b16 %v2296
      %v2461 = vunpack.c.h.b16 %v2296
      %v2462 = vunpack.c.l.b16 %v2297
      %v2463 = vunpack.c.h.b16 %v2297
      %v2464 = vunpack.c.l.b16 %v2298
      %v2465 = vunpack.c.h.b16 %v2298
      %v2466 = vunpack.c.l.b16 %v2299
      %v2467 = vunpack.c.h.b16 %v2299
      %v2468 = vunpack.c.l.b16 %v2300
      %v2469 = vunpack.c.h.b16 %v2300
      %v2470 = vunpack.c.l.b16 %v2301
      %v2471 = vunpack.c.h.b16 %v2301
      %v2472 = vunpack.c.l.b16 %v2302
      %v2473 = vunpack.c.h.b16 %v2302
      %v2474 = vunpack.c.l.b16 %v2303
      %v2475 = vunpack.c.h.b16 %v2303
      %v2476 = vunpack.c.l.b16 %v2304
      %v2477 = vunpack.c.h.b16 %v2304
      %v2478 = vunpack.c.l.b16 %v2305
      %v2479 = vunpack.c.h.b16 %v2305
      %v2480 = vunpack.c.l.b16 %v2306
      %v2481 = vunpack.c.h.b16 %v2306
      %v2482 = vunpack.c.l.b16 %v2307
      %v2483 = vunpack.c.h.b16 %v2307
      %v2484 = vunpack.c.l.b16 %v2308
      %v2485 = vunpack.c.h.b16 %v2308
      %v2486 = vunpack.c.l.b16 %v2309
      %v2487 = vunpack.c.h.b16 %v2309
      %v2488 = vunpack.c.l.b16 %v2310
      %v2489 = vunpack.c.h.b16 %v2310
      %v2490 = vunpack.c.l.b16 %v2311
      %v2491 = vunpack.c.h.b16 %v2311
      %v2492 = vunpack.c.l.b16 %v2312
      %v2493 = vunpack.c.h.b16 %v2312
      %v2494 = vunpack.c.l.b16 %v2313
      %v2495 = vunpack.c.h.b16 %v2313
      %v2496 = vunpack.c.l.b16 %v2314
      %v2497 = vunpack.c.h.b16 %v2314
      %v2498 = vunpack.c.l.b16 %v2315
      %v2499 = vunpack.c.h.b16 %v2315
      %v2500 = vunpack.c.l.b16 %v2316
      %v2501 = vunpack.c.h.b16 %v2316
      %v2502 = vunpack.c.l.b16 %v2317
      %v2503 = vunpack.c.h.b16 %v2317
      %v2504 = vunpack.c.l.b16 %v2318
      %v2505 = vunpack.c.h.b16 %v2318
      %v2506 = vunpack.c.l.b16 %v2319
      %v2507 = vunpack.c.h.b16 %v2319
      %v2508 = vunpack.c.l.b16 %v2320
      %v2509 = vunpack.c.h.b16 %v2320
      %v2510 = vunpack.c.l.b16 %v2321
      %v2511 = vunpack.c.h.b16 %v2321
      %v2512 = vunpack.c.l.b16 %v2322
      %v2513 = vunpack.c.h.b16 %v2322
      %v2514 = vunpack.c.l.b16 %v2323
      %v2515 = vunpack.c.h.b16 %v2323
      %v2516 = vpack.c.b16 %v2388, %v2388
      %v2517 = vpack.c.b16 %v2389, %v2389
      %v2518 = vpack.c.b16 %v2390, %v2390
      %v2519 = vpack.c.b16 %v2391, %v2391
      %v2520 = vpack.c.b16 %v2392, %v2392
      %v2521 = vpack.c.b16 %v2393, %v2393
      %v2522 = vpack.c.b16 %v2394, %v2394
      %v2523 = vpack.c.b16 %v2395, %v2395
      %v2524 = vpack.c.b16 %v2396, %v2396
      %v2525 = vpack.c.b16 %v2397, %v2397
      %v2526 = vpack.c.b16 %v2398, %v2398
      %v2527 = vpack.c.b16 %v2399, %v2399
      %v2528 = vpack.c.b16 %v2400, %v2400
      %v2529 = vpack.c.b16 %v2401, %v2401
      %v2530 = vpack.c.b16 %v2402, %v2402
      %v2531 = vpack.c.b16 %v2403, %v2403
      %v2532 = vpack.c.b16 %v2404, %v2404
      %v2533 = vpack.c.b16 %v2405, %v2405
      %v2534 = vpack.c.b16 %v2406, %v2406
      %v2535 = vpack.c.b16 %v2407, %v2407
      %v2536 = vpack.c.b16 %v2408, %v2408
      %v2537 = vpack.c.b16 %v2409, %v2409
      %v2538 = vpack.c.b16 %v2410, %v2410
      %v2539 = vpack.c.b16 %v2411, %v2411
      %v2540 = vpack.c.b16 %v2412, %v2412
      %v2541 = vpack.c.b16 %v2413, %v2413
      %v2542 = vpack.c.b16 %v2414, %v2414
      %v2543 = vpack.c.b16 %v2415, %v2415
      %v2544 = vpack.c.b16 %v2416, %v2416
      %v2545 = vpack.c.b16 %v2417, %v2417
      %v2546 = vpack.c.b16 %v2418, %v2418
      %v2547 = vpack.c.b16 %v2419, %v2419
      %v2548 = vpack.c.b16 %v2420, %v2420
      %v2549 = vpack.c.b16 %v2421, %v2421
      %v2550 = vpack.c.b16 %v2422, %v2422
      %v2551 = vpack.c.b16 %v2423, %v2423
      %v2552 = vpack.c.b16 %v2424, %v2424
      %v2553 = vpack.c.b16 %v2425, %v2425
      %v2554 = vpack.c.b16 %v2426, %v2426
      %v2555 = vpack.c.b16 %v2427, %v2427
      %v2556 = vpack.c.b16 %v2428, %v2428
      %v2557 = vpack.c.b16 %v2429, %v2429
      %v2558 = vpack.c.b16 %v2430, %v2430
      %v2559 = vpack.c.b16 %v2431, %v2431
      %v2560 = vpack.c.b16 %v2432, %v2432
      %v2561 = vpack.c.b16 %v2433, %v2433
      %v2562 = vpack.c.b16 %v2434, %v2434
      %v2563 = vpack.c.b16 %v2435, %v2435
      %v2564 = vpack.c.b16 %v2436, %v2436
      %v2565 = vpack.c.b16 %v2437, %v2437
      %v2566 = vpack.c.b16 %v2438, %v2438
      %v2567 = vpack.c.b16 %v2439, %v2439
      %v2568 = vpack.c.b16 %v2440, %v2440
      %v2569 = vpack.c.b16 %v2441, %v2441
      %v2570 = vpack.c.b16 %v2442, %v2442
      %v2571 = vpack.c.b16 %v2443, %v2443
      %v2572 = vpack.c.b16 %v2444, %v2444
      %v2573 = vpack.c.b16 %v2445, %v2445
      %v2574 = vpack.c.b16 %v2446, %v2446
      %v2575 = vpack.c.b16 %v2447, %v2447
      %v2576 = vpack.c.b16 %v2448, %v2448
      %v2577 = vpack.c.b16 %v2449, %v2449
      %v2578 = vpack.c.b16 %v2450, %v2450
      %v2579 = vpack.c.b16 %v2451, %v2451
      %v2580 = vpack.c.b16 %v2452, %v2452
      %v2581 = vpack.c.b16 %v2453, %v2453
      %v2582 = vpack.c.b16 %v2454, %v2454
      %v2583 = vpack.c.b16 %v2455, %v2455
      %v2584 = vpack.c.b16 %v2456, %v2456
      %v2585 = vpack.c.b16 %v2457, %v2457
      %v2586 = vpack.c.b16 %v2458, %v2458
      %v2587 = vpack.c.b16 %v2459, %v2459
      %v2588 = vpack.c.b16 %v2460, %v2460
      %v2589 = vpack.c.b16 %v2461, %v2461
      %v2590 = vpack.c.b16 %v2462, %v2462
      %v2591 = vpack.c.b16 %v2463, %v2463
      %v2592 = vpack.c.b16 %v2464, %v2464
      %v2593 = vpack.c.b16 %v2465, %v2465
      %v2594 = vpack.c.b16 %v2466, %v2466
      %v2595 = vpack.c.b16 %v2467, %v2467
      %v2596 = vpack.c.b16 %v2468, %v2468
      %v2597 = vpack.c.b16 %v2469, %v2469
      %v2598 = vpack.c.b16 %v2470, %v2470
      %v2599 = vpack.c.b16 %v2471, %v2471
      %v2600 = vpack.c.b16 %v2472, %v2472
      %v2601 = vpack.c.b16 %v2473, %v2473
      %v2602 = vpack.c.b16 %v2474, %v2474
      %v2603 = vpack.c.b16 %v2475, %v2475
      %v2604 = vpack.c.b16 %v2476, %v2476
      %v2605 = vpack.c.b16 %v2477, %v2477
      %v2606 = vpack.c.b16 %v2478, %v2478
      %v2607 = vpack.c.b16 %v2479, %v2479
      %v2608 = vpack.c.b16 %v2480, %v2480
      %v2609 = vpack.c.b16 %v2481, %v2481
      %v2610 = vpack.c.b16 %v2482, %v2482
      %v2611 = vpack.c.b16 %v2483, %v2483
      %v2612 = vpack.c.b16 %v2484, %v2484
      %v2613 = vpack.c.b16 %v2485, %v2485
      %v2614 = vpack.c.b16 %v2486, %v2486
      %v2615 = vpack.c.b16 %v2487, %v2487
      %v2616 = vpack.c.b16 %v2488, %v2488
      %v2617 = vpack.c.b16 %v2489, %v2489
      %v2618 = vpack.c.b16 %v2490, %v2490
      %v2619 = vpack.c.b16 %v2491, %v2491
      %v2620 = vpack.c.b16 %v2492, %v2492
      %v2621 = vpack.c.b16 %v2493, %v2493
      %v2622 = vpack.c.b16 %v2494, %v2494
      %v2623 = vpack.c.b16 %v2495, %v2495
      %v2624 = vpack.c.b16 %v2496, %v2496
      %v2625 = vpack.c.b16 %v2497, %v2497
      %v2626 = vpack.c.b16 %v2498, %v2498
      %v2627 = vpack.c.b16 %v2499, %v2499
      %v2628 = vpack.c.b16 %v2500, %v2500
      %v2629 = vpack.c.b16 %v2501, %v2501
      %v2630 = vpack.c.b16 %v2502, %v2502
      %v2631 = vpack.c.b16 %v2503, %v2503
      %v2632 = vpack.c.b16 %v2504, %v2504
      %v2633 = vpack.c.b16 %v2505, %v2505
      %v2634 = vpack.c.b16 %v2506, %v2506
      %v2635 = vpack.c.b16 %v2507, %v2507
      %v2636 = vpack.c.b16 %v2508, %v2508
      %v2637 = vpack.c.b16 %v2509, %v2509
      %v2638 = vpack.c.b16 %v2510, %v2510
      %v2639 = vpack.c.b16 %v2511, %v2511
      %v2640 = vpack.c.b16 %v2512, %v2512
      %v2641 = vpack.c.b16 %v2513, %v2513
      %v2642 = vpack.c.b16 %v2514, %v2514
      %v2643 = vpack.c.b16 %v2515, %v2515
      %vm2772 = vcmask 125952
      %2773 = vst.msk [vmem:[%s224] sm:$0xf] %vm2772, %v2516
      %2774 = vst.msk [vmem:[%s224 + $0x4] sm:$0xf] %vm2772, %v2517
      %2775 = vst.msk [vmem:[%s224 + $0x8] sm:$0xf] %vm2772, %v2518
      %2776 = vst.msk [vmem:[%s224 + $0xc] sm:$0xf] %vm2772, %v2519
      %2777 = vst.msk [vmem:[%s224 + $0x10] sm:$0xf] %vm2772, %v2520
      %2778 = vst.msk [vmem:[%s224 + $0x14] sm:$0xf] %vm2772, %v2521
      %2779 = vst.msk [vmem:[%s224 + $0x18] sm:$0xf] %vm2772, %v2522
      %2780 = vst.msk [vmem:[%s224 + $0x1c] sm:$0xf] %vm2772, %v2523
      %2781 = vst.msk [vmem:[%s224 + $0x20] sm:$0xf] %vm2772, %v2524
      %2782 = vst.msk [vmem:[%s224 + $0x24] sm:$0xf] %vm2772, %v2525
      %2783 = vst.msk [vmem:[%s224 + $0x28] sm:$0xf] %vm2772, %v2526
      %2784 = vst.msk [vmem:[%s224 + $0x2c] sm:$0xf] %vm2772, %v2527
      %2785 = vst.msk [vmem:[%s224 + $0x30] sm:$0xf] %vm2772, %v2528
      %2786 = vst.msk [vmem:[%s224 + $0x34] sm:$0xf] %vm2772, %v2529
      %2787 = vst.msk [vmem:[%s224 + $0x38] sm:$0xf] %vm2772, %v2530
      %2788 = vst.msk [vmem:[%s224 + $0x3c] sm:$0xf] %vm2772, %v2531
      %2789 = vst.msk [vmem:[%s224 + $0x40] sm:$0xf] %vm2772, %v2532
      %2790 = vst.msk [vmem:[%s224 + $0x44] sm:$0xf] %vm2772, %v2533
      %2791 = vst.msk [vmem:[%s224 + $0x48] sm:$0xf] %vm2772, %v2534
      %2792 = vst.msk [vmem:[%s224 + $0x4c] sm:$0xf] %vm2772, %v2535
      %2793 = vst.msk [vmem:[%s224 + $0x50] sm:$0xf] %vm2772, %v2536
      %2794 = vst.msk [vmem:[%s224 + $0x54] sm:$0xf] %vm2772, %v2537
      %2795 = vst.msk [vmem:[%s224 + $0x58] sm:$0xf] %vm2772, %v2538
      %2796 = vst.msk [vmem:[%s224 + $0x5c] sm:$0xf] %vm2772, %v2539
      %2797 = vst.msk [vmem:[%s224 + $0x60] sm:$0xf] %vm2772, %v2540
      %2798 = vst.msk [vmem:[%s224 + $0x64] sm:$0xf] %vm2772, %v2541
      %2799 = vst.msk [vmem:[%s224 + $0x68] sm:$0xf] %vm2772, %v2542
      %2800 = vst.msk [vmem:[%s224 + $0x6c] sm:$0xf] %vm2772, %v2543
      %2801 = vst.msk [vmem:[%s224 + $0x70] sm:$0xf] %vm2772, %v2544
      %2802 = vst.msk [vmem:[%s224 + $0x74] sm:$0xf] %vm2772, %v2545
      %2803 = vst.msk [vmem:[%s224 + $0x78] sm:$0xf] %vm2772, %v2546
      %2804 = vst.msk [vmem:[%s224 + $0x7c] sm:$0xf] %vm2772, %v2547
      %2805 = vst.msk [vmem:[%s224 + $0x80] sm:$0xf] %vm2772, %v2548
      %2806 = vst.msk [vmem:[%s224 + $0x84] sm:$0xf] %vm2772, %v2549
      %2807 = vst.msk [vmem:[%s224 + $0x88] sm:$0xf] %vm2772, %v2550
      %2808 = vst.msk [vmem:[%s224 + $0x8c] sm:$0xf] %vm2772, %v2551
      %2809 = vst.msk [vmem:[%s224 + $0x90] sm:$0xf] %vm2772, %v2552
      %2810 = vst.msk [vmem:[%s224 + $0x94] sm:$0xf] %vm2772, %v2553
      %2811 = vst.msk [vmem:[%s224 + $0x98] sm:$0xf] %vm2772, %v2554
      %2812 = vst.msk [vmem:[%s224 + $0x9c] sm:$0xf] %vm2772, %v2555
      %2813 = vst.msk [vmem:[%s224 + $0xa0] sm:$0xf] %vm2772, %v2556
      %2814 = vst.msk [vmem:[%s224 + $0xa4] sm:$0xf] %vm2772, %v2557
      %2815 = vst.msk [vmem:[%s224 + $0xa8] sm:$0xf] %vm2772, %v2558
      %2816 = vst.msk [vmem:[%s224 + $0xac] sm:$0xf] %vm2772, %v2559
      %2817 = vst.msk [vmem:[%s224 + $0xb0] sm:$0xf] %vm2772, %v2560
      %2818 = vst.msk [vmem:[%s224 + $0xb4] sm:$0xf] %vm2772, %v2561
      %2819 = vst.msk [vmem:[%s224 + $0xb8] sm:$0xf] %vm2772, %v2562
      %2820 = vst.msk [vmem:[%s224 + $0xbc] sm:$0xf] %vm2772, %v2563
      %2821 = vst.msk [vmem:[%s224 + $0xc0] sm:$0xf] %vm2772, %v2564
      %2822 = vst.msk [vmem:[%s224 + $0xc4] sm:$0xf] %vm2772, %v2565
      %2823 = vst.msk [vmem:[%s224 + $0xc8] sm:$0xf] %vm2772, %v2566
      %2824 = vst.msk [vmem:[%s224 + $0xcc] sm:$0xf] %vm2772, %v2567
      %2825 = vst.msk [vmem:[%s224 + $0xd0] sm:$0xf] %vm2772, %v2568
      %2826 = vst.msk [vmem:[%s224 + $0xd4] sm:$0xf] %vm2772, %v2569
      %2827 = vst.msk [vmem:[%s224 + $0xd8] sm:$0xf] %vm2772, %v2570
      %2828 = vst.msk [vmem:[%s224 + $0xdc] sm:$0xf] %vm2772, %v2571
      %2829 = vst.msk [vmem:[%s224 + $0xe0] sm:$0xf] %vm2772, %v2572
      %2830 = vst.msk [vmem:[%s224 + $0xe4] sm:$0xf] %vm2772, %v2573
      %2831 = vst.msk [vmem:[%s224 + $0xe8] sm:$0xf] %vm2772, %v2574
      %2832 = vst.msk [vmem:[%s224 + $0xec] sm:$0xf] %vm2772, %v2575
      %2833 = vst.msk [vmem:[%s224 + $0xf0] sm:$0xf] %vm2772, %v2576
      %2834 = vst.msk [vmem:[%s224 + $0xf4] sm:$0xf] %vm2772, %v2577
      %2835 = vst.msk [vmem:[%s224 + $0xf8] sm:$0xf] %vm2772, %v2578
      %2836 = vst.msk [vmem:[%s224 + $0xfc] sm:$0xf] %vm2772, %v2579
      %2837 = vst.msk [vmem:[%s224 + $0x100] sm:$0xf] %vm2772, %v2580
      %2838 = vst.msk [vmem:[%s224 + $0x104] sm:$0xf] %vm2772, %v2581
      %2839 = vst.msk [vmem:[%s224 + $0x108] sm:$0xf] %vm2772, %v2582
      %2840 = vst.msk [vmem:[%s224 + $0x10c] sm:$0xf] %vm2772, %v2583
      %2841 = vst.msk [vmem:[%s224 + $0x110] sm:$0xf] %vm2772, %v2584
      %2842 = vst.msk [vmem:[%s224 + $0x114] sm:$0xf] %vm2772, %v2585
      %2843 = vst.msk [vmem:[%s224 + $0x118] sm:$0xf] %vm2772, %v2586
      %2844 = vst.msk [vmem:[%s224 + $0x11c] sm:$0xf] %vm2772, %v2587
      %2845 = vst.msk [vmem:[%s224 + $0x120] sm:$0xf] %vm2772, %v2588
      %2846 = vst.msk [vmem:[%s224 + $0x124] sm:$0xf] %vm2772, %v2589
      %2847 = vst.msk [vmem:[%s224 + $0x128] sm:$0xf] %vm2772, %v2590
      %2848 = vst.msk [vmem:[%s224 + $0x12c] sm:$0xf] %vm2772, %v2591
      %2849 = vst.msk [vmem:[%s224 + $0x130] sm:$0xf] %vm2772, %v2592
      %2850 = vst.msk [vmem:[%s224 + $0x134] sm:$0xf] %vm2772, %v2593
      %2851 = vst.msk [vmem:[%s224 + $0x138] sm:$0xf] %vm2772, %v2594
      %2852 = vst.msk [vmem:[%s224 + $0x13c] sm:$0xf] %vm2772, %v2595
      %2853 = vst.msk [vmem:[%s224 + $0x140] sm:$0xf] %vm2772, %v2596
      %2854 = vst.msk [vmem:[%s224 + $0x144] sm:$0xf] %vm2772, %v2597
      %2855 = vst.msk [vmem:[%s224 + $0x148] sm:$0xf] %vm2772, %v2598
      %2856 = vst.msk [vmem:[%s224 + $0x14c] sm:$0xf] %vm2772, %v2599
      %2857 = vst.msk [vmem:[%s224 + $0x150] sm:$0xf] %vm2772, %v2600
      %2858 = vst.msk [vmem:[%s224 + $0x154] sm:$0xf] %vm2772, %v2601
      %2859 = vst.msk [vmem:[%s224 + $0x158] sm:$0xf] %vm2772, %v2602
      %2860 = vst.msk [vmem:[%s224 + $0x15c] sm:$0xf] %vm2772, %v2603
      %2861 = vst.msk [vmem:[%s224 + $0x160] sm:$0xf] %vm2772, %v2604
      %2862 = vst.msk [vmem:[%s224 + $0x164] sm:$0xf] %vm2772, %v2605
      %2863 = vst.msk [vmem:[%s224 + $0x168] sm:$0xf] %vm2772, %v2606
      %2864 = vst.msk [vmem:[%s224 + $0x16c] sm:$0xf] %vm2772, %v2607
      %2865 = vst.msk [vmem:[%s224 + $0x170] sm:$0xf] %vm2772, %v2608
      %2866 = vst.msk [vmem:[%s224 + $0x174] sm:$0xf] %vm2772, %v2609
      %2867 = vst.msk [vmem:[%s224 + $0x178] sm:$0xf] %vm2772, %v2610
      %2868 = vst.msk [vmem:[%s224 + $0x17c] sm:$0xf] %vm2772, %v2611
      %2869 = vst.msk [vmem:[%s224 + $0x180] sm:$0xf] %vm2772, %v2612
      %2870 = vst.msk [vmem:[%s224 + $0x184] sm:$0xf] %vm2772, %v2613
      %2871 = vst.msk [vmem:[%s224 + $0x188] sm:$0xf] %vm2772, %v2614
      %2872 = vst.msk [vmem:[%s224 + $0x18c] sm:$0xf] %vm2772, %v2615
      %2873 = vst.msk [vmem:[%s224 + $0x190] sm:$0xf] %vm2772, %v2616
      %2874 = vst.msk [vmem:[%s224 + $0x194] sm:$0xf] %vm2772, %v2617
      %2875 = vst.msk [vmem:[%s224 + $0x198] sm:$0xf] %vm2772, %v2618
      %2876 = vst.msk [vmem:[%s224 + $0x19c] sm:$0xf] %vm2772, %v2619
      %2877 = vst.msk [vmem:[%s224 + $0x1a0] sm:$0xf] %vm2772, %v2620
      %2878 = vst.msk [vmem:[%s224 + $0x1a4] sm:$0xf] %vm2772, %v2621
      %2879 = vst.msk [vmem:[%s224 + $0x1a8] sm:$0xf] %vm2772, %v2622
      %2880 = vst.msk [vmem:[%s224 + $0x1ac] sm:$0xf] %vm2772, %v2623
      %2881 = vst.msk [vmem:[%s224 + $0x1b0] sm:$0xf] %vm2772, %v2624
      %2882 = vst.msk [vmem:[%s224 + $0x1b4] sm:$0xf] %vm2772, %v2625
      %2883 = vst.msk [vmem:[%s224 + $0x1b8] sm:$0xf] %vm2772, %v2626
      %2884 = vst.msk [vmem:[%s224 + $0x1bc] sm:$0xf] %vm2772, %v2627
      %2885 = vst.msk [vmem:[%s224 + $0x1c0] sm:$0xf] %vm2772, %v2628
      %2886 = vst.msk [vmem:[%s224 + $0x1c4] sm:$0xf] %vm2772, %v2629
      %2887 = vst.msk [vmem:[%s224 + $0x1c8] sm:$0xf] %vm2772, %v2630
      %2888 = vst.msk [vmem:[%s224 + $0x1cc] sm:$0xf] %vm2772, %v2631
      %2889 = vst.msk [vmem:[%s224 + $0x1d0] sm:$0xf] %vm2772, %v2632
      %2890 = vst.msk [vmem:[%s224 + $0x1d4] sm:$0xf] %vm2772, %v2633
      %2891 = vst.msk [vmem:[%s224 + $0x1d8] sm:$0xf] %vm2772, %v2634
      %2892 = vst.msk [vmem:[%s224 + $0x1dc] sm:$0xf] %vm2772, %v2635
      %2893 = vst.msk [vmem:[%s224 + $0x1e0] sm:$0xf] %vm2772, %v2636
      %2894 = vst.msk [vmem:[%s224 + $0x1e4] sm:$0xf] %vm2772, %v2637
      %2895 = vst.msk [vmem:[%s224 + $0x1e8] sm:$0xf] %vm2772, %v2638
      %2896 = vst.msk [vmem:[%s224 + $0x1ec] sm:$0xf] %vm2772, %v2639
      %2897 = vst.msk [vmem:[%s224 + $0x1f0] sm:$0xf] %vm2772, %v2640
      %2898 = vst.msk [vmem:[%s224 + $0x1f4] sm:$0xf] %vm2772, %v2641
      %2899 = vst.msk [vmem:[%s224 + $0x1f8] sm:$0xf] %vm2772, %v2642
      %2900 = vst.msk [vmem:[%s224 + $0x1fc] sm:$0xf] %vm2772, %v2643
      %s2901 = smul.u32 128, %s15
      %p2902 = scmp.lt.s32.totalorder %s2901, 255
      %s2903 = scalar_select %p2902, %s2901, 255
      %s2904 = smul.addr %s2903, 4
      %s2905 = scalar_lea.vmem %s4, %s2904
      // Predicated region
      $region37: #{forward.12} parent=35 // pred_check
        %p2906 = pneg %p127
      $region38: #{forward.12} parent=35 // pred_check_branch
        %2908 = sbr.rel (%p2906) target = $region40
      $region39: #{forward.12} parent=35 // pred_region
        %s2909 = smul.u32 128, %s15
      $region40: #{forward.12} parent=35 // pred_fallthru
        _
    $region36: #{forward.12} parent=5 // pred_fallthru
      _
    %p2910 = scmp.le.s32.totalorder 2, %s10
    // Predicated region
    $region41: #{forward.12} parent=5 // pred_check
      %p2911 = pneg %p2910
    $region42: #{forward.12} parent=5 // pred_check_branch
      %2913 = sbr.rel (%p2911) target = $region44
    $region43: #{forward.12} parent=5 // pred_region
      %s2914 = ssub.s32 %s10, 2
      // Predicated region
      $region45: #{forward.12} parent=43 // pred_check
        %p2915 = pneg %p133
      $region46: #{forward.12} parent=43 // pred_check_branch
        %2917 = sbr.rel (%p2915) target = $region48
      $region47: #{forward.12} parent=43 // pred_region
        %s2918 = smul.u32 128, %s16
        %p2919 = scmp.lt.s32.totalorder %s2918, 255
        %s2920 = scalar_select %p2919, %s2918, 255
        %s2921 = smul.addr %s2920, 4
        %s2922 = scalar_lea.vmem %s4, %s2921
      $region48: #{forward.12} parent=43 // pred_fallthru
        _
    $region44: #{forward.12} parent=5 // pred_fallthru
      _
  $region6: #{forward.12} parent=0 // loop_footer
    %s14 = sadd.s32 1, %s10
  $region7: #{forward.12} parent=0 // loop_footer_branch
    %9 = sbr.rel target = $region3
  $region8: #{forward.12} parent=0 // loop_exit
    _

// kernel: forward.13
$region0: #{forward.13}
  #allocation0 [shape = 'u32[]', space=smem, size = 0x4, offset = 0x4, fixed_abs, tag = 'smem constant byte address 0x4 - core index']
  #allocation1 [shape = 'u32[144,128]{1,0:T(1,128)}', space=vmem, size = 0x12000, scoped, tag = 'internal scratch']
  %s0 = inlined_call_operand.vmem [shape: bf16[512,144], index: 0, kind: input, shape index: {}]
  %s1 = inlined_call_operand.vmem [shape: bf16[144,32], index: 1, kind: input, shape index: {}]
  %s2 = inlined_call_operand.vmem [shape: f32[1,32], index: 2, kind: input, shape index: {}]
  %s3 = inlined_call_operand.vmem [shape: bf16[512,32], index: 3, kind: output, shape index: {}]
  %s4 = sld [smem:[#allocation0]]
  $region45: #{forward.13} parent=0
    _
  %s6 = ssub.s32 1, %s4
  %s7 = scalar_select 0, %s6, %s4
  loop: start=0, step=1, limit=4
  $region2: #{forward.13} parent=0 // loop_pre_header
    _
  $region3: #{forward.13} parent=0 // loop_header
    %s9 = sphi 0, %s13
    %p10 = scmp.ge.s32.totalorder %s9, 4
    %s19 = sphi 0, %s21
    %s22 = sphi 0, %s19
    %s23 = sphi 0, %s22
    %s39 = sphi 0, %s23
    %s43 = sphi 0, %s43
    %s45 = sphi 0, %s43
    %s46 = sphi 0, %s45
    %s60 = sphi 0, %s46
    %s64 = sphi 0, %s64
    %s66 = sphi 0, %s64
    %s67 = sphi 0, %s66
    %s81 = sphi 0, %s67
    %s87 = sphi 0, %s89
    %s90 = sphi 0, %s87
    %s91 = sphi 0, %s90
    %s107 = sphi 0, %s91
  $region4: #{forward.13} parent=0 // loop_header_branch
    %12 = sbr.rel (%p10) target = $region8
  $region5: #{forward.13} parent=0 // loop_body
    %s14 = ssub.s32 %s9, 1
    %s15 = ssub.s32 %s9, 2
    %s16 = sadd.s32 %s9, 1
    %s17 = ssub.s32 %s9, %s16
    %p18 = scmp.eq.s32.totalorder %s17, 0
    %s20 = sadd.s32 %s19, 1
    %s21 = scalar_select %p18, %s19, %s20
    %p24 = pneg %p18
    %p25 = scmp.eq.s32.totalorder %s9, 1
    %p26 = por %p24, %p25
    %p27 = scmp.ne.s32.totalorder %s19, %s22
    %p28 = scmp.eq.s32.totalorder %s9, 0
    %p29 = por %p27, %p28
    %p30 = scmp.ne.s32.totalorder %s19, %s22
    %p31 = scmp.eq.s32.totalorder %s14, 1
    %p32 = por %p30, %p31
    %p33 = scmp.ne.s32.totalorder %s22, %s23
    %p34 = scmp.eq.s32.totalorder %s14, 0
    %p35 = por %p33, %p34
    %p36 = scmp.ne.s32.totalorder %s22, %s23
    %p37 = scmp.eq.s32.totalorder %s15, 1
    %p38 = por %p36, %p37
    %p40 = scmp.ne.s32.totalorder %s23, %s39
    %p41 = scmp.eq.s32.totalorder %s15, 0
    %p42 = por %p40, %p41
    %s44 = sadd.s32 %s43, 1
    %p47 = scmp.eq.s32.totalorder %s9, 1
    %p48 = scmp.ne.s32.totalorder %s43, %s45
    %p49 = scmp.eq.s32.totalorder %s9, 0
    %p50 = por %p48, %p49
    %p51 = scmp.ne.s32.totalorder %s43, %s45
    %p52 = scmp.eq.s32.totalorder %s14, 1
    %p53 = por %p51, %p52
    %p54 = scmp.ne.s32.totalorder %s45, %s46
    %p55 = scmp.eq.s32.totalorder %s14, 0
    %p56 = por %p54, %p55
    %p57 = scmp.ne.s32.totalorder %s45, %s46
    %p58 = scmp.eq.s32.totalorder %s15, 1
    %p59 = por %p57, %p58
    %p61 = scmp.ne.s32.totalorder %s46, %s60
    %p62 = scmp.eq.s32.totalorder %s15, 0
    %p63 = por %p61, %p62
    %s65 = sadd.s32 %s64, 1
    %p68 = scmp.eq.s32.totalorder %s9, 1
    %p69 = scmp.ne.s32.totalorder %s64, %s66
    %p70 = scmp.eq.s32.totalorder %s9, 0
    %p71 = por %p69, %p70
    %p72 = scmp.ne.s32.totalorder %s64, %s66
    %p73 = scmp.eq.s32.totalorder %s14, 1
    %p74 = por %p72, %p73
    %p75 = scmp.ne.s32.totalorder %s66, %s67
    %p76 = scmp.eq.s32.totalorder %s14, 0
    %p77 = por %p75, %p76
    %p78 = scmp.ne.s32.totalorder %s66, %s67
    %p79 = scmp.eq.s32.totalorder %s15, 1
    %p80 = por %p78, %p79
    %p82 = scmp.ne.s32.totalorder %s67, %s81
    %p83 = scmp.eq.s32.totalorder %s15, 0
    %p84 = por %p82, %p83
    %s85 = ssub.s32 %s9, %s16
    %p86 = scmp.eq.s32.totalorder %s85, 0
    %s88 = sadd.s32 %s87, 1
    %s89 = scalar_select %p86, %s87, %s88
    %p92 = pneg %p86
    %p93 = scmp.eq.s32.totalorder %s9, 1
    %p94 = por %p92, %p93
    %p95 = scmp.ne.s32.totalorder %s87, %s90
    %p96 = scmp.eq.s32.totalorder %s9, 0
    %p97 = por %p95, %p96
    %p98 = scmp.ne.s32.totalorder %s87, %s90
    %p99 = scmp.eq.s32.totalorder %s14, 1
    %p100 = por %p98, %p99
    %p101 = scmp.ne.s32.totalorder %s90, %s91
    %p102 = scmp.eq.s32.totalorder %s14, 0
    %p103 = por %p101, %p102
    %p104 = scmp.ne.s32.totalorder %s90, %s91
    %p105 = scmp.eq.s32.totalorder %s15, 1
    %p106 = por %p104, %p105
    %p108 = scmp.ne.s32.totalorder %s91, %s107
    %p109 = scmp.eq.s32.totalorder %s15, 0
    %p110 = por %p108, %p109
    %p111 = scmp.le.s32.totalorder 1, %s9
    %p112 = scmp.lt.s32.totalorder %s9, 3
    %p113 = pnand %p111, %p112
    %p114 = pneg %p113
    // Predicated region
    $region9: #{forward.13} parent=5 // pred_check
      _
    $region10: #{forward.13} parent=5 // pred_check_branch
      %116 = sbr.rel (%p113) target = $region12
    $region11: #{forward.13} parent=5 // pred_region
      %s117 = ssub.s32 %s9, 1
      // Predicated region
      $region13: #{forward.13} parent=11 // pred_check
        %p118 = pneg %p56
      $region14: #{forward.13} parent=11 // pred_check_branch
        %120 = sbr.rel (%p118) target = $region16
      $region15: #{forward.13} parent=11 // pred_region
        _
      $region16: #{forward.13} parent=11 // pred_fallthru
        _
      // Predicated region
      $region17: #{forward.13} parent=11 // pred_check
        %p121 = pneg %p77
      $region18: #{forward.13} parent=11 // pred_check_branch
        %123 = sbr.rel (%p121) target = $region20
      $region19: #{forward.13} parent=11 // pred_region
        _
      $region20: #{forward.13} parent=11 // pred_fallthru
        _
    $region12: #{forward.13} parent=5 // pred_fallthru
      _
    %p124 = scmp.lt.s32.totalorder %s9, 2
    // Predicated region
    $region21: #{forward.13} parent=5 // pred_check
      %p125 = pneg %p124
    $region22: #{forward.13} parent=5 // pred_check_branch
      %127 = sbr.rel (%p125) target = $region24
    $region23: #{forward.13} parent=5 // pred_region
      // Predicated region
      $region25: #{forward.13} parent=23 // pred_check
        %p128 = pneg %p29
      $region26: #{forward.13} parent=23 // pred_check_branch
        %130 = sbr.rel (%p128) target = $region28
      $region27: #{forward.13} parent=23 // pred_region
        %s131 = smul.u32 32, %s9
        %p132 = scmp.lt.s32.totalorder %s131, 63
        %s133 = scalar_select %p132, %s131, 63
        %s134 = smul.addr %s133, 2
        %s135 = smul.addr %s134, 4
        %s136 = scalar_lea.vmem %s0, %s135
        %s137 = smul.u32 32, %s9
      $region28: #{forward.13} parent=23 // pred_fallthru
        _
    $region24: #{forward.13} parent=5 // pred_fallthru
      _
    %p138 = scmp.le.s32.totalorder 1, %s9
    %p139 = scmp.lt.s32.totalorder %s9, 3
    %p140 = pnand %p138, %p139
    %p141 = pneg %p140
    // Predicated region
    $region29: #{forward.13} parent=5 // pred_check
      _
    $region30: #{forward.13} parent=5 // pred_check_branch
      %143 = sbr.rel (%p140) target = $region32
    $region31: #{forward.13} parent=5 // pred_region
      %s144 = ssub.s32 %s9, 1
      %s145 = smul.u32 32, %s14
      %p146 = scmp.lt.s32.totalorder %s145, 63
      %s147 = scalar_select %p146, %s145, 63
      %s148 = smul.addr %s147, 2
      %s149 = smul.addr %s148, 4
      %s150 = scalar_lea.vmem %s0, %s149
      %p151 = pneg %p35
      %p152 = pneg %p32
      %p153 = pneg %p56
      %p154 = pneg %p53
      %p155 = pneg %p77
      %p156 = pneg %p74
      %p157 = pneg %p103
      %p158 = pneg %p100
      %s159 = smul.u32 32, %s14
      %p160 = scmp.lt.s32.totalorder %s159, 63
      %s161 = scalar_select %p160, %s159, 63
      %s162 = smul.addr %s161, 4
      %s163 = scalar_lea.vmem %s3, %s162
      %s164 = smul.u32 32, %s14
      %p165 = scmp.lt.s32.totalorder %s164, 63
      %s166 = scalar_select %p165, %s164, 63
      %s167 = smul.addr %s166, 2
      %s168 = smul.addr %s167, 4
      %s169 = scalar_lea.vmem %s0, %s168
      %s170 = smul.u32 32, %s14
      %s171 = smul.u32 32, %s14
      %p172 = scmp.lt.s32.totalorder %s171, 63
      %s173 = scalar_select %p172, %s171, 63
      %s174 = smul.addr %s173, 4
      %s175 = scalar_lea.vmem %s3, %s174
      %s176 = smul.u32 32, %s14
      %v178 = vld [vmem:[%s169] sm:$0xff]
      %v179 = vld [vmem:[%s169 + $0x8] sm:$0xff]
      %v180 = vld [vmem:[%s169 + $0x10] sm:$0xff]
      %v181 = vld [vmem:[%s169 + $0x18] sm:$0xff]
      %v182 = vld [vmem:[%s169 + $0x20] sm:$0xff]
      %v183 = vld [vmem:[%s169 + $0x28] sm:$0xff]
      %v184 = vld [vmem:[%s169 + $0x30] sm:$0xff]
      %v185 = vld [vmem:[%s169 + $0x38] sm:$0xff]
      %v186 = vld [vmem:[%s169 + $0x40] sm:$0xff]
      %v187 = vld [vmem:[%s169 + $0x48] sm:$0xff]
      %v188 = vld [vmem:[%s169 + $0x50] sm:$0xff]
      %v189 = vld [vmem:[%s169 + $0x58] sm:$0xff]
      %v190 = vld [vmem:[%s169 + $0x60] sm:$0xff]
      %v191 = vld [vmem:[%s169 + $0x68] sm:$0xff]
      %v192 = vld [vmem:[%s169 + $0x70] sm:$0xff]
      %v193 = vld [vmem:[%s169 + $0x78] sm:$0xff]
      %v194 = vld [vmem:[%s169 + $0x80] sm:$0xff]
      %v195 = vld [vmem:[%s169 + $0x88] sm:$0xff]
      %v196 = vld [vmem:[%s169 + $0x90] sm:$0xff]
      %v197 = vld [vmem:[%s169 + $0x98] sm:$0xff]
      %v198 = vld [vmem:[%s169 + $0xa0] sm:$0xff]
      %v199 = vld [vmem:[%s169 + $0xa8] sm:$0xff]
      %v200 = vld [vmem:[%s169 + $0xb0] sm:$0xff]
      %v201 = vld [vmem:[%s169 + $0xb8] sm:$0xff]
      %v202 = vld [vmem:[%s169 + $0xc0] sm:$0xff]
      %v203 = vld [vmem:[%s169 + $0xc8] sm:$0xff]
      %v204 = vld [vmem:[%s169 + $0xd0] sm:$0xff]
      %v205 = vld [vmem:[%s169 + $0xd8] sm:$0xff]
      %v206 = vld [vmem:[%s169 + $0xe0] sm:$0xff]
      %v207 = vld [vmem:[%s169 + $0xe8] sm:$0xff]
      %v208 = vld [vmem:[%s169 + $0xf0] sm:$0xff]
      %v209 = vld [vmem:[%s169 + $0xf8] sm:$0xff]
      %v210 = vld [vmem:[%s1] sm:$0xf]
      %v211 = vld [vmem:[%s1 + $0x4] sm:$0xf]
      %v212 = vld [vmem:[%s1 + $0x8] sm:$0xf]
      %v213 = vld [vmem:[%s1 + $0xc] sm:$0xf]
      %v214 = vld [vmem:[%s1 + $0x10] sm:$0xf]
      %v215 = vld [vmem:[%s1 + $0x14] sm:$0xf]
      %v216 = vld [vmem:[%s1 + $0x18] sm:$0xf]
      %v217 = vld [vmem:[%s1 + $0x1c] sm:$0xf]
      %v218 = vld [vmem:[%s1 + $0x20] sm:$0xf]
      %v219 = vld [vmem:[%s1 + $0x24] sm:$0xf]
      %v220 = vld [vmem:[%s1 + $0x28] sm:$0xf]
      %v221 = vld [vmem:[%s1 + $0x2c] sm:$0xf]
      %v222 = vld [vmem:[%s1 + $0x30] sm:$0xf]
      %v223 = vld [vmem:[%s1 + $0x34] sm:$0xf]
      %v224 = vld [vmem:[%s1 + $0x38] sm:$0xf]
      %v225 = vld [vmem:[%s1 + $0x3c] sm:$0xf]
      %v226 = vld [vmem:[%s1 + $0x40] sm:$0xf]
      %v227 = vld [vmem:[%s1 + $0x44] sm:$0xf]
      %v228 = vld [vmem:[%s2] sm:$0x1]
      %v230 = vlaneseq
      %v231 = vshrl.u32 %v230, 7
      %v232 = vsub.s32 0, %v231
      %v233 = vrot.slane %v228, %v232
      %v267 = vunpack.c.l.b16 %v178
      %v268 = vunpack.c.h.b16 %v178
      %v269 = vunpack.c.l.b16 %v179
      %v270 = vunpack.c.h.b16 %v179
      %v271 = vunpack.c.l.b16 %v180
      %v272 = vunpack.c.h.b16 %v180
      %v273 = vunpack.c.l.b16 %v181
      %v274 = vunpack.c.h.b16 %v181
      %v275 = vunpack.c.l.b16 %v182
      %v276 = vunpack.c.h.b16 %v182
      %v277 = vunpack.c.l.b16 %v183
      %v278 = vunpack.c.h.b16 %v183
      %v279 = vunpack.c.l.b16 %v184
      %v280 = vunpack.c.h.b16 %v184
      %v281 = vunpack.c.l.b16 %v185
      %v282 = vunpack.c.h.b16 %v185
      %v283 = vunpack.c.l.b16 %v186
      %v284 = vunpack.c.h.b16 %v186
      %v285 = vunpack.c.l.b16 %v187
      %v286 = vunpack.c.h.b16 %v187
      %v287 = vunpack.c.l.b16 %v188
      %v288 = vunpack.c.h.b16 %v188
      %v289 = vunpack.c.l.b16 %v189
      %v290 = vunpack.c.h.b16 %v189
      %v291 = vunpack.c.l.b16 %v190
      %v292 = vunpack.c.h.b16 %v190
      %v293 = vunpack.c.l.b16 %v191
      %v294 = vunpack.c.h.b16 %v191
      %v295 = vunpack.c.l.b16 %v192
      %v296 = vunpack.c.h.b16 %v192
      %v297 = vunpack.c.l.b16 %v193
      %v298 = vunpack.c.h.b16 %v193
      %v299 = vunpack.c.l.b16 %v194
      %v300 = vunpack.c.h.b16 %v194
      %v301 = vunpack.c.l.b16 %v195
      %v302 = vunpack.c.h.b16 %v195
      %v303 = vunpack.c.l.b16 %v196
      %v304 = vunpack.c.h.b16 %v196
      %v305 = vunpack.c.l.b16 %v197
      %v306 = vunpack.c.h.b16 %v197
      %v307 = vunpack.c.l.b16 %v198
      %v308 = vunpack.c.h.b16 %v198
      %v309 = vunpack.c.l.b16 %v199
      %v310 = vunpack.c.h.b16 %v199
      %v311 = vunpack.c.l.b16 %v200
      %v312 = vunpack.c.h.b16 %v200
      %v313 = vunpack.c.l.b16 %v201
      %v314 = vunpack.c.h.b16 %v201
      %v315 = vunpack.c.l.b16 %v202
      %v316 = vunpack.c.h.b16 %v202
      %v317 = vunpack.c.l.b16 %v203
      %v318 = vunpack.c.h.b16 %v203
      %v319 = vunpack.c.l.b16 %v204
      %v320 = vunpack.c.h.b16 %v204
      %v321 = vunpack.c.l.b16 %v205
      %v322 = vunpack.c.h.b16 %v205
      %v323 = vunpack.c.l.b16 %v206
      %v324 = vunpack.c.h.b16 %v206
      %v325 = vunpack.c.l.b16 %v207
      %v326 = vunpack.c.h.b16 %v207
      %v327 = vunpack.c.l.b16 %v208
      %v328 = vunpack.c.h.b16 %v208
      %v329 = vunpack.c.l.b16 %v209
      %v330 = vunpack.c.h.b16 %v209
      %v331 = vpack.c.b16 %v269, %v267
      %v332 = vpack.c.b16 %v270, %v268
      %v333 = vpack.c.b16 %v273, %v271
      %v334 = vpack.c.b16 %v274, %v272
      %v335 = vpack.c.b16 %v277, %v275
      %v336 = vpack.c.b16 %v278, %v276
      %v337 = vpack.c.b16 %v281, %v279
      %v338 = vpack.c.b16 %v282, %v280
      %v339 = vpack.c.b16 %v285, %v283
      %v340 = vpack.c.b16 %v286, %v284
      %v341 = vpack.c.b16 %v289, %v287
      %v342 = vpack.c.b16 %v290, %v288
      %v343 = vpack.c.b16 %v293, %v291
      %v344 = vpack.c.b16 %v294, %v292
      %v345 = vpack.c.b16 %v297, %v295
      %v346 = vpack.c.b16 %v298, %v296
      %v347 = vpack.c.b16 %v301, %v299
      %v348 = vpack.c.b16 %v302, %v300
      %v349 = vpack.c.b16 %v305, %v303
      %v350 = vpack.c.b16 %v306, %v304
      %v351 = vpack.c.b16 %v309, %v307
      %v352 = vpack.c.b16 %v310, %v308
      %v353 = vpack.c.b16 %v313, %v311
      %v354 = vpack.c.b16 %v314, %v312
      %v355 = vpack.c.b16 %v317, %v315
      %v356 = vpack.c.b16 %v318, %v316
      %v357 = vpack.c.b16 %v321, %v319
      %v358 = vpack.c.b16 %v322, %v320
      %v359 = vpack.c.b16 %v325, %v323
      %v360 = vpack.c.b16 %v326, %v324
      %v361 = vpack.c.b16 %v329, %v327
      %v362 = vpack.c.b16 %v330, %v328
      %v397 = vunpack.c.l.b16 %v210
      %v398 = vunpack.c.l.b16 %v211
      %v399 = vunpack.c.l.b16 %v212
      %v400 = vunpack.c.l.b16 %v213
      %v401 = vunpack.c.l.b16 %v214
      %v402 = vunpack.c.l.b16 %v215
      %v403 = vunpack.c.l.b16 %v216
      %v404 = vunpack.c.l.b16 %v217
      %v405 = vunpack.c.l.b16 %v218
      %v406 = vunpack.c.l.b16 %v219
      %v407 = vunpack.c.l.b16 %v220
      %v408 = vunpack.c.l.b16 %v221
      %v409 = vunpack.c.l.b16 %v222
      %v410 = vunpack.c.l.b16 %v223
      %v411 = vunpack.c.l.b16 %v224
      %v412 = vunpack.c.l.b16 %v225
      %v413 = vunpack.c.l.b16 %v226
      %v414 = vunpack.c.l.b16 %v227
      %v415 = vpack.c.b16 %v398, %v397
      %v416 = vpack.c.b16 %v400, %v399
      %v417 = vpack.c.b16 %v402, %v401
      %v418 = vpack.c.b16 %v404, %v403
      %v419 = vpack.c.b16 %v406, %v405
      %v420 = vpack.c.b16 %v408, %v407
      %v421 = vpack.c.b16 %v410, %v409
      %v422 = vpack.c.b16 %v412, %v411
      %v423 = vpack.c.b16 %v414, %v413
      %vm433 = vcmask 130048
      %v435 = vsel %vm433, %v332, 0
      %v438 = vsel %vm433, %v334, 0
      %v441 = vsel %vm433, %v336, 0
      %v444 = vsel %vm433, %v338, 0
      %v447 = vsel %vm433, %v340, 0
      %v450 = vsel %vm433, %v342, 0
      %v453 = vsel %vm433, %v344, 0
      %v456 = vsel %vm433, %v346, 0
      %v459 = vsel %vm433, %v348, 0
      %v462 = vsel %vm433, %v350, 0
      %v465 = vsel %vm433, %v352, 0
      %v468 = vsel %vm433, %v354, 0
      %v471 = vsel %vm433, %v356, 0
      %v474 = vsel %vm433, %v358, 0
      %v477 = vsel %vm433, %v360, 0
      %v480 = vsel %vm433, %v362, 0
      %482 = vmatprep.subr.bf16.mxu0 0
      %483 = vmatpush1.bf16.msra.mxu0 %v415
      %484 = vmatprep.subr.bf16.mxu0 0
      %485 = vmatpush1.bf16.msra.mxu0 %v416
      %486 = vmatprep.subr.bf16.mxu0 0
      %487 = vmatpush1.bf16.msra.mxu0 %v417
      %488 = vmatprep.subr.bf16.mxu0 0
      %489 = vmatpush1.bf16.msra.mxu0 %v418
      %490 = vmatprep.subr.bf16.mxu0 0
      %491 = vmatpush1.bf16.msra.mxu0 %v419
      %492 = vmatprep.subr.bf16.mxu0 0
      %493 = vmatpush1.bf16.msra.mxu0 %v420
      %494 = vmatprep.subr.bf16.mxu0 0
      %495 = vmatpush1.bf16.msra.mxu0 %v421
      %496 = vmatprep.subr.bf16.mxu0 0
      %497 = vmatpush1.bf16.msra.mxu0 %v422
      %498 = vmatprep.subr.bf16.mxu0 0
      %499 = vmatpush1.bf16.msra.mxu0 %v423
      %500 = vmatprep.subr.bf16.mxu0 0
      %501 = vmatpush1.bf16.msra.mxu0 0
      %502 = vmatprep.subr.bf16.mxu0 0
      %503 = vmatpush1.bf16.msra.mxu0 0
      %504 = vmatprep.subr.bf16.mxu0 0
      %505 = vmatpush1.bf16.msra.mxu0 0
      %506 = vmatprep.subr.bf16.mxu0 0
      %507 = vmatpush1.bf16.msra.mxu0 0
      %508 = vmatprep.subr.bf16.mxu0 0
      %509 = vmatpush1.bf16.msra.mxu0 0
      %510 = vmatprep.subr.bf16.mxu0 0
      %511 = vmatpush1.bf16.msra.mxu0 0
      %512 = vmatprep.subr.bf16.mxu0 0
      %513 = vmatpush1.bf16.msra.mxu0 0
      %514 = vmatprep.mubr.bf16.mxu0 %v435
      %515 = vmatmul.mubr.bf16.gmra.mrb[0].mxu0 %v331
      %v516 = vpop.f32.mrb[0].mxu0
      %v517 = vadd.f32 %v233, %v516
      %v518 = vpop.f32.mrb[0].mxu0
      %v519 = vpop.f32.mrb[0].mxu0
      %v520 = vadd.f32 %v233, %v519
      %v521 = vpop.f32.mrb[0].mxu0
      %522 = vmatprep.mubr.bf16.mxu0 %v438
      %523 = vmatmul.mubr.bf16.gmra.mrb[0].mxu0 %v333
      %v524 = vpop.f32.mrb[0].mxu0
      %v525 = vadd.f32 %v233, %v524
      %v526 = vpop.f32.mrb[0].mxu0
      %v527 = vpop.f32.mrb[0].mxu0
      %v528 = vadd.f32 %v233, %v527
      %v529 = vpop.f32.mrb[0].mxu0
      %530 = vmatprep.mubr.bf16.mxu0 %v441
      %531 = vmatmul.mubr.bf16.gmra.mrb[0].mxu0 %v335
      %v532 = vpop.f32.mrb[0].mxu0
      %v533 = vadd.f32 %v233, %v532
      %v534 = vpop.f32.mrb[0].mxu0
      %v535 = vpop.f32.mrb[0].mxu0
      %v536 = vadd.f32 %v233, %v535
      %v537 = vpop.f32.mrb[0].mxu0
      %538 = vmatprep.mubr.bf16.mxu0 %v444
      %539 = vmatmul.mubr.bf16.gmra.mrb[0].mxu0 %v337
      %v540 = vpop.f32.mrb[0].mxu0
      %v541 = vadd.f32 %v233, %v540
      %v542 = vpop.f32.mrb[0].mxu0
      %v543 = vpop.f32.mrb[0].mxu0
      %v544 = vadd.f32 %v233, %v543
      %v545 = vpop.f32.mrb[0].mxu0
      %546 = vmatprep.mubr.bf16.mxu0 %v447
      %547 = vmatmul.mubr.bf16.gmra.mrb[0].mxu0 %v339
      %v548 = vpop.f32.mrb[0].mxu0
      %v549 = vadd.f32 %v233, %v548
      %v550 = vpop.f32.mrb[0].mxu0
      %v551 = vpop.f32.mrb[0].mxu0
      %v552 = vadd.f32 %v233, %v551
      %v553 = vpop.f32.mrb[0].mxu0
      %554 = vmatprep.mubr.bf16.mxu0 %v450
      %555 = vmatmul.mubr.bf16.gmra.mrb[0].mxu0 %v341
      %v556 = vpop.f32.mrb[0].mxu0
      %v557 = vadd.f32 %v233, %v556
      %v558 = vpop.f32.mrb[0].mxu0
      %v559 = vpop.f32.mrb[0].mxu0
      %v560 = vadd.f32 %v233, %v559
      %v561 = vpop.f32.mrb[0].mxu0
      %562 = vmatprep.mubr.bf16.mxu0 %v453
      %563 = vmatmul.mubr.bf16.gmra.mrb[0].mxu0 %v343
      %v564 = vpop.f32.mrb[0].mxu0
      %v565 = vadd.f32 %v233, %v564
      %v566 = vpop.f32.mrb[0].mxu0
      %v567 = vpop.f32.mrb[0].mxu0
      %v568 = vadd.f32 %v233, %v567
      %v569 = vpop.f32.mrb[0].mxu0
      %570 = vmatprep.mubr.bf16.mxu0 %v456
      %571 = vmatmul.mubr.bf16.gmra.mrb[0].mxu0 %v345
      %v572 = vpop.f32.mrb[0].mxu0
      %v573 = vadd.f32 %v233, %v572
      %v574 = vpop.f32.mrb[0].mxu0
      %v575 = vpop.f32.mrb[0].mxu0
      %v576 = vadd.f32 %v233, %v575
      %v577 = vpop.f32.mrb[0].mxu0
      %578 = vmatprep.mubr.bf16.mxu0 %v459
      %579 = vmatmul.mubr.bf16.gmra.mrb[0].mxu0 %v347
      %v580 = vpop.f32.mrb[0].mxu0
      %v581 = vadd.f32 %v233, %v580
      %v582 = vpop.f32.mrb[0].mxu0
      %v583 = vpop.f32.mrb[0].mxu0
      %v584 = vadd.f32 %v233, %v583
      %v585 = vpop.f32.mrb[0].mxu0
      %586 = vmatprep.mubr.bf16.mxu0 %v462
      %587 = vmatmul.mubr.bf16.gmra.mrb[0].mxu0 %v349
      %v588 = vpop.f32.mrb[0].mxu0
      %v589 = vadd.f32 %v233, %v588
      %v590 = vpop.f32.mrb[0].mxu0
      %v591 = vpop.f32.mrb[0].mxu0
      %v592 = vadd.f32 %v233, %v591
      %v593 = vpop.f32.mrb[0].mxu0
      %594 = vmatprep.mubr.bf16.mxu0 %v465
      %595 = vmatmul.mubr.bf16.gmra.mrb[0].mxu0 %v351
      %v596 = vpop.f32.mrb[0].mxu0
      %v597 = vadd.f32 %v233, %v596
      %v598 = vpop.f32.mrb[0].mxu0
      %v599 = vpop.f32.mrb[0].mxu0
      %v600 = vadd.f32 %v233, %v599
      %v601 = vpop.f32.mrb[0].mxu0
      %602 = vmatprep.mubr.bf16.mxu0 %v468
      %603 = vmatmul.mubr.bf16.gmra.mrb[0].mxu0 %v353
      %v604 = vpop.f32.mrb[0].mxu0
      %v605 = vadd.f32 %v233, %v604
      %v606 = vpop.f32.mrb[0].mxu0
      %v607 = vpop.f32.mrb[0].mxu0
      %v608 = vadd.f32 %v233, %v607
      %v609 = vpop.f32.mrb[0].mxu0
      %610 = vmatprep.mubr.bf16.mxu0 %v471
      %611 = vmatmul.mubr.bf16.gmra.mrb[0].mxu0 %v355
      %v612 = vpop.f32.mrb[0].mxu0
      %v613 = vadd.f32 %v233, %v612
      %v614 = vpop.f32.mrb[0].mxu0
      %v615 = vpop.f32.mrb[0].mxu0
      %v616 = vadd.f32 %v233, %v615
      %v617 = vpop.f32.mrb[0].mxu0
      %618 = vmatprep.mubr.bf16.mxu0 %v474
      %619 = vmatmul.mubr.bf16.gmra.mrb[0].mxu0 %v357
      %v620 = vpop.f32.mrb[0].mxu0
      %v621 = vadd.f32 %v233, %v620
      %v622 = vpop.f32.mrb[0].mxu0
      %v623 = vpop.f32.mrb[0].mxu0
      %v624 = vadd.f32 %v233, %v623
      %v625 = vpop.f32.mrb[0].mxu0
      %626 = vmatprep.mubr.bf16.mxu0 %v477
      %627 = vmatmul.mubr.bf16.gmra.mrb[0].mxu0 %v359
      %v628 = vpop.f32.mrb[0].mxu0
      %v629 = vadd.f32 %v233, %v628
      %v630 = vpop.f32.mrb[0].mxu0
      %v631 = vpop.f32.mrb[0].mxu0
      %v632 = vadd.f32 %v233, %v631
      %v633 = vpop.f32.mrb[0].mxu0
      %634 = vmatprep.mubr.bf16.mxu0 %v480
      %635 = vmatmul.mubr.bf16.gmra.mrb[0].mxu0 %v361
      %v636 = vpop.f32.mrb[0].mxu0
      %v637 = vadd.f32 %v233, %v636
      %v638 = vpop.f32.mrb[0].mxu0
      %v639 = vpop.f32.mrb[0].mxu0
      %v640 = vadd.f32 %v233, %v639
      %v641 = vpop.f32.mrb[0].mxu0
      %642 = vdwg.mxu0
      %v643 = vmax.f32 %v517, 0.0
      %v644 = vmax.f32 %v520, 0.0
      %v645 = vmax.f32 %v525, 0.0
      %v646 = vmax.f32 %v528, 0.0
      %v647 = vmax.f32 %v533, 0.0
      %v648 = vmax.f32 %v536, 0.0
      %v649 = vmax.f32 %v541, 0.0
      %v650 = vmax.f32 %v544, 0.0
      %v651 = vmax.f32 %v549, 0.0
      %v652 = vmax.f32 %v552, 0.0
      %v653 = vmax.f32 %v557, 0.0
      %v654 = vmax.f32 %v560, 0.0
      %v655 = vmax.f32 %v565, 0.0
      %v656 = vmax.f32 %v568, 0.0
      %v657 = vmax.f32 %v573, 0.0
      %v658 = vmax.f32 %v576, 0.0
      %v659 = vmax.f32 %v581, 0.0
      %v660 = vmax.f32 %v584, 0.0
      %v661 = vmax.f32 %v589, 0.0
      %v662 = vmax.f32 %v592, 0.0
      %v663 = vmax.f32 %v597, 0.0
      %v664 = vmax.f32 %v600, 0.0
      %v665 = vmax.f32 %v605, 0.0
      %v666 = vmax.f32 %v608, 0.0
      %v667 = vmax.f32 %v613, 0.0
      %v668 = vmax.f32 %v616, 0.0
      %v669 = vmax.f32 %v621, 0.0
      %v670 = vmax.f32 %v624, 0.0
      %v671 = vmax.f32 %v629, 0.0
      %v672 = vmax.f32 %v632, 0.0
      %v673 = vmax.f32 %v637, 0.0
      %v674 = vmax.f32 %v640, 0.0
      %v675 = vpack.c.bf16 %v644, %v643
      %v676 = vpack.c.bf16 %v646, %v645
      %v677 = vpack.c.bf16 %v648, %v647
      %v678 = vpack.c.bf16 %v650, %v649
      %v679 = vpack.c.bf16 %v652, %v651
      %v680 = vpack.c.bf16 %v654, %v653
      %v681 = vpack.c.bf16 %v656, %v655
      %v682 = vpack.c.bf16 %v658, %v657
      %v683 = vpack.c.bf16 %v660, %v659
      %v684 = vpack.c.bf16 %v662, %v661
      %v685 = vpack.c.bf16 %v664, %v663
      %v686 = vpack.c.bf16 %v666, %v665
      %v687 = vpack.c.bf16 %v668, %v667
      %v688 = vpack.c.bf16 %v670, %v669
      %v689 = vpack.c.bf16 %v672, %v671
      %v690 = vpack.c.bf16 %v674, %v673
      %v707 = vunpack.c.l.b16 %v675
      %v708 = vunpack.c.h.b16 %v675
      %v709 = vunpack.c.l.b16 %v676
      %v710 = vunpack.c.h.b16 %v676
      %v711 = vunpack.c.l.b16 %v677
      %v712 = vunpack.c.h.b16 %v677
      %v713 = vunpack.c.l.b16 %v678
      %v714 = vunpack.c.h.b16 %v678
      %v715 = vunpack.c.l.b16 %v679
      %v716 = vunpack.c.h.b16 %v679
      %v717 = vunpack.c.l.b16 %v680
      %v718 = vunpack.c.h.b16 %v680
      %v719 = vunpack.c.l.b16 %v681
      %v720 = vunpack.c.h.b16 %v681
      %v721 = vunpack.c.l.b16 %v682
      %v722 = vunpack.c.h.b16 %v682
      %v723 = vunpack.c.l.b16 %v683
      %v724 = vunpack.c.h.b16 %v683
      %v725 = vunpack.c.l.b16 %v684
      %v726 = vunpack.c.h.b16 %v684
      %v727 = vunpack.c.l.b16 %v685
      %v728 = vunpack.c.h.b16 %v685
      %v729 = vunpack.c.l.b16 %v686
      %v730 = vunpack.c.h.b16 %v686
      %v731 = vunpack.c.l.b16 %v687
      %v732 = vunpack.c.h.b16 %v687
      %v733 = vunpack.c.l.b16 %v688
      %v734 = vunpack.c.h.b16 %v688
      %v735 = vunpack.c.l.b16 %v689
      %v736 = vunpack.c.h.b16 %v689
      %v737 = vunpack.c.l.b16 %v690
      %v738 = vunpack.c.h.b16 %v690
      %v739 = vpack.c.b16 %v707, %v707
      %v740 = vpack.c.b16 %v708, %v708
      %v741 = vpack.c.b16 %v709, %v709
      %v742 = vpack.c.b16 %v710, %v710
      %v743 = vpack.c.b16 %v711, %v711
      %v744 = vpack.c.b16 %v712, %v712
      %v745 = vpack.c.b16 %v713, %v713
      %v746 = vpack.c.b16 %v714, %v714
      %v747 = vpack.c.b16 %v715, %v715
      %v748 = vpack.c.b16 %v716, %v716
      %v749 = vpack.c.b16 %v717, %v717
      %v750 = vpack.c.b16 %v718, %v718
      %v751 = vpack.c.b16 %v719, %v719
      %v752 = vpack.c.b16 %v720, %v720
      %v753 = vpack.c.b16 %v721, %v721
      %v754 = vpack.c.b16 %v722, %v722
      %v755 = vpack.c.b16 %v723, %v723
      %v756 = vpack.c.b16 %v724, %v724
      %v757 = vpack.c.b16 %v725, %v725
      %v758 = vpack.c.b16 %v726, %v726
      %v759 = vpack.c.b16 %v727, %v727
      %v760 = vpack.c.b16 %v728, %v728
      %v761 = vpack.c.b16 %v729, %v729
      %v762 = vpack.c.b16 %v730, %v730
      %v763 = vpack.c.b16 %v731, %v731
      %v764 = vpack.c.b16 %v732, %v732
      %v765 = vpack.c.b16 %v733, %v733
      %v766 = vpack.c.b16 %v734, %v734
      %v767 = vpack.c.b16 %v735, %v735
      %v768 = vpack.c.b16 %v736, %v736
      %v769 = vpack.c.b16 %v737, %v737
      %v770 = vpack.c.b16 %v738, %v738
      %vm803 = vcmask 257024
      %804 = vst.msk [vmem:[%s175] sm:$0xf] %vm803, %v739
      %805 = vst.msk [vmem:[%s175 + $0x4] sm:$0xf] %vm803, %v740
      %806 = vst.msk [vmem:[%s175 + $0x8] sm:$0xf] %vm803, %v741
      %807 = vst.msk [vmem:[%s175 + $0xc] sm:$0xf] %vm803, %v742
      %808 = vst.msk [vmem:[%s175 + $0x10] sm:$0xf] %vm803, %v743
      %809 = vst.msk [vmem:[%s175 + $0x14] sm:$0xf] %vm803, %v744
      %810 = vst.msk [vmem:[%s175 + $0x18] sm:$0xf] %vm803, %v745
      %811 = vst.msk [vmem:[%s175 + $0x1c] sm:$0xf] %vm803, %v746
      %812 = vst.msk [vmem:[%s175 + $0x20] sm:$0xf] %vm803, %v747
      %813 = vst.msk [vmem:[%s175 + $0x24] sm:$0xf] %vm803, %v748
      %814 = vst.msk [vmem:[%s175 + $0x28] sm:$0xf] %vm803, %v749
      %815 = vst.msk [vmem:[%s175 + $0x2c] sm:$0xf] %vm803, %v750
      %816 = vst.msk [vmem:[%s175 + $0x30] sm:$0xf] %vm803, %v751
      %817 = vst.msk [vmem:[%s175 + $0x34] sm:$0xf] %vm803, %v752
      %818 = vst.msk [vmem:[%s175 + $0x38] sm:$0xf] %vm803, %v753
      %819 = vst.msk [vmem:[%s175 + $0x3c] sm:$0xf] %vm803, %v754
      %820 = vst.msk [vmem:[%s175 + $0x40] sm:$0xf] %vm803, %v755
      %821 = vst.msk [vmem:[%s175 + $0x44] sm:$0xf] %vm803, %v756
      %822 = vst.msk [vmem:[%s175 + $0x48] sm:$0xf] %vm803, %v757
      %823 = vst.msk [vmem:[%s175 + $0x4c] sm:$0xf] %vm803, %v758
      %824 = vst.msk [vmem:[%s175 + $0x50] sm:$0xf] %vm803, %v759
      %825 = vst.msk [vmem:[%s175 + $0x54] sm:$0xf] %vm803, %v760
      %826 = vst.msk [vmem:[%s175 + $0x58] sm:$0xf] %vm803, %v761
      %827 = vst.msk [vmem:[%s175 + $0x5c] sm:$0xf] %vm803, %v762
      %828 = vst.msk [vmem:[%s175 + $0x60] sm:$0xf] %vm803, %v763
      %829 = vst.msk [vmem:[%s175 + $0x64] sm:$0xf] %vm803, %v764
      %830 = vst.msk [vmem:[%s175 + $0x68] sm:$0xf] %vm803, %v765
      %831 = vst.msk [vmem:[%s175 + $0x6c] sm:$0xf] %vm803, %v766
      %832 = vst.msk [vmem:[%s175 + $0x70] sm:$0xf] %vm803, %v767
      %833 = vst.msk [vmem:[%s175 + $0x74] sm:$0xf] %vm803, %v768
      %834 = vst.msk [vmem:[%s175 + $0x78] sm:$0xf] %vm803, %v769
      %835 = vst.msk [vmem:[%s175 + $0x7c] sm:$0xf] %vm803, %v770
      %s836 = smul.u32 32, %s14
      %p837 = scmp.lt.s32.totalorder %s836, 63
      %s838 = scalar_select %p837, %s836, 63
      %s839 = smul.addr %s838, 4
      %s840 = scalar_lea.vmem %s3, %s839
      // Predicated region
      $region33: #{forward.13} parent=31 // pred_check
        %p841 = pneg %p100
      $region34: #{forward.13} parent=31 // pred_check_branch
        %843 = sbr.rel (%p841) target = $region36
      $region35: #{forward.13} parent=31 // pred_region
        %s844 = smul.u32 32, %s14
      $region36: #{forward.13} parent=31 // pred_fallthru
        _
    $region32: #{forward.13} parent=5 // pred_fallthru
      _
    %p845 = scmp.le.s32.totalorder 2, %s9
    // Predicated region
    $region37: #{forward.13} parent=5 // pred_check
      %p846 = pneg %p845
    $region38: #{forward.13} parent=5 // pred_check_branch
      %848 = sbr.rel (%p846) target = $region40
    $region39: #{forward.13} parent=5 // pred_region
      %s849 = ssub.s32 %s9, 2
      // Predicated region
      $region41: #{forward.13} parent=39 // pred_check
        %p850 = pneg %p106
      $region42: #{forward.13} parent=39 // pred_check_branch
        %852 = sbr.rel (%p850) target = $region44
      $region43: #{forward.13} parent=39 // pred_region
        %s853 = smul.u32 32, %s15
        %p854 = scmp.lt.s32.totalorder %s853, 63
        %s855 = scalar_select %p854, %s853, 63
        %s856 = smul.addr %s855, 4
        %s857 = scalar_lea.vmem %s3, %s856
      $region44: #{forward.13} parent=39 // pred_fallthru
        _
    $region40: #{forward.13} parent=5 // pred_fallthru
      _
  $region6: #{forward.13} parent=0 // loop_footer
    %s13 = sadd.s32 1, %s9
  $region7: #{forward.13} parent=0 // loop_footer_branch
    %8 = sbr.rel target = $region3
  $region8: #{forward.13} parent=0 // loop_exit
    _

// kernel: forward.14
$region0: #{forward.14}
  #allocation0 [shape = 'u32[]', space=smem, size = 0x4, offset = 0x4, fixed_abs, tag = 'smem constant byte address 0x4 - core index']
  #allocation1 [shape = 'u32[144,128]{1,0:T(1,128)}', space=vmem, size = 0x12000, scoped, tag = 'internal scratch']
  %s0 = inlined_call_operand.vmem [shape: bf16[512,16], index: 0, kind: input, shape index: {}]
  %s1 = inlined_call_operand.vmem [shape: bf16[16,32], index: 1, kind: input, shape index: {}]
  %s2 = inlined_call_operand.vmem [shape: f32[1,32], index: 2, kind: input, shape index: {}]
  %s3 = inlined_call_operand.vmem [shape: bf16[512,32], index: 3, kind: output, shape index: {}]
  %s4 = sld [smem:[#allocation0]]
  $region45: #{forward.14} parent=0
    _
  %s6 = ssub.s32 1, %s4
  %s7 = scalar_select 0, %s6, %s4
  loop: start=0, step=1, limit=4
  $region2: #{forward.14} parent=0 // loop_pre_header
    _
  $region3: #{forward.14} parent=0 // loop_header
    %s9 = sphi 0, %s13
    %p10 = scmp.ge.s32.totalorder %s9, 4
    %s19 = sphi 0, %s21
    %s22 = sphi 0, %s19
    %s23 = sphi 0, %s22
    %s39 = sphi 0, %s23
    %s43 = sphi 0, %s43
    %s45 = sphi 0, %s43
    %s46 = sphi 0, %s45
    %s60 = sphi 0, %s46
    %s64 = sphi 0, %s64
    %s66 = sphi 0, %s64
    %s67 = sphi 0, %s66
    %s81 = sphi 0, %s67
    %s87 = sphi 0, %s89
    %s90 = sphi 0, %s87
    %s91 = sphi 0, %s90
    %s107 = sphi 0, %s91
  $region4: #{forward.14} parent=0 // loop_header_branch
    %12 = sbr.rel (%p10) target = $region8
  $region5: #{forward.14} parent=0 // loop_body
    %s14 = ssub.s32 %s9, 1
    %s15 = ssub.s32 %s9, 2
    %s16 = sadd.s32 %s9, 1
    %s17 = ssub.s32 %s9, %s16
    %p18 = scmp.eq.s32.totalorder %s17, 0
    %s20 = sadd.s32 %s19, 1
    %s21 = scalar_select %p18, %s19, %s20
    %p24 = pneg %p18
    %p25 = scmp.eq.s32.totalorder %s9, 1
    %p26 = por %p24, %p25
    %p27 = scmp.ne.s32.totalorder %s19, %s22
    %p28 = scmp.eq.s32.totalorder %s9, 0
    %p29 = por %p27, %p28
    %p30 = scmp.ne.s32.totalorder %s19, %s22
    %p31 = scmp.eq.s32.totalorder %s14, 1
    %p32 = por %p30, %p31
    %p33 = scmp.ne.s32.totalorder %s22, %s23
    %p34 = scmp.eq.s32.totalorder %s14, 0
    %p35 = por %p33, %p34
    %p36 = scmp.ne.s32.totalorder %s22, %s23
    %p37 = scmp.eq.s32.totalorder %s15, 1
    %p38 = por %p36, %p37
    %p40 = scmp.ne.s32.totalorder %s23, %s39
    %p41 = scmp.eq.s32.totalorder %s15, 0
    %p42 = por %p40, %p41
    %s44 = sadd.s32 %s43, 1
    %p47 = scmp.eq.s32.totalorder %s9, 1
    %p48 = scmp.ne.s32.totalorder %s43, %s45
    %p49 = scmp.eq.s32.totalorder %s9, 0
    %p50 = por %p48, %p49
    %p51 = scmp.ne.s32.totalorder %s43, %s45
    %p52 = scmp.eq.s32.totalorder %s14, 1
    %p53 = por %p51, %p52
    %p54 = scmp.ne.s32.totalorder %s45, %s46
    %p55 = scmp.eq.s32.totalorder %s14, 0
    %p56 = por %p54, %p55
    %p57 = scmp.ne.s32.totalorder %s45, %s46
    %p58 = scmp.eq.s32.totalorder %s15, 1
    %p59 = por %p57, %p58
    %p61 = scmp.ne.s32.totalorder %s46, %s60
    %p62 = scmp.eq.s32.totalorder %s15, 0
    %p63 = por %p61, %p62
    %s65 = sadd.s32 %s64, 1
    %p68 = scmp.eq.s32.totalorder %s9, 1
    %p69 = scmp.ne.s32.totalorder %s64, %s66
    %p70 = scmp.eq.s32.totalorder %s9, 0
    %p71 = por %p69, %p70
    %p72 = scmp.ne.s32.totalorder %s64, %s66
    %p73 = scmp.eq.s32.totalorder %s14, 1
    %p74 = por %p72, %p73
    %p75 = scmp.ne.s32.totalorder %s66, %s67
    %p76 = scmp.eq.s32.totalorder %s14, 0
    %p77 = por %p75, %p76
    %p78 = scmp.ne.s32.totalorder %s66, %s67
    %p79 = scmp.eq.s32.totalorder %s15, 1
    %p80 = por %p78, %p79
    %p82 = scmp.ne.s32.totalorder %s67, %s81
    %p83 = scmp.eq.s32.totalorder %s15, 0
    %p84 = por %p82, %p83
    %s85 = ssub.s32 %s9, %s16
    %p86 = scmp.eq.s32.totalorder %s85, 0
    %s88 = sadd.s32 %s87, 1
    %s89 = scalar_select %p86, %s87, %s88
    %p92 = pneg %p86
    %p93 = scmp.eq.s32.totalorder %s9, 1
    %p94 = por %p92, %p93
    %p95 = scmp.ne.s32.totalorder %s87, %s90
    %p96 = scmp.eq.s32.totalorder %s9, 0
    %p97 = por %p95, %p96
    %p98 = scmp.ne.s32.totalorder %s87, %s90
    %p99 = scmp.eq.s32.totalorder %s14, 1
    %p100 = por %p98, %p99
    %p101 = scmp.ne.s32.totalorder %s90, %s91
    %p102 = scmp.eq.s32.totalorder %s14, 0
    %p103 = por %p101, %p102
    %p104 = scmp.ne.s32.totalorder %s90, %s91
    %p105 = scmp.eq.s32.totalorder %s15, 1
    %p106 = por %p104, %p105
    %p108 = scmp.ne.s32.totalorder %s91, %s107
    %p109 = scmp.eq.s32.totalorder %s15, 0
    %p110 = por %p108, %p109
    %p111 = scmp.le.s32.totalorder 1, %s9
    %p112 = scmp.lt.s32.totalorder %s9, 3
    %p113 = pnand %p111, %p112
    %p114 = pneg %p113
    // Predicated region
    $region9: #{forward.14} parent=5 // pred_check
      _
    $region10: #{forward.14} parent=5 // pred_check_branch
      %116 = sbr.rel (%p113) target = $region12
    $region11: #{forward.14} parent=5 // pred_region
      %s117 = ssub.s32 %s9, 1
      // Predicated region
      $region13: #{forward.14} parent=11 // pred_check
        %p118 = pneg %p56
      $region14: #{forward.14} parent=11 // pred_check_branch
        %120 = sbr.rel (%p118) target = $region16
      $region15: #{forward.14} parent=11 // pred_region
        _
      $region16: #{forward.14} parent=11 // pred_fallthru
        _
      // Predicated region
      $region17: #{forward.14} parent=11 // pred_check
        %p121 = pneg %p77
      $region18: #{forward.14} parent=11 // pred_check_branch
        %123 = sbr.rel (%p121) target = $region20
      $region19: #{forward.14} parent=11 // pred_region
        _
      $region20: #{forward.14} parent=11 // pred_fallthru
        _
    $region12: #{forward.14} parent=5 // pred_fallthru
      _
    %p124 = scmp.lt.s32.totalorder %s9, 2
    // Predicated region
    $region21: #{forward.14} parent=5 // pred_check
      %p125 = pneg %p124
    $region22: #{forward.14} parent=5 // pred_check_branch
      %127 = sbr.rel (%p125) target = $region24
    $region23: #{forward.14} parent=5 // pred_region
      // Predicated region
      $region25: #{forward.14} parent=23 // pred_check
        %p128 = pneg %p29
      $region26: #{forward.14} parent=23 // pred_check_branch
        %130 = sbr.rel (%p128) target = $region28
      $region27: #{forward.14} parent=23 // pred_region
        %s131 = smul.u32 32, %s9
        %p132 = scmp.lt.s32.totalorder %s131, 63
        %s133 = scalar_select %p132, %s131, 63
        %s134 = smul.addr %s133, 4
        %s135 = scalar_lea.vmem %s0, %s134
        %s136 = smul.u32 32, %s9
      $region28: #{forward.14} parent=23 // pred_fallthru
        _
    $region24: #{forward.14} parent=5 // pred_fallthru
      _
    %p137 = scmp.le.s32.totalorder 1, %s9
    %p138 = scmp.lt.s32.totalorder %s9, 3
    %p139 = pnand %p137, %p138
    %p140 = pneg %p139
    // Predicated region
    $region29: #{forward.14} parent=5 // pred_check
      _
    $region30: #{forward.14} parent=5 // pred_check_branch
      %142 = sbr.rel (%p139) target = $region32
    $region31: #{forward.14} parent=5 // pred_region
      %s143 = ssub.s32 %s9, 1
      %s144 = smul.u32 32, %s14
      %p145 = scmp.lt.s32.totalorder %s144, 63
      %s146 = scalar_select %p145, %s144, 63
      %s147 = smul.addr %s146, 4
      %s148 = scalar_lea.vmem %s0, %s147
      %p149 = pneg %p35
      %p150 = pneg %p32
      %p151 = pneg %p56
      %p152 = pneg %p53
      %p153 = pneg %p77
      %p154 = pneg %p74
      %p155 = pneg %p103
      %p156 = pneg %p100
      %s157 = smul.u32 32, %s14
      %p158 = scmp.lt.s32.totalorder %s157, 63
      %s159 = scalar_select %p158, %s157, 63
      %s160 = smul.addr %s159, 4
      %s161 = scalar_lea.vmem %s3, %s160
      %s162 = smul.u32 32, %s14
      %p163 = scmp.lt.s32.totalorder %s162, 63
      %s164 = scalar_select %p163, %s162, 63
      %s165 = smul.addr %s164, 4
      %s166 = scalar_lea.vmem %s0, %s165
      %s167 = smul.u32 32, %s14
      %s168 = smul.u32 32, %s14
      %p169 = scmp.lt.s32.totalorder %s168, 63
      %s170 = scalar_select %p169, %s168, 63
      %s171 = smul.addr %s170, 4
      %s172 = scalar_lea.vmem %s3, %s171
      %s173 = smul.u32 32, %s14
      %v175 = vld [vmem:[%s166] sm:$0xf]
      %v176 = vld [vmem:[%s166 + $0x4] sm:$0xf]
      %v177 = vld [vmem:[%s166 + $0x8] sm:$0xf]
      %v178 = vld [vmem:[%s166 + $0xc] sm:$0xf]
      %v179 = vld [vmem:[%s166 + $0x10] sm:$0xf]
      %v180 = vld [vmem:[%s166 + $0x14] sm:$0xf]
      %v181 = vld [vmem:[%s166 + $0x18] sm:$0xf]
      %v182 = vld [vmem:[%s166 + $0x1c] sm:$0xf]
      %v183 = vld [vmem:[%s166 + $0x20] sm:$0xf]
      %v184 = vld [vmem:[%s166 + $0x24] sm:$0xf]
      %v185 = vld [vmem:[%s166 + $0x28] sm:$0xf]
      %v186 = vld [vmem:[%s166 + $0x2c] sm:$0xf]
      %v187 = vld [vmem:[%s166 + $0x30] sm:$0xf]
      %v188 = vld [vmem:[%s166 + $0x34] sm:$0xf]
      %v189 = vld [vmem:[%s166 + $0x38] sm:$0xf]
      %v190 = vld [vmem:[%s166 + $0x3c] sm:$0xf]
      %v191 = vld [vmem:[%s166 + $0x40] sm:$0xf]
      %v192 = vld [vmem:[%s166 + $0x44] sm:$0xf]
      %v193 = vld [vmem:[%s166 + $0x48] sm:$0xf]
      %v194 = vld [vmem:[%s166 + $0x4c] sm:$0xf]
      %v195 = vld [vmem:[%s166 + $0x50] sm:$0xf]
      %v196 = vld [vmem:[%s166 + $0x54] sm:$0xf]
      %v197 = vld [vmem:[%s166 + $0x58] sm:$0xf]
      %v198 = vld [vmem:[%s166 + $0x5c] sm:$0xf]
      %v199 = vld [vmem:[%s166 + $0x60] sm:$0xf]
      %v200 = vld [vmem:[%s166 + $0x64] sm:$0xf]
      %v201 = vld [vmem:[%s166 + $0x68] sm:$0xf]
      %v202 = vld [vmem:[%s166 + $0x6c] sm:$0xf]
      %v203 = vld [vmem:[%s166 + $0x70] sm:$0xf]
      %v204 = vld [vmem:[%s166 + $0x74] sm:$0xf]
      %v205 = vld [vmem:[%s166 + $0x78] sm:$0xf]
      %v206 = vld [vmem:[%s166 + $0x7c] sm:$0xf]
      %v207 = vld [vmem:[%s1] sm:$0xf]
      %v208 = vld [vmem:[%s1 + $0x4] sm:$0xf]
      %v209 = vld [vmem:[%s2] sm:$0x1]
      %v211 = vlaneseq
      %v212 = vshrl.u32 %v211, 7
      %v213 = vsub.s32 0, %v212
      %v214 = vrot.slane %v209, %v213
      %v248 = vunpack.c.l.b16 %v175
      %v249 = vunpack.c.l.b16 %v176
      %v250 = vunpack.c.l.b16 %v177
      %v251 = vunpack.c.l.b16 %v178
      %v252 = vunpack.c.l.b16 %v179
      %v253 = vunpack.c.l.b16 %v180
      %v254 = vunpack.c.l.b16 %v181
      %v255 = vunpack.c.l.b16 %v182
      %v256 = vunpack.c.l.b16 %v183
      %v257 = vunpack.c.l.b16 %v184
      %v258 = vunpack.c.l.b16 %v185
      %v259 = vunpack.c.l.b16 %v186
      %v260 = vunpack.c.l.b16 %v187
      %v261 = vunpack.c.l.b16 %v188
      %v262 = vunpack.c.l.b16 %v189
      %v263 = vunpack.c.l.b16 %v190
      %v264 = vunpack.c.l.b16 %v191
      %v265 = vunpack.c.l.b16 %v192
      %v266 = vunpack.c.l.b16 %v193
      %v267 = vunpack.c.l.b16 %v194
      %v268 = vunpack.c.l.b16 %v195
      %v269 = vunpack.c.l.b16 %v196
      %v270 = vunpack.c.l.b16 %v197
      %v271 = vunpack.c.l.b16 %v198
      %v272 = vunpack.c.l.b16 %v199
      %v273 = vunpack.c.l.b16 %v200
      %v274 = vunpack.c.l.b16 %v201
      %v275 = vunpack.c.l.b16 %v202
      %v276 = vunpack.c.l.b16 %v203
      %v277 = vunpack.c.l.b16 %v204
      %v278 = vunpack.c.l.b16 %v205
      %v279 = vunpack.c.l.b16 %v206
      %v280 = vpack.c.b16 %v249, %v248
      %v281 = vpack.c.b16 %v251, %v250
      %v282 = vpack.c.b16 %v253, %v252
      %v283 = vpack.c.b16 %v255, %v254
      %v284 = vpack.c.b16 %v257, %v256
      %v285 = vpack.c.b16 %v259, %v258
      %v286 = vpack.c.b16 %v261, %v260
      %v287 = vpack.c.b16 %v263, %v262
      %v288 = vpack.c.b16 %v265, %v264
      %v289 = vpack.c.b16 %v267, %v266
      %v290 = vpack.c.b16 %v269, %v268
      %v291 = vpack.c.b16 %v271, %v270
      %v292 = vpack.c.b16 %v273, %v272
      %v293 = vpack.c.b16 %v275, %v274
      %v294 = vpack.c.b16 %v277, %v276
      %v295 = vpack.c.b16 %v279, %v278
      %v298 = vunpack.c.l.b16 %v207
      %v299 = vunpack.c.l.b16 %v208
      %v300 = vpack.c.b16 %v299, %v298
      %vm302 = vcmask 130048
      %v304 = vsel %vm302, %v280, 0
      %v307 = vsel %vm302, %v281, 0
      %v310 = vsel %vm302, %v282, 0
      %v313 = vsel %vm302, %v283, 0
      %v316 = vsel %vm302, %v284, 0
      %v319 = vsel %vm302, %v285, 0
      %v322 = vsel %vm302, %v286, 0
      %v325 = vsel %vm302, %v287, 0
      %v328 = vsel %vm302, %v288, 0
      %v331 = vsel %vm302, %v289, 0
      %v334 = vsel %vm302, %v290, 0
      %v337 = vsel %vm302, %v291, 0
      %v340 = vsel %vm302, %v292, 0
      %v343 = vsel %vm302, %v293, 0
      %v346 = vsel %vm302, %v294, 0
      %v349 = vsel %vm302, %v295, 0
      %351 = vmatprep.subr.bf16.mxu0 0
      %352 = vmatpush1.bf16.msra.mxu0 %v300
      %353 = vmatprep.subr.bf16.mxu0 0
      %354 = vmatpush1.bf16.msra.mxu0 0
      %355 = vmatprep.subr.bf16.mxu0 0
      %356 = vmatpush1.bf16.msra.mxu0 0
      %357 = vmatprep.subr.bf16.mxu0 0
      %358 = vmatpush1.bf16.msra.mxu0 0
      %359 = vmatprep.subr.bf16.mxu0 0
      %360 = vmatpush1.bf16.msra.mxu0 0
      %361 = vmatprep.subr.bf16.mxu0 0
      %362 = vmatpush1.bf16.msra.mxu0 0
      %363 = vmatprep.subr.bf16.mxu0 0
      %364 = vmatpush1.bf16.msra.mxu0 0
      %365 = vmatprep.subr.bf16.mxu0 0
      %366 = vmatpush1.bf16.msra.mxu0 0
      %367 = vmatprep.subr.bf16.mxu0 0
      %368 = vmatpush1.bf16.msra.mxu0 0
      %369 = vmatprep.subr.bf16.mxu0 0
      %370 = vmatpush1.bf16.msra.mxu0 0
      %371 = vmatprep.subr.bf16.mxu0 0
      %372 = vmatpush1.bf16.msra.mxu0 0
      %373 = vmatprep.subr.bf16.mxu0 0
      %374 = vmatpush1.bf16.msra.mxu0 0
      %375 = vmatprep.subr.bf16.mxu0 0
      %376 = vmatpush1.bf16.msra.mxu0 0
      %377 = vmatprep.subr.bf16.mxu0 0
      %378 = vmatpush1.bf16.msra.mxu0 0
      %379 = vmatprep.subr.bf16.mxu0 0
      %380 = vmatpush1.bf16.msra.mxu0 0
      %381 = vmatprep.subr.bf16.mxu0 0
      %382 = vmatpush1.bf16.msra.mxu0 0
      %383 = vmatprep.mubr.bf16.mxu0 0
      %384 = vmatmul.mubr.bf16.gmra.mrb[0].mxu0 %v304
      %v385 = vpop.f32.mrb[0].mxu0
      %v386 = vadd.f32 %v214, %v385
      %v387 = vpop.f32.mrb[0].mxu0
      %v388 = vpop.f32.mrb[0].mxu0
      %v389 = vadd.f32 %v214, %v388
      %v390 = vpop.f32.mrb[0].mxu0
      %391 = vmatprep.mubr.bf16.mxu0 0
      %392 = vmatmul.mubr.bf16.gmra.mrb[0].mxu0 %v307
      %v393 = vpop.f32.mrb[0].mxu0
      %v394 = vadd.f32 %v214, %v393
      %v395 = vpop.f32.mrb[0].mxu0
      %v396 = vpop.f32.mrb[0].mxu0
      %v397 = vadd.f32 %v214, %v396
      %v398 = vpop.f32.mrb[0].mxu0
      %399 = vmatprep.mubr.bf16.mxu0 0
      %400 = vmatmul.mubr.bf16.gmra.mrb[0].mxu0 %v310
      %v401 = vpop.f32.mrb[0].mxu0
      %v402 = vadd.f32 %v214, %v401
      %v403 = vpop.f32.mrb[0].mxu0
      %v404 = vpop.f32.mrb[0].mxu0
      %v405 = vadd.f32 %v214, %v404
      %v406 = vpop.f32.mrb[0].mxu0
      %407 = vmatprep.mubr.bf16.mxu0 0
      %408 = vmatmul.mubr.bf16.gmra.mrb[0].mxu0 %v313
      %v409 = vpop.f32.mrb[0].mxu0
      %v410 = vadd.f32 %v214, %v409
      %v411 = vpop.f32.mrb[0].mxu0
      %v412 = vpop.f32.mrb[0].mxu0
      %v413 = vadd.f32 %v214, %v412
      %v414 = vpop.f32.mrb[0].mxu0
      %415 = vmatprep.mubr.bf16.mxu0 0
      %416 = vmatmul.mubr.bf16.gmra.mrb[0].mxu0 %v316
      %v417 = vpop.f32.mrb[0].mxu0
      %v418 = vadd.f32 %v214, %v417
      %v419 = vpop.f32.mrb[0].mxu0
      %v420 = vpop.f32.mrb[0].mxu0
      %v421 = vadd.f32 %v214, %v420
      %v422 = vpop.f32.mrb[0].mxu0
      %423 = vmatprep.mubr.bf16.mxu0 0
      %424 = vmatmul.mubr.bf16.gmra.mrb[0].mxu0 %v319
      %v425 = vpop.f32.mrb[0].mxu0
      %v426 = vadd.f32 %v214, %v425
      %v427 = vpop.f32.mrb[0].mxu0
      %v428 = vpop.f32.mrb[0].mxu0
      %v429 = vadd.f32 %v214, %v428
      %v430 = vpop.f32.mrb[0].mxu0
      %431 = vmatprep.mubr.bf16.mxu0 0
      %432 = vmatmul.mubr.bf16.gmra.mrb[0].mxu0 %v322
      %v433 = vpop.f32.mrb[0].mxu0
      %v434 = vadd.f32 %v214, %v433
      %v435 = vpop.f32.mrb[0].mxu0
      %v436 = vpop.f32.mrb[0].mxu0
      %v437 = vadd.f32 %v214, %v436
      %v438 = vpop.f32.mrb[0].mxu0
      %439 = vmatprep.mubr.bf16.mxu0 0
      %440 = vmatmul.mubr.bf16.gmra.mrb[0].mxu0 %v325
      %v441 = vpop.f32.mrb[0].mxu0
      %v442 = vadd.f32 %v214, %v441
      %v443 = vpop.f32.mrb[0].mxu0
      %v444 = vpop.f32.mrb[0].mxu0
      %v445 = vadd.f32 %v214, %v444
      %v446 = vpop.f32.mrb[0].mxu0
      %447 = vmatprep.mubr.bf16.mxu0 0
      %448 = vmatmul.mubr.bf16.gmra.mrb[0].mxu0 %v328
      %v449 = vpop.f32.mrb[0].mxu0
      %v450 = vadd.f32 %v214, %v449
      %v451 = vpop.f32.mrb[0].mxu0
      %v452 = vpop.f32.mrb[0].mxu0
      %v453 = vadd.f32 %v214, %v452
      %v454 = vpop.f32.mrb[0].mxu0
      %455 = vmatprep.mubr.bf16.mxu0 0
      %456 = vmatmul.mubr.bf16.gmra.mrb[0].mxu0 %v331
      %v457 = vpop.f32.mrb[0].mxu0
      %v458 = vadd.f32 %v214, %v457
      %v459 = vpop.f32.mrb[0].mxu0
      %v460 = vpop.f32.mrb[0].mxu0
      %v461 = vadd.f32 %v214, %v460
      %v462 = vpop.f32.mrb[0].mxu0
      %463 = vmatprep.mubr.bf16.mxu0 0
      %464 = vmatmul.mubr.bf16.gmra.mrb[0].mxu0 %v334
      %v465 = vpop.f32.mrb[0].mxu0
      %v466 = vadd.f32 %v214, %v465
      %v467 = vpop.f32.mrb[0].mxu0
      %v468 = vpop.f32.mrb[0].mxu0
      %v469 = vadd.f32 %v214, %v468
      %v470 = vpop.f32.mrb[0].mxu0
      %471 = vmatprep.mubr.bf16.mxu0 0
      %472 = vmatmul.mubr.bf16.gmra.mrb[0].mxu0 %v337
      %v473 = vpop.f32.mrb[0].mxu0
      %v474 = vadd.f32 %v214, %v473
      %v475 = vpop.f32.mrb[0].mxu0
      %v476 = vpop.f32.mrb[0].mxu0
      %v477 = vadd.f32 %v214, %v476
      %v478 = vpop.f32.mrb[0].mxu0
      %479 = vmatprep.mubr.bf16.mxu0 0
      %480 = vmatmul.mubr.bf16.gmra.mrb[0].mxu0 %v340
      %v481 = vpop.f32.mrb[0].mxu0
      %v482 = vadd.f32 %v214, %v481
      %v483 = vpop.f32.mrb[0].mxu0
      %v484 = vpop.f32.mrb[0].mxu0
      %v485 = vadd.f32 %v214, %v484
      %v486 = vpop.f32.mrb[0].mxu0
      %487 = vmatprep.mubr.bf16.mxu0 0
      %488 = vmatmul.mubr.bf16.gmra.mrb[0].mxu0 %v343
      %v489 = vpop.f32.mrb[0].mxu0
      %v490 = vadd.f32 %v214, %v489
      %v491 = vpop.f32.mrb[0].mxu0
      %v492 = vpop.f32.mrb[0].mxu0
      %v493 = vadd.f32 %v214, %v492
      %v494 = vpop.f32.mrb[0].mxu0
      %495 = vmatprep.mubr.bf16.mxu0 0
      %496 = vmatmul.mubr.bf16.gmra.mrb[0].mxu0 %v346
      %v497 = vpop.f32.mrb[0].mxu0
      %v498 = vadd.f32 %v214, %v497
      %v499 = vpop.f32.mrb[0].mxu0
      %v500 = vpop.f32.mrb[0].mxu0
      %v501 = vadd.f32 %v214, %v500
      %v502 = vpop.f32.mrb[0].mxu0
      %503 = vmatprep.mubr.bf16.mxu0 0
      %504 = vmatmul.mubr.bf16.gmra.mrb[0].mxu0 %v349
      %v505 = vpop.f32.mrb[0].mxu0
      %v506 = vadd.f32 %v214, %v505
      %v507 = vpop.f32.mrb[0].mxu0
      %v508 = vpop.f32.mrb[0].mxu0
      %v509 = vadd.f32 %v214, %v508
      %v510 = vpop.f32.mrb[0].mxu0
      %511 = vdwg.mxu0
      %v512 = vpack.c.bf16 %v389, %v386
      %v513 = vpack.c.bf16 %v397, %v394
      %v514 = vpack.c.bf16 %v405, %v402
      %v515 = vpack.c.bf16 %v413, %v410
      %v516 = vpack.c.bf16 %v421, %v418
      %v517 = vpack.c.bf16 %v429, %v426
      %v518 = vpack.c.bf16 %v437, %v434
      %v519 = vpack.c.bf16 %v445, %v442
      %v520 = vpack.c.bf16 %v453, %v450
      %v521 = vpack.c.bf16 %v461, %v458
      %v522 = vpack.c.bf16 %v469, %v466
      %v523 = vpack.c.bf16 %v477, %v474
      %v524 = vpack.c.bf16 %v485, %v482
      %v525 = vpack.c.bf16 %v493, %v490
      %v526 = vpack.c.bf16 %v501, %v498
      %v527 = vpack.c.bf16 %v509, %v506
      %v544 = vunpack.c.l.b16 %v512
      %v545 = vunpack.c.h.b16 %v512
      %v546 = vunpack.c.l.b16 %v513
      %v547 = vunpack.c.h.b16 %v513
      %v548 = vunpack.c.l.b16 %v514
      %v549 = vunpack.c.h.b16 %v514
      %v550 = vunpack.c.l.b16 %v515
      %v551 = vunpack.c.h.b16 %v515
      %v552 = vunpack.c.l.b16 %v516
      %v553 = vunpack.c.h.b16 %v516
      %v554 = vunpack.c.l.b16 %v517
      %v555 = vunpack.c.h.b16 %v517
      %v556 = vunpack.c.l.b16 %v518
      %v557 = vunpack.c.h.b16 %v518
      %v558 = vunpack.c.l.b16 %v519
      %v559 = vunpack.c.h.b16 %v519
      %v560 = vunpack.c.l.b16 %v520
      %v561 = vunpack.c.h.b16 %v520
      %v562 = vunpack.c.l.b16 %v521
      %v563 = vunpack.c.h.b16 %v521
      %v564 = vunpack.c.l.b16 %v522
      %v565 = vunpack.c.h.b16 %v522
      %v566 = vunpack.c.l.b16 %v523
      %v567 = vunpack.c.h.b16 %v523
      %v568 = vunpack.c.l.b16 %v524
      %v569 = vunpack.c.h.b16 %v524
      %v570 = vunpack.c.l.b16 %v525
      %v571 = vunpack.c.h.b16 %v525
      %v572 = vunpack.c.l.b16 %v526
      %v573 = vunpack.c.h.b16 %v526
      %v574 = vunpack.c.l.b16 %v527
      %v575 = vunpack.c.h.b16 %v527
      %v576 = vpack.c.b16 %v544, %v544
      %v577 = vpack.c.b16 %v545, %v545
      %v578 = vpack.c.b16 %v546, %v546
      %v579 = vpack.c.b16 %v547, %v547
      %v580 = vpack.c.b16 %v548, %v548
      %v581 = vpack.c.b16 %v549, %v549
      %v582 = vpack.c.b16 %v550, %v550
      %v583 = vpack.c.b16 %v551, %v551
      %v584 = vpack.c.b16 %v552, %v552
      %v585 = vpack.c.b16 %v553, %v553
      %v586 = vpack.c.b16 %v554, %v554
      %v587 = vpack.c.b16 %v555, %v555
      %v588 = vpack.c.b16 %v556, %v556
      %v589 = vpack.c.b16 %v557, %v557
      %v590 = vpack.c.b16 %v558, %v558
      %v591 = vpack.c.b16 %v559, %v559
      %v592 = vpack.c.b16 %v560, %v560
      %v593 = vpack.c.b16 %v561, %v561
      %v594 = vpack.c.b16 %v562, %v562
      %v595 = vpack.c.b16 %v563, %v563
      %v596 = vpack.c.b16 %v564, %v564
      %v597 = vpack.c.b16 %v565, %v565
      %v598 = vpack.c.b16 %v566, %v566
      %v599 = vpack.c.b16 %v567, %v567
      %v600 = vpack.c.b16 %v568, %v568
      %v601 = vpack.c.b16 %v569, %v569
      %v602 = vpack.c.b16 %v570, %v570
      %v603 = vpack.c.b16 %v571, %v571
      %v604 = vpack.c.b16 %v572, %v572
      %v605 = vpack.c.b16 %v573, %v573
      %v606 = vpack.c.b16 %v574, %v574
      %v607 = vpack.c.b16 %v575, %v575
      %vm640 = vcmask 257024
      %641 = vst.msk [vmem:[%s172] sm:$0xf] %vm640, %v576
      %642 = vst.msk [vmem:[%s172 + $0x4] sm:$0xf] %vm640, %v577
      %643 = vst.msk [vmem:[%s172 + $0x8] sm:$0xf] %vm640, %v578
      %644 = vst.msk [vmem:[%s172 + $0xc] sm:$0xf] %vm640, %v579
      %645 = vst.msk [vmem:[%s172 + $0x10] sm:$0xf] %vm640, %v580
      %646 = vst.msk [vmem:[%s172 + $0x14] sm:$0xf] %vm640, %v581
      %647 = vst.msk [vmem:[%s172 + $0x18] sm:$0xf] %vm640, %v582
      %648 = vst.msk [vmem:[%s172 + $0x1c] sm:$0xf] %vm640, %v583
      %649 = vst.msk [vmem:[%s172 + $0x20] sm:$0xf] %vm640, %v584
      %650 = vst.msk [vmem:[%s172 + $0x24] sm:$0xf] %vm640, %v585
      %651 = vst.msk [vmem:[%s172 + $0x28] sm:$0xf] %vm640, %v586
      %652 = vst.msk [vmem:[%s172 + $0x2c] sm:$0xf] %vm640, %v587
      %653 = vst.msk [vmem:[%s172 + $0x30] sm:$0xf] %vm640, %v588
      %654 = vst.msk [vmem:[%s172 + $0x34] sm:$0xf] %vm640, %v589
      %655 = vst.msk [vmem:[%s172 + $0x38] sm:$0xf] %vm640, %v590
      %656 = vst.msk [vmem:[%s172 + $0x3c] sm:$0xf] %vm640, %v591
      %657 = vst.msk [vmem:[%s172 + $0x40] sm:$0xf] %vm640, %v592
      %658 = vst.msk [vmem:[%s172 + $0x44] sm:$0xf] %vm640, %v593
      %659 = vst.msk [vmem:[%s172 + $0x48] sm:$0xf] %vm640, %v594
      %660 = vst.msk [vmem:[%s172 + $0x4c] sm:$0xf] %vm640, %v595
      %661 = vst.msk [vmem:[%s172 + $0x50] sm:$0xf] %vm640, %v596
      %662 = vst.msk [vmem:[%s172 + $0x54] sm:$0xf] %vm640, %v597
      %663 = vst.msk [vmem:[%s172 + $0x58] sm:$0xf] %vm640, %v598
      %664 = vst.msk [vmem:[%s172 + $0x5c] sm:$0xf] %vm640, %v599
      %665 = vst.msk [vmem:[%s172 + $0x60] sm:$0xf] %vm640, %v600
      %666 = vst.msk [vmem:[%s172 + $0x64] sm:$0xf] %vm640, %v601
      %667 = vst.msk [vmem:[%s172 + $0x68] sm:$0xf] %vm640, %v602
      %668 = vst.msk [vmem:[%s172 + $0x6c] sm:$0xf] %vm640, %v603
      %669 = vst.msk [vmem:[%s172 + $0x70] sm:$0xf] %vm640, %v604
      %670 = vst.msk [vmem:[%s172 + $0x74] sm:$0xf] %vm640, %v605
      %671 = vst.msk [vmem:[%s172 + $0x78] sm:$0xf] %vm640, %v606
      %672 = vst.msk [vmem:[%s172 + $0x7c] sm:$0xf] %vm640, %v607
      %s673 = smul.u32 32, %s14
      %p674 = scmp.lt.s32.totalorder %s673, 63
      %s675 = scalar_select %p674, %s673, 63
      %s676 = smul.addr %s675, 4
      %s677 = scalar_lea.vmem %s3, %s676
      // Predicated region
      $region33: #{forward.14} parent=31 // pred_check
        %p678 = pneg %p100
      $region34: #{forward.14} parent=31 // pred_check_branch
        %680 = sbr.rel (%p678) target = $region36
      $region35: #{forward.14} parent=31 // pred_region
        %s681 = smul.u32 32, %s14
      $region36: #{forward.14} parent=31 // pred_fallthru
        _
    $region32: #{forward.14} parent=5 // pred_fallthru
      _
    %p682 = scmp.le.s32.totalorder 2, %s9
    // Predicated region
    $region37: #{forward.14} parent=5 // pred_check
      %p683 = pneg %p682
    $region38: #{forward.14} parent=5 // pred_check_branch
      %685 = sbr.rel (%p683) target = $region40
    $region39: #{forward.14} parent=5 // pred_region
      %s686 = ssub.s32 %s9, 2
      // Predicated region
      $region41: #{forward.14} parent=39 // pred_check
        %p687 = pneg %p106
      $region42: #{forward.14} parent=39 // pred_check_branch
        %689 = sbr.rel (%p687) target = $region44
      $region43: #{forward.14} parent=39 // pred_region
        %s690 = smul.u32 32, %s15
        %p691 = scmp.lt.s32.totalorder %s690, 63
        %s692 = scalar_select %p691, %s690, 63
        %s693 = smul.addr %s692, 4
        %s694 = scalar_lea.vmem %s3, %s693
      $region44: #{forward.14} parent=39 // pred_fallthru
        _
    $region40: #{forward.14} parent=5 // pred_fallthru
      _
  $region6: #{forward.14} parent=0 // loop_footer
    %s13 = sadd.s32 1, %s9
  $region7: #{forward.14} parent=0 // loop_footer_branch
    %8 = sbr.rel target = $region3
  $region8: #{forward.14} parent=0 // loop_exit
    _

// kernel: forward.15
$region0: #{forward.15}
  #allocation0 [shape = 'u32[]', space=smem, size = 0x4, offset = 0x4, fixed_abs, tag = 'smem constant byte address 0x4 - core index']
  #allocation1 [shape = 'u32[144,128]{1,0:T(1,128)}', space=vmem, size = 0x12000, scoped, tag = 'internal scratch']
  %s0 = inlined_call_operand.vmem [shape: bf16[512,288], index: 0, kind: input, shape index: {}]
  %s1 = inlined_call_operand.vmem [shape: bf16[288,32], index: 1, kind: input, shape index: {}]
  %s2 = inlined_call_operand.vmem [shape: f32[1,32], index: 2, kind: input, shape index: {}]
  %s3 = inlined_call_operand.vmem [shape: bf16[512,32], index: 3, kind: input, shape index: {}]
  %s4 = inlined_call_operand.vmem [shape: bf16[512,32], index: 4, kind: output, shape index: {}]
  %s5 = sld [smem:[#allocation0]]
  $region49: #{forward.15} parent=0
    _
  %s7 = ssub.s32 1, %s5
  %s8 = scalar_select 0, %s7, %s5
  loop: start=0, step=1, limit=4
  $region2: #{forward.15} parent=0 // loop_pre_header
    _
  $region3: #{forward.15} parent=0 // loop_header
    %s10 = sphi 0, %s14
    %p11 = scmp.ge.s32.totalorder %s10, 4
    %s20 = sphi 0, %s22
    %s23 = sphi 0, %s20
    %s24 = sphi 0, %s23
    %s40 = sphi 0, %s24
    %s44 = sphi 0, %s44
    %s46 = sphi 0, %s44
    %s47 = sphi 0, %s46
    %s61 = sphi 0, %s47
    %s65 = sphi 0, %s65
    %s67 = sphi 0, %s65
    %s68 = sphi 0, %s67
    %s82 = sphi 0, %s68
    %s88 = sphi 0, %s90
    %s91 = sphi 0, %s88
    %s92 = sphi 0, %s91
    %s108 = sphi 0, %s92
    %s114 = sphi 0, %s116
    %s117 = sphi 0, %s114
    %s118 = sphi 0, %s117
    %s134 = sphi 0, %s118
  $region4: #{forward.15} parent=0 // loop_header_branch
    %13 = sbr.rel (%p11) target = $region8
  $region5: #{forward.15} parent=0 // loop_body
    %s15 = ssub.s32 %s10, 1
    %s16 = ssub.s32 %s10, 2
    %s17 = sadd.s32 %s10, 1
    %s18 = ssub.s32 %s10, %s17
    %p19 = scmp.eq.s32.totalorder %s18, 0
    %s21 = sadd.s32 %s20, 1
    %s22 = scalar_select %p19, %s20, %s21
    %p25 = pneg %p19
    %p26 = scmp.eq.s32.totalorder %s10, 1
    %p27 = por %p25, %p26
    %p28 = scmp.ne.s32.totalorder %s20, %s23
    %p29 = scmp.eq.s32.totalorder %s10, 0
    %p30 = por %p28, %p29
    %p31 = scmp.ne.s32.totalorder %s20, %s23
    %p32 = scmp.eq.s32.totalorder %s15, 1
    %p33 = por %p31, %p32
    %p34 = scmp.ne.s32.totalorder %s23, %s24
    %p35 = scmp.eq.s32.totalorder %s15, 0
    %p36 = por %p34, %p35
    %p37 = scmp.ne.s32.totalorder %s23, %s24
    %p38 = scmp.eq.s32.totalorder %s16, 1
    %p39 = por %p37, %p38
    %p41 = scmp.ne.s32.totalorder %s24, %s40
    %p42 = scmp.eq.s32.totalorder %s16, 0
    %p43 = por %p41, %p42
    %s45 = sadd.s32 %s44, 1
    %p48 = scmp.eq.s32.totalorder %s10, 1
    %p49 = scmp.ne.s32.totalorder %s44, %s46
    %p50 = scmp.eq.s32.totalorder %s10, 0
    %p51 = por %p49, %p50
    %p52 = scmp.ne.s32.totalorder %s44, %s46
    %p53 = scmp.eq.s32.totalorder %s15, 1
    %p54 = por %p52, %p53
    %p55 = scmp.ne.s32.totalorder %s46, %s47
    %p56 = scmp.eq.s32.totalorder %s15, 0
    %p57 = por %p55, %p56
    %p58 = scmp.ne.s32.totalorder %s46, %s47
    %p59 = scmp.eq.s32.totalorder %s16, 1
    %p60 = por %p58, %p59
    %p62 = scmp.ne.s32.totalorder %s47, %s61
    %p63 = scmp.eq.s32.totalorder %s16, 0
    %p64 = por %p62, %p63
    %s66 = sadd.s32 %s65, 1
    %p69 = scmp.eq.s32.totalorder %s10, 1
    %p70 = scmp.ne.s32.totalorder %s65, %s67
    %p71 = scmp.eq.s32.totalorder %s10, 0
    %p72 = por %p70, %p71
    %p73 = scmp.ne.s32.totalorder %s65, %s67
    %p74 = scmp.eq.s32.totalorder %s15, 1
    %p75 = por %p73, %p74
    %p76 = scmp.ne.s32.totalorder %s67, %s68
    %p77 = scmp.eq.s32.totalorder %s15, 0
    %p78 = por %p76, %p77
    %p79 = scmp.ne.s32.totalorder %s67, %s68
    %p80 = scmp.eq.s32.totalorder %s16, 1
    %p81 = por %p79, %p80
    %p83 = scmp.ne.s32.totalorder %s68, %s82
    %p84 = scmp.eq.s32.totalorder %s16, 0
    %p85 = por %p83, %p84
    %s86 = ssub.s32 %s10, %s17
    %p87 = scmp.eq.s32.totalorder %s86, 0
    %s89 = sadd.s32 %s88, 1
    %s90 = scalar_select %p87, %s88, %s89
    %p93 = pneg %p87
    %p94 = scmp.eq.s32.totalorder %s10, 1
    %p95 = por %p93, %p94
    %p96 = scmp.ne.s32.totalorder %s88, %s91
    %p97 = scmp.eq.s32.totalorder %s10, 0
    %p98 = por %p96, %p97
    %p99 = scmp.ne.s32.totalorder %s88, %s91
    %p100 = scmp.eq.s32.totalorder %s15, 1
    %p101 = por %p99, %p100
    %p102 = scmp.ne.s32.totalorder %s91, %s92
    %p103 = scmp.eq.s32.totalorder %s15, 0
    %p104 = por %p102, %p103
    %p105 = scmp.ne.s32.totalorder %s91, %s92
    %p106 = scmp.eq.s32.totalorder %s16, 1
    %p107 = por %p105, %p106
    %p109 = scmp.ne.s32.totalorder %s92, %s108
    %p110 = scmp.eq.s32.totalorder %s16, 0
    %p111 = por %p109, %p110
    %s112 = ssub.s32 %s10, %s17
    %p113 = scmp.eq.s32.totalorder %s112, 0
    %s115 = sadd.s32 %s114, 1
    %s116 = scalar_select %p113, %s114, %s115
    %p119 = pneg %p113
    %p120 = scmp.eq.s32.totalorder %s10, 1
    %p121 = por %p119, %p120
    %p122 = scmp.ne.s32.totalorder %s114, %s117
    %p123 = scmp.eq.s32.totalorder %s10, 0
    %p124 = por %p122, %p123
    %p125 = scmp.ne.s32.totalorder %s114, %s117
    %p126 = scmp.eq.s32.totalorder %s15, 1
    %p127 = por %p125, %p126
    %p128 = scmp.ne.s32.totalorder %s117, %s118
    %p129 = scmp.eq.s32.totalorder %s15, 0
    %p130 = por %p128, %p129
    %p131 = scmp.ne.s32.totalorder %s117, %s118
    %p132 = scmp.eq.s32.totalorder %s16, 1
    %p133 = por %p131, %p132
    %p135 = scmp.ne.s32.totalorder %s118, %s134
    %p136 = scmp.eq.s32.totalorder %s16, 0
    %p137 = por %p135, %p136
    %p138 = scmp.le.s32.totalorder 1, %s10
    %p139 = scmp.lt.s32.totalorder %s10, 3
    %p140 = pnand %p138, %p139
    %p141 = pneg %p140
    // Predicated region
    $region9: #{forward.15} parent=5 // pred_check
      _
    $region10: #{forward.15} parent=5 // pred_check_branch
      %143 = sbr.rel (%p140) target = $region12
    $region11: #{forward.15} parent=5 // pred_region
      %s144 = ssub.s32 %s10, 1
      // Predicated region
      $region13: #{forward.15} parent=11 // pred_check
        %p145 = pneg %p57
      $region14: #{forward.15} parent=11 // pred_check_branch
        %147 = sbr.rel (%p145) target = $region16
      $region15: #{forward.15} parent=11 // pred_region
        _
      $region16: #{forward.15} parent=11 // pred_fallthru
        _
      // Predicated region
      $region17: #{forward.15} parent=11 // pred_check
        %p148 = pneg %p78
      $region18: #{forward.15} parent=11 // pred_check_branch
        %150 = sbr.rel (%p148) target = $region20
      $region19: #{forward.15} parent=11 // pred_region
        _
      $region20: #{forward.15} parent=11 // pred_fallthru
        _
    $region12: #{forward.15} parent=5 // pred_fallthru
      _
    %p151 = scmp.lt.s32.totalorder %s10, 2
    // Predicated region
    $region21: #{forward.15} parent=5 // pred_check
      %p152 = pneg %p151
    $region22: #{forward.15} parent=5 // pred_check_branch
      %154 = sbr.rel (%p152) target = $region24
    $region23: #{forward.15} parent=5 // pred_region
      // Predicated region
      $region25: #{forward.15} parent=23 // pred_check
        %p155 = pneg %p30
      $region26: #{forward.15} parent=23 // pred_check_branch
        %157 = sbr.rel (%p155) target = $region28
      $region27: #{forward.15} parent=23 // pred_region
        %s158 = smul.u32 32, %s10
        %p159 = scmp.lt.s32.totalorder %s158, 63
        %s160 = scalar_select %p159, %s158, 63
        %s161 = smul.addr %s160, 3
        %s162 = smul.addr %s161, 4
        %s163 = scalar_lea.vmem %s0, %s162
        %s164 = smul.u32 32, %s10
      $region28: #{forward.15} parent=23 // pred_fallthru
        _
      // Predicated region
      $region29: #{forward.15} parent=23 // pred_check
        %p165 = pneg %p98
      $region30: #{forward.15} parent=23 // pred_check_branch
        %167 = sbr.rel (%p165) target = $region32
      $region31: #{forward.15} parent=23 // pred_region
        %s168 = smul.u32 32, %s10
        %p169 = scmp.lt.s32.totalorder %s168, 63
        %s170 = scalar_select %p169, %s168, 63
        %s171 = smul.addr %s170, 4
        %s172 = scalar_lea.vmem %s3, %s171
        %s173 = smul.u32 32, %s10
      $region32: #{forward.15} parent=23 // pred_fallthru
        _
    $region24: #{forward.15} parent=5 // pred_fallthru
      _
    %p174 = scmp.le.s32.totalorder 1, %s10
    %p175 = scmp.lt.s32.totalorder %s10, 3
    %p176 = pnand %p174, %p175
    %p177 = pneg %p176
    // Predicated region
    $region33: #{forward.15} parent=5 // pred_check
      _
    $region34: #{forward.15} parent=5 // pred_check_branch
      %179 = sbr.rel (%p176) target = $region36
    $region35: #{forward.15} parent=5 // pred_region
      %s180 = ssub.s32 %s10, 1
      %s181 = smul.u32 32, %s15
      %p182 = scmp.lt.s32.totalorder %s181, 63
      %s183 = scalar_select %p182, %s181, 63
      %s184 = smul.addr %s183, 3
      %s185 = smul.addr %s184, 4
      %s186 = scalar_lea.vmem %s0, %s185
      %p187 = pneg %p36
      %p188 = pneg %p33
      %p189 = pneg %p57
      %p190 = pneg %p54
      %p191 = pneg %p78
      %p192 = pneg %p75
      %s193 = smul.u32 32, %s15
      %p194 = scmp.lt.s32.totalorder %s193, 63
      %s195 = scalar_select %p194, %s193, 63
      %s196 = smul.addr %s195, 4
      %s197 = scalar_lea.vmem %s3, %s196
      %p198 = pneg %p104
      %p199 = pneg %p101
      %p200 = pneg %p130
      %p201 = pneg %p127
      %s202 = smul.u32 32, %s15
      %p203 = scmp.lt.s32.totalorder %s202, 63
      %s204 = scalar_select %p203, %s202, 63
      %s205 = smul.addr %s204, 4
      %s206 = scalar_lea.vmem %s4, %s205
      %s207 = smul.u32 32, %s15
      %p208 = scmp.lt.s32.totalorder %s207, 63
      %s209 = scalar_select %p208, %s207, 63
      %s210 = smul.addr %s209, 3
      %s211 = smul.addr %s210, 4
      %s212 = scalar_lea.vmem %s0, %s211
      %s213 = smul.u32 32, %s15
      %s214 = smul.u32 32, %s15
      %p215 = scmp.lt.s32.totalorder %s214, 63
      %s216 = scalar_select %p215, %s214, 63
      %s217 = smul.addr %s216, 4
      %s218 = scalar_lea.vmem %s3, %s217
      %s219 = smul.u32 32, %s15
      %s220 = smul.u32 32, %s15
      %p221 = scmp.lt.s32.totalorder %s220, 63
      %s222 = scalar_select %p221, %s220, 63
      %s223 = smul.addr %s222, 4
      %s224 = scalar_lea.vmem %s4, %s223
      %s225 = smul.u32 32, %s15
      %v227 = vld [vmem:[%s212] sm:$0xff]
      %v228 = vld [vmem:[%s212 + $0x8] sm:$0xf]
      %v229 = vld [vmem:[%s212 + $0xc] sm:$0xff]
      %v230 = vld [vmem:[%s212 + $0x14] sm:$0xf]
      %v231 = vld [vmem:[%s212 + $0x18] sm:$0xff]
      %v232 = vld [vmem:[%s212 + $0x20] sm:$0xf]
      %v233 = vld [vmem:[%s212 + $0x24] sm:$0xff]
      %v234 = vld [vmem:[%s212 + $0x2c] sm:$0xf]
      %v235 = vld [vmem:[%s212 + $0x30] sm:$0xff]
      %v236 = vld [vmem:[%s212 + $0x38] sm:$0xf]
      %v237 = vld [vmem:[%s212 + $0x3c] sm:$0xff]
      %v238 = vld [vmem:[%s212 + $0x44] sm:$0xf]
      %v239 = vld [vmem:[%s212 + $0x48] sm:$0xff]
      %v240 = vld [vmem:[%s212 + $0x50] sm:$0xf]
      %v241 = vld [vmem:[%s212 + $0x54] sm:$0xff]
      %v242 = vld [vmem:[%s212 + $0x5c] sm:$0xf]
      %v243 = vld [vmem:[%s212 + $0x60] sm:$0xff]
      %v244 = vld [vmem:[%s212 + $0x68] sm:$0xf]
      %v245 = vld [vmem:[%s212 + $0x6c] sm:$0xff]
      %v246 = vld [vmem:[%s212 + $0x74] sm:$0xf]
      %v247 = vld [vmem:[%s212 + $0x78] sm:$0xff]
      %v248 = vld [vmem:[%s212 + $0x80] sm:$0xf]
      %v249 = vld [vmem:[%s212 + $0x84] sm:$0xff]
      %v250 = vld [vmem:[%s212 + $0x8c] sm:$0xf]
      %v251 = vld [vmem:[%s212 + $0x90] sm:$0xff]
      %v252 = vld [vmem:[%s212 + $0x98] sm:$0xf]
      %v253 = vld [vmem:[%s212 + $0x9c] sm:$0xff]
      %v254 = vld [vmem:[%s212 + $0xa4] sm:$0xf]
      %v255 = vld [vmem:[%s212 + $0xa8] sm:$0xff]
      %v256 = vld [vmem:[%s212 + $0xb0] sm:$0xf]
      %v257 = vld [vmem:[%s212 + $0xb4] sm:$0xff]
      %v258 = vld [vmem:[%s212 + $0xbc] sm:$0xf]
      %v259 = vld [vmem:[%s212 + $0xc0] sm:$0xff]
      %v260 = vld [vmem:[%s212 + $0xc8] sm:$0xf]
      %v261 = vld [vmem:[%s212 + $0xcc] sm:$0xff]
      %v262 = vld [vmem:[%s212 + $0xd4] sm:$0xf]
      %v263 = vld [vmem:[%s212 + $0xd8] sm:$0xff]
      %v264 = vld [vmem:[%s212 + $0xe0] sm:$0xf]
      %v265 = vld [vmem:[%s212 + $0xe4] sm:$0xff]
      %v266 = vld [vmem:[%s212 + $0xec] sm:$0xf]
      %v267 = vld [vmem:[%s212 + $0xf0] sm:$0xff]
      %v268 = vld [vmem:[%s212 + $0xf8] sm:$0xf]
      %v269 = vld [vmem:[%s212 + $0xfc] sm:$0xff]
      %v270 = vld [vmem:[%s212 + $0x104] sm:$0xf]
      %v271 = vld [vmem:[%s212 + $0x108] sm:$0xff]
      %v272 = vld [vmem:[%s212 + $0x110] sm:$0xf]
      %v273 = vld [vmem:[%s212 + $0x114] sm:$0xff]
      %v274 = vld [vmem:[%s212 + $0x11c] sm:$0xf]
      %v275 = vld [vmem:[%s212 + $0x120] sm:$0xff]
      %v276 = vld [vmem:[%s212 + $0x128] sm:$0xf]
      %v277 = vld [vmem:[%s212 + $0x12c] sm:$0xff]
      %v278 = vld [vmem:[%s212 + $0x134] sm:$0xf]
      %v279 = vld [vmem:[%s212 + $0x138] sm:$0xff]
      %v280 = vld [vmem:[%s212 + $0x140] sm:$0xf]
      %v281 = vld [vmem:[%s212 + $0x144] sm:$0xff]
      %v282 = vld [vmem:[%s212 + $0x14c] sm:$0xf]
      %v283 = vld [vmem:[%s212 + $0x150] sm:$0xff]
      %v284 = vld [vmem:[%s212 + $0x158] sm:$0xf]
      %v285 = vld [vmem:[%s212 + $0x15c] sm:$0xff]
      %v286 = vld [vmem:[%s212 + $0x164] sm:$0xf]
      %v287 = vld [vmem:[%s212 + $0x168] sm:$0xff]
      %v288 = vld [vmem:[%s212 + $0x170] sm:$0xf]
      %v289 = vld [vmem:[%s212 + $0x174] sm:$0xff]
      %v290 = vld [vmem:[%s212 + $0x17c] sm:$0xf]
      %v291 = vld [vmem:[%s1] sm:$0xf]
      %v292 = vld [vmem:[%s1 + $0x4] sm:$0xf]
      %v293 = vld [vmem:[%s1 + $0x8] sm:$0xf]
      %v294 = vld [vmem:[%s1 + $0xc] sm:$0xf]
      %v295 = vld [vmem:[%s1 + $0x10] sm:$0xf]
      %v296 = vld [vmem:[%s1 + $0x14] sm:$0xf]
      %v297 = vld [vmem:[%s1 + $0x18] sm:$0xf]
      %v298 = vld [vmem:[%s1 + $0x1c] sm:$0xf]
      %v299 = vld [vmem:[%s1 + $0x20] sm:$0xf]
      %v300 = vld [vmem:[%s1 + $0x24] sm:$0xf]
      %v301 = vld [vmem:[%s1 + $0x28] sm:$0xf]
      %v302 = vld [vmem:[%s1 + $0x2c] sm:$0xf]
      %v303 = vld [vmem:[%s1 + $0x30] sm:$0xf]
      %v304 = vld [vmem:[%s1 + $0x34] sm:$0xf]
      %v305 = vld [vmem:[%s1 + $0x38] sm:$0xf]
      %v306 = vld [vmem:[%s1 + $0x3c] sm:$0xf]
      %v307 = vld [vmem:[%s1 + $0x40] sm:$0xf]
      %v308 = vld [vmem:[%s1 + $0x44] sm:$0xf]
      %v309 = vld [vmem:[%s1 + $0x48] sm:$0xf]
      %v310 = vld [vmem:[%s1 + $0x4c] sm:$0xf]
      %v311 = vld [vmem:[%s1 + $0x50] sm:$0xf]
      %v312 = vld [vmem:[%s1 + $0x54] sm:$0xf]
      %v313 = vld [vmem:[%s1 + $0x58] sm:$0xf]
      %v314 = vld [vmem:[%s1 + $0x5c] sm:$0xf]
      %v315 = vld [vmem:[%s1 + $0x60] sm:$0xf]
      %v316 = vld [vmem:[%s1 + $0x64] sm:$0xf]
      %v317 = vld [vmem:[%s1 + $0x68] sm:$0xf]
      %v318 = vld [vmem:[%s1 + $0x6c] sm:$0xf]
      %v319 = vld [vmem:[%s1 + $0x70] sm:$0xf]
      %v320 = vld [vmem:[%s1 + $0x74] sm:$0xf]
      %v321 = vld [vmem:[%s1 + $0x78] sm:$0xf]
      %v322 = vld [vmem:[%s1 + $0x7c] sm:$0xf]
      %v323 = vld [vmem:[%s1 + $0x80] sm:$0xf]
      %v324 = vld [vmem:[%s1 + $0x84] sm:$0xf]
      %v325 = vld [vmem:[%s1 + $0x88] sm:$0xf]
      %v326 = vld [vmem:[%s1 + $0x8c] sm:$0xf]
      %v327 = vld [vmem:[%s2] sm:$0x1]
      %v329 = vlaneseq
      %v330 = vshrl.u32 %v329, 7
      %v331 = vsub.s32 0, %v330
      %v332 = vrot.slane %v327, %v331
      %v398 = vunpack.c.l.b16 %v227
      %v399 = vunpack.c.h.b16 %v227
      %v400 = vunpack.c.l.b16 %v228
      %v401 = vunpack.c.l.b16 %v229
      %v402 = vunpack.c.h.b16 %v229
      %v403 = vunpack.c.l.b16 %v230
      %v404 = vunpack.c.l.b16 %v231
      %v405 = vunpack.c.h.b16 %v231
      %v406 = vunpack.c.l.b16 %v232
      %v407 = vunpack.c.l.b16 %v233
      %v408 = vunpack.c.h.b16 %v233
      %v409 = vunpack.c.l.b16 %v234
      %v410 = vunpack.c.l.b16 %v235
      %v411 = vunpack.c.h.b16 %v235
      %v412 = vunpack.c.l.b16 %v236
      %v413 = vunpack.c.l.b16 %v237
      %v414 = vunpack.c.h.b16 %v237
      %v415 = vunpack.c.l.b16 %v238
      %v416 = vunpack.c.l.b16 %v239
      %v417 = vunpack.c.h.b16 %v239
      %v418 = vunpack.c.l.b16 %v240
      %v419 = vunpack.c.l.b16 %v241
      %v420 = vunpack.c.h.b16 %v241
      %v421 = vunpack.c.l.b16 %v242
      %v422 = vunpack.c.l.b16 %v243
      %v423 = vunpack.c.h.b16 %v243
      %v424 = vunpack.c.l.b16 %v244
      %v425 = vunpack.c.l.b16 %v245
      %v426 = vunpack.c.h.b16 %v245
      %v427 = vunpack.c.l.b16 %v246
      %v428 = vunpack.c.l.b16 %v247
      %v429 = vunpack.c.h.b16 %v247
      %v430 = vunpack.c.l.b16 %v248
      %v431 = vunpack.c.l.b16 %v249
      %v432 = vunpack.c.h.b16 %v249
      %v433 = vunpack.c.l.b16 %v250
      %v434 = vunpack.c.l.b16 %v251
      %v435 = vunpack.c.h.b16 %v251
      %v436 = vunpack.c.l.b16 %v252
      %v437 = vunpack.c.l.b16 %v253
      %v438 = vunpack.c.h.b16 %v253
      %v439 = vunpack.c.l.b16 %v254
      %v440 = vunpack.c.l.b16 %v255
      %v441 = vunpack.c.h.b16 %v255
      %v442 = vunpack.c.l.b16 %v256
      %v443 = vunpack.c.l.b16 %v257
      %v444 = vunpack.c.h.b16 %v257
      %v445 = vunpack.c.l.b16 %v258
      %v446 = vunpack.c.l.b16 %v259
      %v447 = vunpack.c.h.b16 %v259
      %v448 = vunpack.c.l.b16 %v260
      %v449 = vunpack.c.l.b16 %v261
      %v450 = vunpack.c.h.b16 %v261
      %v451 = vunpack.c.l.b16 %v262
      %v452 = vunpack.c.l.b16 %v263
      %v453 = vunpack.c.h.b16 %v263
      %v454 = vunpack.c.l.b16 %v264
      %v455 = vunpack.c.l.b16 %v265
      %v456 = vunpack.c.h.b16 %v265
      %v457 = vunpack.c.l.b16 %v266
      %v458 = vunpack.c.l.b16 %v267
      %v459 = vunpack.c.h.b16 %v267
      %v460 = vunpack.c.l.b16 %v268
      %v461 = vunpack.c.l.b16 %v269
      %v462 = vunpack.c.h.b16 %v269
      %v463 = vunpack.c.l.b16 %v270
      %v464 = vunpack.c.l.b16 %v271
      %v465 = vunpack.c.h.b16 %v271
      %v466 = vunpack.c.l.b16 %v272
      %v467 = vunpack.c.l.b16 %v273
      %v468 = vunpack.c.h.b16 %v273
      %v469 = vunpack.c.l.b16 %v274
      %v470 = vunpack.c.l.b16 %v275
      %v471 = vunpack.c.h.b16 %v275
      %v472 = vunpack.c.l.b16 %v276
      %v473 = vunpack.c.l.b16 %v277
      %v474 = vunpack.c.h.b16 %v277
      %v475 = vunpack.c.l.b16 %v278
      %v476 = vunpack.c.l.b16 %v279
      %v477 = vunpack.c.h.b16 %v279
      %v478 = vunpack.c.l.b16 %v280
      %v479 = vunpack.c.l.b16 %v281
      %v480 = vunpack.c.h.b16 %v281
      %v481 = vunpack.c.l.b16 %v282
      %v482 = vunpack.c.l.b16 %v283
      %v483 = vunpack.c.h.b16 %v283
      %v484 = vunpack.c.l.b16 %v284
      %v485 = vunpack.c.l.b16 %v285
      %v486 = vunpack.c.h.b16 %v285
      %v487 = vunpack.c.l.b16 %v286
      %v488 = vunpack.c.l.b16 %v287
      %v489 = vunpack.c.h.b16 %v287
      %v490 = vunpack.c.l.b16 %v288
      %v491 = vunpack.c.l.b16 %v289
      %v492 = vunpack.c.h.b16 %v289
      %v493 = vunpack.c.l.b16 %v290
      %v494 = vpack.c.b16 %v401, %v398
      %v495 = vpack.c.b16 %v402, %v399
      %v496 = vpack.c.b16 %v403, %v400
      %v497 = vpack.c.b16 %v407, %v404
      %v498 = vpack.c.b16 %v408, %v405
      %v499 = vpack.c.b16 %v409, %v406
      %v500 = vpack.c.b16 %v413, %v410
      %v501 = vpack.c.b16 %v414, %v411
      %v502 = vpack.c.b16 %v415, %v412
      %v503 = vpack.c.b16 %v419, %v416
      %v504 = vpack.c.b16 %v420, %v417
      %v505 = vpack.c.b16 %v421, %v418
      %v506 = vpack.c.b16 %v425, %v422
      %v507 = vpack.c.b16 %v426, %v423
      %v508 = vpack.c.b16 %v427, %v424
      %v509 = vpack.c.b16 %v431, %v428
      %v510 = vpack.c.b16 %v432, %v429
      %v511 = vpack.c.b16 %v433, %v430
      %v512 = vpack.c.b16 %v437, %v434
      %v513 = vpack.c.b16 %v438, %v435
      %v514 = vpack.c.b16 %v439, %v436
      %v515 = vpack.c.b16 %v443, %v440
      %v516 = vpack.c.b16 %v444, %v441
      %v517 = vpack.c.b16 %v445, %v442
      %v518 = vpack.c.b16 %v449, %v446
      %v519 = vpack.c.b16 %v450, %v447
      %v520 = vpack.c.b16 %v451, %v448
      %v521 = vpack.c.b16 %v455, %v452
      %v522 = vpack.c.b16 %v456, %v453
      %v523 = vpack.c.b16 %v457, %v454
      %v524 = vpack.c.b16 %v461, %v458
      %v525 = vpack.c.b16 %v462, %v459
      %v526 = vpack.c.b16 %v463, %v460
      %v527 = vpack.c.b16 %v467, %v464
      %v528 = vpack.c.b16 %v468, %v465
      %v529 = vpack.c.b16 %v469, %v466
      %v530 = vpack.c.b16 %v473, %v470
      %v531 = vpack.c.b16 %v474, %v471
      %v532 = vpack.c.b16 %v475, %v472
      %v533 = vpack.c.b16 %v479, %v476
      %v534 = vpack.c.b16 %v480, %v477
      %v535 = vpack.c.b16 %v481, %v478
      %v536 = vpack.c.b16 %v485, %v482
      %v537 = vpack.c.b16 %v486, %v483
      %v538 = vpack.c.b16 %v487, %v484
      %v539 = vpack.c.b16 %v491, %v488
      %v540 = vpack.c.b16 %v492, %v489
      %v541 = vpack.c.b16 %v493, %v490
      %v610 = vunpack.c.l.b16 %v291
      %v611 = vunpack.c.l.b16 %v292
      %v612 = vunpack.c.l.b16 %v293
      %v613 = vunpack.c.l.b16 %v294
      %v614 = vunpack.c.l.b16 %v295
      %v615 = vunpack.c.l.b16 %v296
      %v616 = vunpack.c.l.b16 %v297
      %v617 = vunpack.c.l.b16 %v298
      %v618 = vunpack.c.l.b16 %v299
      %v619 = vunpack.c.l.b16 %v300
      %v620 = vunpack.c.l.b16 %v301
      %v621 = vunpack.c.l.b16 %v302
      %v622 = vunpack.c.l.b16 %v303
      %v623 = vunpack.c.l.b16 %v304
      %v624 = vunpack.c.l.b16 %v305
      %v625 = vunpack.c.l.b16 %v306
      %v626 = vunpack.c.l.b16 %v307
      %v627 = vunpack.c.l.b16 %v308
      %v628 = vunpack.c.l.b16 %v309
      %v629 = vunpack.c.l.b16 %v310
      %v630 = vunpack.c.l.b16 %v311
      %v631 = vunpack.c.l.b16 %v312
      %v632 = vunpack.c.l.b16 %v313
      %v633 = vunpack.c.l.b16 %v314
      %v634 = vunpack.c.l.b16 %v315
      %v635 = vunpack.c.l.b16 %v316
      %v636 = vunpack.c.l.b16 %v317
      %v637 = vunpack.c.l.b16 %v318
      %v638 = vunpack.c.l.b16 %v319
      %v639 = vunpack.c.l.b16 %v320
      %v640 = vunpack.c.l.b16 %v321
      %v641 = vunpack.c.l.b16 %v322
      %v642 = vunpack.c.l.b16 %v323
      %v643 = vunpack.c.l.b16 %v324
      %v644 = vunpack.c.l.b16 %v325
      %v645 = vunpack.c.l.b16 %v326
      %v646 = vpack.c.b16 %v611, %v610
      %v647 = vpack.c.b16 %v613, %v612
      %v648 = vpack.c.b16 %v615, %v614
      %v649 = vpack.c.b16 %v617, %v616
      %v650 = vpack.c.b16 %v619, %v618
      %v651 = vpack.c.b16 %v621, %v620
      %v652 = vpack.c.b16 %v623, %v622
      %v653 = vpack.c.b16 %v625, %v624
      %v654 = vpack.c.b16 %v627, %v626
      %v655 = vpack.c.b16 %v629, %v628
      %v656 = vpack.c.b16 %v631, %v630
      %v657 = vpack.c.b16 %v633, %v632
      %v658 = vpack.c.b16 %v635, %v634
      %v659 = vpack.c.b16 %v637, %v636
      %v660 = vpack.c.b16 %v639, %v638
      %v661 = vpack.c.b16 %v641, %v640
      %v662 = vpack.c.b16 %v643, %v642
      %v663 = vpack.c.b16 %v645, %v644
      %vm682 = vcmask 261120
      %v684 = vsel %vm682, %v496, 0
      %v687 = vsel %vm682, %v499, 0
      %v690 = vsel %vm682, %v502, 0
      %v693 = vsel %vm682, %v505, 0
      %v696 = vsel %vm682, %v508, 0
      %v699 = vsel %vm682, %v511, 0
      %v702 = vsel %vm682, %v514, 0
      %v705 = vsel %vm682, %v517, 0
      %v708 = vsel %vm682, %v520, 0
      %v711 = vsel %vm682, %v523, 0
      %v714 = vsel %vm682, %v526, 0
      %v717 = vsel %vm682, %v529, 0
      %v720 = vsel %vm682, %v532, 0
      %v723 = vsel %vm682, %v535, 0
      %v726 = vsel %vm682, %v538, 0
      %v729 = vsel %vm682, %v541, 0
      %731 = vmatprep.subr.bf16.mxu0 0
      %732 = vmatpush1.bf16.msra.mxu0 %v646
      %733 = vmatprep.subr.bf16.mxu0 0
      %734 = vmatpush1.bf16.msra.mxu0 %v647
      %735 = vmatprep.subr.bf16.mxu0 0
      %736 = vmatpush1.bf16.msra.mxu0 %v648
      %737 = vmatprep.subr.bf16.mxu0 0
      %738 = vmatpush1.bf16.msra.mxu0 %v649
      %739 = vmatprep.subr.bf16.mxu0 0
      %740 = vmatpush1.bf16.msra.mxu0 %v650
      %741 = vmatprep.subr.bf16.mxu0 0
      %742 = vmatpush1.bf16.msra.mxu0 %v651
      %743 = vmatprep.subr.bf16.mxu0 0
      %744 = vmatpush1.bf16.msra.mxu0 %v652
      %745 = vmatprep.subr.bf16.mxu0 0
      %746 = vmatpush1.bf16.msra.mxu0 %v653
      %747 = vmatprep.subr.bf16.mxu0 0
      %748 = vmatpush1.bf16.msra.mxu0 %v654
      %749 = vmatprep.subr.bf16.mxu0 0
      %750 = vmatpush1.bf16.msra.mxu0 %v655
      %751 = vmatprep.subr.bf16.mxu0 0
      %752 = vmatpush1.bf16.msra.mxu0 %v656
      %753 = vmatprep.subr.bf16.mxu0 0
      %754 = vmatpush1.bf16.msra.mxu0 %v657
      %755 = vmatprep.subr.bf16.mxu0 0
      %756 = vmatpush1.bf16.msra.mxu0 %v658
      %757 = vmatprep.subr.bf16.mxu0 0
      %758 = vmatpush1.bf16.msra.mxu0 %v659
      %759 = vmatprep.subr.bf16.mxu0 0
      %760 = vmatpush1.bf16.msra.mxu0 %v660
      %761 = vmatprep.subr.bf16.mxu0 0
      %762 = vmatpush1.bf16.msra.mxu0 %v661
      %763 = vmatprep.mubr.bf16.mxu0 %v495
      %764 = vmatmul.mubr.bf16.gmra.mrb[0].mxu0 %v494
      %v765 = vpop.f32.mrb[0].mxu0
      %v766 = vadd.f32 %v332, %v765
      %v767 = vpop.f32.mrb[0].mxu0
      %v768 = vpop.f32.mrb[0].mxu0
      %v769 = vadd.f32 %v332, %v768
      %v770 = vpop.f32.mrb[0].mxu0
      %771 = vmatprep.mubr.bf16.mxu0 %v498
      %772 = vmatmul.mubr.bf16.gmra.mrb[0].mxu0 %v497
      %v773 = vpop.f32.mrb[0].mxu0
      %v774 = vadd.f32 %v332, %v773
      %v775 = vpop.f32.mrb[0].mxu0
      %v776 = vpop.f32.mrb[0].mxu0
      %v777 = vadd.f32 %v332, %v776
      %v778 = vpop.f32.mrb[0].mxu0
      %779 = vmatprep.mubr.bf16.mxu0 %v501
      %780 = vmatmul.mubr.bf16.gmra.mrb[0].mxu0 %v500
      %v781 = vpop.f32.mrb[0].mxu0
      %v782 = vadd.f32 %v332, %v781
      %v783 = vpop.f32.mrb[0].mxu0
      %v784 = vpop.f32.mrb[0].mxu0
      %v785 = vadd.f32 %v332, %v784
      %v786 = vpop.f32.mrb[0].mxu0
      %787 = vmatprep.mubr.bf16.mxu0 %v504
      %788 = vmatmul.mubr.bf16.gmra.mrb[0].mxu0 %v503
      %v789 = vpop.f32.mrb[0].mxu0
      %v790 = vadd.f32 %v332, %v789
      %v791 = vpop.f32.mrb[0].mxu0
      %v792 = vpop.f32.mrb[0].mxu0
      %v793 = vadd.f32 %v332, %v792
      %v794 = vpop.f32.mrb[0].mxu0
      %795 = vmatprep.mubr.bf16.mxu0 %v507
      %796 = vmatmul.mubr.bf16.gmra.mrb[0].mxu0 %v506
      %v797 = vpop.f32.mrb[0].mxu0
      %v798 = vadd.f32 %v332, %v797
      %v799 = vpop.f32.mrb[0].mxu0
      %v800 = vpop.f32.mrb[0].mxu0
      %v801 = vadd.f32 %v332, %v800
      %v802 = vpop.f32.mrb[0].mxu0
      %803 = vmatprep.mubr.bf16.mxu0 %v510
      %804 = vmatmul.mubr.bf16.gmra.mrb[0].mxu0 %v509
      %v805 = vpop.f32.mrb[0].mxu0
      %v806 = vadd.f32 %v332, %v805
      %v807 = vpop.f32.mrb[0].mxu0
      %v808 = vpop.f32.mrb[0].mxu0
      %v809 = vadd.f32 %v332, %v808
      %v810 = vpop.f32.mrb[0].mxu0
      %811 = vmatprep.mubr.bf16.mxu0 %v513
      %812 = vmatmul.mubr.bf16.gmra.mrb[0].mxu0 %v512
      %v813 = vpop.f32.mrb[0].mxu0
      %v814 = vadd.f32 %v332, %v813
      %v815 = vpop.f32.mrb[0].mxu0
      %v816 = vpop.f32.mrb[0].mxu0
      %v817 = vadd.f32 %v332, %v816
      %v818 = vpop.f32.mrb[0].mxu0
      %819 = vmatprep.mubr.bf16.mxu0 %v516
      %820 = vmatmul.mubr.bf16.gmra.mrb[0].mxu0 %v515
      %v821 = vpop.f32.mrb[0].mxu0
      %v822 = vadd.f32 %v332, %v821
      %v823 = vpop.f32.mrb[0].mxu0
      %v824 = vpop.f32.mrb[0].mxu0
      %v825 = vadd.f32 %v332, %v824
      %v826 = vpop.f32.mrb[0].mxu0
      %827 = vmatprep.mubr.bf16.mxu0 %v519
      %828 = vmatmul.mubr.bf16.gmra.mrb[0].mxu0 %v518
      %v829 = vpop.f32.mrb[0].mxu0
      %v830 = vadd.f32 %v332, %v829
      %v831 = vpop.f32.mrb[0].mxu0
      %v832 = vpop.f32.mrb[0].mxu0
      %v833 = vadd.f32 %v332, %v832
      %v834 = vpop.f32.mrb[0].mxu0
      %835 = vmatprep.mubr.bf16.mxu0 %v522
      %836 = vmatmul.mubr.bf16.gmra.mrb[0].mxu0 %v521
      %v837 = vpop.f32.mrb[0].mxu0
      %v838 = vadd.f32 %v332, %v837
      %v839 = vpop.f32.mrb[0].mxu0
      %v840 = vpop.f32.mrb[0].mxu0
      %v841 = vadd.f32 %v332, %v840
      %v842 = vpop.f32.mrb[0].mxu0
      %843 = vmatprep.mubr.bf16.mxu0 %v525
      %844 = vmatmul.mubr.bf16.gmra.mrb[0].mxu0 %v524
      %v845 = vpop.f32.mrb[0].mxu0
      %v846 = vadd.f32 %v332, %v845
      %v847 = vpop.f32.mrb[0].mxu0
      %v848 = vpop.f32.mrb[0].mxu0
      %v849 = vadd.f32 %v332, %v848
      %v850 = vpop.f32.mrb[0].mxu0
      %851 = vmatprep.mubr.bf16.mxu0 %v528
      %852 = vmatmul.mubr.bf16.gmra.mrb[0].mxu0 %v527
      %v853 = vpop.f32.mrb[0].mxu0
      %v854 = vadd.f32 %v332, %v853
      %v855 = vpop.f32.mrb[0].mxu0
      %v856 = vpop.f32.mrb[0].mxu0
      %v857 = vadd.f32 %v332, %v856
      %v858 = vpop.f32.mrb[0].mxu0
      %859 = vmatprep.mubr.bf16.mxu0 %v531
      %860 = vmatmul.mubr.bf16.gmra.mrb[0].mxu0 %v530
      %v861 = vpop.f32.mrb[0].mxu0
      %v862 = vadd.f32 %v332, %v861
      %v863 = vpop.f32.mrb[0].mxu0
      %v864 = vpop.f32.mrb[0].mxu0
      %v865 = vadd.f32 %v332, %v864
      %v866 = vpop.f32.mrb[0].mxu0
      %867 = vmatprep.mubr.bf16.mxu0 %v534
      %868 = vmatmul.mubr.bf16.gmra.mrb[0].mxu0 %v533
      %v869 = vpop.f32.mrb[0].mxu0
      %v870 = vadd.f32 %v332, %v869
      %v871 = vpop.f32.mrb[0].mxu0
      %v872 = vpop.f32.mrb[0].mxu0
      %v873 = vadd.f32 %v332, %v872
      %v874 = vpop.f32.mrb[0].mxu0
      %875 = vmatprep.mubr.bf16.mxu0 %v537
      %876 = vmatmul.mubr.bf16.gmra.mrb[0].mxu0 %v536
      %v877 = vpop.f32.mrb[0].mxu0
      %v878 = vadd.f32 %v332, %v877
      %v879 = vpop.f32.mrb[0].mxu0
      %v880 = vpop.f32.mrb[0].mxu0
      %v881 = vadd.f32 %v332, %v880
      %v882 = vpop.f32.mrb[0].mxu0
      %883 = vmatprep.mubr.bf16.mxu0 %v540
      %884 = vmatmul.mubr.bf16.gmra.mrb[0].mxu0 %v539
      %v885 = vpop.f32.mrb[0].mxu0
      %v886 = vadd.f32 %v332, %v885
      %v887 = vpop.f32.mrb[0].mxu0
      %v888 = vpop.f32.mrb[0].mxu0
      %v889 = vadd.f32 %v332, %v888
      %v890 = vpop.f32.mrb[0].mxu0
      %891 = vdwg.mxu0
      %892 = vmatprep.subr.bf16.mxu0 0
      %893 = vmatpush1.bf16.msra.mxu0 %v662
      %894 = vmatprep.subr.bf16.mxu0 0
      %895 = vmatpush1.bf16.msra.mxu0 %v663
      %896 = vmatprep.subr.bf16.mxu0 0
      %897 = vmatpush1.bf16.msra.mxu0 0
      %898 = vmatprep.subr.bf16.mxu0 0
      %899 = vmatpush1.bf16.msra.mxu0 0
      %900 = vmatprep.subr.bf16.mxu0 0
      %901 = vmatpush1.bf16.msra.mxu0 0
      %902 = vmatprep.subr.bf16.mxu0 0
      %903 = vmatpush1.bf16.msra.mxu0 0
      %904 = vmatprep.subr.bf16.mxu0 0
      %905 = vmatpush1.bf16.msra.mxu0 0
      %906 = vmatprep.subr.bf16.mxu0 0
      %907 = vmatpush1.bf16.msra.mxu0 0
      %908 = vmatprep.subr.bf16.mxu0 0
      %909 = vmatpush1.bf16.msra.mxu0 0
      %910 = vmatprep.subr.bf16.mxu0 0
      %911 = vmatpush1.bf16.msra.mxu0 0
      %912 = vmatprep.subr.bf16.mxu0 0
      %913 = vmatpush1.bf16.msra.mxu0 0
      %914 = vmatprep.subr.bf16.mxu0 0
      %915 = vmatpush1.bf16.msra.mxu0 0
      %916 = vmatprep.subr.bf16.mxu0 0
      %917 = vmatpush1.bf16.msra.mxu0 0
      %918 = vmatprep.subr.bf16.mxu0 0
      %919 = vmatpush1.bf16.msra.mxu0 0
      %920 = vmatprep.subr.bf16.mxu0 0
      %921 = vmatpush1.bf16.msra.mxu0 0
      %922 = vmatprep.subr.bf16.mxu0 0
      %923 = vmatpush1.bf16.msra.mxu0 0
      %924 = vmatprep.mubr.bf16.mxu0 0
      %925 = vmatmul.mubr.bf16.gmra.mrb[0].mxu0 %v684
      %v926 = vpop.f32.mrb[0].mxu0
      %v927 = vadd.f32 %v766, %v926
      %v928 = vpop.f32.mrb[0].mxu0
      %v929 = vpop.f32.mrb[0].mxu0
      %v930 = vadd.f32 %v769, %v929
      %v931 = vpop.f32.mrb[0].mxu0
      %932 = vmatprep.mubr.bf16.mxu0 0
      %933 = vmatmul.mubr.bf16.gmra.mrb[0].mxu0 %v687
      %v934 = vpop.f32.mrb[0].mxu0
      %v935 = vadd.f32 %v774, %v934
      %v936 = vpop.f32.mrb[0].mxu0
      %v937 = vpop.f32.mrb[0].mxu0
      %v938 = vadd.f32 %v777, %v937
      %v939 = vpop.f32.mrb[0].mxu0
      %940 = vmatprep.mubr.bf16.mxu0 0
      %941 = vmatmul.mubr.bf16.gmra.mrb[0].mxu0 %v690
      %v942 = vpop.f32.mrb[0].mxu0
      %v943 = vadd.f32 %v782, %v942
      %v944 = vpop.f32.mrb[0].mxu0
      %v945 = vpop.f32.mrb[0].mxu0
      %v946 = vadd.f32 %v785, %v945
      %v947 = vpop.f32.mrb[0].mxu0
      %948 = vmatprep.mubr.bf16.mxu0 0
      %949 = vmatmul.mubr.bf16.gmra.mrb[0].mxu0 %v693
      %v950 = vpop.f32.mrb[0].mxu0
      %v951 = vadd.f32 %v790, %v950
      %v952 = vpop.f32.mrb[0].mxu0
      %v953 = vpop.f32.mrb[0].mxu0
      %v954 = vadd.f32 %v793, %v953
      %v955 = vpop.f32.mrb[0].mxu0
      %956 = vmatprep.mubr.bf16.mxu0 0
      %957 = vmatmul.mubr.bf16.gmra.mrb[0].mxu0 %v696
      %v958 = vpop.f32.mrb[0].mxu0
      %v959 = vadd.f32 %v798, %v958
      %v960 = vpop.f32.mrb[0].mxu0
      %v961 = vpop.f32.mrb[0].mxu0
      %v962 = vadd.f32 %v801, %v961
      %v963 = vpop.f32.mrb[0].mxu0
      %964 = vmatprep.mubr.bf16.mxu0 0
      %965 = vmatmul.mubr.bf16.gmra.mrb[0].mxu0 %v699
      %v966 = vpop.f32.mrb[0].mxu0
      %v967 = vadd.f32 %v806, %v966
      %v968 = vpop.f32.mrb[0].mxu0
      %v969 = vpop.f32.mrb[0].mxu0
      %v970 = vadd.f32 %v809, %v969
      %v971 = vpop.f32.mrb[0].mxu0
      %972 = vmatprep.mubr.bf16.mxu0 0
      %973 = vmatmul.mubr.bf16.gmra.mrb[0].mxu0 %v702
      %v974 = vpop.f32.mrb[0].mxu0
      %v975 = vadd.f32 %v814, %v974
      %v976 = vpop.f32.mrb[0].mxu0
      %v977 = vpop.f32.mrb[0].mxu0
      %v978 = vadd.f32 %v817, %v977
      %v979 = vpop.f32.mrb[0].mxu0
      %980 = vmatprep.mubr.bf16.mxu0 0
      %981 = vmatmul.mubr.bf16.gmra.mrb[0].mxu0 %v705
      %v982 = vpop.f32.mrb[0].mxu0
      %v983 = vadd.f32 %v822, %v982
      %v984 = vpop.f32.mrb[0].mxu0
      %v985 = vpop.f32.mrb[0].mxu0
      %v986 = vadd.f32 %v825, %v985
      %v987 = vpop.f32.mrb[0].mxu0
      %988 = vmatprep.mubr.bf16.mxu0 0
      %989 = vmatmul.mubr.bf16.gmra.mrb[0].mxu0 %v708
      %v990 = vpop.f32.mrb[0].mxu0
      %v991 = vadd.f32 %v830, %v990
      %v992 = vpop.f32.mrb[0].mxu0
      %v993 = vpop.f32.mrb[0].mxu0
      %v994 = vadd.f32 %v833, %v993
      %v995 = vpop.f32.mrb[0].mxu0
      %996 = vmatprep.mubr.bf16.mxu0 0
      %997 = vmatmul.mubr.bf16.gmra.mrb[0].mxu0 %v711
      %v998 = vpop.f32.mrb[0].mxu0
      %v999 = vadd.f32 %v838, %v998
      %v1000 = vpop.f32.mrb[0].mxu0
      %v1001 = vpop.f32.mrb[0].mxu0
      %v1002 = vadd.f32 %v841, %v1001
      %v1003 = vpop.f32.mrb[0].mxu0
      %1004 = vmatprep.mubr.bf16.mxu0 0
      %1005 = vmatmul.mubr.bf16.gmra.mrb[0].mxu0 %v714
      %v1006 = vpop.f32.mrb[0].mxu0
      %v1007 = vadd.f32 %v846, %v1006
      %v1008 = vpop.f32.mrb[0].mxu0
      %v1009 = vpop.f32.mrb[0].mxu0
      %v1010 = vadd.f32 %v849, %v1009
      %v1011 = vpop.f32.mrb[0].mxu0
      %1012 = vmatprep.mubr.bf16.mxu0 0
      %1013 = vmatmul.mubr.bf16.gmra.mrb[0].mxu0 %v717
      %v1014 = vpop.f32.mrb[0].mxu0
      %v1015 = vadd.f32 %v854, %v1014
      %v1016 = vpop.f32.mrb[0].mxu0
      %v1017 = vpop.f32.mrb[0].mxu0
      %v1018 = vadd.f32 %v857, %v1017
      %v1019 = vpop.f32.mrb[0].mxu0
      %1020 = vmatprep.mubr.bf16.mxu0 0
      %1021 = vmatmul.mubr.bf16.gmra.mrb[0].mxu0 %v720
      %v1022 = vpop.f32.mrb[0].mxu0
      %v1023 = vadd.f32 %v862, %v1022
      %v1024 = vpop.f32.mrb[0].mxu0
      %v1025 = vpop.f32.mrb[0].mxu0
      %v1026 = vadd.f32 %v865, %v1025
      %v1027 = vpop.f32.mrb[0].mxu0
      %1028 = vmatprep.mubr.bf16.mxu0 0
      %1029 = vmatmul.mubr.bf16.gmra.mrb[0].mxu0 %v723
      %v1030 = vpop.f32.mrb[0].mxu0
      %v1031 = vadd.f32 %v870, %v1030
      %v1032 = vpop.f32.mrb[0].mxu0
      %v1033 = vpop.f32.mrb[0].mxu0
      %v1034 = vadd.f32 %v873, %v1033
      %v1035 = vpop.f32.mrb[0].mxu0
      %1036 = vmatprep.mubr.bf16.mxu0 0
      %1037 = vmatmul.mubr.bf16.gmra.mrb[0].mxu0 %v726
      %v1038 = vpop.f32.mrb[0].mxu0
      %v1039 = vadd.f32 %v878, %v1038
      %v1040 = vpop.f32.mrb[0].mxu0
      %v1041 = vpop.f32.mrb[0].mxu0
      %v1042 = vadd.f32 %v881, %v1041
      %v1043 = vpop.f32.mrb[0].mxu0
      %1044 = vmatprep.mubr.bf16.mxu0 0
      %1045 = vmatmul.mubr.bf16.gmra.mrb[0].mxu0 %v729
      %v1046 = vpop.f32.mrb[0].mxu0
      %v1047 = vadd.f32 %v886, %v1046
      %v1048 = vpop.f32.mrb[0].mxu0
      %v1049 = vpop.f32.mrb[0].mxu0
      %v1050 = vadd.f32 %v889, %v1049
      %v1051 = vpop.f32.mrb[0].mxu0
      %1052 = vdwg.mxu0
      %v1053 = vld [vmem:[%s218] sm:$0xf]
      %v1054 = vld [vmem:[%s218 + $0x4] sm:$0xf]
      %v1055 = vld [vmem:[%s218 + $0x8] sm:$0xf]
      %v1056 = vld [vmem:[%s218 + $0xc] sm:$0xf]
      %v1057 = vld [vmem:[%s218 + $0x10] sm:$0xf]
      %v1058 = vld [vmem:[%s218 + $0x14] sm:$0xf]
      %v1059 = vld [vmem:[%s218 + $0x18] sm:$0xf]
      %v1060 = vld [vmem:[%s218 + $0x1c] sm:$0xf]
      %v1061 = vld [vmem:[%s218 + $0x20] sm:$0xf]
      %v1062 = vld [vmem:[%s218 + $0x24] sm:$0xf]
      %v1063 = vld [vmem:[%s218 + $0x28] sm:$0xf]
      %v1064 = vld [vmem:[%s218 + $0x2c] sm:$0xf]
      %v1065 = vld [vmem:[%s218 + $0x30] sm:$0xf]
      %v1066 = vld [vmem:[%s218 + $0x34] sm:$0xf]
      %v1067 = vld [vmem:[%s218 + $0x38] sm:$0xf]
      %v1068 = vld [vmem:[%s218 + $0x3c] sm:$0xf]
      %v1069 = vld [vmem:[%s218 + $0x40] sm:$0xf]
      %v1070 = vld [vmem:[%s218 + $0x44] sm:$0xf]
      %v1071 = vld [vmem:[%s218 + $0x48] sm:$0xf]
      %v1072 = vld [vmem:[%s218 + $0x4c] sm:$0xf]
      %v1073 = vld [vmem:[%s218 + $0x50] sm:$0xf]
      %v1074 = vld [vmem:[%s218 + $0x54] sm:$0xf]
      %v1075 = vld [vmem:[%s218 + $0x58] sm:$0xf]
      %v1076 = vld [vmem:[%s218 + $0x5c] sm:$0xf]
      %v1077 = vld [vmem:[%s218 + $0x60] sm:$0xf]
      %v1078 = vld [vmem:[%s218 + $0x64] sm:$0xf]
      %v1079 = vld [vmem:[%s218 + $0x68] sm:$0xf]
      %v1080 = vld [vmem:[%s218 + $0x6c] sm:$0xf]
      %v1081 = vld [vmem:[%s218 + $0x70] sm:$0xf]
      %v1082 = vld [vmem:[%s218 + $0x74] sm:$0xf]
      %v1083 = vld [vmem:[%s218 + $0x78] sm:$0xf]
      %v1084 = vld [vmem:[%s218 + $0x7c] sm:$0xf]
      %v1085 = vunpack.c.l.bf16 %v1053
      %v1086 = vunpack.c.l.bf16 %v1054
      %v1087 = vunpack.c.l.bf16 %v1055
      %v1088 = vunpack.c.l.bf16 %v1056
      %v1089 = vunpack.c.l.bf16 %v1057
      %v1090 = vunpack.c.l.bf16 %v1058
      %v1091 = vunpack.c.l.bf16 %v1059
      %v1092 = vunpack.c.l.bf16 %v1060
      %v1093 = vunpack.c.l.bf16 %v1061
      %v1094 = vunpack.c.l.bf16 %v1062
      %v1095 = vunpack.c.l.bf16 %v1063
      %v1096 = vunpack.c.l.bf16 %v1064
      %v1097 = vunpack.c.l.bf16 %v1065
      %v1098 = vunpack.c.l.bf16 %v1066
      %v1099 = vunpack.c.l.bf16 %v1067
      %v1100 = vunpack.c.l.bf16 %v1068
      %v1101 = vunpack.c.l.bf16 %v1069
      %v1102 = vunpack.c.l.bf16 %v1070
      %v1103 = vunpack.c.l.bf16 %v1071
      %v1104 = vunpack.c.l.bf16 %v1072
      %v1105 = vunpack.c.l.bf16 %v1073
      %v1106 = vunpack.c.l.bf16 %v1074
      %v1107 = vunpack.c.l.bf16 %v1075
      %v1108 = vunpack.c.l.bf16 %v1076
      %v1109 = vunpack.c.l.bf16 %v1077
      %v1110 = vunpack.c.l.bf16 %v1078
      %v1111 = vunpack.c.l.bf16 %v1079
      %v1112 = vunpack.c.l.bf16 %v1080
      %v1113 = vunpack.c.l.bf16 %v1081
      %v1114 = vunpack.c.l.bf16 %v1082
      %v1115 = vunpack.c.l.bf16 %v1083
      %v1116 = vunpack.c.l.bf16 %v1084
      %v1117 = vadd.f32 %v927, %v1085
      %v1118 = vadd.f32 %v930, %v1086
      %v1119 = vadd.f32 %v935, %v1087
      %v1120 = vadd.f32 %v938, %v1088
      %v1121 = vadd.f32 %v943, %v1089
      %v1122 = vadd.f32 %v946, %v1090
      %v1123 = vadd.f32 %v951, %v1091
      %v1124 = vadd.f32 %v954, %v1092
      %v1125 = vadd.f32 %v959, %v1093
      %v1126 = vadd.f32 %v962, %v1094
      %v1127 = vadd.f32 %v967, %v1095
      %v1128 = vadd.f32 %v970, %v1096
      %v1129 = vadd.f32 %v975, %v1097
      %v1130 = vadd.f32 %v978, %v1098
      %v1131 = vadd.f32 %v983, %v1099
      %v1132 = vadd.f32 %v986, %v1100
      %v1133 = vadd.f32 %v991, %v1101
      %v1134 = vadd.f32 %v994, %v1102
      %v1135 = vadd.f32 %v999, %v1103
      %v1136 = vadd.f32 %v1002, %v1104
      %v1137 = vadd.f32 %v1007, %v1105
      %v1138 = vadd.f32 %v1010, %v1106
      %v1139 = vadd.f32 %v1015, %v1107
      %v1140 = vadd.f32 %v1018, %v1108
      %v1141 = vadd.f32 %v1023, %v1109
      %v1142 = vadd.f32 %v1026, %v1110
      %v1143 = vadd.f32 %v1031, %v1111
      %v1144 = vadd.f32 %v1034, %v1112
      %v1145 = vadd.f32 %v1039, %v1113
      %v1146 = vadd.f32 %v1042, %v1114
      %v1147 = vadd.f32 %v1047, %v1115
      %v1148 = vadd.f32 %v1050, %v1116
      %v1149 = vmax.f32 %v1117, 0.0
      %v1150 = vmax.f32 %v1118, 0.0
      %v1151 = vmax.f32 %v1119, 0.0
      %v1152 = vmax.f32 %v1120, 0.0
      %v1153 = vmax.f32 %v1121, 0.0
      %v1154 = vmax.f32 %v1122, 0.0
      %v1155 = vmax.f32 %v1123, 0.0
      %v1156 = vmax.f32 %v1124, 0.0
      %v1157 = vmax.f32 %v1125, 0.0
      %v1158 = vmax.f32 %v1126, 0.0
      %v1159 = vmax.f32 %v1127, 0.0
      %v1160 = vmax.f32 %v1128, 0.0
      %v1161 = vmax.f32 %v1129, 0.0
      %v1162 = vmax.f32 %v1130, 0.0
      %v1163 = vmax.f32 %v1131, 0.0
      %v1164 = vmax.f32 %v1132, 0.0
      %v1165 = vmax.f32 %v1133, 0.0
      %v1166 = vmax.f32 %v1134, 0.0
      %v1167 = vmax.f32 %v1135, 0.0
      %v1168 = vmax.f32 %v1136, 0.0
      %v1169 = vmax.f32 %v1137, 0.0
      %v1170 = vmax.f32 %v1138, 0.0
      %v1171 = vmax.f32 %v1139, 0.0
      %v1172 = vmax.f32 %v1140, 0.0
      %v1173 = vmax.f32 %v1141, 0.0
      %v1174 = vmax.f32 %v1142, 0.0
      %v1175 = vmax.f32 %v1143, 0.0
      %v1176 = vmax.f32 %v1144, 0.0
      %v1177 = vmax.f32 %v1145, 0.0
      %v1178 = vmax.f32 %v1146, 0.0
      %v1179 = vmax.f32 %v1147, 0.0
      %v1180 = vmax.f32 %v1148, 0.0
      %v1181 = vpack.c.bf16 %v1150, %v1149
      %v1182 = vpack.c.bf16 %v1152, %v1151
      %v1183 = vpack.c.bf16 %v1154, %v1153
      %v1184 = vpack.c.bf16 %v1156, %v1155
      %v1185 = vpack.c.bf16 %v1158, %v1157
      %v1186 = vpack.c.bf16 %v1160, %v1159
      %v1187 = vpack.c.bf16 %v1162, %v1161
      %v1188 = vpack.c.bf16 %v1164, %v1163
      %v1189 = vpack.c.bf16 %v1166, %v1165
      %v1190 = vpack.c.bf16 %v1168, %v1167
      %v1191 = vpack.c.bf16 %v1170, %v1169
      %v1192 = vpack.c.bf16 %v1172, %v1171
      %v1193 = vpack.c.bf16 %v1174, %v1173
      %v1194 = vpack.c.bf16 %v1176, %v1175
      %v1195 = vpack.c.bf16 %v1178, %v1177
      %v1196 = vpack.c.bf16 %v1180, %v1179
      %v1213 = vunpack.c.l.b16 %v1181
      %v1214 = vunpack.c.h.b16 %v1181
      %v1215 = vunpack.c.l.b16 %v1182
      %v1216 = vunpack.c.h.b16 %v1182
      %v1217 = vunpack.c.l.b16 %v1183
      %v1218 = vunpack.c.h.b16 %v1183
      %v1219 = vunpack.c.l.b16 %v1184
      %v1220 = vunpack.c.h.b16 %v1184
      %v1221 = vunpack.c.l.b16 %v1185
      %v1222 = vunpack.c.h.b16 %v1185
      %v1223 = vunpack.c.l.b16 %v1186
      %v1224 = vunpack.c.h.b16 %v1186
      %v1225 = vunpack.c.l.b16 %v1187
      %v1226 = vunpack.c.h.b16 %v1187
      %v1227 = vunpack.c.l.b16 %v1188
      %v1228 = vunpack.c.h.b16 %v1188
      %v1229 = vunpack.c.l.b16 %v1189
      %v1230 = vunpack.c.h.b16 %v1189
      %v1231 = vunpack.c.l.b16 %v1190
      %v1232 = vunpack.c.h.b16 %v1190
      %v1233 = vunpack.c.l.b16 %v1191
      %v1234 = vunpack.c.h.b16 %v1191
      %v1235 = vunpack.c.l.b16 %v1192
      %v1236 = vunpack.c.h.b16 %v1192
      %v1237 = vunpack.c.l.b16 %v1193
      %v1238 = vunpack.c.h.b16 %v1193
      %v1239 = vunpack.c.l.b16 %v1194
      %v1240 = vunpack.c.h.b16 %v1194
      %v1241 = vunpack.c.l.b16 %v1195
      %v1242 = vunpack.c.h.b16 %v1195
      %v1243 = vunpack.c.l.b16 %v1196
      %v1244 = vunpack.c.h.b16 %v1196
      %v1245 = vpack.c.b16 %v1213, %v1213
      %v1246 = vpack.c.b16 %v1214, %v1214
      %v1247 = vpack.c.b16 %v1215, %v1215
      %v1248 = vpack.c.b16 %v1216, %v1216
      %v1249 = vpack.c.b16 %v1217, %v1217
      %v1250 = vpack.c.b16 %v1218, %v1218
      %v1251 = vpack.c.b16 %v1219, %v1219
      %v1252 = vpack.c.b16 %v1220, %v1220
      %v1253 = vpack.c.b16 %v1221, %v1221
      %v1254 = vpack.c.b16 %v1222, %v1222
      %v1255 = vpack.c.b16 %v1223, %v1223
      %v1256 = vpack.c.b16 %v1224, %v1224
      %v1257 = vpack.c.b16 %v1225, %v1225
      %v1258 = vpack.c.b16 %v1226, %v1226
      %v1259 = vpack.c.b16 %v1227, %v1227
      %v1260 = vpack.c.b16 %v1228, %v1228
      %v1261 = vpack.c.b16 %v1229, %v1229
      %v1262 = vpack.c.b16 %v1230, %v1230
      %v1263 = vpack.c.b16 %v1231, %v1231
      %v1264 = vpack.c.b16 %v1232, %v1232
      %v1265 = vpack.c.b16 %v1233, %v1233
      %v1266 = vpack.c.b16 %v1234, %v1234
      %v1267 = vpack.c.b16 %v1235, %v1235
      %v1268 = vpack.c.b16 %v1236, %v1236
      %v1269 = vpack.c.b16 %v1237, %v1237
      %v1270 = vpack.c.b16 %v1238, %v1238
      %v1271 = vpack.c.b16 %v1239, %v1239
      %v1272 = vpack.c.b16 %v1240, %v1240
      %v1273 = vpack.c.b16 %v1241, %v1241
      %v1274 = vpack.c.b16 %v1242, %v1242
      %v1275 = vpack.c.b16 %v1243, %v1243
      %v1276 = vpack.c.b16 %v1244, %v1244
      %vm1309 = vcmask 257024
      %1310 = vst.msk [vmem:[%s224] sm:$0xf] %vm1309, %v1245
      %1311 = vst.msk [vmem:[%s224 + $0x4] sm:$0xf] %vm1309, %v1246
      %1312 = vst.msk [vmem:[%s224 + $0x8] sm:$0xf] %vm1309, %v1247
      %1313 = vst.msk [vmem:[%s224 + $0xc] sm:$0xf] %vm1309, %v1248
      %1314 = vst.msk [vmem:[%s224 + $0x10] sm:$0xf] %vm1309, %v1249
      %1315 = vst.msk [vmem:[%s224 + $0x14] sm:$0xf] %vm1309, %v1250
      %1316 = vst.msk [vmem:[%s224 + $0x18] sm:$0xf] %vm1309, %v1251
      %1317 = vst.msk [vmem:[%s224 + $0x1c] sm:$0xf] %vm1309, %v1252
      %1318 = vst.msk [vmem:[%s224 + $0x20] sm:$0xf] %vm1309, %v1253
      %1319 = vst.msk [vmem:[%s224 + $0x24] sm:$0xf] %vm1309, %v1254
      %1320 = vst.msk [vmem:[%s224 + $0x28] sm:$0xf] %vm1309, %v1255
      %1321 = vst.msk [vmem:[%s224 + $0x2c] sm:$0xf] %vm1309, %v1256
      %1322 = vst.msk [vmem:[%s224 + $0x30] sm:$0xf] %vm1309, %v1257
      %1323 = vst.msk [vmem:[%s224 + $0x34] sm:$0xf] %vm1309, %v1258
      %1324 = vst.msk [vmem:[%s224 + $0x38] sm:$0xf] %vm1309, %v1259
      %1325 = vst.msk [vmem:[%s224 + $0x3c] sm:$0xf] %vm1309, %v1260
      %1326 = vst.msk [vmem:[%s224 + $0x40] sm:$0xf] %vm1309, %v1261
      %1327 = vst.msk [vmem:[%s224 + $0x44] sm:$0xf] %vm1309, %v1262
      %1328 = vst.msk [vmem:[%s224 + $0x48] sm:$0xf] %vm1309, %v1263
      %1329 = vst.msk [vmem:[%s224 + $0x4c] sm:$0xf] %vm1309, %v1264
      %1330 = vst.msk [vmem:[%s224 + $0x50] sm:$0xf] %vm1309, %v1265
      %1331 = vst.msk [vmem:[%s224 + $0x54] sm:$0xf] %vm1309, %v1266
      %1332 = vst.msk [vmem:[%s224 + $0x58] sm:$0xf] %vm1309, %v1267
      %1333 = vst.msk [vmem:[%s224 + $0x5c] sm:$0xf] %vm1309, %v1268
      %1334 = vst.msk [vmem:[%s224 + $0x60] sm:$0xf] %vm1309, %v1269
      %1335 = vst.msk [vmem:[%s224 + $0x64] sm:$0xf] %vm1309, %v1270
      %1336 = vst.msk [vmem:[%s224 + $0x68] sm:$0xf] %vm1309, %v1271
      %1337 = vst.msk [vmem:[%s224 + $0x6c] sm:$0xf] %vm1309, %v1272
      %1338 = vst.msk [vmem:[%s224 + $0x70] sm:$0xf] %vm1309, %v1273
      %1339 = vst.msk [vmem:[%s224 + $0x74] sm:$0xf] %vm1309, %v1274
      %1340 = vst.msk [vmem:[%s224 + $0x78] sm:$0xf] %vm1309, %v1275
      %1341 = vst.msk [vmem:[%s224 + $0x7c] sm:$0xf] %vm1309, %v1276
      %s1342 = smul.u32 32, %s15
      %p1343 = scmp.lt.s32.totalorder %s1342, 63
      %s1344 = scalar_select %p1343, %s1342, 63
      %s1345 = smul.addr %s1344, 4
      %s1346 = scalar_lea.vmem %s4, %s1345
      // Predicated region
      $region37: #{forward.15} parent=35 // pred_check
        %p1347 = pneg %p127
      $region38: #{forward.15} parent=35 // pred_check_branch
        %1349 = sbr.rel (%p1347) target = $region40
      $region39: #{forward.15} parent=35 // pred_region
        %s1350 = smul.u32 32, %s15
      $region40: #{forward.15} parent=35 // pred_fallthru
        _
    $region36: #{forward.15} parent=5 // pred_fallthru
      _
    %p1351 = scmp.le.s32.totalorder 2, %s10
    // Predicated region
    $region41: #{forward.15} parent=5 // pred_check
      %p1352 = pneg %p1351
    $region42: #{forward.15} parent=5 // pred_check_branch
      %1354 = sbr.rel (%p1352) target = $region44
    $region43: #{forward.15} parent=5 // pred_region
      %s1355 = ssub.s32 %s10, 2
      // Predicated region
      $region45: #{forward.15} parent=43 // pred_check
        %p1356 = pneg %p133
      $region46: #{forward.15} parent=43 // pred_check_branch
        %1358 = sbr.rel (%p1356) target = $region48
      $region47: #{forward.15} parent=43 // pred_region
        %s1359 = smul.u32 32, %s16
        %p1360 = scmp.lt.s32.totalorder %s1359, 63
        %s1361 = scalar_select %p1360, %s1359, 63
        %s1362 = smul.addr %s1361, 4
        %s1363 = scalar_lea.vmem %s4, %s1362
      $region48: #{forward.15} parent=43 // pred_fallthru
        _
    $region44: #{forward.15} parent=5 // pred_fallthru
      _
  $region6: #{forward.15} parent=0 // loop_footer
    %s14 = sadd.s32 1, %s10
  $region7: #{forward.15} parent=0 // loop_footer_branch
    %9 = sbr.rel target = $region3
  $region8: #{forward.15} parent=0 // loop_exit
    _

// kernel: forward.16
$region0: #{forward.16}
  #allocation0 [shape = 'u32[]', space=smem, size = 0x4, offset = 0x4, fixed_abs, tag = 'smem constant byte address 0x4 - core index']
  #allocation1 [shape = 'u32[144,128]{1,0:T(1,128)}', space=vmem, size = 0x12000, scoped, tag = 'internal scratch']
  %s0 = inlined_call_operand.vmem [shape: bf16[128,288], index: 0, kind: input, shape index: {}]
  %s1 = inlined_call_operand.vmem [shape: bf16[288,64], index: 1, kind: input, shape index: {}]
  %s2 = inlined_call_operand.vmem [shape: f32[1,64], index: 2, kind: input, shape index: {}]
  %s3 = inlined_call_operand.vmem [shape: bf16[128,64], index: 3, kind: output, shape index: {}]
  %s4 = sld [smem:[#allocation0]]
  $region45: #{forward.16} parent=0
    _
  %s6 = ssub.s32 1, %s4
  %s7 = scalar_select 0, %s6, %s4
  loop: start=0, step=1, limit=4
  $region2: #{forward.16} parent=0 // loop_pre_header
    _
  $region3: #{forward.16} parent=0 // loop_header
    %s9 = sphi 0, %s13
    %p10 = scmp.ge.s32.totalorder %s9, 4
    %s19 = sphi 0, %s21
    %s22 = sphi 0, %s19
    %s23 = sphi 0, %s22
    %s39 = sphi 0, %s23
    %s43 = sphi 0, %s43
    %s45 = sphi 0, %s43
    %s46 = sphi 0, %s45
    %s60 = sphi 0, %s46
    %s64 = sphi 0, %s64
    %s66 = sphi 0, %s64
    %s67 = sphi 0, %s66
    %s81 = sphi 0, %s67
    %s87 = sphi 0, %s89
    %s90 = sphi 0, %s87
    %s91 = sphi 0, %s90
    %s107 = sphi 0, %s91
  $region4: #{forward.16} parent=0 // loop_header_branch
    %12 = sbr.rel (%p10) target = $region8
  $region5: #{forward.16} parent=0 // loop_body
    %s14 = ssub.s32 %s9, 1
    %s15 = ssub.s32 %s9, 2
    %s16 = sadd.s32 %s9, 1
    %s17 = ssub.s32 %s9, %s16
    %p18 = scmp.eq.s32.totalorder %s17, 0
    %s20 = sadd.s32 %s19, 1
    %s21 = scalar_select %p18, %s19, %s20
    %p24 = pneg %p18
    %p25 = scmp.eq.s32.totalorder %s9, 1
    %p26 = por %p24, %p25
    %p27 = scmp.ne.s32.totalorder %s19, %s22
    %p28 = scmp.eq.s32.totalorder %s9, 0
    %p29 = por %p27, %p28
    %p30 = scmp.ne.s32.totalorder %s19, %s22
    %p31 = scmp.eq.s32.totalorder %s14, 1
    %p32 = por %p30, %p31
    %p33 = scmp.ne.s32.totalorder %s22, %s23
    %p34 = scmp.eq.s32.totalorder %s14, 0
    %p35 = por %p33, %p34
    %p36 = scmp.ne.s32.totalorder %s22, %s23
    %p37 = scmp.eq.s32.totalorder %s15, 1
    %p38 = por %p36, %p37
    %p40 = scmp.ne.s32.totalorder %s23, %s39
    %p41 = scmp.eq.s32.totalorder %s15, 0
    %p42 = por %p40, %p41
    %s44 = sadd.s32 %s43, 1
    %p47 = scmp.eq.s32.totalorder %s9, 1
    %p48 = scmp.ne.s32.totalorder %s43, %s45
    %p49 = scmp.eq.s32.totalorder %s9, 0
    %p50 = por %p48, %p49
    %p51 = scmp.ne.s32.totalorder %s43, %s45
    %p52 = scmp.eq.s32.totalorder %s14, 1
    %p53 = por %p51, %p52
    %p54 = scmp.ne.s32.totalorder %s45, %s46
    %p55 = scmp.eq.s32.totalorder %s14, 0
    %p56 = por %p54, %p55
    %p57 = scmp.ne.s32.totalorder %s45, %s46
    %p58 = scmp.eq.s32.totalorder %s15, 1
    %p59 = por %p57, %p58
    %p61 = scmp.ne.s32.totalorder %s46, %s60
    %p62 = scmp.eq.s32.totalorder %s15, 0
    %p63 = por %p61, %p62
    %s65 = sadd.s32 %s64, 1
    %p68 = scmp.eq.s32.totalorder %s9, 1
    %p69 = scmp.ne.s32.totalorder %s64, %s66
    %p70 = scmp.eq.s32.totalorder %s9, 0
    %p71 = por %p69, %p70
    %p72 = scmp.ne.s32.totalorder %s64, %s66
    %p73 = scmp.eq.s32.totalorder %s14, 1
    %p74 = por %p72, %p73
    %p75 = scmp.ne.s32.totalorder %s66, %s67
    %p76 = scmp.eq.s32.totalorder %s14, 0
    %p77 = por %p75, %p76
    %p78 = scmp.ne.s32.totalorder %s66, %s67
    %p79 = scmp.eq.s32.totalorder %s15, 1
    %p80 = por %p78, %p79
    %p82 = scmp.ne.s32.totalorder %s67, %s81
    %p83 = scmp.eq.s32.totalorder %s15, 0
    %p84 = por %p82, %p83
    %s85 = ssub.s32 %s9, %s16
    %p86 = scmp.eq.s32.totalorder %s85, 0
    %s88 = sadd.s32 %s87, 1
    %s89 = scalar_select %p86, %s87, %s88
    %p92 = pneg %p86
    %p93 = scmp.eq.s32.totalorder %s9, 1
    %p94 = por %p92, %p93
    %p95 = scmp.ne.s32.totalorder %s87, %s90
    %p96 = scmp.eq.s32.totalorder %s9, 0
    %p97 = por %p95, %p96
    %p98 = scmp.ne.s32.totalorder %s87, %s90
    %p99 = scmp.eq.s32.totalorder %s14, 1
    %p100 = por %p98, %p99
    %p101 = scmp.ne.s32.totalorder %s90, %s91
    %p102 = scmp.eq.s32.totalorder %s14, 0
    %p103 = por %p101, %p102
    %p104 = scmp.ne.s32.totalorder %s90, %s91
    %p105 = scmp.eq.s32.totalorder %s15, 1
    %p106 = por %p104, %p105
    %p108 = scmp.ne.s32.totalorder %s91, %s107
    %p109 = scmp.eq.s32.totalorder %s15, 0
    %p110 = por %p108, %p109
    %p111 = scmp.le.s32.totalorder 1, %s9
    %p112 = scmp.lt.s32.totalorder %s9, 3
    %p113 = pnand %p111, %p112
    %p114 = pneg %p113
    // Predicated region
    $region9: #{forward.16} parent=5 // pred_check
      _
    $region10: #{forward.16} parent=5 // pred_check_branch
      %116 = sbr.rel (%p113) target = $region12
    $region11: #{forward.16} parent=5 // pred_region
      %s117 = ssub.s32 %s9, 1
      // Predicated region
      $region13: #{forward.16} parent=11 // pred_check
        %p118 = pneg %p56
      $region14: #{forward.16} parent=11 // pred_check_branch
        %120 = sbr.rel (%p118) target = $region16
      $region15: #{forward.16} parent=11 // pred_region
        _
      $region16: #{forward.16} parent=11 // pred_fallthru
        _
      // Predicated region
      $region17: #{forward.16} parent=11 // pred_check
        %p121 = pneg %p77
      $region18: #{forward.16} parent=11 // pred_check_branch
        %123 = sbr.rel (%p121) target = $region20
      $region19: #{forward.16} parent=11 // pred_region
        _
      $region20: #{forward.16} parent=11 // pred_fallthru
        _
    $region12: #{forward.16} parent=5 // pred_fallthru
      _
    %p124 = scmp.lt.s32.totalorder %s9, 2
    // Predicated region
    $region21: #{forward.16} parent=5 // pred_check
      %p125 = pneg %p124
    $region22: #{forward.16} parent=5 // pred_check_branch
      %127 = sbr.rel (%p125) target = $region24
    $region23: #{forward.16} parent=5 // pred_region
      // Predicated region
      $region25: #{forward.16} parent=23 // pred_check
        %p128 = pneg %p29
      $region26: #{forward.16} parent=23 // pred_check_branch
        %130 = sbr.rel (%p128) target = $region28
      $region27: #{forward.16} parent=23 // pred_region
        %s131 = smul.u32 8, %s9
        %p132 = scmp.lt.s32.totalorder %s131, 15
        %s133 = scalar_select %p132, %s131, 15
        %s134 = smul.addr %s133, 3
        %s135 = smul.addr %s134, 4
        %s136 = scalar_lea.vmem %s0, %s135
        %s137 = smul.u32 8, %s9
      $region28: #{forward.16} parent=23 // pred_fallthru
        _
    $region24: #{forward.16} parent=5 // pred_fallthru
      _
    %p138 = scmp.le.s32.totalorder 1, %s9
    %p139 = scmp.lt.s32.totalorder %s9, 3
    %p140 = pnand %p138, %p139
    %p141 = pneg %p140
    // Predicated region
    $region29: #{forward.16} parent=5 // pred_check
      _
    $region30: #{forward.16} parent=5 // pred_check_branch
      %143 = sbr.rel (%p140) target = $region32
    $region31: #{forward.16} parent=5 // pred_region
      %s144 = ssub.s32 %s9, 1
      %s145 = smul.u32 8, %s14
      %p146 = scmp.lt.s32.totalorder %s145, 15
      %s147 = scalar_select %p146, %s145, 15
      %s148 = smul.addr %s147, 3
      %s149 = smul.addr %s148, 4
      %s150 = scalar_lea.vmem %s0, %s149
      %p151 = pneg %p35
      %p152 = pneg %p32
      %p153 = pneg %p56
      %p154 = pneg %p53
      %p155 = pneg %p77
      %p156 = pneg %p74
      %p157 = pneg %p103
      %p158 = pneg %p100
      %s159 = smul.u32 8, %s14
      %p160 = scmp.lt.s32.totalorder %s159, 15
      %s161 = scalar_select %p160, %s159, 15
      %s162 = smul.addr %s161, 4
      %s163 = scalar_lea.vmem %s3, %s162
      %s164 = smul.u32 8, %s14
      %p165 = scmp.lt.s32.totalorder %s164, 15
      %s166 = scalar_select %p165, %s164, 15
      %s167 = smul.addr %s166, 3
      %s168 = smul.addr %s167, 4
      %s169 = scalar_lea.vmem %s0, %s168
      %s170 = smul.u32 8, %s14
      %s171 = smul.u32 8, %s14
      %p172 = scmp.lt.s32.totalorder %s171, 15
      %s173 = scalar_select %p172, %s171, 15
      %s174 = smul.addr %s173, 4
      %s175 = scalar_lea.vmem %s3, %s174
      %s176 = smul.u32 8, %s14
      %v178 = vld [vmem:[%s169] sm:$0xff]
      %v179 = vld [vmem:[%s169 + $0x8] sm:$0xf]
      %v180 = vld [vmem:[%s169 + $0xc] sm:$0xff]
      %v181 = vld [vmem:[%s169 + $0x14] sm:$0xf]
      %v182 = vld [vmem:[%s169 + $0x18] sm:$0xff]
      %v183 = vld [vmem:[%s169 + $0x20] sm:$0xf]
      %v184 = vld [vmem:[%s169 + $0x24] sm:$0xff]
      %v185 = vld [vmem:[%s169 + $0x2c] sm:$0xf]
      %v186 = vld [vmem:[%s169 + $0x30] sm:$0xff]
      %v187 = vld [vmem:[%s169 + $0x38] sm:$0xf]
      %v188 = vld [vmem:[%s169 + $0x3c] sm:$0xff]
      %v189 = vld [vmem:[%s169 + $0x44] sm:$0xf]
      %v190 = vld [vmem:[%s169 + $0x48] sm:$0xff]
      %v191 = vld [vmem:[%s169 + $0x50] sm:$0xf]
      %v192 = vld [vmem:[%s169 + $0x54] sm:$0xff]
      %v193 = vld [vmem:[%s169 + $0x5c] sm:$0xf]
      %v194 = vld [vmem:[%s1] sm:$0xf]
      %v195 = vld [vmem:[%s1 + $0x4] sm:$0xf]
      %v196 = vld [vmem:[%s1 + $0x8] sm:$0xf]
      %v197 = vld [vmem:[%s1 + $0xc] sm:$0xf]
      %v198 = vld [vmem:[%s1 + $0x10] sm:$0xf]
      %v199 = vld [vmem:[%s1 + $0x14] sm:$0xf]
      %v200 = vld [vmem:[%s1 + $0x18] sm:$0xf]
      %v201 = vld [vmem:[%s1 + $0x1c] sm:$0xf]
      %v202 = vld [vmem:[%s1 + $0x20] sm:$0xf]
      %v203 = vld [vmem:[%s1 + $0x24] sm:$0xf]
      %v204 = vld [vmem:[%s1 + $0x28] sm:$0xf]
      %v205 = vld [vmem:[%s1 + $0x2c] sm:$0xf]
      %v206 = vld [vmem:[%s1 + $0x30] sm:$0xf]
      %v207 = vld [vmem:[%s1 + $0x34] sm:$0xf]
      %v208 = vld [vmem:[%s1 + $0x38] sm:$0xf]
      %v209 = vld [vmem:[%s1 + $0x3c] sm:$0xf]
      %v210 = vld [vmem:[%s1 + $0x40] sm:$0xf]
      %v211 = vld [vmem:[%s1 + $0x44] sm:$0xf]
      %v212 = vld [vmem:[%s1 + $0x48] sm:$0xf]
      %v213 = vld [vmem:[%s1 + $0x4c] sm:$0xf]
      %v214 = vld [vmem:[%s1 + $0x50] sm:$0xf]
      %v215 = vld [vmem:[%s1 + $0x54] sm:$0xf]
      %v216 = vld [vmem:[%s1 + $0x58] sm:$0xf]
      %v217 = vld [vmem:[%s1 + $0x5c] sm:$0xf]
      %v218 = vld [vmem:[%s1 + $0x60] sm:$0xf]
      %v219 = vld [vmem:[%s1 + $0x64] sm:$0xf]
      %v220 = vld [vmem:[%s1 + $0x68] sm:$0xf]
      %v221 = vld [vmem:[%s1 + $0x6c] sm:$0xf]
      %v222 = vld [vmem:[%s1 + $0x70] sm:$0xf]
      %v223 = vld [vmem:[%s1 + $0x74] sm:$0xf]
      %v224 = vld [vmem:[%s1 + $0x78] sm:$0xf]
      %v225 = vld [vmem:[%s1 + $0x7c] sm:$0xf]
      %v226 = vld [vmem:[%s1 + $0x80] sm:$0xf]
      %v227 = vld [vmem:[%s1 + $0x84] sm:$0xf]
      %v228 = vld [vmem:[%s1 + $0x88] sm:$0xf]
      %v229 = vld [vmem:[%s1 + $0x8c] sm:$0xf]
      %v230 = vld [vmem:[%s2] sm:$0x1]
      %v232 = vlaneseq
      %v233 = vshrl.u32 %v232, 7
      %v234 = vsub.s32 0, %v233
      %v235 = vrot.slane %v230, %v234
      %v253 = vunpack.c.l.b16 %v178
      %v254 = vunpack.c.h.b16 %v178
      %v255 = vunpack.c.l.b16 %v179
      %v256 = vunpack.c.l.b16 %v180
      %v257 = vunpack.c.h.b16 %v180
      %v258 = vunpack.c.l.b16 %v181
      %v259 = vunpack.c.l.b16 %v182
      %v260 = vunpack.c.h.b16 %v182
      %v261 = vunpack.c.l.b16 %v183
      %v262 = vunpack.c.l.b16 %v184
      %v263 = vunpack.c.h.b16 %v184
      %v264 = vunpack.c.l.b16 %v185
      %v265 = vunpack.c.l.b16 %v186
      %v266 = vunpack.c.h.b16 %v186
      %v267 = vunpack.c.l.b16 %v187
      %v268 = vunpack.c.l.b16 %v188
      %v269 = vunpack.c.h.b16 %v188
      %v270 = vunpack.c.l.b16 %v189
      %v271 = vunpack.c.l.b16 %v190
      %v272 = vunpack.c.h.b16 %v190
      %v273 = vunpack.c.l.b16 %v191
      %v274 = vunpack.c.l.b16 %v192
      %v275 = vunpack.c.h.b16 %v192
      %v276 = vunpack.c.l.b16 %v193
      %v277 = vpack.c.b16 %v256, %v253
      %v278 = vpack.c.b16 %v257, %v254
      %v279 = vpack.c.b16 %v258, %v255
      %v280 = vpack.c.b16 %v262, %v259
      %v281 = vpack.c.b16 %v263, %v260
      %v282 = vpack.c.b16 %v264, %v261
      %v283 = vpack.c.b16 %v268, %v265
      %v284 = vpack.c.b16 %v269, %v266
      %v285 = vpack.c.b16 %v270, %v267
      %v286 = vpack.c.b16 %v274, %v271
      %v287 = vpack.c.b16 %v275, %v272
      %v288 = vpack.c.b16 %v276, %v273
      %v333 = vunpack.c.l.b16 %v194
      %v334 = vunpack.c.l.b16 %v195
      %v335 = vunpack.c.l.b16 %v196
      %v336 = vunpack.c.l.b16 %v197
      %v337 = vunpack.c.l.b16 %v198
      %v338 = vunpack.c.l.b16 %v199
      %v339 = vunpack.c.l.b16 %v200
      %v340 = vunpack.c.l.b16 %v201
      %v341 = vunpack.c.l.b16 %v202
      %v342 = vunpack.c.l.b16 %v203
      %v343 = vunpack.c.l.b16 %v204
      %v344 = vunpack.c.l.b16 %v205
      %v345 = vunpack.c.l.b16 %v206
      %v346 = vunpack.c.l.b16 %v207
      %v347 = vunpack.c.l.b16 %v208
      %v348 = vunpack.c.l.b16 %v209
      %v349 = vunpack.c.l.b16 %v210
      %v350 = vunpack.c.l.b16 %v211
      %v351 = vunpack.c.l.b16 %v212
      %v352 = vunpack.c.l.b16 %v213
      %v353 = vunpack.c.l.b16 %v214
      %v354 = vunpack.c.l.b16 %v215
      %v355 = vunpack.c.l.b16 %v216
      %v356 = vunpack.c.l.b16 %v217
      %v357 = vunpack.c.l.b16 %v218
      %v358 = vunpack.c.l.b16 %v219
      %v359 = vunpack.c.l.b16 %v220
      %v360 = vunpack.c.l.b16 %v221
      %v361 = vunpack.c.l.b16 %v222
      %v362 = vunpack.c.l.b16 %v223
      %v363 = vunpack.c.l.b16 %v224
      %v364 = vunpack.c.l.b16 %v225
      %v365 = vunpack.c.l.b16 %v226
      %v366 = vunpack.c.l.b16 %v227
      %v367 = vunpack.c.l.b16 %v228
      %v368 = vunpack.c.l.b16 %v229
      %v369 = vpack.c.b16 %v334, %v333
      %v370 = vpack.c.b16 %v336, %v335
      %v371 = vpack.c.b16 %v338, %v337
      %v372 = vpack.c.b16 %v340, %v339
      %v373 = vpack.c.b16 %v342, %v341
      %v374 = vpack.c.b16 %v344, %v343
      %v375 = vpack.c.b16 %v346, %v345
      %v376 = vpack.c.b16 %v348, %v347
      %v377 = vpack.c.b16 %v350, %v349
      %v378 = vpack.c.b16 %v352, %v351
      %v379 = vpack.c.b16 %v354, %v353
      %v380 = vpack.c.b16 %v356, %v355
      %v381 = vpack.c.b16 %v358, %v357
      %v382 = vpack.c.b16 %v360, %v359
      %v383 = vpack.c.b16 %v362, %v361
      %v384 = vpack.c.b16 %v364, %v363
      %v385 = vpack.c.b16 %v366, %v365
      %v386 = vpack.c.b16 %v368, %v367
      %vm405 = vcmask 261120
      %v407 = vsel %vm405, %v279, 0
      %v410 = vsel %vm405, %v282, 0
      %v413 = vsel %vm405, %v285, 0
      %v416 = vsel %vm405, %v288, 0
      %418 = vmatprep.subr.bf16.mxu0 0
      %419 = vmatpush1.bf16.msra.mxu0 %v369
      %420 = vmatprep.subr.bf16.mxu0 0
      %421 = vmatpush1.bf16.msra.mxu0 %v370
      %422 = vmatprep.subr.bf16.mxu0 0
      %423 = vmatpush1.bf16.msra.mxu0 %v371
      %424 = vmatprep.subr.bf16.mxu0 0
      %425 = vmatpush1.bf16.msra.mxu0 %v372
      %426 = vmatprep.subr.bf16.mxu0 0
      %427 = vmatpush1.bf16.msra.mxu0 %v373
      %428 = vmatprep.subr.bf16.mxu0 0
      %429 = vmatpush1.bf16.msra.mxu0 %v374
      %430 = vmatprep.subr.bf16.mxu0 0
      %431 = vmatpush1.bf16.msra.mxu0 %v375
      %432 = vmatprep.subr.bf16.mxu0 0
      %433 = vmatpush1.bf16.msra.mxu0 %v376
      %434 = vmatprep.subr.bf16.mxu0 0
      %435 = vmatpush1.bf16.msra.mxu0 %v377
      %436 = vmatprep.subr.bf16.mxu0 0
      %437 = vmatpush1.bf16.msra.mxu0 %v378
      %438 = vmatprep.subr.bf16.mxu0 0
      %439 = vmatpush1.bf16.msra.mxu0 %v379
      %440 = vmatprep.subr.bf16.mxu0 0
      %441 = vmatpush1.bf16.msra.mxu0 %v380
      %442 = vmatprep.subr.bf16.mxu0 0
      %443 = vmatpush1.bf16.msra.mxu0 %v381
      %444 = vmatprep.subr.bf16.mxu0 0
      %445 = vmatpush1.bf16.msra.mxu0 %v382
      %446 = vmatprep.subr.bf16.mxu0 0
      %447 = vmatpush1.bf16.msra.mxu0 %v383
      %448 = vmatprep.subr.bf16.mxu0 0
      %449 = vmatpush1.bf16.msra.mxu0 %v384
      %450 = vmatprep.mubr.bf16.mxu0 %v278
      %451 = vmatmul.mubr.bf16.gmra.mrb[0].mxu0 %v277
      %v452 = vpop.f32.mrb[0].mxu0
      %v453 = vadd.f32 %v235, %v452
      %v454 = vpop.f32.mrb[0].mxu0
      %v455 = vpop.f32.mrb[0].mxu0
      %v456 = vadd.f32 %v235, %v455
      %v457 = vpop.f32.mrb[0].mxu0
      %458 = vmatprep.mubr.bf16.mxu0 %v281
      %459 = vmatmul.mubr.bf16.gmra.mrb[0].mxu0 %v280
      %v460 = vpop.f32.mrb[0].mxu0
      %v461 = vadd.f32 %v235, %v460
      %v462 = vpop.f32.mrb[0].mxu0
      %v463 = vpop.f32.mrb[0].mxu0
      %v464 = vadd.f32 %v235, %v463
      %v465 = vpop.f32.mrb[0].mxu0
      %466 = vmatprep.mubr.bf16.mxu0 %v284
      %467 = vmatmul.mubr.bf16.gmra.mrb[0].mxu0 %v283
      %v468 = vpop.f32.mrb[0].mxu0
      %v469 = vadd.f32 %v235, %v468
      %v470 = vpop.f32.mrb[0].mxu0
      %v471 = vpop.f32.mrb[0].mxu0
      %v472 = vadd.f32 %v235, %v471
      %v473 = vpop.f32.mrb[0].mxu0
      %474 = vmatprep.mubr.bf16.mxu0 %v287
      %475 = vmatmul.mubr.bf16.gmra.mrb[0].mxu0 %v286
      %v476 = vpop.f32.mrb[0].mxu0
      %v477 = vadd.f32 %v235, %v476
      %v478 = vpop.f32.mrb[0].mxu0
      %v479 = vpop.f32.mrb[0].mxu0
      %v480 = vadd.f32 %v235, %v479
      %v481 = vpop.f32.mrb[0].mxu0
      %482 = vdwg.mxu0
      %483 = vmatprep.subr.bf16.mxu0 0
      %484 = vmatpush1.bf16.msra.mxu0 %v385
      %485 = vmatprep.subr.bf16.mxu0 0
      %486 = vmatpush1.bf16.msra.mxu0 %v386
      %487 = vmatprep.subr.bf16.mxu0 0
      %488 = vmatpush1.bf16.msra.mxu0 0
      %489 = vmatprep.subr.bf16.mxu0 0
      %490 = vmatpush1.bf16.msra.mxu0 0
      %491 = vmatprep.subr.bf16.mxu0 0
      %492 = vmatpush1.bf16.msra.mxu0 0
      %493 = vmatprep.subr.bf16.mxu0 0
      %494 = vmatpush1.bf16.msra.mxu0 0
      %495 = vmatprep.subr.bf16.mxu0 0
      %496 = vmatpush1.bf16.msra.mxu0 0
      %497 = vmatprep.subr.bf16.mxu0 0
      %498 = vmatpush1.bf16.msra.mxu0 0
      %499 = vmatprep.subr.bf16.mxu0 0
      %500 = vmatpush1.bf16.msra.mxu0 0
      %501 = vmatprep.subr.bf16.mxu0 0
      %502 = vmatpush1.bf16.msra.mxu0 0
      %503 = vmatprep.subr.bf16.mxu0 0
      %504 = vmatpush1.bf16.msra.mxu0 0
      %505 = vmatprep.subr.bf16.mxu0 0
      %506 = vmatpush1.bf16.msra.mxu0 0
      %507 = vmatprep.subr.bf16.mxu0 0
      %508 = vmatpush1.bf16.msra.mxu0 0
      %509 = vmatprep.subr.bf16.mxu0 0
      %510 = vmatpush1.bf16.msra.mxu0 0
      %511 = vmatprep.subr.bf16.mxu0 0
      %512 = vmatpush1.bf16.msra.mxu0 0
      %513 = vmatprep.subr.bf16.mxu0 0
      %514 = vmatpush1.bf16.msra.mxu0 0
      %515 = vmatprep.mubr.bf16.mxu0 0
      %516 = vmatmul.mubr.bf16.gmra.mrb[0].mxu0 %v407
      %v517 = vpop.f32.mrb[0].mxu0
      %v518 = vadd.f32 %v453, %v517
      %v519 = vpop.f32.mrb[0].mxu0
      %v520 = vpop.f32.mrb[0].mxu0
      %v521 = vadd.f32 %v456, %v520
      %v522 = vpop.f32.mrb[0].mxu0
      %523 = vmatprep.mubr.bf16.mxu0 0
      %524 = vmatmul.mubr.bf16.gmra.mrb[0].mxu0 %v410
      %v525 = vpop.f32.mrb[0].mxu0
      %v526 = vadd.f32 %v461, %v525
      %v527 = vpop.f32.mrb[0].mxu0
      %v528 = vpop.f32.mrb[0].mxu0
      %v529 = vadd.f32 %v464, %v528
      %v530 = vpop.f32.mrb[0].mxu0
      %531 = vmatprep.mubr.bf16.mxu0 0
      %532 = vmatmul.mubr.bf16.gmra.mrb[0].mxu0 %v413
      %v533 = vpop.f32.mrb[0].mxu0
      %v534 = vadd.f32 %v469, %v533
      %v535 = vpop.f32.mrb[0].mxu0
      %v536 = vpop.f32.mrb[0].mxu0
      %v537 = vadd.f32 %v472, %v536
      %v538 = vpop.f32.mrb[0].mxu0
      %539 = vmatprep.mubr.bf16.mxu0 0
      %540 = vmatmul.mubr.bf16.gmra.mrb[0].mxu0 %v416
      %v541 = vpop.f32.mrb[0].mxu0
      %v542 = vadd.f32 %v477, %v541
      %v543 = vpop.f32.mrb[0].mxu0
      %v544 = vpop.f32.mrb[0].mxu0
      %v545 = vadd.f32 %v480, %v544
      %v546 = vpop.f32.mrb[0].mxu0
      %547 = vdwg.mxu0
      %v548 = vmax.f32 %v518, 0.0
      %v549 = vmax.f32 %v521, 0.0
      %v550 = vmax.f32 %v526, 0.0
      %v551 = vmax.f32 %v529, 0.0
      %v552 = vmax.f32 %v534, 0.0
      %v553 = vmax.f32 %v537, 0.0
      %v554 = vmax.f32 %v542, 0.0
      %v555 = vmax.f32 %v545, 0.0
      %v556 = vpack.c.bf16 %v549, %v548
      %v557 = vpack.c.bf16 %v551, %v550
      %v558 = vpack.c.bf16 %v553, %v552
      %v559 = vpack.c.bf16 %v555, %v554
      %v564 = vunpack.c.l.b16 %v556
      %v565 = vunpack.c.h.b16 %v556
      %v566 = vunpack.c.l.b16 %v557
      %v567 = vunpack.c.h.b16 %v557
      %v568 = vunpack.c.l.b16 %v558
      %v569 = vunpack.c.h.b16 %v558
      %v570 = vunpack.c.l.b16 %v559
      %v571 = vunpack.c.h.b16 %v559
      %v572 = vpack.c.b16 %v564, %v564
      %v573 = vpack.c.b16 %v565, %v565
      %v574 = vpack.c.b16 %v566, %v566
      %v575 = vpack.c.b16 %v567, %v567
      %v576 = vpack.c.b16 %v568, %v568
      %v577 = vpack.c.b16 %v569, %v569
      %v578 = vpack.c.b16 %v570, %v570
      %v579 = vpack.c.b16 %v571, %v571
      %vm588 = vcmask 519168
      %589 = vst.msk [vmem:[%s175] sm:$0xf] %vm588, %v572
      %590 = vst.msk [vmem:[%s175 + $0x4] sm:$0xf] %vm588, %v573
      %591 = vst.msk [vmem:[%s175 + $0x8] sm:$0xf] %vm588, %v574
      %592 = vst.msk [vmem:[%s175 + $0xc] sm:$0xf] %vm588, %v575
      %593 = vst.msk [vmem:[%s175 + $0x10] sm:$0xf] %vm588, %v576
      %594 = vst.msk [vmem:[%s175 + $0x14] sm:$0xf] %vm588, %v577
      %595 = vst.msk [vmem:[%s175 + $0x18] sm:$0xf] %vm588, %v578
      %596 = vst.msk [vmem:[%s175 + $0x1c] sm:$0xf] %vm588, %v579
      %s597 = smul.u32 8, %s14
      %p598 = scmp.lt.s32.totalorder %s597, 15
      %s599 = scalar_select %p598, %s597, 15
      %s600 = smul.addr %s599, 4
      %s601 = scalar_lea.vmem %s3, %s600
      // Predicated region
      $region33: #{forward.16} parent=31 // pred_check
        %p602 = pneg %p100
      $region34: #{forward.16} parent=31 // pred_check_branch
        %604 = sbr.rel (%p602) target = $region36
      $region35: #{forward.16} parent=31 // pred_region
        %s605 = smul.u32 8, %s14
      $region36: #{forward.16} parent=31 // pred_fallthru
        _
    $region32: #{forward.16} parent=5 // pred_fallthru
      _
    %p606 = scmp.le.s32.totalorder 2, %s9
    // Predicated region
    $region37: #{forward.16} parent=5 // pred_check
      %p607 = pneg %p606
    $region38: #{forward.16} parent=5 // pred_check_branch
      %609 = sbr.rel (%p607) target = $region40
    $region39: #{forward.16} parent=5 // pred_region
      %s610 = ssub.s32 %s9, 2
      // Predicated region
      $region41: #{forward.16} parent=39 // pred_check
        %p611 = pneg %p106
      $region42: #{forward.16} parent=39 // pred_check_branch
        %613 = sbr.rel (%p611) target = $region44
      $region43: #{forward.16} parent=39 // pred_region
        %s614 = smul.u32 8, %s15
        %p615 = scmp.lt.s32.totalorder %s614, 15
        %s616 = scalar_select %p615, %s614, 15
        %s617 = smul.addr %s616, 4
        %s618 = scalar_lea.vmem %s3, %s617
      $region44: #{forward.16} parent=39 // pred_fallthru
        _
    $region40: #{forward.16} parent=5 // pred_fallthru
      _
  $region6: #{forward.16} parent=0 // loop_footer
    %s13 = sadd.s32 1, %s9
  $region7: #{forward.16} parent=0 // loop_footer_branch
    %8 = sbr.rel target = $region3
  $region8: #{forward.16} parent=0 // loop_exit
    _

// kernel: forward.17
$region0: #{forward.17}
  #allocation0 [shape = 'u32[]', space=smem, size = 0x4, offset = 0x4, fixed_abs, tag = 'smem constant byte address 0x4 - core index']
  #allocation1 [shape = 'u32[144,128]{1,0:T(1,128)}', space=vmem, size = 0x12000, scoped, tag = 'internal scratch']
  %s0 = inlined_call_operand.vmem [shape: bf16[128,32], index: 0, kind: input, shape index: {}]
  %s1 = inlined_call_operand.vmem [shape: bf16[32,64], index: 1, kind: input, shape index: {}]
  %s2 = inlined_call_operand.vmem [shape: f32[1,64], index: 2, kind: input, shape index: {}]
  %s3 = inlined_call_operand.vmem [shape: bf16[128,64], index: 3, kind: output, shape index: {}]
  %s4 = sld [smem:[#allocation0]]
  $region45: #{forward.17} parent=0
    _
  %s6 = ssub.s32 1, %s4
  %s7 = scalar_select 0, %s6, %s4
  loop: start=0, step=1, limit=4
  $region2: #{forward.17} parent=0 // loop_pre_header
    _
  $region3: #{forward.17} parent=0 // loop_header
    %s9 = sphi 0, %s13
    %p10 = scmp.ge.s32.totalorder %s9, 4
    %s19 = sphi 0, %s21
    %s22 = sphi 0, %s19
    %s23 = sphi 0, %s22
    %s39 = sphi 0, %s23
    %s43 = sphi 0, %s43
    %s45 = sphi 0, %s43
    %s46 = sphi 0, %s45
    %s60 = sphi 0, %s46
    %s64 = sphi 0, %s64
    %s66 = sphi 0, %s64
    %s67 = sphi 0, %s66
    %s81 = sphi 0, %s67
    %s87 = sphi 0, %s89
    %s90 = sphi 0, %s87
    %s91 = sphi 0, %s90
    %s107 = sphi 0, %s91
  $region4: #{forward.17} parent=0 // loop_header_branch
    %12 = sbr.rel (%p10) target = $region8
  $region5: #{forward.17} parent=0 // loop_body
    %s14 = ssub.s32 %s9, 1
    %s15 = ssub.s32 %s9, 2
    %s16 = sadd.s32 %s9, 1
    %s17 = ssub.s32 %s9, %s16
    %p18 = scmp.eq.s32.totalorder %s17, 0
    %s20 = sadd.s32 %s19, 1
    %s21 = scalar_select %p18, %s19, %s20
    %p24 = pneg %p18
    %p25 = scmp.eq.s32.totalorder %s9, 1
    %p26 = por %p24, %p25
    %p27 = scmp.ne.s32.totalorder %s19, %s22
    %p28 = scmp.eq.s32.totalorder %s9, 0
    %p29 = por %p27, %p28
    %p30 = scmp.ne.s32.totalorder %s19, %s22
    %p31 = scmp.eq.s32.totalorder %s14, 1
    %p32 = por %p30, %p31
    %p33 = scmp.ne.s32.totalorder %s22, %s23
    %p34 = scmp.eq.s32.totalorder %s14, 0
    %p35 = por %p33, %p34
    %p36 = scmp.ne.s32.totalorder %s22, %s23
    %p37 = scmp.eq.s32.totalorder %s15, 1
    %p38 = por %p36, %p37
    %p40 = scmp.ne.s32.totalorder %s23, %s39
    %p41 = scmp.eq.s32.totalorder %s15, 0
    %p42 = por %p40, %p41
    %s44 = sadd.s32 %s43, 1
    %p47 = scmp.eq.s32.totalorder %s9, 1
    %p48 = scmp.ne.s32.totalorder %s43, %s45
    %p49 = scmp.eq.s32.totalorder %s9, 0
    %p50 = por %p48, %p49
    %p51 = scmp.ne.s32.totalorder %s43, %s45
    %p52 = scmp.eq.s32.totalorder %s14, 1
    %p53 = por %p51, %p52
    %p54 = scmp.ne.s32.totalorder %s45, %s46
    %p55 = scmp.eq.s32.totalorder %s14, 0
    %p56 = por %p54, %p55
    %p57 = scmp.ne.s32.totalorder %s45, %s46
    %p58 = scmp.eq.s32.totalorder %s15, 1
    %p59 = por %p57, %p58
    %p61 = scmp.ne.s32.totalorder %s46, %s60
    %p62 = scmp.eq.s32.totalorder %s15, 0
    %p63 = por %p61, %p62
    %s65 = sadd.s32 %s64, 1
    %p68 = scmp.eq.s32.totalorder %s9, 1
    %p69 = scmp.ne.s32.totalorder %s64, %s66
    %p70 = scmp.eq.s32.totalorder %s9, 0
    %p71 = por %p69, %p70
    %p72 = scmp.ne.s32.totalorder %s64, %s66
    %p73 = scmp.eq.s32.totalorder %s14, 1
    %p74 = por %p72, %p73
    %p75 = scmp.ne.s32.totalorder %s66, %s67
    %p76 = scmp.eq.s32.totalorder %s14, 0
    %p77 = por %p75, %p76
    %p78 = scmp.ne.s32.totalorder %s66, %s67
    %p79 = scmp.eq.s32.totalorder %s15, 1
    %p80 = por %p78, %p79
    %p82 = scmp.ne.s32.totalorder %s67, %s81
    %p83 = scmp.eq.s32.totalorder %s15, 0
    %p84 = por %p82, %p83
    %s85 = ssub.s32 %s9, %s16
    %p86 = scmp.eq.s32.totalorder %s85, 0
    %s88 = sadd.s32 %s87, 1
    %s89 = scalar_select %p86, %s87, %s88
    %p92 = pneg %p86
    %p93 = scmp.eq.s32.totalorder %s9, 1
    %p94 = por %p92, %p93
    %p95 = scmp.ne.s32.totalorder %s87, %s90
    %p96 = scmp.eq.s32.totalorder %s9, 0
    %p97 = por %p95, %p96
    %p98 = scmp.ne.s32.totalorder %s87, %s90
    %p99 = scmp.eq.s32.totalorder %s14, 1
    %p100 = por %p98, %p99
    %p101 = scmp.ne.s32.totalorder %s90, %s91
    %p102 = scmp.eq.s32.totalorder %s14, 0
    %p103 = por %p101, %p102
    %p104 = scmp.ne.s32.totalorder %s90, %s91
    %p105 = scmp.eq.s32.totalorder %s15, 1
    %p106 = por %p104, %p105
    %p108 = scmp.ne.s32.totalorder %s91, %s107
    %p109 = scmp.eq.s32.totalorder %s15, 0
    %p110 = por %p108, %p109
    %p111 = scmp.le.s32.totalorder 1, %s9
    %p112 = scmp.lt.s32.totalorder %s9, 3
    %p113 = pnand %p111, %p112
    %p114 = pneg %p113
    // Predicated region
    $region9: #{forward.17} parent=5 // pred_check
      _
    $region10: #{forward.17} parent=5 // pred_check_branch
      %116 = sbr.rel (%p113) target = $region12
    $region11: #{forward.17} parent=5 // pred_region
      %s117 = ssub.s32 %s9, 1
      // Predicated region
      $region13: #{forward.17} parent=11 // pred_check
        %p118 = pneg %p56
      $region14: #{forward.17} parent=11 // pred_check_branch
        %120 = sbr.rel (%p118) target = $region16
      $region15: #{forward.17} parent=11 // pred_region
        _
      $region16: #{forward.17} parent=11 // pred_fallthru
        _
      // Predicated region
      $region17: #{forward.17} parent=11 // pred_check
        %p121 = pneg %p77
      $region18: #{forward.17} parent=11 // pred_check_branch
        %123 = sbr.rel (%p121) target = $region20
      $region19: #{forward.17} parent=11 // pred_region
        _
      $region20: #{forward.17} parent=11 // pred_fallthru
        _
    $region12: #{forward.17} parent=5 // pred_fallthru
      _
    %p124 = scmp.lt.s32.totalorder %s9, 2
    // Predicated region
    $region21: #{forward.17} parent=5 // pred_check
      %p125 = pneg %p124
    $region22: #{forward.17} parent=5 // pred_check_branch
      %127 = sbr.rel (%p125) target = $region24
    $region23: #{forward.17} parent=5 // pred_region
      // Predicated region
      $region25: #{forward.17} parent=23 // pred_check
        %p128 = pneg %p29
      $region26: #{forward.17} parent=23 // pred_check_branch
        %130 = sbr.rel (%p128) target = $region28
      $region27: #{forward.17} parent=23 // pred_region
        %s131 = smul.u32 8, %s9
        %p132 = scmp.lt.s32.totalorder %s131, 15
        %s133 = scalar_select %p132, %s131, 15
        %s134 = smul.addr %s133, 4
        %s135 = scalar_lea.vmem %s0, %s134
        %s136 = smul.u32 8, %s9
      $region28: #{forward.17} parent=23 // pred_fallthru
        _
    $region24: #{forward.17} parent=5 // pred_fallthru
      _
    %p137 = scmp.le.s32.totalorder 1, %s9
    %p138 = scmp.lt.s32.totalorder %s9, 3
    %p139 = pnand %p137, %p138
    %p140 = pneg %p139
    // Predicated region
    $region29: #{forward.17} parent=5 // pred_check
      _
    $region30: #{forward.17} parent=5 // pred_check_branch
      %142 = sbr.rel (%p139) target = $region32
    $region31: #{forward.17} parent=5 // pred_region
      %s143 = ssub.s32 %s9, 1
      %s144 = smul.u32 8, %s14
      %p145 = scmp.lt.s32.totalorder %s144, 15
      %s146 = scalar_select %p145, %s144, 15
      %s147 = smul.addr %s146, 4
      %s148 = scalar_lea.vmem %s0, %s147
      %p149 = pneg %p35
      %p150 = pneg %p32
      %p151 = pneg %p56
      %p152 = pneg %p53
      %p153 = pneg %p77
      %p154 = pneg %p74
      %p155 = pneg %p103
      %p156 = pneg %p100
      %s157 = smul.u32 8, %s14
      %p158 = scmp.lt.s32.totalorder %s157, 15
      %s159 = scalar_select %p158, %s157, 15
      %s160 = smul.addr %s159, 4
      %s161 = scalar_lea.vmem %s3, %s160
      %s162 = smul.u32 8, %s14
      %p163 = scmp.lt.s32.totalorder %s162, 15
      %s164 = scalar_select %p163, %s162, 15
      %s165 = smul.addr %s164, 4
      %s166 = scalar_lea.vmem %s0, %s165
      %s167 = smul.u32 8, %s14
      %s168 = smul.u32 8, %s14
      %p169 = scmp.lt.s32.totalorder %s168, 15
      %s170 = scalar_select %p169, %s168, 15
      %s171 = smul.addr %s170, 4
      %s172 = scalar_lea.vmem %s3, %s171
      %s173 = smul.u32 8, %s14
      %v175 = vld [vmem:[%s166] sm:$0xf]
      %v176 = vld [vmem:[%s166 + $0x4] sm:$0xf]
      %v177 = vld [vmem:[%s166 + $0x8] sm:$0xf]
      %v178 = vld [vmem:[%s166 + $0xc] sm:$0xf]
      %v179 = vld [vmem:[%s166 + $0x10] sm:$0xf]
      %v180 = vld [vmem:[%s166 + $0x14] sm:$0xf]
      %v181 = vld [vmem:[%s166 + $0x18] sm:$0xf]
      %v182 = vld [vmem:[%s166 + $0x1c] sm:$0xf]
      %v183 = vld [vmem:[%s1] sm:$0xf]
      %v184 = vld [vmem:[%s1 + $0x4] sm:$0xf]
      %v185 = vld [vmem:[%s1 + $0x8] sm:$0xf]
      %v186 = vld [vmem:[%s1 + $0xc] sm:$0xf]
      %v187 = vld [vmem:[%s2] sm:$0x1]
      %v189 = vlaneseq
      %v190 = vshrl.u32 %v189, 7
      %v191 = vsub.s32 0, %v190
      %v192 = vrot.slane %v187, %v191
      %v202 = vunpack.c.l.b16 %v175
      %v203 = vunpack.c.l.b16 %v176
      %v204 = vunpack.c.l.b16 %v177
      %v205 = vunpack.c.l.b16 %v178
      %v206 = vunpack.c.l.b16 %v179
      %v207 = vunpack.c.l.b16 %v180
      %v208 = vunpack.c.l.b16 %v181
      %v209 = vunpack.c.l.b16 %v182
      %v210 = vpack.c.b16 %v203, %v202
      %v211 = vpack.c.b16 %v205, %v204
      %v212 = vpack.c.b16 %v207, %v206
      %v213 = vpack.c.b16 %v209, %v208
      %v218 = vunpack.c.l.b16 %v183
      %v219 = vunpack.c.l.b16 %v184
      %v220 = vunpack.c.l.b16 %v185
      %v221 = vunpack.c.l.b16 %v186
      %v222 = vpack.c.b16 %v219, %v218
      %v223 = vpack.c.b16 %v221, %v220
      %vm226 = vcmask 261120
      %v228 = vsel %vm226, %v210, 0
      %v231 = vsel %vm226, %v211, 0
      %v234 = vsel %vm226, %v212, 0
      %v237 = vsel %vm226, %v213, 0
      %239 = vmatprep.subr.bf16.mxu0 0
      %240 = vmatpush1.bf16.msra.mxu0 %v222
      %241 = vmatprep.subr.bf16.mxu0 0
      %242 = vmatpush1.bf16.msra.mxu0 %v223
      %243 = vmatprep.subr.bf16.mxu0 0
      %244 = vmatpush1.bf16.msra.mxu0 0
      %245 = vmatprep.subr.bf16.mxu0 0
      %246 = vmatpush1.bf16.msra.mxu0 0
      %247 = vmatprep.subr.bf16.mxu0 0
      %248 = vmatpush1.bf16.msra.mxu0 0
      %249 = vmatprep.subr.bf16.mxu0 0
      %250 = vmatpush1.bf16.msra.mxu0 0
      %251 = vmatprep.subr.bf16.mxu0 0
      %252 = vmatpush1.bf16.msra.mxu0 0
      %253 = vmatprep.subr.bf16.mxu0 0
      %254 = vmatpush1.bf16.msra.mxu0 0
      %255 = vmatprep.subr.bf16.mxu0 0
      %256 = vmatpush1.bf16.msra.mxu0 0
      %257 = vmatprep.subr.bf16.mxu0 0
      %258 = vmatpush1.bf16.msra.mxu0 0
      %259 = vmatprep.subr.bf16.mxu0 0
      %260 = vmatpush1.bf16.msra.mxu0 0
      %261 = vmatprep.subr.bf16.mxu0 0
      %262 = vmatpush1.bf16.msra.mxu0 0
      %263 = vmatprep.subr.bf16.mxu0 0
      %264 = vmatpush1.bf16.msra.mxu0 0
      %265 = vmatprep.subr.bf16.mxu0 0
      %266 = vmatpush1.bf16.msra.mxu0 0
      %267 = vmatprep.subr.bf16.mxu0 0
      %268 = vmatpush1.bf16.msra.mxu0 0
      %269 = vmatprep.subr.bf16.mxu0 0
      %270 = vmatpush1.bf16.msra.mxu0 0
      %271 = vmatprep.mubr.bf16.mxu0 0
      %272 = vmatmul.mubr.bf16.gmra.mrb[0].mxu0 %v228
      %v273 = vpop.f32.mrb[0].mxu0
      %v274 = vadd.f32 %v192, %v273
      %v275 = vpop.f32.mrb[0].mxu0
      %v276 = vpop.f32.mrb[0].mxu0
      %v277 = vadd.f32 %v192, %v276
      %v278 = vpop.f32.mrb[0].mxu0
      %279 = vmatprep.mubr.bf16.mxu0 0
      %280 = vmatmul.mubr.bf16.gmra.mrb[0].mxu0 %v231
      %v281 = vpop.f32.mrb[0].mxu0
      %v282 = vadd.f32 %v192, %v281
      %v283 = vpop.f32.mrb[0].mxu0
      %v284 = vpop.f32.mrb[0].mxu0
      %v285 = vadd.f32 %v192, %v284
      %v286 = vpop.f32.mrb[0].mxu0
      %287 = vmatprep.mubr.bf16.mxu0 0
      %288 = vmatmul.mubr.bf16.gmra.mrb[0].mxu0 %v234
      %v289 = vpop.f32.mrb[0].mxu0
      %v290 = vadd.f32 %v192, %v289
      %v291 = vpop.f32.mrb[0].mxu0
      %v292 = vpop.f32.mrb[0].mxu0
      %v293 = vadd.f32 %v192, %v292
      %v294 = vpop.f32.mrb[0].mxu0
      %295 = vmatprep.mubr.bf16.mxu0 0
      %296 = vmatmul.mubr.bf16.gmra.mrb[0].mxu0 %v237
      %v297 = vpop.f32.mrb[0].mxu0
      %v298 = vadd.f32 %v192, %v297
      %v299 = vpop.f32.mrb[0].mxu0
      %v300 = vpop.f32.mrb[0].mxu0
      %v301 = vadd.f32 %v192, %v300
      %v302 = vpop.f32.mrb[0].mxu0
      %303 = vdwg.mxu0
      %v304 = vpack.c.bf16 %v277, %v274
      %v305 = vpack.c.bf16 %v285, %v282
      %v306 = vpack.c.bf16 %v293, %v290
      %v307 = vpack.c.bf16 %v301, %v298
      %v312 = vunpack.c.l.b16 %v304
      %v313 = vunpack.c.h.b16 %v304
      %v314 = vunpack.c.l.b16 %v305
      %v315 = vunpack.c.h.b16 %v305
      %v316 = vunpack.c.l.b16 %v306
      %v317 = vunpack.c.h.b16 %v306
      %v318 = vunpack.c.l.b16 %v307
      %v319 = vunpack.c.h.b16 %v307
      %v320 = vpack.c.b16 %v312, %v312
      %v321 = vpack.c.b16 %v313, %v313
      %v322 = vpack.c.b16 %v314, %v314
      %v323 = vpack.c.b16 %v315, %v315
      %v324 = vpack.c.b16 %v316, %v316
      %v325 = vpack.c.b16 %v317, %v317
      %v326 = vpack.c.b16 %v318, %v318
      %v327 = vpack.c.b16 %v319, %v319
      %vm336 = vcmask 519168
      %337 = vst.msk [vmem:[%s172] sm:$0xf] %vm336, %v320
      %338 = vst.msk [vmem:[%s172 + $0x4] sm:$0xf] %vm336, %v321
      %339 = vst.msk [vmem:[%s172 + $0x8] sm:$0xf] %vm336, %v322
      %340 = vst.msk [vmem:[%s172 + $0xc] sm:$0xf] %vm336, %v323
      %341 = vst.msk [vmem:[%s172 + $0x10] sm:$0xf] %vm336, %v324
      %342 = vst.msk [vmem:[%s172 + $0x14] sm:$0xf] %vm336, %v325
      %343 = vst.msk [vmem:[%s172 + $0x18] sm:$0xf] %vm336, %v326
      %344 = vst.msk [vmem:[%s172 + $0x1c] sm:$0xf] %vm336, %v327
      %s345 = smul.u32 8, %s14
      %p346 = scmp.lt.s32.totalorder %s345, 15
      %s347 = scalar_select %p346, %s345, 15
      %s348 = smul.addr %s347, 4
      %s349 = scalar_lea.vmem %s3, %s348
      // Predicated region
      $region33: #{forward.17} parent=31 // pred_check
        %p350 = pneg %p100
      $region34: #{forward.17} parent=31 // pred_check_branch
        %352 = sbr.rel (%p350) target = $region36
      $region35: #{forward.17} parent=31 // pred_region
        %s353 = smul.u32 8, %s14
      $region36: #{forward.17} parent=31 // pred_fallthru
        _
    $region32: #{forward.17} parent=5 // pred_fallthru
      _
    %p354 = scmp.le.s32.totalorder 2, %s9
    // Predicated region
    $region37: #{forward.17} parent=5 // pred_check
      %p355 = pneg %p354
    $region38: #{forward.17} parent=5 // pred_check_branch
      %357 = sbr.rel (%p355) target = $region40
    $region39: #{forward.17} parent=5 // pred_region
      %s358 = ssub.s32 %s9, 2
      // Predicated region
      $region41: #{forward.17} parent=39 // pred_check
        %p359 = pneg %p106
      $region42: #{forward.17} parent=39 // pred_check_branch
        %361 = sbr.rel (%p359) target = $region44
      $region43: #{forward.17} parent=39 // pred_region
        %s362 = smul.u32 8, %s15
        %p363 = scmp.lt.s32.totalorder %s362, 15
        %s364 = scalar_select %p363, %s362, 15
        %s365 = smul.addr %s364, 4
        %s366 = scalar_lea.vmem %s3, %s365
      $region44: #{forward.17} parent=39 // pred_fallthru
        _
    $region40: #{forward.17} parent=5 // pred_fallthru
      _
  $region6: #{forward.17} parent=0 // loop_footer
    %s13 = sadd.s32 1, %s9
  $region7: #{forward.17} parent=0 // loop_footer_branch
    %8 = sbr.rel target = $region3
  $region8: #{forward.17} parent=0 // loop_exit
    _

// kernel: forward.18
$region0: #{forward.18}
  #allocation0 [shape = 'u32[]', space=smem, size = 0x4, offset = 0x4, fixed_abs, tag = 'smem constant byte address 0x4 - core index']
  #allocation1 [shape = 'u32[144,128]{1,0:T(1,128)}', space=vmem, size = 0x12000, scoped, tag = 'internal scratch']
  %s0 = inlined_call_operand.vmem [shape: bf16[128,576], index: 0, kind: input, shape index: {}]
  %s1 = inlined_call_operand.vmem [shape: bf16[576,64], index: 1, kind: input, shape index: {}]
  %s2 = inlined_call_operand.vmem [shape: f32[1,64], index: 2, kind: input, shape index: {}]
  %s3 = inlined_call_operand.vmem [shape: bf16[128,64], index: 3, kind: input, shape index: {}]
  %s4 = inlined_call_operand.vmem [shape: bf16[128,64], index: 4, kind: output, shape index: {}]
  %s5 = sld [smem:[#allocation0]]
  $region49: #{forward.18} parent=0
    _
  %s7 = ssub.s32 1, %s5
  %s8 = scalar_select 0, %s7, %s5
  loop: start=0, step=1, limit=4
  $region2: #{forward.18} parent=0 // loop_pre_header
    _
  $region3: #{forward.18} parent=0 // loop_header
    %s10 = sphi 0, %s14
    %p11 = scmp.ge.s32.totalorder %s10, 4
    %s20 = sphi 0, %s22
    %s23 = sphi 0, %s20
    %s24 = sphi 0, %s23
    %s40 = sphi 0, %s24
    %s44 = sphi 0, %s44
    %s46 = sphi 0, %s44
    %s47 = sphi 0, %s46
    %s61 = sphi 0, %s47
    %s65 = sphi 0, %s65
    %s67 = sphi 0, %s65
    %s68 = sphi 0, %s67
    %s82 = sphi 0, %s68
    %s88 = sphi 0, %s90
    %s91 = sphi 0, %s88
    %s92 = sphi 0, %s91
    %s108 = sphi 0, %s92
    %s114 = sphi 0, %s116
    %s117 = sphi 0, %s114
    %s118 = sphi 0, %s117
    %s134 = sphi 0, %s118
  $region4: #{forward.18} parent=0 // loop_header_branch
    %13 = sbr.rel (%p11) target = $region8
  $region5: #{forward.18} parent=0 // loop_body
    %s15 = ssub.s32 %s10, 1
    %s16 = ssub.s32 %s10, 2
    %s17 = sadd.s32 %s10, 1
    %s18 = ssub.s32 %s10, %s17
    %p19 = scmp.eq.s32.totalorder %s18, 0
    %s21 = sadd.s32 %s20, 1
    %s22 = scalar_select %p19, %s20, %s21
    %p25 = pneg %p19
    %p26 = scmp.eq.s32.totalorder %s10, 1
    %p27 = por %p25, %p26
    %p28 = scmp.ne.s32.totalorder %s20, %s23
    %p29 = scmp.eq.s32.totalorder %s10, 0
    %p30 = por %p28, %p29
    %p31 = scmp.ne.s32.totalorder %s20, %s23
    %p32 = scmp.eq.s32.totalorder %s15, 1
    %p33 = por %p31, %p32
    %p34 = scmp.ne.s32.totalorder %s23, %s24
    %p35 = scmp.eq.s32.totalorder %s15, 0
    %p36 = por %p34, %p35
    %p37 = scmp.ne.s32.totalorder %s23, %s24
    %p38 = scmp.eq.s32.totalorder %s16, 1
    %p39 = por %p37, %p38
    %p41 = scmp.ne.s32.totalorder %s24, %s40
    %p42 = scmp.eq.s32.totalorder %s16, 0
    %p43 = por %p41, %p42
    %s45 = sadd.s32 %s44, 1
    %p48 = scmp.eq.s32.totalorder %s10, 1
    %p49 = scmp.ne.s32.totalorder %s44, %s46
    %p50 = scmp.eq.s32.totalorder %s10, 0
    %p51 = por %p49, %p50
    %p52 = scmp.ne.s32.totalorder %s44, %s46
    %p53 = scmp.eq.s32.totalorder %s15, 1
    %p54 = por %p52, %p53
    %p55 = scmp.ne.s32.totalorder %s46, %s47
    %p56 = scmp.eq.s32.totalorder %s15, 0
    %p57 = por %p55, %p56
    %p58 = scmp.ne.s32.totalorder %s46, %s47
    %p59 = scmp.eq.s32.totalorder %s16, 1
    %p60 = por %p58, %p59
    %p62 = scmp.ne.s32.totalorder %s47, %s61
    %p63 = scmp.eq.s32.totalorder %s16, 0
    %p64 = por %p62, %p63
    %s66 = sadd.s32 %s65, 1
    %p69 = scmp.eq.s32.totalorder %s10, 1
    %p70 = scmp.ne.s32.totalorder %s65, %s67
    %p71 = scmp.eq.s32.totalorder %s10, 0
    %p72 = por %p70, %p71
    %p73 = scmp.ne.s32.totalorder %s65, %s67
    %p74 = scmp.eq.s32.totalorder %s15, 1
    %p75 = por %p73, %p74
    %p76 = scmp.ne.s32.totalorder %s67, %s68
    %p77 = scmp.eq.s32.totalorder %s15, 0
    %p78 = por %p76, %p77
    %p79 = scmp.ne.s32.totalorder %s67, %s68
    %p80 = scmp.eq.s32.totalorder %s16, 1
    %p81 = por %p79, %p80
    %p83 = scmp.ne.s32.totalorder %s68, %s82
    %p84 = scmp.eq.s32.totalorder %s16, 0
    %p85 = por %p83, %p84
    %s86 = ssub.s32 %s10, %s17
    %p87 = scmp.eq.s32.totalorder %s86, 0
    %s89 = sadd.s32 %s88, 1
    %s90 = scalar_select %p87, %s88, %s89
    %p93 = pneg %p87
    %p94 = scmp.eq.s32.totalorder %s10, 1
    %p95 = por %p93, %p94
    %p96 = scmp.ne.s32.totalorder %s88, %s91
    %p97 = scmp.eq.s32.totalorder %s10, 0
    %p98 = por %p96, %p97
    %p99 = scmp.ne.s32.totalorder %s88, %s91
    %p100 = scmp.eq.s32.totalorder %s15, 1
    %p101 = por %p99, %p100
    %p102 = scmp.ne.s32.totalorder %s91, %s92
    %p103 = scmp.eq.s32.totalorder %s15, 0
    %p104 = por %p102, %p103
    %p105 = scmp.ne.s32.totalorder %s91, %s92
    %p106 = scmp.eq.s32.totalorder %s16, 1
    %p107 = por %p105, %p106
    %p109 = scmp.ne.s32.totalorder %s92, %s108
    %p110 = scmp.eq.s32.totalorder %s16, 0
    %p111 = por %p109, %p110
    %s112 = ssub.s32 %s10, %s17
    %p113 = scmp.eq.s32.totalorder %s112, 0
    %s115 = sadd.s32 %s114, 1
    %s116 = scalar_select %p113, %s114, %s115
    %p119 = pneg %p113
    %p120 = scmp.eq.s32.totalorder %s10, 1
    %p121 = por %p119, %p120
    %p122 = scmp.ne.s32.totalorder %s114, %s117
    %p123 = scmp.eq.s32.totalorder %s10, 0
    %p124 = por %p122, %p123
    %p125 = scmp.ne.s32.totalorder %s114, %s117
    %p126 = scmp.eq.s32.totalorder %s15, 1
    %p127 = por %p125, %p126
    %p128 = scmp.ne.s32.totalorder %s117, %s118
    %p129 = scmp.eq.s32.totalorder %s15, 0
    %p130 = por %p128, %p129
    %p131 = scmp.ne.s32.totalorder %s117, %s118
    %p132 = scmp.eq.s32.totalorder %s16, 1
    %p133 = por %p131, %p132
    %p135 = scmp.ne.s32.totalorder %s118, %s134
    %p136 = scmp.eq.s32.totalorder %s16, 0
    %p137 = por %p135, %p136
    %p138 = scmp.le.s32.totalorder 1, %s10
    %p139 = scmp.lt.s32.totalorder %s10, 3
    %p140 = pnand %p138, %p139
    %p141 = pneg %p140
    // Predicated region
    $region9: #{forward.18} parent=5 // pred_check
      _
    $region10: #{forward.18} parent=5 // pred_check_branch
      %143 = sbr.rel (%p140) target = $region12
    $region11: #{forward.18} parent=5 // pred_region
      %s144 = ssub.s32 %s10, 1
      // Predicated region
      $region13: #{forward.18} parent=11 // pred_check
        %p145 = pneg %p57
      $region14: #{forward.18} parent=11 // pred_check_branch
        %147 = sbr.rel (%p145) target = $region16
      $region15: #{forward.18} parent=11 // pred_region
        _
      $region16: #{forward.18} parent=11 // pred_fallthru
        _
      // Predicated region
      $region17: #{forward.18} parent=11 // pred_check
        %p148 = pneg %p78
      $region18: #{forward.18} parent=11 // pred_check_branch
        %150 = sbr.rel (%p148) target = $region20
      $region19: #{forward.18} parent=11 // pred_region
        _
      $region20: #{forward.18} parent=11 // pred_fallthru
        _
    $region12: #{forward.18} parent=5 // pred_fallthru
      _
    %p151 = scmp.lt.s32.totalorder %s10, 2
    // Predicated region
    $region21: #{forward.18} parent=5 // pred_check
      %p152 = pneg %p151
    $region22: #{forward.18} parent=5 // pred_check_branch
      %154 = sbr.rel (%p152) target = $region24
    $region23: #{forward.18} parent=5 // pred_region
      // Predicated region
      $region25: #{forward.18} parent=23 // pred_check
        %p155 = pneg %p30
      $region26: #{forward.18} parent=23 // pred_check_branch
        %157 = sbr.rel (%p155) target = $region28
      $region27: #{forward.18} parent=23 // pred_region
        %s158 = smul.u32 8, %s10
        %p159 = scmp.lt.s32.totalorder %s158, 15
        %s160 = scalar_select %p159, %s158, 15
        %s161 = smul.addr %s160, 5
        %s162 = smul.addr %s161, 4
        %s163 = scalar_lea.vmem %s0, %s162
        %s164 = smul.u32 8, %s10
      $region28: #{forward.18} parent=23 // pred_fallthru
        _
      // Predicated region
      $region29: #{forward.18} parent=23 // pred_check
        %p165 = pneg %p98
      $region30: #{forward.18} parent=23 // pred_check_branch
        %167 = sbr.rel (%p165) target = $region32
      $region31: #{forward.18} parent=23 // pred_region
        %s168 = smul.u32 8, %s10
        %p169 = scmp.lt.s32.totalorder %s168, 15
        %s170 = scalar_select %p169, %s168, 15
        %s171 = smul.addr %s170, 4
        %s172 = scalar_lea.vmem %s3, %s171
        %s173 = smul.u32 8, %s10
      $region32: #{forward.18} parent=23 // pred_fallthru
        _
    $region24: #{forward.18} parent=5 // pred_fallthru
      _
    %p174 = scmp.le.s32.totalorder 1, %s10
    %p175 = scmp.lt.s32.totalorder %s10, 3
    %p176 = pnand %p174, %p175
    %p177 = pneg %p176
    // Predicated region
    $region33: #{forward.18} parent=5 // pred_check
      _
    $region34: #{forward.18} parent=5 // pred_check_branch
      %179 = sbr.rel (%p176) target = $region36
    $region35: #{forward.18} parent=5 // pred_region
      %s180 = ssub.s32 %s10, 1
      %s181 = smul.u32 8, %s15
      %p182 = scmp.lt.s32.totalorder %s181, 15
      %s183 = scalar_select %p182, %s181, 15
      %s184 = smul.addr %s183, 5
      %s185 = smul.addr %s184, 4
      %s186 = scalar_lea.vmem %s0, %s185
      %p187 = pneg %p36
      %p188 = pneg %p33
      %p189 = pneg %p57
      %p190 = pneg %p54
      %p191 = pneg %p78
      %p192 = pneg %p75
      %s193 = smul.u32 8, %s15
      %p194 = scmp.lt.s32.totalorder %s193, 15
      %s195 = scalar_select %p194, %s193, 15
      %s196 = smul.addr %s195, 4
      %s197 = scalar_lea.vmem %s3, %s196
      %p198 = pneg %p104
      %p199 = pneg %p101
      %p200 = pneg %p130
      %p201 = pneg %p127
      %s202 = smul.u32 8, %s15
      %p203 = scmp.lt.s32.totalorder %s202, 15
      %s204 = scalar_select %p203, %s202, 15
      %s205 = smul.addr %s204, 4
      %s206 = scalar_lea.vmem %s4, %s205
      %s207 = smul.u32 8, %s15
      %p208 = scmp.lt.s32.totalorder %s207, 15
      %s209 = scalar_select %p208, %s207, 15
      %s210 = smul.addr %s209, 5
      %s211 = smul.addr %s210, 4
      %s212 = scalar_lea.vmem %s0, %s211
      %s213 = smul.u32 8, %s15
      %s214 = smul.u32 8, %s15
      %p215 = scmp.lt.s32.totalorder %s214, 15
      %s216 = scalar_select %p215, %s214, 15
      %s217 = smul.addr %s216, 4
      %s218 = scalar_lea.vmem %s3, %s217
      %s219 = smul.u32 8, %s15
      %s220 = smul.u32 8, %s15
      %p221 = scmp.lt.s32.totalorder %s220, 15
      %s222 = scalar_select %p221, %s220, 15
      %s223 = smul.addr %s222, 4
      %s224 = scalar_lea.vmem %s4, %s223
      %s225 = smul.u32 8, %s15
      %v227 = vld [vmem:[%s212] sm:$0xff]
      %v228 = vld [vmem:[%s212 + $0x8] sm:$0xff]
      %v229 = vld [vmem:[%s212 + $0x10] sm:$0xf]
      %v230 = vld [vmem:[%s212 + $0x14] sm:$0xff]
      %v231 = vld [vmem:[%s212 + $0x1c] sm:$0xff]
      %v232 = vld [vmem:[%s212 + $0x24] sm:$0xf]
      %v233 = vld [vmem:[%s212 + $0x28] sm:$0xff]
      %v234 = vld [vmem:[%s212 + $0x30] sm:$0xff]
      %v235 = vld [vmem:[%s212 + $0x38] sm:$0xf]
      %v236 = vld [vmem:[%s212 + $0x3c] sm:$0xff]
      %v237 = vld [vmem:[%s212 + $0x44] sm:$0xff]
      %v238 = vld [vmem:[%s212 + $0x4c] sm:$0xf]
      %v239 = vld [vmem:[%s212 + $0x50] sm:$0xff]
      %v240 = vld [vmem:[%s212 + $0x58] sm:$0xff]
      %v241 = vld [vmem:[%s212 + $0x60] sm:$0xf]
      %v242 = vld [vmem:[%s212 + $0x64] sm:$0xff]
      %v243 = vld [vmem:[%s212 + $0x6c] sm:$0xff]
      %v244 = vld [vmem:[%s212 + $0x74] sm:$0xf]
      %v245 = vld [vmem:[%s212 + $0x78] sm:$0xff]
      %v246 = vld [vmem:[%s212 + $0x80] sm:$0xff]
      %v247 = vld [vmem:[%s212 + $0x88] sm:$0xf]
      %v248 = vld [vmem:[%s212 + $0x8c] sm:$0xff]
      %v249 = vld [vmem:[%s212 + $0x94] sm:$0xff]
      %v250 = vld [vmem:[%s212 + $0x9c] sm:$0xf]
      %v251 = vld [vmem:[%s1] sm:$0xf]
      %v252 = vld [vmem:[%s1 + $0x4] sm:$0xf]
      %v253 = vld [vmem:[%s1 + $0x8] sm:$0xf]
      %v254 = vld [vmem:[%s1 + $0xc] sm:$0xf]
      %v255 = vld [vmem:[%s1 + $0x10] sm:$0xf]
      %v256 = vld [vmem:[%s1 + $0x14] sm:$0xf]
      %v257 = vld [vmem:[%s1 + $0x18] sm:$0xf]
      %v258 = vld [vmem:[%s1 + $0x1c] sm:$0xf]
      %v259 = vld [vmem:[%s1 + $0x20] sm:$0xf]
      %v260 = vld [vmem:[%s1 + $0x24] sm:$0xf]
      %v261 = vld [vmem:[%s1 + $0x28] sm:$0xf]
      %v262 = vld [vmem:[%s1 + $0x2c] sm:$0xf]
      %v263 = vld [vmem:[%s1 + $0x30] sm:$0xf]
      %v264 = vld [vmem:[%s1 + $0x34] sm:$0xf]
      %v265 = vld [vmem:[%s1 + $0x38] sm:$0xf]
      %v266 = vld [vmem:[%s1 + $0x3c] sm:$0xf]
      %v267 = vld [vmem:[%s1 + $0x40] sm:$0xf]
      %v268 = vld [vmem:[%s1 + $0x44] sm:$0xf]
      %v269 = vld [vmem:[%s1 + $0x48] sm:$0xf]
      %v270 = vld [vmem:[%s1 + $0x4c] sm:$0xf]
      %v271 = vld [vmem:[%s1 + $0x50] sm:$0xf]
      %v272 = vld [vmem:[%s1 + $0x54] sm:$0xf]
      %v273 = vld [vmem:[%s1 + $0x58] sm:$0xf]
      %v274 = vld [vmem:[%s1 + $0x5c] sm:$0xf]
      %v275 = vld [vmem:[%s1 + $0x60] sm:$0xf]
      %v276 = vld [vmem:[%s1 + $0x64] sm:$0xf]
      %v277 = vld [vmem:[%s1 + $0x68] sm:$0xf]
      %v278 = vld [vmem:[%s1 + $0x6c] sm:$0xf]
      %v279 = vld [vmem:[%s1 + $0x70] sm:$0xf]
      %v280 = vld [vmem:[%s1 + $0x74] sm:$0xf]
      %v281 = vld [vmem:[%s1 + $0x78] sm:$0xf]
      %v282 = vld [vmem:[%s1 + $0x7c] sm:$0xf]
      %v283 = vld [vmem:[%s1 + $0x80] sm:$0xf]
      %v284 = vld [vmem:[%s1 + $0x84] sm:$0xf]
      %v285 = vld [vmem:[%s1 + $0x88] sm:$0xf]
      %v286 = vld [vmem:[%s1 + $0x8c] sm:$0xf]
      %v287 = vld [vmem:[%s1 + $0x90] sm:$0xf]
      %v288 = vld [vmem:[%s1 + $0x94] sm:$0xf]
      %v289 = vld [vmem:[%s1 + $0x98] sm:$0xf]
      %v290 = vld [vmem:[%s1 + $0x9c] sm:$0xf]
      %v291 = vld [vmem:[%s1 + $0xa0] sm:$0xf]
      %v292 = vld [vmem:[%s1 + $0xa4] sm:$0xf]
      %v293 = vld [vmem:[%s1 + $0xa8] sm:$0xf]
      %v294 = vld [vmem:[%s1 + $0xac] sm:$0xf]
      %v295 = vld [vmem:[%s1 + $0xb0] sm:$0xf]
      %v296 = vld [vmem:[%s1 + $0xb4] sm:$0xf]
      %v297 = vld [vmem:[%s1 + $0xb8] sm:$0xf]
      %v298 = vld [vmem:[%s1 + $0xbc] sm:$0xf]
      %v299 = vld [vmem:[%s1 + $0xc0] sm:$0xf]
      %v300 = vld [vmem:[%s1 + $0xc4] sm:$0xf]
      %v301 = vld [vmem:[%s1 + $0xc8] sm:$0xf]
      %v302 = vld [vmem:[%s1 + $0xcc] sm:$0xf]
      %v303 = vld [vmem:[%s1 + $0xd0] sm:$0xf]
      %v304 = vld [vmem:[%s1 + $0xd4] sm:$0xf]
      %v305 = vld [vmem:[%s1 + $0xd8] sm:$0xf]
      %v306 = vld [vmem:[%s1 + $0xdc] sm:$0xf]
      %v307 = vld [vmem:[%s1 + $0xe0] sm:$0xf]
      %v308 = vld [vmem:[%s1 + $0xe4] sm:$0xf]
      %v309 = vld [vmem:[%s1 + $0xe8] sm:$0xf]
      %v310 = vld [vmem:[%s1 + $0xec] sm:$0xf]
      %v311 = vld [vmem:[%s1 + $0xf0] sm:$0xf]
      %v312 = vld [vmem:[%s1 + $0xf4] sm:$0xf]
      %v313 = vld [vmem:[%s1 + $0xf8] sm:$0xf]
      %v314 = vld [vmem:[%s1 + $0xfc] sm:$0xf]
      %v315 = vld [vmem:[%s1 + $0x100] sm:$0xf]
      %v316 = vld [vmem:[%s1 + $0x104] sm:$0xf]
      %v317 = vld [vmem:[%s1 + $0x108] sm:$0xf]
      %v318 = vld [vmem:[%s1 + $0x10c] sm:$0xf]
      %v319 = vld [vmem:[%s1 + $0x110] sm:$0xf]
      %v320 = vld [vmem:[%s1 + $0x114] sm:$0xf]
      %v321 = vld [vmem:[%s1 + $0x118] sm:$0xf]
      %v322 = vld [vmem:[%s1 + $0x11c] sm:$0xf]
      %v323 = vld [vmem:[%s2] sm:$0x1]
      %v325 = vlaneseq
      %v326 = vshrl.u32 %v325, 7
      %v327 = vsub.s32 0, %v326
      %v328 = vrot.slane %v323, %v327
      %v354 = vunpack.c.l.b16 %v227
      %v355 = vunpack.c.h.b16 %v227
      %v356 = vunpack.c.l.b16 %v228
      %v357 = vunpack.c.h.b16 %v228
      %v358 = vunpack.c.l.b16 %v229
      %v359 = vunpack.c.l.b16 %v230
      %v360 = vunpack.c.h.b16 %v230
      %v361 = vunpack.c.l.b16 %v231
      %v362 = vunpack.c.h.b16 %v231
      %v363 = vunpack.c.l.b16 %v232
      %v364 = vunpack.c.l.b16 %v233
      %v365 = vunpack.c.h.b16 %v233
      %v366 = vunpack.c.l.b16 %v234
      %v367 = vunpack.c.h.b16 %v234
      %v368 = vunpack.c.l.b16 %v235
      %v369 = vunpack.c.l.b16 %v236
      %v370 = vunpack.c.h.b16 %v236
      %v371 = vunpack.c.l.b16 %v237
      %v372 = vunpack.c.h.b16 %v237
      %v373 = vunpack.c.l.b16 %v238
      %v374 = vunpack.c.l.b16 %v239
      %v375 = vunpack.c.h.b16 %v239
      %v376 = vunpack.c.l.b16 %v240
      %v377 = vunpack.c.h.b16 %v240
      %v378 = vunpack.c.l.b16 %v241
      %v379 = vunpack.c.l.b16 %v242
      %v380 = vunpack.c.h.b16 %v242
      %v381 = vunpack.c.l.b16 %v243
      %v382 = vunpack.c.h.b16 %v243
      %v383 = vunpack.c.l.b16 %v244
      %v384 = vunpack.c.l.b16 %v245
      %v385 = vunpack.c.h.b16 %v245
      %v386 = vunpack.c.l.b16 %v246
      %v387 = vunpack.c.h.b16 %v246
      %v388 = vunpack.c.l.b16 %v247
      %v389 = vunpack.c.l.b16 %v248
      %v390 = vunpack.c.h.b16 %v248
      %v391 = vunpack.c.l.b16 %v249
      %v392 = vunpack.c.h.b16 %v249
      %v393 = vunpack.c.l.b16 %v250
      %v394 = vpack.c.b16 %v359, %v354
      %v395 = vpack.c.b16 %v360, %v355
      %v396 = vpack.c.b16 %v361, %v356
      %v397 = vpack.c.b16 %v362, %v357
      %v398 = vpack.c.b16 %v363, %v358
      %v399 = vpack.c.b16 %v369, %v364
      %v400 = vpack.c.b16 %v370, %v365
      %v401 = vpack.c.b16 %v371, %v366
      %v402 = vpack.c.b16 %v372, %v367
      %v403 = vpack.c.b16 %v373, %v368
      %v404 = vpack.c.b16 %v379, %v374
      %v405 = vpack.c.b16 %v380, %v375
      %v406 = vpack.c.b16 %v381, %v376
      %v407 = vpack.c.b16 %v382, %v377
      %v408 = vpack.c.b16 %v383, %v378
      %v409 = vpack.c.b16 %v389, %v384
      %v410 = vpack.c.b16 %v390, %v385
      %v411 = vpack.c.b16 %v391, %v386
      %v412 = vpack.c.b16 %v392, %v387
      %v413 = vpack.c.b16 %v393, %v388
      %v502 = vunpack.c.l.b16 %v251
      %v503 = vunpack.c.l.b16 %v252
      %v504 = vunpack.c.l.b16 %v253
      %v505 = vunpack.c.l.b16 %v254
      %v506 = vunpack.c.l.b16 %v255
      %v507 = vunpack.c.l.b16 %v256
      %v508 = vunpack.c.l.b16 %v257
      %v509 = vunpack.c.l.b16 %v258
      %v510 = vunpack.c.l.b16 %v259
      %v511 = vunpack.c.l.b16 %v260
      %v512 = vunpack.c.l.b16 %v261
      %v513 = vunpack.c.l.b16 %v262
      %v514 = vunpack.c.l.b16 %v263
      %v515 = vunpack.c.l.b16 %v264
      %v516 = vunpack.c.l.b16 %v265
      %v517 = vunpack.c.l.b16 %v266
      %v518 = vunpack.c.l.b16 %v267
      %v519 = vunpack.c.l.b16 %v268
      %v520 = vunpack.c.l.b16 %v269
      %v521 = vunpack.c.l.b16 %v270
      %v522 = vunpack.c.l.b16 %v271
      %v523 = vunpack.c.l.b16 %v272
      %v524 = vunpack.c.l.b16 %v273
      %v525 = vunpack.c.l.b16 %v274
      %v526 = vunpack.c.l.b16 %v275
      %v527 = vunpack.c.l.b16 %v276
      %v528 = vunpack.c.l.b16 %v277
      %v529 = vunpack.c.l.b16 %v278
      %v530 = vunpack.c.l.b16 %v279
      %v531 = vunpack.c.l.b16 %v280
      %v532 = vunpack.c.l.b16 %v281
      %v533 = vunpack.c.l.b16 %v282
      %v534 = vunpack.c.l.b16 %v283
      %v535 = vunpack.c.l.b16 %v284
      %v536 = vunpack.c.l.b16 %v285
      %v537 = vunpack.c.l.b16 %v286
      %v538 = vunpack.c.l.b16 %v287
      %v539 = vunpack.c.l.b16 %v288
      %v540 = vunpack.c.l.b16 %v289
      %v541 = vunpack.c.l.b16 %v290
      %v542 = vunpack.c.l.b16 %v291
      %v543 = vunpack.c.l.b16 %v292
      %v544 = vunpack.c.l.b16 %v293
      %v545 = vunpack.c.l.b16 %v294
      %v546 = vunpack.c.l.b16 %v295
      %v547 = vunpack.c.l.b16 %v296
      %v548 = vunpack.c.l.b16 %v297
      %v549 = vunpack.c.l.b16 %v298
      %v550 = vunpack.c.l.b16 %v299
      %v551 = vunpack.c.l.b16 %v300
      %v552 = vunpack.c.l.b16 %v301
      %v553 = vunpack.c.l.b16 %v302
      %v554 = vunpack.c.l.b16 %v303
      %v555 = vunpack.c.l.b16 %v304
      %v556 = vunpack.c.l.b16 %v305
      %v557 = vunpack.c.l.b16 %v306
      %v558 = vunpack.c.l.b16 %v307
      %v559 = vunpack.c.l.b16 %v308
      %v560 = vunpack.c.l.b16 %v309
      %v561 = vunpack.c.l.b16 %v310
      %v562 = vunpack.c.l.b16 %v311
      %v563 = vunpack.c.l.b16 %v312
      %v564 = vunpack.c.l.b16 %v313
      %v565 = vunpack.c.l.b16 %v314
      %v566 = vunpack.c.l.b16 %v315
      %v567 = vunpack.c.l.b16 %v316
      %v568 = vunpack.c.l.b16 %v317
      %v569 = vunpack.c.l.b16 %v318
      %v570 = vunpack.c.l.b16 %v319
      %v571 = vunpack.c.l.b16 %v320
      %v572 = vunpack.c.l.b16 %v321
      %v573 = vunpack.c.l.b16 %v322
      %v574 = vpack.c.b16 %v503, %v502
      %v575 = vpack.c.b16 %v505, %v504
      %v576 = vpack.c.b16 %v507, %v506
      %v577 = vpack.c.b16 %v509, %v508
      %v578 = vpack.c.b16 %v511, %v510
      %v579 = vpack.c.b16 %v513, %v512
      %v580 = vpack.c.b16 %v515, %v514
      %v581 = vpack.c.b16 %v517, %v516
      %v582 = vpack.c.b16 %v519, %v518
      %v583 = vpack.c.b16 %v521, %v520
      %v584 = vpack.c.b16 %v523, %v522
      %v585 = vpack.c.b16 %v525, %v524
      %v586 = vpack.c.b16 %v527, %v526
      %v587 = vpack.c.b16 %v529, %v528
      %v588 = vpack.c.b16 %v531, %v530
      %v589 = vpack.c.b16 %v533, %v532
      %v590 = vpack.c.b16 %v535, %v534
      %v591 = vpack.c.b16 %v537, %v536
      %v592 = vpack.c.b16 %v539, %v538
      %v593 = vpack.c.b16 %v541, %v540
      %v594 = vpack.c.b16 %v543, %v542
      %v595 = vpack.c.b16 %v545, %v544
      %v596 = vpack.c.b16 %v547, %v546
      %v597 = vpack.c.b16 %v549, %v548
      %v598 = vpack.c.b16 %v551, %v550
      %v599 = vpack.c.b16 %v553, %v552
      %v600 = vpack.c.b16 %v555, %v554
      %v601 = vpack.c.b16 %v557, %v556
      %v602 = vpack.c.b16 %v559, %v558
      %v603 = vpack.c.b16 %v561, %v560
      %v604 = vpack.c.b16 %v563, %v562
      %v605 = vpack.c.b16 %v565, %v564
      %v606 = vpack.c.b16 %v567, %v566
      %v607 = vpack.c.b16 %v569, %v568
      %v608 = vpack.c.b16 %v571, %v570
      %v609 = vpack.c.b16 %v573, %v572
      %vm646 = vcmask 523264
      %v648 = vsel %vm646, %v398, 0
      %v651 = vsel %vm646, %v403, 0
      %v654 = vsel %vm646, %v408, 0
      %v657 = vsel %vm646, %v413, 0
      %659 = vmatprep.subr.bf16.mxu0 0
      %660 = vmatpush1.bf16.msra.mxu0 %v574
      %661 = vmatprep.subr.bf16.mxu0 0
      %662 = vmatpush1.bf16.msra.mxu0 %v575
      %663 = vmatprep.subr.bf16.mxu0 0
      %664 = vmatpush1.bf16.msra.mxu0 %v576
      %665 = vmatprep.subr.bf16.mxu0 0
      %666 = vmatpush1.bf16.msra.mxu0 %v577
      %667 = vmatprep.subr.bf16.mxu0 0
      %668 = vmatpush1.bf16.msra.mxu0 %v578
      %669 = vmatprep.subr.bf16.mxu0 0
      %670 = vmatpush1.bf16.msra.mxu0 %v579
      %671 = vmatprep.subr.bf16.mxu0 0
      %672 = vmatpush1.bf16.msra.mxu0 %v580
      %673 = vmatprep.subr.bf16.mxu0 0
      %674 = vmatpush1.bf16.msra.mxu0 %v581
      %675 = vmatprep.subr.bf16.mxu0 0
      %676 = vmatpush1.bf16.msra.mxu0 %v582
      %677 = vmatprep.subr.bf16.mxu0 0
      %678 = vmatpush1.bf16.msra.mxu0 %v583
      %679 = vmatprep.subr.bf16.mxu0 0
      %680 = vmatpush1.bf16.msra.mxu0 %v584
      %681 = vmatprep.subr.bf16.mxu0 0
      %682 = vmatpush1.bf16.msra.mxu0 %v585
      %683 = vmatprep.subr.bf16.mxu0 0
      %684 = vmatpush1.bf16.msra.mxu0 %v586
      %685 = vmatprep.subr.bf16.mxu0 0
      %686 = vmatpush1.bf16.msra.mxu0 %v587
      %687 = vmatprep.subr.bf16.mxu0 0
      %688 = vmatpush1.bf16.msra.mxu0 %v588
      %689 = vmatprep.subr.bf16.mxu0 0
      %690 = vmatpush1.bf16.msra.mxu0 %v589
      %691 = vmatprep.mubr.bf16.mxu0 %v395
      %692 = vmatmul.mubr.bf16.gmra.mrb[0].mxu0 %v394
      %v693 = vpop.f32.mrb[0].mxu0
      %v694 = vadd.f32 %v328, %v693
      %v695 = vpop.f32.mrb[0].mxu0
      %v696 = vpop.f32.mrb[0].mxu0
      %v697 = vadd.f32 %v328, %v696
      %v698 = vpop.f32.mrb[0].mxu0
      %699 = vmatprep.mubr.bf16.mxu0 %v400
      %700 = vmatmul.mubr.bf16.gmra.mrb[0].mxu0 %v399
      %v701 = vpop.f32.mrb[0].mxu0
      %v702 = vadd.f32 %v328, %v701
      %v703 = vpop.f32.mrb[0].mxu0
      %v704 = vpop.f32.mrb[0].mxu0
      %v705 = vadd.f32 %v328, %v704
      %v706 = vpop.f32.mrb[0].mxu0
      %707 = vmatprep.mubr.bf16.mxu0 %v405
      %708 = vmatmul.mubr.bf16.gmra.mrb[0].mxu0 %v404
      %v709 = vpop.f32.mrb[0].mxu0
      %v710 = vadd.f32 %v328, %v709
      %v711 = vpop.f32.mrb[0].mxu0
      %v712 = vpop.f32.mrb[0].mxu0
      %v713 = vadd.f32 %v328, %v712
      %v714 = vpop.f32.mrb[0].mxu0
      %715 = vmatprep.mubr.bf16.mxu0 %v410
      %716 = vmatmul.mubr.bf16.gmra.mrb[0].mxu0 %v409
      %v717 = vpop.f32.mrb[0].mxu0
      %v718 = vadd.f32 %v328, %v717
      %v719 = vpop.f32.mrb[0].mxu0
      %v720 = vpop.f32.mrb[0].mxu0
      %v721 = vadd.f32 %v328, %v720
      %v722 = vpop.f32.mrb[0].mxu0
      %723 = vdwg.mxu0
      %724 = vmatprep.subr.bf16.mxu0 0
      %725 = vmatpush1.bf16.msra.mxu0 %v590
      %726 = vmatprep.subr.bf16.mxu0 0
      %727 = vmatpush1.bf16.msra.mxu0 %v591
      %728 = vmatprep.subr.bf16.mxu0 0
      %729 = vmatpush1.bf16.msra.mxu0 %v592
      %730 = vmatprep.subr.bf16.mxu0 0
      %731 = vmatpush1.bf16.msra.mxu0 %v593
      %732 = vmatprep.subr.bf16.mxu0 0
      %733 = vmatpush1.bf16.msra.mxu0 %v594
      %734 = vmatprep.subr.bf16.mxu0 0
      %735 = vmatpush1.bf16.msra.mxu0 %v595
      %736 = vmatprep.subr.bf16.mxu0 0
      %737 = vmatpush1.bf16.msra.mxu0 %v596
      %738 = vmatprep.subr.bf16.mxu0 0
      %739 = vmatpush1.bf16.msra.mxu0 %v597
      %740 = vmatprep.subr.bf16.mxu0 0
      %741 = vmatpush1.bf16.msra.mxu0 %v598
      %742 = vmatprep.subr.bf16.mxu0 0
      %743 = vmatpush1.bf16.msra.mxu0 %v599
      %744 = vmatprep.subr.bf16.mxu0 0
      %745 = vmatpush1.bf16.msra.mxu0 %v600
      %746 = vmatprep.subr.bf16.mxu0 0
      %747 = vmatpush1.bf16.msra.mxu0 %v601
      %748 = vmatprep.subr.bf16.mxu0 0
      %749 = vmatpush1.bf16.msra.mxu0 %v602
      %750 = vmatprep.subr.bf16.mxu0 0
      %751 = vmatpush1.bf16.msra.mxu0 %v603
      %752 = vmatprep.subr.bf16.mxu0 0
      %753 = vmatpush1.bf16.msra.mxu0 %v604
      %754 = vmatprep.subr.bf16.mxu0 0
      %755 = vmatpush1.bf16.msra.mxu0 %v605
      %756 = vmatprep.mubr.bf16.mxu0 %v397
      %757 = vmatmul.mubr.bf16.gmra.mrb[0].mxu0 %v396
      %v758 = vpop.f32.mrb[0].mxu0
      %v759 = vadd.f32 %v694, %v758
      %v760 = vpop.f32.mrb[0].mxu0
      %v761 = vpop.f32.mrb[0].mxu0
      %v762 = vadd.f32 %v697, %v761
      %v763 = vpop.f32.mrb[0].mxu0
      %764 = vmatprep.mubr.bf16.mxu0 %v402
      %765 = vmatmul.mubr.bf16.gmra.mrb[0].mxu0 %v401
      %v766 = vpop.f32.mrb[0].mxu0
      %v767 = vadd.f32 %v702, %v766
      %v768 = vpop.f32.mrb[0].mxu0
      %v769 = vpop.f32.mrb[0].mxu0
      %v770 = vadd.f32 %v705, %v769
      %v771 = vpop.f32.mrb[0].mxu0
      %772 = vmatprep.mubr.bf16.mxu0 %v407
      %773 = vmatmul.mubr.bf16.gmra.mrb[0].mxu0 %v406
      %v774 = vpop.f32.mrb[0].mxu0
      %v775 = vadd.f32 %v710, %v774
      %v776 = vpop.f32.mrb[0].mxu0
      %v777 = vpop.f32.mrb[0].mxu0
      %v778 = vadd.f32 %v713, %v777
      %v779 = vpop.f32.mrb[0].mxu0
      %780 = vmatprep.mubr.bf16.mxu0 %v412
      %781 = vmatmul.mubr.bf16.gmra.mrb[0].mxu0 %v411
      %v782 = vpop.f32.mrb[0].mxu0
      %v783 = vadd.f32 %v718, %v782
      %v784 = vpop.f32.mrb[0].mxu0
      %v785 = vpop.f32.mrb[0].mxu0
      %v786 = vadd.f32 %v721, %v785
      %v787 = vpop.f32.mrb[0].mxu0
      %788 = vdwg.mxu0
      %789 = vmatprep.subr.bf16.mxu0 0
      %790 = vmatpush1.bf16.msra.mxu0 %v606
      %791 = vmatprep.subr.bf16.mxu0 0
      %792 = vmatpush1.bf16.msra.mxu0 %v607
      %793 = vmatprep.subr.bf16.mxu0 0
      %794 = vmatpush1.bf16.msra.mxu0 %v608
      %795 = vmatprep.subr.bf16.mxu0 0
      %796 = vmatpush1.bf16.msra.mxu0 %v609
      %797 = vmatprep.subr.bf16.mxu0 0
      %798 = vmatpush1.bf16.msra.mxu0 0
      %799 = vmatprep.subr.bf16.mxu0 0
      %800 = vmatpush1.bf16.msra.mxu0 0
      %801 = vmatprep.subr.bf16.mxu0 0
      %802 = vmatpush1.bf16.msra.mxu0 0
      %803 = vmatprep.subr.bf16.mxu0 0
      %804 = vmatpush1.bf16.msra.mxu0 0
      %805 = vmatprep.subr.bf16.mxu0 0
      %806 = vmatpush1.bf16.msra.mxu0 0
      %807 = vmatprep.subr.bf16.mxu0 0
      %808 = vmatpush1.bf16.msra.mxu0 0
      %809 = vmatprep.subr.bf16.mxu0 0
      %810 = vmatpush1.bf16.msra.mxu0 0
      %811 = vmatprep.subr.bf16.mxu0 0
      %812 = vmatpush1.bf16.msra.mxu0 0
      %813 = vmatprep.subr.bf16.mxu0 0
      %814 = vmatpush1.bf16.msra.mxu0 0
      %815 = vmatprep.subr.bf16.mxu0 0
      %816 = vmatpush1.bf16.msra.mxu0 0
      %817 = vmatprep.subr.bf16.mxu0 0
      %818 = vmatpush1.bf16.msra.mxu0 0
      %819 = vmatprep.subr.bf16.mxu0 0
      %820 = vmatpush1.bf16.msra.mxu0 0
      %821 = vmatprep.mubr.bf16.mxu0 0
      %822 = vmatmul.mubr.bf16.gmra.mrb[0].mxu0 %v648
      %v823 = vpop.f32.mrb[0].mxu0
      %v824 = vadd.f32 %v759, %v823
      %v825 = vpop.f32.mrb[0].mxu0
      %v826 = vpop.f32.mrb[0].mxu0
      %v827 = vadd.f32 %v762, %v826
      %v828 = vpop.f32.mrb[0].mxu0
      %829 = vmatprep.mubr.bf16.mxu0 0
      %830 = vmatmul.mubr.bf16.gmra.mrb[0].mxu0 %v651
      %v831 = vpop.f32.mrb[0].mxu0
      %v832 = vadd.f32 %v767, %v831
      %v833 = vpop.f32.mrb[0].mxu0
      %v834 = vpop.f32.mrb[0].mxu0
      %v835 = vadd.f32 %v770, %v834
      %v836 = vpop.f32.mrb[0].mxu0
      %837 = vmatprep.mubr.bf16.mxu0 0
      %838 = vmatmul.mubr.bf16.gmra.mrb[0].mxu0 %v654
      %v839 = vpop.f32.mrb[0].mxu0
      %v840 = vadd.f32 %v775, %v839
      %v841 = vpop.f32.mrb[0].mxu0
      %v842 = vpop.f32.mrb[0].mxu0
      %v843 = vadd.f32 %v778, %v842
      %v844 = vpop.f32.mrb[0].mxu0
      %845 = vmatprep.mubr.bf16.mxu0 0
      %846 = vmatmul.mubr.bf16.gmra.mrb[0].mxu0 %v657
      %v847 = vpop.f32.mrb[0].mxu0
      %v848 = vadd.f32 %v783, %v847
      %v849 = vpop.f32.mrb[0].mxu0
      %v850 = vpop.f32.mrb[0].mxu0
      %v851 = vadd.f32 %v786, %v850
      %v852 = vpop.f32.mrb[0].mxu0
      %853 = vdwg.mxu0
      %v854 = vld [vmem:[%s218] sm:$0xf]
      %v855 = vld [vmem:[%s218 + $0x4] sm:$0xf]
      %v856 = vld [vmem:[%s218 + $0x8] sm:$0xf]
      %v857 = vld [vmem:[%s218 + $0xc] sm:$0xf]
      %v858 = vld [vmem:[%s218 + $0x10] sm:$0xf]
      %v859 = vld [vmem:[%s218 + $0x14] sm:$0xf]
      %v860 = vld [vmem:[%s218 + $0x18] sm:$0xf]
      %v861 = vld [vmem:[%s218 + $0x1c] sm:$0xf]
      %v862 = vunpack.c.l.bf16 %v854
      %v863 = vunpack.c.l.bf16 %v855
      %v864 = vunpack.c.l.bf16 %v856
      %v865 = vunpack.c.l.bf16 %v857
      %v866 = vunpack.c.l.bf16 %v858
      %v867 = vunpack.c.l.bf16 %v859
      %v868 = vunpack.c.l.bf16 %v860
      %v869 = vunpack.c.l.bf16 %v861
      %v870 = vadd.f32 %v824, %v862
      %v871 = vadd.f32 %v827, %v863
      %v872 = vadd.f32 %v832, %v864
      %v873 = vadd.f32 %v835, %v865
      %v874 = vadd.f32 %v840, %v866
      %v875 = vadd.f32 %v843, %v867
      %v876 = vadd.f32 %v848, %v868
      %v877 = vadd.f32 %v851, %v869
      %v878 = vmax.f32 %v870, 0.0
      %v879 = vmax.f32 %v871, 0.0
      %v880 = vmax.f32 %v872, 0.0
      %v881 = vmax.f32 %v873, 0.0
      %v882 = vmax.f32 %v874, 0.0
      %v883 = vmax.f32 %v875, 0.0
      %v884 = vmax.f32 %v876, 0.0
      %v885 = vmax.f32 %v877, 0.0
      %v886 = vpack.c.bf16 %v879, %v878
      %v887 = vpack.c.bf16 %v881, %v880
      %v888 = vpack.c.bf16 %v883, %v882
      %v889 = vpack.c.bf16 %v885, %v884
      %v894 = vunpack.c.l.b16 %v886
      %v895 = vunpack.c.h.b16 %v886
      %v896 = vunpack.c.l.b16 %v887
      %v897 = vunpack.c.h.b16 %v887
      %v898 = vunpack.c.l.b16 %v888
      %v899 = vunpack.c.h.b16 %v888
      %v900 = vunpack.c.l.b16 %v889
      %v901 = vunpack.c.h.b16 %v889
      %v902 = vpack.c.b16 %v894, %v894
      %v903 = vpack.c.b16 %v895, %v895
      %v904 = vpack.c.b16 %v896, %v896
      %v905 = vpack.c.b16 %v897, %v897
      %v906 = vpack.c.b16 %v898, %v898
      %v907 = vpack.c.b16 %v899, %v899
      %v908 = vpack.c.b16 %v900, %v900
      %v909 = vpack.c.b16 %v901, %v901
      %vm918 = vcmask 519168
      %919 = vst.msk [vmem:[%s224] sm:$0xf] %vm918, %v902
      %920 = vst.msk [vmem:[%s224 + $0x4] sm:$0xf] %vm918, %v903
      %921 = vst.msk [vmem:[%s224 + $0x8] sm:$0xf] %vm918, %v904
      %922 = vst.msk [vmem:[%s224 + $0xc] sm:$0xf] %vm918, %v905
      %923 = vst.msk [vmem:[%s224 + $0x10] sm:$0xf] %vm918, %v906
      %924 = vst.msk [vmem:[%s224 + $0x14] sm:$0xf] %vm918, %v907
      %925 = vst.msk [vmem:[%s224 + $0x18] sm:$0xf] %vm918, %v908
      %926 = vst.msk [vmem:[%s224 + $0x1c] sm:$0xf] %vm918, %v909
      %s927 = smul.u32 8, %s15
      %p928 = scmp.lt.s32.totalorder %s927, 15
      %s929 = scalar_select %p928, %s927, 15
      %s930 = smul.addr %s929, 4
      %s931 = scalar_lea.vmem %s4, %s930
      // Predicated region
      $region37: #{forward.18} parent=35 // pred_check
        %p932 = pneg %p127
      $region38: #{forward.18} parent=35 // pred_check_branch
        %934 = sbr.rel (%p932) target = $region40
      $region39: #{forward.18} parent=35 // pred_region
        %s935 = smul.u32 8, %s15
      $region40: #{forward.18} parent=35 // pred_fallthru
        _
    $region36: #{forward.18} parent=5 // pred_fallthru
      _
    %p936 = scmp.le.s32.totalorder 2, %s10
    // Predicated region
    $region41: #{forward.18} parent=5 // pred_check
      %p937 = pneg %p936
    $region42: #{forward.18} parent=5 // pred_check_branch
      %939 = sbr.rel (%p937) target = $region44
    $region43: #{forward.18} parent=5 // pred_region
      %s940 = ssub.s32 %s10, 2
      // Predicated region
      $region45: #{forward.18} parent=43 // pred_check
        %p941 = pneg %p133
      $region46: #{forward.18} parent=43 // pred_check_branch
        %943 = sbr.rel (%p941) target = $region48
      $region47: #{forward.18} parent=43 // pred_region
        %s944 = smul.u32 8, %s16
        %p945 = scmp.lt.s32.totalorder %s944, 15
        %s946 = scalar_select %p945, %s944, 15
        %s947 = smul.addr %s946, 4
        %s948 = scalar_lea.vmem %s4, %s947
      $region48: #{forward.18} parent=43 // pred_fallthru
        _
    $region44: #{forward.18} parent=5 // pred_fallthru
      _
  $region6: #{forward.18} parent=0 // loop_footer
    %s14 = sadd.s32 1, %s10
  $region7: #{forward.18} parent=0 // loop_footer_branch
    %9 = sbr.rel target = $region3
  $region8: #{forward.18} parent=0 // loop_exit
    _

// kernel: forward.19
$region0: #{forward.19}
  #allocation0 [shape = 'u32[]', space=smem, size = 0x4, offset = 0x4, fixed_abs, tag = 'smem constant byte address 0x4 - core index']
  #allocation1 [shape = 'u32[144,128]{1,0:T(1,128)}', space=vmem, size = 0x12000, scoped, tag = 'internal scratch']
  %s0 = inlined_call_operand.vmem [shape: bf16[2,64,64], index: 0, kind: input, shape index: {}]
  %s1 = inlined_call_operand.vmem [shape: bf16[64,128], index: 1, kind: input, shape index: {}]
  %s2 = inlined_call_operand.vmem [shape: f32[1,128], index: 2, kind: input, shape index: {}]
  %s3 = inlined_call_operand.hbm [shape: f32[2,128], index: 3, kind: output, shape index: {}]
  %s4 = sld [smem:[#allocation0]]
  $region22: #{forward.19} parent=0
    _
  %s6 = ssub.s32 1, %s4
  %s7 = scalar_select 0, %s6, %s4
  $region1: #{forward.19} parent=0
    #allocation2 [shape = 'u8[1024]{0}', space=vmem, size = 0x400, scoped, tag = 'output window, operand 0, single buffered']
    #allocation3 [shape = 's32[1]{0}', space=sflag, size = 0x4, scoped, tag = 'scoped memory for forward.19']
    %8 = vsyncpa [#allocation3], 0
    // Predicated region
    $region2: #{forward.19} parent=1 // pred_check
      _
    $region3: #{forward.19} parent=1 // pred_check_branch
      %10 = sbr.rel (0) target = $region5
    $region4: #{forward.19} parent=1 // pred_region
      _
    $region5: #{forward.19} parent=1 // pred_fallthru
      _
    // Predicated region
    $region6: #{forward.19} parent=1 // pred_check
      _
    $region7: #{forward.19} parent=1 // pred_check_branch
      %12 = sbr.rel (0) target = $region9
    $region8: #{forward.19} parent=1 // pred_region
      _
    $region9: #{forward.19} parent=1 // pred_fallthru
      _
    // Predicated region
    $region10: #{forward.19} parent=1 // pred_check
      _
    $region11: #{forward.19} parent=1 // pred_check_branch
      %14 = sbr.rel (0) target = $region13
    $region12: #{forward.19} parent=1 // pred_region
      _
    $region13: #{forward.19} parent=1 // pred_fallthru
      _
    %v16 = vld [vmem:[%s0] sm:$0xf]
    %v17 = vld [vmem:[%s0 + $0x4] sm:$0xf]
    %v18 = vld [vmem:[%s0 + $0x8] sm:$0xf]
    %v19 = vld [vmem:[%s0 + $0xc] sm:$0xf]
    %v20 = vld [vmem:[%s0 + $0x10] sm:$0xf]
    %v21 = vld [vmem:[%s0 + $0x14] sm:$0xf]
    %v22 = vld [vmem:[%s0 + $0x18] sm:$0xf]
    %v23 = vld [vmem:[%s0 + $0x1c] sm:$0xf]
    %v24 = vld [vmem:[%s0 + $0x20] sm:$0xf]
    %v25 = vld [vmem:[%s0 + $0x24] sm:$0xf]
    %v26 = vld [vmem:[%s0 + $0x28] sm:$0xf]
    %v27 = vld [vmem:[%s0 + $0x2c] sm:$0xf]
    %v28 = vld [vmem:[%s0 + $0x30] sm:$0xf]
    %v29 = vld [vmem:[%s0 + $0x34] sm:$0xf]
    %v30 = vld [vmem:[%s0 + $0x38] sm:$0xf]
    %v31 = vld [vmem:[%s0 + $0x3c] sm:$0xf]
    %v32 = vunpack.c.l.bf16 %v16
    %v33 = vunpack.c.l.bf16 %v17
    %v34 = vunpack.c.l.bf16 %v18
    %v35 = vunpack.c.l.bf16 %v19
    %v36 = vunpack.c.l.bf16 %v20
    %v37 = vunpack.c.l.bf16 %v21
    %v38 = vunpack.c.l.bf16 %v22
    %v39 = vunpack.c.l.bf16 %v23
    %v40 = vunpack.c.l.bf16 %v24
    %v41 = vunpack.c.l.bf16 %v25
    %v42 = vunpack.c.l.bf16 %v26
    %v43 = vunpack.c.l.bf16 %v27
    %v44 = vunpack.c.l.bf16 %v28
    %v45 = vunpack.c.l.bf16 %v29
    %v46 = vunpack.c.l.bf16 %v30
    %v47 = vunpack.c.l.bf16 %v31
    %vm48 = vcmask 523264
    %v49 = vsel %vm48, %v32, 0.0
    %v50 = vsel %vm48, %v33, 0.0
    %v51 = vadd.f32 %v49, %v50
    %v52 = vsel %vm48, %v34, 0.0
    %v53 = vadd.f32 %v51, %v52
    %v54 = vsel %vm48, %v35, 0.0
    %v55 = vadd.f32 %v53, %v54
    %v56 = vsel %vm48, %v36, 0.0
    %v57 = vadd.f32 %v55, %v56
    %v58 = vsel %vm48, %v37, 0.0
    %v59 = vadd.f32 %v57, %v58
    %v60 = vsel %vm48, %v38, 0.0
    %v61 = vadd.f32 %v59, %v60
    %v62 = vsel %vm48, %v39, 0.0
    %v63 = vadd.f32 %v61, %v62
    %v64 = vrot.slane %v63, 4
    %v65 = vadd.f32 %v63, %v64
    %v66 = vrot.slane %v65, 2
    %v67 = vadd.f32 %v65, %v66
    %v68 = vrot.slane %v67, 1
    %v69 = vadd.f32 %v67, %v68
    %v70 = vsel %vm48, %v40, 0.0
    %v71 = vsel %vm48, %v41, 0.0
    %v72 = vadd.f32 %v70, %v71
    %v73 = vsel %vm48, %v42, 0.0
    %v74 = vadd.f32 %v72, %v73
    %v75 = vsel %vm48, %v43, 0.0
    %v76 = vadd.f32 %v74, %v75
    %v77 = vsel %vm48, %v44, 0.0
    %v78 = vadd.f32 %v76, %v77
    %v79 = vsel %vm48, %v45, 0.0
    %v80 = vadd.f32 %v78, %v79
    %v81 = vsel %vm48, %v46, 0.0
    %v82 = vadd.f32 %v80, %v81
    %v83 = vsel %vm48, %v47, 0.0
    %v84 = vadd.f32 %v82, %v83
    %v85 = vrot.slane %v84, 4
    %v86 = vadd.f32 %v84, %v85
    %v87 = vrot.slane %v86, 2
    %v88 = vadd.f32 %v86, %v87
    %v89 = vrot.slane %v88, 1
    %v90 = vadd.f32 %v88, %v89
    %v91 = vrcp.pop 64.0
    %v92 = vmul.f32 %v69, %v91
    %v93 = vmul.f32 %v90, %v91
    %v94 = vpack.c.bf16 %v92, %v92
    %v95 = vpack.c.bf16 %v93, %v93
    %v96 = vld [vmem:[%s1] sm:$0xf]
    %v97 = vld [vmem:[%s1 + $0x4] sm:$0xf]
    %v98 = vld [vmem:[%s1 + $0x8] sm:$0xf]
    %v99 = vld [vmem:[%s1 + $0xc] sm:$0xf]
    %v100 = vld [vmem:[%s1 + $0x10] sm:$0xf]
    %v101 = vld [vmem:[%s1 + $0x14] sm:$0xf]
    %v102 = vld [vmem:[%s1 + $0x18] sm:$0xf]
    %v103 = vld [vmem:[%s1 + $0x1c] sm:$0xf]
    %v104 = vld [vmem:[%s2] sm:$0x1]
    %v106 = vlaneseq
    %v107 = vshrl.u32 %v106, 7
    %v108 = vsub.s32 0, %v107
    %v109 = vrot.slane %v104, %v108
    %v113 = vunpack.c.l.b16 %v94
    %v114 = vunpack.c.l.b16 %v95
    %vm115 = vcmask 1041409
    %v116 = vsel %vm115, %v114, %v113
    %v117 = vpack.c.b16 %v116, %v116
    %v126 = vunpack.c.l.b16 %v96
    %v127 = vunpack.c.l.b16 %v97
    %v128 = vunpack.c.l.b16 %v98
    %v129 = vunpack.c.l.b16 %v99
    %v130 = vunpack.c.l.b16 %v100
    %v131 = vunpack.c.l.b16 %v101
    %v132 = vunpack.c.l.b16 %v102
    %v133 = vunpack.c.l.b16 %v103
    %v134 = vpack.c.b16 %v127, %v126
    %v135 = vpack.c.b16 %v129, %v128
    %v136 = vpack.c.b16 %v131, %v130
    %v137 = vpack.c.b16 %v133, %v132
    %v143 = vsel %vm48, %v117, 0
    %145 = vmatprep.subr.bf16.mxu0 0
    %146 = vmatpush1.bf16.msra.mxu0 %v134
    %147 = vmatprep.subr.bf16.mxu0 0
    %148 = vmatpush1.bf16.msra.mxu0 %v135
    %149 = vmatprep.subr.bf16.mxu0 0
    %150 = vmatpush1.bf16.msra.mxu0 %v136
    %151 = vmatprep.subr.bf16.mxu0 0
    %152 = vmatpush1.bf16.msra.mxu0 %v137
    %153 = vmatprep.subr.bf16.mxu0 0
    %154 = vmatpush1.bf16.msra.mxu0 0
    %155 = vmatprep.subr.bf16.mxu0 0
    %156 = vmatpush1.bf16.msra.mxu0 0
    %157 = vmatprep.subr.bf16.mxu0 0
    %158 = vmatpush1.bf16.msra.mxu0 0
    %159 = vmatprep.subr.bf16.mxu0 0
    %160 = vmatpush1.bf16.msra.mxu0 0
    %161 = vmatprep.subr.bf16.mxu0 0
    %162 = vmatpush1.bf16.msra.mxu0 0
    %163 = vmatprep.subr.bf16.mxu0 0
    %164 = vmatpush1.bf16.msra.mxu0 0
    %165 = vmatprep.subr.bf16.mxu0 0
    %166 = vmatpush1.bf16.msra.mxu0 0
    %167 = vmatprep.subr.bf16.mxu0 0
    %168 = vmatpush1.bf16.msra.mxu0 0
    %169 = vmatprep.subr.bf16.mxu0 0
    %170 = vmatpush1.bf16.msra.mxu0 0
    %171 = vmatprep.subr.bf16.mxu0 0
    %172 = vmatpush1.bf16.msra.mxu0 0
    %173 = vmatprep.subr.bf16.mxu0 0
    %174 = vmatpush1.bf16.msra.mxu0 0
    %175 = vmatprep.subr.bf16.mxu0 0
    %176 = vmatpush1.bf16.msra.mxu0 0
    %177 = vmatprep.mubr.bf16.mxu0 0
    %178 = vmatmul.mubr.bf16.gmra.mrb[0].mxu0 %v143
    %v179 = vpop.f32.mrb[0].mxu0
    %v180 = vadd.f32 %v109, %v179
    %v181 = vpop.f32.mrb[0].mxu0
    %v182 = vpop.f32.mrb[0].mxu0
    %v183 = vpop.f32.mrb[0].mxu0
    %184 = vdwg.mxu0
    %185 = vst [vmem:[#allocation2] sm:$0x3] %v180
    // Predicated region
    $region14: #{forward.19} parent=1 // pred_check
      _
    $region15: #{forward.19} parent=1 // pred_check_branch
      %187 = sbr.rel (0) target = $region17
    $region16: #{forward.19} parent=1 // pred_region
      %s189 = ssub.s32 32, 32
      %190 = vsyncadd [#allocation3], %s189
      %s192 = sshll.u32 [#allocation2], 4
      %s193 = int_to_ptr.vmem [resolvable:$true] %s192
      %195 = dma.vmem_to_hbm [thread:$0]  %s193, 32, %s3, [#allocation3]
    $region17: #{forward.19} parent=1 // pred_fallthru
      _
    // Predicated region
    $region18: #{forward.19} parent=1 // pred_check
      _
    $region19: #{forward.19} parent=1 // pred_check_branch
      %197 = sbr.rel (0) target = $region21
    $region20: #{forward.19} parent=1 // pred_region
      %198 = dma.done [#allocation3], 32
    $region21: #{forward.19} parent=1 // pred_fallthru
      _
    %199 = vsyncpa [#allocation3], 1

</llo_original>
